<compile_context>
chip_gen: v7x
topology: tpu7x:2x2x1
jax: 0.10.0
libtpu: 0.0.40
codegen_flags: <defaults>
</compile_context>

<pallas_src>
import jax
import jax.numpy as jnp
from jax.experimental import pallas as pl
from jax.experimental.pallas import tpu as pltpu

# ---------------- model geometry (28x28x1 input implied by Linear(20*20*16)) --
H = W = 28
KS = 5
OH1, OW1 = H - KS + 1, W - KS + 1          # 24, 24
OH2, OW2 = OH1 - KS + 1, OW1 - KS + 1      # 20, 20
C1, C2, NCLS = 32, 16, 10
NTAP = KS * KS                             # 25

# Flattened-spatial lane lengths for the shift-and-slice im2col.  All feature
# maps stay on the original 28-wide row grid (index p = row*28 + col).
L2 = (OH2 - 1) * W + OW2                   # 552: covers every valid conv2 output
L1 = L2 + (KS - 1) * W + (KS - 1)          # 668: conv2 reads h1[p + s], s <= 116
assert L1 + (KS - 1) * W + (KS - 1) == H * W   # conv1 reads x[p + s] -> exactly 784

SHIFTS = [kh * W + kw for kh in range(KS) for kw in range(KS)]   # tap offsets


# ----------------------------------------------------------------------------
# Fused kernel: conv1+BN+ReLU -> conv2+BN+ReLU -> (flatten) linear -> softmax,
# one image per grid step.
# ----------------------------------------------------------------------------
def cnn_fused_kernel(x_ref, w1_ref, s1_ref, b1_ref, w2_ref, s2_ref, b2_ref,
                     wl_ref, bl_ref, o_ref):
    x = x_ref[0]                                               # (1, 784)

    # conv1: single K=25 contraction, spatial on lanes.
    p1 = jnp.concatenate([x[:, s:s + L1] for s in SHIFTS], axis=0)       # (25, 668)
    h1 = jnp.dot(w1_ref[...], p1, preferred_element_type=jnp.float32)    # (32, 668)
    h1 = jnp.maximum(h1 * s1_ref[...] + b1_ref[...], 0.0)

    # conv2: single K=25*32=800 contraction.
    p2 = jnp.concatenate([h1[:, s:s + L2] for s in SHIFTS], axis=0)      # (800, 552)
    h2 = jnp.dot(w2_ref[...], p2, preferred_element_type=jnp.float32)    # (16, 552)
    h2 = jnp.maximum(h2 * s2_ref[...] + b2_ref[...], 0.0)

    # linear + softmax: torch-flatten order / valid-lane mask folded into wl_ref.
    part = jnp.einsum("cqp,cnp->cqn", h2[:, None, :], wl_ref[...],
                      preferred_element_type=jnp.float32)                # (16, 1, 10)
    logits = jnp.sum(part, axis=0) + bl_ref[...]                         # (1, 10)
    m = jnp.max(logits, axis=-1, keepdims=True)
    e = jnp.exp(logits - m)
    o_ref[0] = (e / jnp.sum(e, axis=-1, keepdims=True)).astype(o_ref.dtype)


def cnn_forward(x_nchw, kp):
    """x_nchw: (B, 1, 28, 28) PyTorch-layout input; kp: packed kernel params."""
    B = x_nchw.shape[0]
    x = x_nchw.astype(jnp.float32).reshape(B, 1, H * W)        # flatten spatial (free)
    out = pl.pallas_call(
        cnn_fused_kernel,
        out_shape=jax.ShapeDtypeStruct((B, 1, NCLS), jnp.float32),
        grid=(B,),
        in_specs=[
            pl.BlockSpec((1, 1, H * W), lambda b: (b, 0, 0)),          # image
            pl.BlockSpec((C1, NTAP), lambda b: (0, 0)),                # w1 (32,25)
            pl.BlockSpec((C1, 1), lambda b: (0, 0)),                   # bn1 scale
            pl.BlockSpec((C1, 1), lambda b: (0, 0)),                   # bn1 bias
            pl.BlockSpec((C2, NTAP * C1), lambda b: (0, 0)),           # w2 (16,800)
            pl.BlockSpec((C2, 1), lambda b: (0, 0)),                   # bn2 scale
            pl.BlockSpec((C2, 1), lambda b: (0, 0)),                   # bn2 bias
            pl.BlockSpec((C2, NCLS, L2), lambda b: (0, 0, 0)),         # wl (16,10,552)
            pl.BlockSpec((1, NCLS), lambda b: (0, 0)),                 # linear bias
        ],
        out_specs=pl.BlockSpec((1, 1, NCLS), lambda b: (b, 0, 0)),
        compiler_params=pltpu.CompilerParams(
            dimension_semantics=("parallel",)),
    )(x, kp["w1k"], kp["s1"], kp["b1"], kp["w2k"], kp["s2"], kp["b2"],
      kp["wl3"], kp["bl"])
    return out.reshape(B, NCLS)


# ----------------------------------------------------------------------------
# Parameter construction (PyTorch-equivalent) and one-time packing for the
# kernel layout (done once, outside the forward pass).
# ----------------------------------------------------------------------------
def make_params(key):
    ks = jax.random.split(key, 10)
    eps = 1e-5

    def fold_bn(gamma, beta, conv_bias):
        # Fresh BatchNorm2d, eval semantics: running_mean=0, running_var=1.
        scale = gamma / jnp.sqrt(1.0 + eps)
        bias = scale * conv_bias + beta
        return scale, bias

    w1 = jax.random.normal(ks[0], (KS, KS, 1, C1), jnp.float32) * 0.1       # HWIO
    cb1 = 0.1 * jax.random.normal(ks[1], (C1,), jnp.float32)
    g1 = 1.0 + 0.1 * jax.random.normal(ks[2], (C1,), jnp.float32)
    bt1 = 0.1 * jax.random.normal(ks[3], (C1,), jnp.float32)
    s1, b1 = fold_bn(g1, bt1, cb1)

    w2 = jax.random.normal(ks[4], (KS, KS, C1, C2), jnp.float32) * 0.05     # HWIO
    cb2 = 0.1 * jax.random.normal(ks[5], (C2,), jnp.float32)
    g2 = 1.0 + 0.1 * jax.random.normal(ks[6], (C2,), jnp.float32)
    bt2 = 0.1 * jax.random.normal(ks[7], (C2,), jnp.float32)
    s2, b2 = fold_bn(g2, bt2, cb2)

    wl = jax.random.normal(ks[8], (OH2 * OW2 * C2, NCLS), jnp.float32) * 0.01
    bl = 0.1 * jax.random.normal(ks[9], (NCLS,), jnp.float32)
    return dict(w1=w1, s1=s1, b1=b1, w2=w2, s2=s2, b2=b2, wl=wl, bl=bl)


def pack_params(p):
    # Conv weights -> (Cout, taps*Cin) matching the im2col row order (kh, kw, cin).
    w1k = jnp.transpose(p["w1"], (3, 0, 1, 2)).reshape(C1, NTAP)
    w2k = jnp.transpose(p["w2"], (3, 0, 1, 2)).reshape(C2, NTAP * C1)
    # Linear weight: fold torch flatten order (C,H,W), the transpose, and the
    # 28-wide lane grid (valid positions p = oh*28 + ow) into a zero-padded,
    # lane-dense (16, 10, 552) tensor.
    wl_chw = p["wl"].reshape(C2, OH2, OW2, NCLS)                  # [c, oh, ow, n]
    wl_grid = jnp.zeros((C2, NCLS, OH2, W), jnp.float32)
    wl_grid = wl_grid.at[:, :, :, :OW2].set(jnp.transpose(wl_chw, (0, 3, 1, 2)))
    wl3 = wl_grid.reshape(C2, NCLS, OH2 * W)[:, :, :L2]           # (16, 10, 552)
    return dict(
        w1k=w1k, s1=p["s1"].reshape(C1, 1), b1=p["b1"].reshape(C1, 1),
        w2k=w2k, s2=p["s2"].reshape(C2, 1), b2=p["b2"].reshape(C2, 1),
        wl3=wl3, bl=p["bl"].reshape(1, NCLS))


# ----------------------------------------------------------------------------
# Pure-JAX reference (PyTorch-equivalent semantics) for correctness checking.
# ----------------------------------------------------------------------------
def reference_forward(x_nchw, p):
    x = jnp.transpose(x_nchw, (0, 2, 3, 1)).astype(jnp.float32)
    dn = ("NHWC", "HWIO", "NHWC")
    x = jax.lax.conv_general_dilated(x, p["w1"], (1, 1), "VALID",
                                     dimension_numbers=dn)
    x = jnp.maximum(x * p["s1"] + p["b1"], 0.0)
    x = jax.lax.conv_general_dilated(x, p["w2"], (1, 1), "VALID",
                                     dimension_numbers=dn)
    x = jnp.maximum(x * p["s2"] + p["b2"], 0.0)
    B = x.shape[0]
    x = jnp.transpose(x, (0, 3, 1, 2)).reshape(B, -1)     # torch.flatten(x, 1) on NCHW
    logits = x @ p["wl"] + p["bl"]
    return jax.nn.softmax(logits, axis=1)


if __name__ == "__main__":
    key = jax.random.PRNGKey(0)
    k_x, k_p = jax.random.split(key)

    # Input implied by the module: Linear(20*20*16) after two VALID 5x5 convs
    # => 28x28 single-channel images. Small batch of 2.
    x = jax.random.normal(k_x, (2, 1, H, W), jnp.float32)
    params = make_params(k_p)
    kparams = pack_params(params)     # one-time kernel-layout packing

    out = jax.block_until_ready(cnn_forward(x, kparams))
    ref = jax.block_until_ready(reference_forward(x, params))

    assert out.shape == (2, NCLS)
    assert jnp.allclose(jnp.sum(out, axis=1), 1.0, atol=1e-5)
    assert jnp.allclose(out, ref, atol=1e-4, rtol=1e-4), \
        f"max abs err {float(jnp.max(jnp.abs(out - ref)))}"

    print("KERNEL_OK")
</pallas_src>

<mosaic_0001>
module attributes {stable_mosaic.version = 11 : i64} {
  func.func @cnn_fused_kernel(%arg0: i32, %arg1: memref<1x1x784xf32, #tpu.memory_space<vmem>>, %arg2: memref<32x25xf32, #tpu.memory_space<vmem>>, %arg3: memref<32x1xf32, #tpu.memory_space<vmem>>, %arg4: memref<32x1xf32, #tpu.memory_space<vmem>>, %arg5: memref<16x800xf32, #tpu.memory_space<vmem>>, %arg6: memref<16x1xf32, #tpu.memory_space<vmem>>, %arg7: memref<16x1xf32, #tpu.memory_space<vmem>>, %arg8: memref<16x10x552xf32, #tpu.memory_space<vmem>>, %arg9: memref<1x10xf32, #tpu.memory_space<vmem>>, %arg10: memref<1x1x10xf32, #tpu.memory_space<vmem>>) attributes {dimension_semantics = [#tpu.dimension_semantics<parallel>], iteration_bounds = array<i64: 2>, scalar_prefetch = 0 : i64, scratch_operands = 0 : i64, tpu.core_type = #tpu.core_type<tc>, window_params = [{transform_indices = @transform_0, window_bounds = array<i64: 1, 1, 784>}, {pipeline_mode = #tpu.pipeline_mode<synchronous>, transform_indices = @transform_1, window_bounds = array<i64: 32, 25>}, {pipeline_mode = #tpu.pipeline_mode<synchronous>, transform_indices = @transform_2, window_bounds = array<i64: 32, 1>}, {pipeline_mode = #tpu.pipeline_mode<synchronous>, transform_indices = @transform_3, window_bounds = array<i64: 32, 1>}, {pipeline_mode = #tpu.pipeline_mode<synchronous>, transform_indices = @transform_4, window_bounds = array<i64: 16, 800>}, {pipeline_mode = #tpu.pipeline_mode<synchronous>, transform_indices = @transform_5, window_bounds = array<i64: 16, 1>}, {pipeline_mode = #tpu.pipeline_mode<synchronous>, transform_indices = @transform_6, window_bounds = array<i64: 16, 1>}, {pipeline_mode = #tpu.pipeline_mode<synchronous>, transform_indices = @transform_7, window_bounds = array<i64: 16, 10, 552>}, {pipeline_mode = #tpu.pipeline_mode<synchronous>, transform_indices = @transform_8, window_bounds = array<i64: 1, 10>}, {transform_indices = @transform_9, window_bounds = array<i64: 1, 1, 10>}]} {
    %c0 = arith.constant 0 : index
    %c0_0 = arith.constant 0 : index
    %c0_1 = arith.constant 0 : index
    %0 = vector.load %arg1[%c0, %c0_0, %c0_1] : memref<1x1x784xf32, #tpu.memory_space<vmem>>, vector<1x1x784xf32>
    %1 = vector.shape_cast %0 : vector<1x1x784xf32> to vector<1x784xf32>
    %2 = vector.extract_strided_slice %1 {offsets = [0, 0], sizes = [1, 668], strides = [1, 1]} : vector<1x784xf32> to vector<1x668xf32>
    %3 = vector.extract_strided_slice %1 {offsets = [0, 1], sizes = [1, 668], strides = [1, 1]} : vector<1x784xf32> to vector<1x668xf32>
    %4 = vector.extract_strided_slice %1 {offsets = [0, 2], sizes = [1, 668], strides = [1, 1]} : vector<1x784xf32> to vector<1x668xf32>
    %5 = vector.extract_strided_slice %1 {offsets = [0, 3], sizes = [1, 668], strides = [1, 1]} : vector<1x784xf32> to vector<1x668xf32>
    %6 = vector.extract_strided_slice %1 {offsets = [0, 4], sizes = [1, 668], strides = [1, 1]} : vector<1x784xf32> to vector<1x668xf32>
    %7 = vector.extract_strided_slice %1 {offsets = [0, 28], sizes = [1, 668], strides = [1, 1]} : vector<1x784xf32> to vector<1x668xf32>
    %8 = vector.extract_strided_slice %1 {offsets = [0, 29], sizes = [1, 668], strides = [1, 1]} : vector<1x784xf32> to vector<1x668xf32>
    %9 = vector.extract_strided_slice %1 {offsets = [0, 30], sizes = [1, 668], strides = [1, 1]} : vector<1x784xf32> to vector<1x668xf32>
    %10 = vector.extract_strided_slice %1 {offsets = [0, 31], sizes = [1, 668], strides = [1, 1]} : vector<1x784xf32> to vector<1x668xf32>
    %11 = vector.extract_strided_slice %1 {offsets = [0, 32], sizes = [1, 668], strides = [1, 1]} : vector<1x784xf32> to vector<1x668xf32>
    %12 = vector.extract_strided_slice %1 {offsets = [0, 56], sizes = [1, 668], strides = [1, 1]} : vector<1x784xf32> to vector<1x668xf32>
    %13 = vector.extract_strided_slice %1 {offsets = [0, 57], sizes = [1, 668], strides = [1, 1]} : vector<1x784xf32> to vector<1x668xf32>
    %14 = vector.extract_strided_slice %1 {offsets = [0, 58], sizes = [1, 668], strides = [1, 1]} : vector<1x784xf32> to vector<1x668xf32>
    %15 = vector.extract_strided_slice %1 {offsets = [0, 59], sizes = [1, 668], strides = [1, 1]} : vector<1x784xf32> to vector<1x668xf32>
    %16 = vector.extract_strided_slice %1 {offsets = [0, 60], sizes = [1, 668], strides = [1, 1]} : vector<1x784xf32> to vector<1x668xf32>
    %17 = vector.extract_strided_slice %1 {offsets = [0, 84], sizes = [1, 668], strides = [1, 1]} : vector<1x784xf32> to vector<1x668xf32>
    %18 = vector.extract_strided_slice %1 {offsets = [0, 85], sizes = [1, 668], strides = [1, 1]} : vector<1x784xf32> to vector<1x668xf32>
    %19 = vector.extract_strided_slice %1 {offsets = [0, 86], sizes = [1, 668], strides = [1, 1]} : vector<1x784xf32> to vector<1x668xf32>
    %20 = vector.extract_strided_slice %1 {offsets = [0, 87], sizes = [1, 668], strides = [1, 1]} : vector<1x784xf32> to vector<1x668xf32>
    %21 = vector.extract_strided_slice %1 {offsets = [0, 88], sizes = [1, 668], strides = [1, 1]} : vector<1x784xf32> to vector<1x668xf32>
    %22 = vector.extract_strided_slice %1 {offsets = [0, 112], sizes = [1, 668], strides = [1, 1]} : vector<1x784xf32> to vector<1x668xf32>
    %23 = vector.extract_strided_slice %1 {offsets = [0, 113], sizes = [1, 668], strides = [1, 1]} : vector<1x784xf32> to vector<1x668xf32>
    %24 = vector.extract_strided_slice %1 {offsets = [0, 114], sizes = [1, 668], strides = [1, 1]} : vector<1x784xf32> to vector<1x668xf32>
    %25 = vector.extract_strided_slice %1 {offsets = [0, 115], sizes = [1, 668], strides = [1, 1]} : vector<1x784xf32> to vector<1x668xf32>
    %26 = vector.extract_strided_slice %1 {offsets = [0, 116], sizes = [1, 668], strides = [1, 1]} : vector<1x784xf32> to vector<1x668xf32>
    %27 = tpu.concatenate %2, %3, %4, %5, %6, %7, %8, %9, %10, %11, %12, %13, %14, %15, %16, %17 in 0 : vector<1x668xf32>, vector<1x668xf32>, vector<1x668xf32>, vector<1x668xf32>, vector<1x668xf32>, vector<1x668xf32>, vector<1x668xf32>, vector<1x668xf32>, vector<1x668xf32>, vector<1x668xf32>, vector<1x668xf32>, vector<1x668xf32>, vector<1x668xf32>, vector<1x668xf32>, vector<1x668xf32>, vector<1x668xf32> -> vector<16x668xf32>
    %28 = tpu.concatenate %18, %19, %20, %21, %22, %23, %24, %25, %26 in 0 : vector<1x668xf32>, vector<1x668xf32>, vector<1x668xf32>, vector<1x668xf32>, vector<1x668xf32>, vector<1x668xf32>, vector<1x668xf32>, vector<1x668xf32>, vector<1x668xf32> -> vector<9x668xf32>
    %29 = tpu.concatenate %27, %28 in 0 : vector<16x668xf32>, vector<9x668xf32> -> vector<25x668xf32>
    %c0_2 = arith.constant 0 : index
    %c0_3 = arith.constant 0 : index
    %30 = vector.load %arg2[%c0_2, %c0_3] : memref<32x25xf32, #tpu.memory_space<vmem>>, vector<32x25xf32>
    %cst = arith.constant dense<0.000000e+00> : vector<32x668xf32>
    %31 = tpu.matmul %30, %29, %cst {dimension_numbers = #tpu.dot_dimension_numbers<[1], [0], [0], [1], [0, 0, 1, 1], [], []>} : vector<32x25xf32>, vector<25x668xf32>, vector<32x668xf32> -> vector<32x668xf32>
    %c0_4 = arith.constant 0 : index
    %c0_5 = arith.constant 0 : index
    %32 = vector.load %arg3[%c0_4, %c0_5] : memref<32x1xf32, #tpu.memory_space<vmem>>, vector<32x1xf32>
    %33 = vector.broadcast %32 : vector<32x1xf32> to vector<32x668xf32>
    %34 = arith.mulf %31, %33 : vector<32x668xf32>
    %c0_6 = arith.constant 0 : index
    %c0_7 = arith.constant 0 : index
    %35 = vector.load %arg4[%c0_6, %c0_7] : memref<32x1xf32, #tpu.memory_space<vmem>>, vector<32x1xf32>
    %36 = vector.broadcast %35 : vector<32x1xf32> to vector<32x668xf32>
    %37 = arith.addf %34, %36 : vector<32x668xf32>
    %cst_8 = arith.constant 0.000000e+00 : f32
    %38 = vector.broadcast %cst_8 : f32 to vector<32x668xf32>
    %39 = arith.maximumf %37, %38 : vector<32x668xf32>
    %40 = vector.extract_strided_slice %39 {offsets = [0, 0], sizes = [32, 552], strides = [1, 1]} : vector<32x668xf32> to vector<32x552xf32>
    %41 = vector.extract_strided_slice %39 {offsets = [0, 1], sizes = [32, 552], strides = [1, 1]} : vector<32x668xf32> to vector<32x552xf32>
    %42 = vector.extract_strided_slice %39 {offsets = [0, 2], sizes = [32, 552], strides = [1, 1]} : vector<32x668xf32> to vector<32x552xf32>
    %43 = vector.extract_strided_slice %39 {offsets = [0, 3], sizes = [32, 552], strides = [1, 1]} : vector<32x668xf32> to vector<32x552xf32>
    %44 = vector.extract_strided_slice %39 {offsets = [0, 4], sizes = [32, 552], strides = [1, 1]} : vector<32x668xf32> to vector<32x552xf32>
    %45 = vector.extract_strided_slice %39 {offsets = [0, 28], sizes = [32, 552], strides = [1, 1]} : vector<32x668xf32> to vector<32x552xf32>
    %46 = vector.extract_strided_slice %39 {offsets = [0, 29], sizes = [32, 552], strides = [1, 1]} : vector<32x668xf32> to vector<32x552xf32>
    %47 = vector.extract_strided_slice %39 {offsets = [0, 30], sizes = [32, 552], strides = [1, 1]} : vector<32x668xf32> to vector<32x552xf32>
    %48 = vector.extract_strided_slice %39 {offsets = [0, 31], sizes = [32, 552], strides = [1, 1]} : vector<32x668xf32> to vector<32x552xf32>
    %49 = vector.extract_strided_slice %39 {offsets = [0, 32], sizes = [32, 552], strides = [1, 1]} : vector<32x668xf32> to vector<32x552xf32>
    %50 = vector.extract_strided_slice %39 {offsets = [0, 56], sizes = [32, 552], strides = [1, 1]} : vector<32x668xf32> to vector<32x552xf32>
    %51 = vector.extract_strided_slice %39 {offsets = [0, 57], sizes = [32, 552], strides = [1, 1]} : vector<32x668xf32> to vector<32x552xf32>
    %52 = vector.extract_strided_slice %39 {offsets = [0, 58], sizes = [32, 552], strides = [1, 1]} : vector<32x668xf32> to vector<32x552xf32>
    %53 = vector.extract_strided_slice %39 {offsets = [0, 59], sizes = [32, 552], strides = [1, 1]} : vector<32x668xf32> to vector<32x552xf32>
    %54 = vector.extract_strided_slice %39 {offsets = [0, 60], sizes = [32, 552], strides = [1, 1]} : vector<32x668xf32> to vector<32x552xf32>
    %55 = vector.extract_strided_slice %39 {offsets = [0, 84], sizes = [32, 552], strides = [1, 1]} : vector<32x668xf32> to vector<32x552xf32>
    %56 = vector.extract_strided_slice %39 {offsets = [0, 85], sizes = [32, 552], strides = [1, 1]} : vector<32x668xf32> to vector<32x552xf32>
    %57 = vector.extract_strided_slice %39 {offsets = [0, 86], sizes = [32, 552], strides = [1, 1]} : vector<32x668xf32> to vector<32x552xf32>
    %58 = vector.extract_strided_slice %39 {offsets = [0, 87], sizes = [32, 552], strides = [1, 1]} : vector<32x668xf32> to vector<32x552xf32>
    %59 = vector.extract_strided_slice %39 {offsets = [0, 88], sizes = [32, 552], strides = [1, 1]} : vector<32x668xf32> to vector<32x552xf32>
    %60 = vector.extract_strided_slice %39 {offsets = [0, 112], sizes = [32, 552], strides = [1, 1]} : vector<32x668xf32> to vector<32x552xf32>
    %61 = vector.extract_strided_slice %39 {offsets = [0, 113], sizes = [32, 552], strides = [1, 1]} : vector<32x668xf32> to vector<32x552xf32>
    %62 = vector.extract_strided_slice %39 {offsets = [0, 114], sizes = [32, 552], strides = [1, 1]} : vector<32x668xf32> to vector<32x552xf32>
    %63 = vector.extract_strided_slice %39 {offsets = [0, 115], sizes = [32, 552], strides = [1, 1]} : vector<32x668xf32> to vector<32x552xf32>
    %64 = vector.extract_strided_slice %39 {offsets = [0, 116], sizes = [32, 552], strides = [1, 1]} : vector<32x668xf32> to vector<32x552xf32>
    %65 = tpu.concatenate %40, %41, %42, %43, %44, %45, %46, %47, %48, %49, %50, %51, %52, %53, %54, %55 in 0 : vector<32x552xf32>, vector<32x552xf32>, vector<32x552xf32>, vector<32x552xf32>, vector<32x552xf32>, vector<32x552xf32>, vector<32x552xf32>, vector<32x552xf32>, vector<32x552xf32>, vector<32x552xf32>, vector<32x552xf32>, vector<32x552xf32>, vector<32x552xf32>, vector<32x552xf32>, vector<32x552xf32>, vector<32x552xf32> -> vector<512x552xf32>
    %66 = tpu.concatenate %56, %57, %58, %59, %60, %61, %62, %63, %64 in 0 : vector<32x552xf32>, vector<32x552xf32>, vector<32x552xf32>, vector<32x552xf32>, vector<32x552xf32>, vector<32x552xf32>, vector<32x552xf32>, vector<32x552xf32>, vector<32x552xf32> -> vector<288x552xf32>
    %67 = tpu.concatenate %65, %66 in 0 : vector<512x552xf32>, vector<288x552xf32> -> vector<800x552xf32>
    %c0_9 = arith.constant 0 : index
    %c0_10 = arith.constant 0 : index
    %68 = vector.load %arg5[%c0_9, %c0_10] : memref<16x800xf32, #tpu.memory_space<vmem>>, vector<16x800xf32>
    %cst_11 = arith.constant dense<0.000000e+00> : vector<16x552xf32>
    %69 = tpu.matmul %68, %67, %cst_11 {dimension_numbers = #tpu.dot_dimension_numbers<[1], [0], [0], [1], [0, 0, 1, 1], [], []>} : vector<16x800xf32>, vector<800x552xf32>, vector<16x552xf32> -> vector<16x552xf32>
    %c0_12 = arith.constant 0 : index
    %c0_13 = arith.constant 0 : index
    %70 = vector.load %arg6[%c0_12, %c0_13] : memref<16x1xf32, #tpu.memory_space<vmem>>, vector<16x1xf32>
    %71 = vector.broadcast %70 : vector<16x1xf32> to vector<16x552xf32>
    %72 = arith.mulf %69, %71 : vector<16x552xf32>
    %c0_14 = arith.constant 0 : index
    %c0_15 = arith.constant 0 : index
    %73 = vector.load %arg7[%c0_14, %c0_15] : memref<16x1xf32, #tpu.memory_space<vmem>>, vector<16x1xf32>
    %74 = vector.broadcast %73 : vector<16x1xf32> to vector<16x552xf32>
    %75 = arith.addf %72, %74 : vector<16x552xf32>
    %cst_16 = arith.constant 0.000000e+00 : f32
    %76 = vector.broadcast %cst_16 : f32 to vector<16x552xf32>
    %77 = arith.maximumf %75, %76 : vector<16x552xf32>
    %78 = vector.shape_cast %77 : vector<16x552xf32> to vector<16x1x552xf32>
    %c0_17 = arith.constant 0 : index
    %c0_18 = arith.constant 0 : index
    %c0_19 = arith.constant 0 : index
    %79 = vector.load %arg8[%c0_17, %c0_18, %c0_19] : memref<16x10x552xf32, #tpu.memory_space<vmem>>, vector<16x10x552xf32>
    "tpu.trace_start"() <{level = 10 : i32, message = "cqp,cnp->cqn"}> : () -> ()
    %cst_20 = arith.constant dense<0.000000e+00> : vector<16x1x10xf32>
    %80 = tpu.matmul %78, %79, %cst_20 {dimension_numbers = #tpu.dot_dimension_numbers<[2], [2], [1], [1], [0, 0, 0, 1, 1, 1], [0], [0]>} : vector<16x1x552xf32>, vector<16x10x552xf32>, vector<16x1x10xf32> -> vector<16x1x10xf32>
    "tpu.trace_stop"() : () -> ()
    %cst_21 = arith.constant dense<0.000000e+00> : vector<1x10xf32>
    %81 = vector.multi_reduction <add>, %80, %cst_21 [0] : vector<16x1x10xf32> to vector<1x10xf32>
    %c0_22 = arith.constant 0 : index
    %c0_23 = arith.constant 0 : index
    %82 = vector.load %arg9[%c0_22, %c0_23] : memref<1x10xf32, #tpu.memory_space<vmem>>, vector<1x10xf32>
    %83 = arith.addf %81, %82 : vector<1x10xf32>
    %cst_24 = arith.constant dense<0xFF800000> : vector<1xf32>
    %84 = vector.multi_reduction <maximumf>, %83, %cst_24 [1] : vector<1x10xf32> to vector<1xf32>
    %85 = vector.shape_cast %84 : vector<1xf32> to vector<1x1xf32>
    %86 = vector.broadcast %85 : vector<1x1xf32> to vector<1x10xf32>
    %87 = arith.subf %83, %86 : vector<1x10xf32>
    %88 = math.exp %87 : vector<1x10xf32>
    %cst_25 = arith.constant dense<0.000000e+00> : vector<1xf32>
    %89 = vector.multi_reduction <add>, %88, %cst_25 [1] : vector<1x10xf32> to vector<1xf32>
    %90 = vector.shape_cast %89 : vector<1xf32> to vector<1x1xf32>
    %91 = vector.broadcast %90 : vector<1x1xf32> to vector<1x10xf32>
    %92 = arith.divf %88, %91 : vector<1x10xf32>
    %c0_26 = arith.constant 0 : index
    %c0_27 = arith.constant 0 : index
    %c0_28 = arith.constant 0 : index
    %93 = vector.load %arg10[%c0_26, %c0_27, %c0_28] : memref<1x1x10xf32, #tpu.memory_space<vmem>>, vector<1x1x10xf32>
    %94 = vector.shape_cast %93 : vector<1x1x10xf32> to vector<1x10xf32>
    %95 = vector.shape_cast %92 : vector<1x10xf32> to vector<1x1x10xf32>
    tpu.vector_store %arg10[%c0_26, %c0_27, %c0_28], %95 {strides = array<i32>} : memref<1x1x10xf32, #tpu.memory_space<vmem>>, vector<1x1x10xf32>,
    return
  }
  func.func @transform_0(%arg0: i32) -> (i32, i32, i32) {
    %c0_i32 = arith.constant 0 : i32
    %c0_i32_0 = arith.constant 0 : i32
    %c0_i32_1 = arith.constant 0 : i32
    return %arg0, %c0_i32, %c0_i32_0 : i32, i32, i32
  }
  func.func @transform_1(%arg0: i32) -> (i32, i32) {
    %c0_i32 = arith.constant 0 : i32
    %c0_i32_0 = arith.constant 0 : i32
    %c0_i32_1 = arith.constant 0 : i32
    return %c0_i32, %c0_i32_0 : i32, i32
  }
  func.func @transform_2(%arg0: i32) -> (i32, i32) {
    %c0_i32 = arith.constant 0 : i32
    %c0_i32_0 = arith.constant 0 : i32
    %c0_i32_1 = arith.constant 0 : i32
    return %c0_i32, %c0_i32_0 : i32, i32
  }
  func.func @transform_3(%arg0: i32) -> (i32, i32) {
    %c0_i32 = arith.constant 0 : i32
    %c0_i32_0 = arith.constant 0 : i32
    %c0_i32_1 = arith.constant 0 : i32
    return %c0_i32, %c0_i32_0 : i32, i32
  }
  func.func @transform_4(%arg0: i32) -> (i32, i32) {
    %c0_i32 = arith.constant 0 : i32
    %c0_i32_0 = arith.constant 0 : i32
    %c0_i32_1 = arith.constant 0 : i32
    return %c0_i32, %c0_i32_0 : i32, i32
  }
  func.func @transform_5(%arg0: i32) -> (i32, i32) {
    %c0_i32 = arith.constant 0 : i32
    %c0_i32_0 = arith.constant 0 : i32
    %c0_i32_1 = arith.constant 0 : i32
    return %c0_i32, %c0_i32_0 : i32, i32
  }
  func.func @transform_6(%arg0: i32) -> (i32, i32) {
    %c0_i32 = arith.constant 0 : i32
    %c0_i32_0 = arith.constant 0 : i32
    %c0_i32_1 = arith.constant 0 : i32
    return %c0_i32, %c0_i32_0 : i32, i32
  }
  func.func @transform_7(%arg0: i32) -> (i32, i32, i32) {
    %c0_i32 = arith.constant 0 : i32
    %c0_i32_0 = arith.constant 0 : i32
    %c0_i32_1 = arith.constant 0 : i32
    %c0_i32_2 = arith.constant 0 : i32
    return %c0_i32, %c0_i32_0, %c0_i32_1 : i32, i32, i32
  }
  func.func @transform_8(%arg0: i32) -> (i32, i32) {
    %c0_i32 = arith.constant 0 : i32
    %c0_i32_0 = arith.constant 0 : i32
    %c0_i32_1 = arith.constant 0 : i32
    return %c0_i32, %c0_i32_0 : i32, i32
  }
  func.func @transform_9(%arg0: i32) -> (i32, i32, i32) {
    %c0_i32 = arith.constant 0 : i32
    %c0_i32_0 = arith.constant 0 : i32
    %c0_i32_1 = arith.constant 0 : i32
    return %arg0, %c0_i32, %c0_i32_0 : i32, i32, i32
  }
}

</mosaic_0001>

<llo_original>
// kernel: tpu_custom_call.1
$region0: #{tpu_custom_call.1}
  #allocation0 [shape = 'u32[]', space=smem, size = 0x4, offset = 0x4, fixed_abs, tag = 'smem constant byte address 0x4 - core index']
  #allocation1 [shape = 'u32[144,128]{1,0:T(1,128)}', space=vmem, size = 0x12000, scoped, tag = 'internal scratch']
  %s0 = inlined_call_operand.vmem [shape: f32[2,1,784], index: 0, kind: input, shape index: {}]
  %s1 = inlined_call_operand.vmem [shape: f32[32,25], index: 1, kind: input, shape index: {}]
  %s2 = inlined_call_operand.vmem [shape: f32[32,1], index: 2, kind: input, shape index: {}]
  %s3 = inlined_call_operand.vmem [shape: f32[32,1], index: 3, kind: input, shape index: {}]
  %s4 = inlined_call_operand.vmem [shape: f32[16,800], index: 4, kind: input, shape index: {}]
  %s5 = inlined_call_operand.vmem [shape: f32[16,1], index: 5, kind: input, shape index: {}]
  %s6 = inlined_call_operand.vmem [shape: f32[16,1], index: 6, kind: input, shape index: {}]
  %s7 = inlined_call_operand.vmem [shape: f32[16,10,552], index: 7, kind: input, shape index: {}]
  %s8 = inlined_call_operand.vmem [shape: f32[1,10], index: 8, kind: input, shape index: {}]
  %s9 = inlined_call_operand.hbm [shape: f32[2,1,10], index: 9, kind: output, shape index: {}]
  %s10 = sld [smem:[#allocation0]]
  $region69: #{tpu_custom_call.1} parent=0
    _
  %s12 = ssub.s32 1, %s10
  %s13 = scalar_select 0, %s12, %s10
  $region1: #{tpu_custom_call.1} parent=0
    #allocation2 [shape = 'u8[1024]{0}', space=vmem, size = 0x400, scoped, tag = 'output window, operand 0']
    #allocation3 [shape = 's32[2]{0}', space=sflag, size = 0x8, scoped, tag = 'scoped memory for tpu_custom_call.1']
    %14 = vsyncpa [#allocation3], 0
    %s15 = scalar_lea.sflag [#allocation3], 1
    %16 = vsyncpa %s15, 0
    loop: start=0, step=1, limit=4
    $region2: #{tpu_custom_call.1} parent=1 // loop_pre_header
      _
    $region3: #{tpu_custom_call.1} parent=1 // loop_header
      %s18 = sphi 0, %s22
      %p19 = scmp.ge.s32.totalorder %s18, 4
      %s28 = sphi 0, %s30
      %s31 = sphi 0, %s28
      %s32 = sphi 0, %s31
      %s48 = sphi 0, %s32
      %s52 = sphi 0, %s52
      %s54 = sphi 0, %s52
      %s55 = sphi 0, %s54
      %s69 = sphi 0, %s55
      %s73 = sphi 0, %s73
      %s75 = sphi 0, %s73
      %s76 = sphi 0, %s75
      %s90 = sphi 0, %s76
      %s94 = sphi 0, %s94
      %s96 = sphi 0, %s94
      %s97 = sphi 0, %s96
      %s111 = sphi 0, %s97
      %s115 = sphi 0, %s115
      %s117 = sphi 0, %s115
      %s118 = sphi 0, %s117
      %s132 = sphi 0, %s118
      %s136 = sphi 0, %s136
      %s138 = sphi 0, %s136
      %s139 = sphi 0, %s138
      %s153 = sphi 0, %s139
      %s157 = sphi 0, %s157
      %s159 = sphi 0, %s157
      %s160 = sphi 0, %s159
      %s174 = sphi 0, %s160
      %s178 = sphi 0, %s178
      %s180 = sphi 0, %s178
      %s181 = sphi 0, %s180
      %s195 = sphi 0, %s181
      %s199 = sphi 0, %s199
      %s201 = sphi 0, %s199
      %s202 = sphi 0, %s201
      %s216 = sphi 0, %s202
      %s222 = sphi 0, %s224
      %s225 = sphi 0, %s222
      %s226 = sphi 0, %s225
      %s242 = sphi 0, %s226
    $region4: #{tpu_custom_call.1} parent=1 // loop_header_branch
      %21 = sbr.rel (%p19) target = $region8
    $region5: #{tpu_custom_call.1} parent=1 // loop_body
      %s23 = ssub.s32 %s18, 1
      %s24 = ssub.s32 %s18, 2
      %s25 = sadd.s32 %s18, 1
      %s26 = ssub.s32 %s18, %s25
      %p27 = scmp.eq.s32.totalorder %s26, 0
      %s29 = sadd.s32 %s28, 1
      %s30 = scalar_select %p27, %s28, %s29
      %p33 = pneg %p27
      %p34 = scmp.eq.s32.totalorder %s18, 1
      %p35 = por %p33, %p34
      %p36 = scmp.ne.s32.totalorder %s28, %s31
      %p37 = scmp.eq.s32.totalorder %s18, 0
      %p38 = por %p36, %p37
      %p39 = scmp.ne.s32.totalorder %s28, %s31
      %p40 = scmp.eq.s32.totalorder %s23, 1
      %p41 = por %p39, %p40
      %p42 = scmp.ne.s32.totalorder %s31, %s32
      %p43 = scmp.eq.s32.totalorder %s23, 0
      %p44 = por %p42, %p43
      %p45 = scmp.ne.s32.totalorder %s31, %s32
      %p46 = scmp.eq.s32.totalorder %s24, 1
      %p47 = por %p45, %p46
      %p49 = scmp.ne.s32.totalorder %s32, %s48
      %p50 = scmp.eq.s32.totalorder %s24, 0
      %p51 = por %p49, %p50
      %s53 = sadd.s32 %s52, 1
      %p56 = scmp.eq.s32.totalorder %s18, 1
      %p57 = scmp.ne.s32.totalorder %s52, %s54
      %p58 = scmp.eq.s32.totalorder %s18, 0
      %p59 = por %p57, %p58
      %p60 = scmp.ne.s32.totalorder %s52, %s54
      %p61 = scmp.eq.s32.totalorder %s23, 1
      %p62 = por %p60, %p61
      %p63 = scmp.ne.s32.totalorder %s54, %s55
      %p64 = scmp.eq.s32.totalorder %s23, 0
      %p65 = por %p63, %p64
      %p66 = scmp.ne.s32.totalorder %s54, %s55
      %p67 = scmp.eq.s32.totalorder %s24, 1
      %p68 = por %p66, %p67
      %p70 = scmp.ne.s32.totalorder %s55, %s69
      %p71 = scmp.eq.s32.totalorder %s24, 0
      %p72 = por %p70, %p71
      %s74 = sadd.s32 %s73, 1
      %p77 = scmp.eq.s32.totalorder %s18, 1
      %p78 = scmp.ne.s32.totalorder %s73, %s75
      %p79 = scmp.eq.s32.totalorder %s18, 0
      %p80 = por %p78, %p79
      %p81 = scmp.ne.s32.totalorder %s73, %s75
      %p82 = scmp.eq.s32.totalorder %s23, 1
      %p83 = por %p81, %p82
      %p84 = scmp.ne.s32.totalorder %s75, %s76
      %p85 = scmp.eq.s32.totalorder %s23, 0
      %p86 = por %p84, %p85
      %p87 = scmp.ne.s32.totalorder %s75, %s76
      %p88 = scmp.eq.s32.totalorder %s24, 1
      %p89 = por %p87, %p88
      %p91 = scmp.ne.s32.totalorder %s76, %s90
      %p92 = scmp.eq.s32.totalorder %s24, 0
      %p93 = por %p91, %p92
      %s95 = sadd.s32 %s94, 1
      %p98 = scmp.eq.s32.totalorder %s18, 1
      %p99 = scmp.ne.s32.totalorder %s94, %s96
      %p100 = scmp.eq.s32.totalorder %s18, 0
      %p101 = por %p99, %p100
      %p102 = scmp.ne.s32.totalorder %s94, %s96
      %p103 = scmp.eq.s32.totalorder %s23, 1
      %p104 = por %p102, %p103
      %p105 = scmp.ne.s32.totalorder %s96, %s97
      %p106 = scmp.eq.s32.totalorder %s23, 0
      %p107 = por %p105, %p106
      %p108 = scmp.ne.s32.totalorder %s96, %s97
      %p109 = scmp.eq.s32.totalorder %s24, 1
      %p110 = por %p108, %p109
      %p112 = scmp.ne.s32.totalorder %s97, %s111
      %p113 = scmp.eq.s32.totalorder %s24, 0
      %p114 = por %p112, %p113
      %s116 = sadd.s32 %s115, 1
      %p119 = scmp.eq.s32.totalorder %s18, 1
      %p120 = scmp.ne.s32.totalorder %s115, %s117
      %p121 = scmp.eq.s32.totalorder %s18, 0
      %p122 = por %p120, %p121
      %p123 = scmp.ne.s32.totalorder %s115, %s117
      %p124 = scmp.eq.s32.totalorder %s23, 1
      %p125 = por %p123, %p124
      %p126 = scmp.ne.s32.totalorder %s117, %s118
      %p127 = scmp.eq.s32.totalorder %s23, 0
      %p128 = por %p126, %p127
      %p129 = scmp.ne.s32.totalorder %s117, %s118
      %p130 = scmp.eq.s32.totalorder %s24, 1
      %p131 = por %p129, %p130
      %p133 = scmp.ne.s32.totalorder %s118, %s132
      %p134 = scmp.eq.s32.totalorder %s24, 0
      %p135 = por %p133, %p134
      %s137 = sadd.s32 %s136, 1
      %p140 = scmp.eq.s32.totalorder %s18, 1
      %p141 = scmp.ne.s32.totalorder %s136, %s138
      %p142 = scmp.eq.s32.totalorder %s18, 0
      %p143 = por %p141, %p142
      %p144 = scmp.ne.s32.totalorder %s136, %s138
      %p145 = scmp.eq.s32.totalorder %s23, 1
      %p146 = por %p144, %p145
      %p147 = scmp.ne.s32.totalorder %s138, %s139
      %p148 = scmp.eq.s32.totalorder %s23, 0
      %p149 = por %p147, %p148
      %p150 = scmp.ne.s32.totalorder %s138, %s139
      %p151 = scmp.eq.s32.totalorder %s24, 1
      %p152 = por %p150, %p151
      %p154 = scmp.ne.s32.totalorder %s139, %s153
      %p155 = scmp.eq.s32.totalorder %s24, 0
      %p156 = por %p154, %p155
      %s158 = sadd.s32 %s157, 1
      %p161 = scmp.eq.s32.totalorder %s18, 1
      %p162 = scmp.ne.s32.totalorder %s157, %s159
      %p163 = scmp.eq.s32.totalorder %s18, 0
      %p164 = por %p162, %p163
      %p165 = scmp.ne.s32.totalorder %s157, %s159
      %p166 = scmp.eq.s32.totalorder %s23, 1
      %p167 = por %p165, %p166
      %p168 = scmp.ne.s32.totalorder %s159, %s160
      %p169 = scmp.eq.s32.totalorder %s23, 0
      %p170 = por %p168, %p169
      %p171 = scmp.ne.s32.totalorder %s159, %s160
      %p172 = scmp.eq.s32.totalorder %s24, 1
      %p173 = por %p171, %p172
      %p175 = scmp.ne.s32.totalorder %s160, %s174
      %p176 = scmp.eq.s32.totalorder %s24, 0
      %p177 = por %p175, %p176
      %s179 = sadd.s32 %s178, 1
      %p182 = scmp.eq.s32.totalorder %s18, 1
      %p183 = scmp.ne.s32.totalorder %s178, %s180
      %p184 = scmp.eq.s32.totalorder %s18, 0
      %p185 = por %p183, %p184
      %p186 = scmp.ne.s32.totalorder %s178, %s180
      %p187 = scmp.eq.s32.totalorder %s23, 1
      %p188 = por %p186, %p187
      %p189 = scmp.ne.s32.totalorder %s180, %s181
      %p190 = scmp.eq.s32.totalorder %s23, 0
      %p191 = por %p189, %p190
      %p192 = scmp.ne.s32.totalorder %s180, %s181
      %p193 = scmp.eq.s32.totalorder %s24, 1
      %p194 = por %p192, %p193
      %p196 = scmp.ne.s32.totalorder %s181, %s195
      %p197 = scmp.eq.s32.totalorder %s24, 0
      %p198 = por %p196, %p197
      %s200 = sadd.s32 %s199, 1
      %p203 = scmp.eq.s32.totalorder %s18, 1
      %p204 = scmp.ne.s32.totalorder %s199, %s201
      %p205 = scmp.eq.s32.totalorder %s18, 0
      %p206 = por %p204, %p205
      %p207 = scmp.ne.s32.totalorder %s199, %s201
      %p208 = scmp.eq.s32.totalorder %s23, 1
      %p209 = por %p207, %p208
      %p210 = scmp.ne.s32.totalorder %s201, %s202
      %p211 = scmp.eq.s32.totalorder %s23, 0
      %p212 = por %p210, %p211
      %p213 = scmp.ne.s32.totalorder %s201, %s202
      %p214 = scmp.eq.s32.totalorder %s24, 1
      %p215 = por %p213, %p214
      %p217 = scmp.ne.s32.totalorder %s202, %s216
      %p218 = scmp.eq.s32.totalorder %s24, 0
      %p219 = por %p217, %p218
      %s220 = ssub.s32 %s18, %s25
      %p221 = scmp.eq.s32.totalorder %s220, 0
      %s223 = sadd.s32 %s222, 1
      %s224 = scalar_select %p221, %s222, %s223
      %p227 = pneg %p221
      %p228 = scmp.eq.s32.totalorder %s18, 1
      %p229 = por %p227, %p228
      %p230 = scmp.ne.s32.totalorder %s222, %s225
      %p231 = scmp.eq.s32.totalorder %s18, 0
      %p232 = por %p230, %p231
      %p233 = scmp.ne.s32.totalorder %s222, %s225
      %p234 = scmp.eq.s32.totalorder %s23, 1
      %p235 = por %p233, %p234
      %p236 = scmp.ne.s32.totalorder %s225, %s226
      %p237 = scmp.eq.s32.totalorder %s23, 0
      %p238 = por %p236, %p237
      %p239 = scmp.ne.s32.totalorder %s225, %s226
      %p240 = scmp.eq.s32.totalorder %s24, 1
      %p241 = por %p239, %p240
      %p243 = scmp.ne.s32.totalorder %s226, %s242
      %p244 = scmp.eq.s32.totalorder %s24, 0
      %p245 = por %p243, %p244
      %p246 = scmp.le.s32.totalorder 1, %s18
      %p247 = scmp.lt.s32.totalorder %s18, 3
      %p248 = pnand %p246, %p247
      %p249 = pneg %p248
      // Predicated region
      $region9: #{tpu_custom_call.1} parent=5 // pred_check
        _
      $region10: #{tpu_custom_call.1} parent=5 // pred_check_branch
        %251 = sbr.rel (%p248) target = $region12
      $region11: #{tpu_custom_call.1} parent=5 // pred_region
        %s252 = ssub.s32 %s18, 1
        // Predicated region
        $region13: #{tpu_custom_call.1} parent=11 // pred_check
          %p253 = pneg %p65
        $region14: #{tpu_custom_call.1} parent=11 // pred_check_branch
          %255 = sbr.rel (%p253) target = $region16
        $region15: #{tpu_custom_call.1} parent=11 // pred_region
          _
        $region16: #{tpu_custom_call.1} parent=11 // pred_fallthru
          _
        // Predicated region
        $region17: #{tpu_custom_call.1} parent=11 // pred_check
          %p256 = pneg %p86
        $region18: #{tpu_custom_call.1} parent=11 // pred_check_branch
          %258 = sbr.rel (%p256) target = $region20
        $region19: #{tpu_custom_call.1} parent=11 // pred_region
          _
        $region20: #{tpu_custom_call.1} parent=11 // pred_fallthru
          _
        // Predicated region
        $region21: #{tpu_custom_call.1} parent=11 // pred_check
          %p259 = pneg %p107
        $region22: #{tpu_custom_call.1} parent=11 // pred_check_branch
          %261 = sbr.rel (%p259) target = $region24
        $region23: #{tpu_custom_call.1} parent=11 // pred_region
          _
        $region24: #{tpu_custom_call.1} parent=11 // pred_fallthru
          _
        // Predicated region
        $region25: #{tpu_custom_call.1} parent=11 // pred_check
          %p262 = pneg %p128
        $region26: #{tpu_custom_call.1} parent=11 // pred_check_branch
          %264 = sbr.rel (%p262) target = $region28
        $region27: #{tpu_custom_call.1} parent=11 // pred_region
          _
        $region28: #{tpu_custom_call.1} parent=11 // pred_fallthru
          _
        // Predicated region
        $region29: #{tpu_custom_call.1} parent=11 // pred_check
          %p265 = pneg %p149
        $region30: #{tpu_custom_call.1} parent=11 // pred_check_branch
          %267 = sbr.rel (%p265) target = $region32
        $region31: #{tpu_custom_call.1} parent=11 // pred_region
          _
        $region32: #{tpu_custom_call.1} parent=11 // pred_fallthru
          _
        // Predicated region
        $region33: #{tpu_custom_call.1} parent=11 // pred_check
          %p268 = pneg %p170
        $region34: #{tpu_custom_call.1} parent=11 // pred_check_branch
          %270 = sbr.rel (%p268) target = $region36
        $region35: #{tpu_custom_call.1} parent=11 // pred_region
          _
        $region36: #{tpu_custom_call.1} parent=11 // pred_fallthru
          _
        // Predicated region
        $region37: #{tpu_custom_call.1} parent=11 // pred_check
          %p271 = pneg %p191
        $region38: #{tpu_custom_call.1} parent=11 // pred_check_branch
          %273 = sbr.rel (%p271) target = $region40
        $region39: #{tpu_custom_call.1} parent=11 // pred_region
          _
        $region40: #{tpu_custom_call.1} parent=11 // pred_fallthru
          _
        // Predicated region
        $region41: #{tpu_custom_call.1} parent=11 // pred_check
          %p274 = pneg %p212
        $region42: #{tpu_custom_call.1} parent=11 // pred_check_branch
          %276 = sbr.rel (%p274) target = $region44
        $region43: #{tpu_custom_call.1} parent=11 // pred_region
          _
        $region44: #{tpu_custom_call.1} parent=11 // pred_fallthru
          _
      $region12: #{tpu_custom_call.1} parent=5 // pred_fallthru
        _
      %p277 = scmp.lt.s32.totalorder %s18, 2
      // Predicated region
      $region45: #{tpu_custom_call.1} parent=5 // pred_check
        %p278 = pneg %p277
      $region46: #{tpu_custom_call.1} parent=5 // pred_check_branch
        %280 = sbr.rel (%p278) target = $region48
      $region47: #{tpu_custom_call.1} parent=5 // pred_region
        // Predicated region
        $region49: #{tpu_custom_call.1} parent=47 // pred_check
          %p281 = pneg %p38
        $region50: #{tpu_custom_call.1} parent=47 // pred_check_branch
          %283 = sbr.rel (%p281) target = $region52
        $region51: #{tpu_custom_call.1} parent=47 // pred_region
          %p284 = scmp.lt.s32.totalorder %s18, 1
          %s285 = scalar_select %p284, %s18, 1
          %s286 = smul.addr %s285, 7
          %s287 = scalar_lea.vmem %s0, %s286
        $region52: #{tpu_custom_call.1} parent=47 // pred_fallthru
          _
      $region48: #{tpu_custom_call.1} parent=5 // pred_fallthru
        _
      %p288 = scmp.le.s32.totalorder 1, %s18
      %p289 = scmp.lt.s32.totalorder %s18, 3
      %p290 = pnand %p288, %p289
      %p291 = pneg %p290
      // Predicated region
      $region53: #{tpu_custom_call.1} parent=5 // pred_check
        _
      $region54: #{tpu_custom_call.1} parent=5 // pred_check_branch
        %293 = sbr.rel (%p290) target = $region56
      $region55: #{tpu_custom_call.1} parent=5 // pred_region
        %s294 = ssub.s32 %s18, 1
        %p295 = scmp.lt.s32.totalorder %s23, 1
        %s296 = scalar_select %p295, %s23, 1
        %s297 = smul.addr %s296, 7
        %s298 = scalar_lea.vmem %s0, %s297
        %p299 = pneg %p44
        %p300 = pneg %p41
        %p301 = pneg %p65
        %p302 = pneg %p62
        %p303 = pneg %p86
        %p304 = pneg %p83
        %p305 = pneg %p107
        %p306 = pneg %p104
        %p307 = pneg %p128
        %p308 = pneg %p125
        %p309 = pneg %p149
        %p310 = pneg %p146
        %p311 = pneg %p170
        %p312 = pneg %p167
        %p313 = pneg %p191
        %p314 = pneg %p188
        %p315 = pneg %p212
        %p316 = pneg %p209
        %p317 = pneg %p238
        %p318 = pneg %p235
        %s319 = sand.u32 %s225, 1
        %s320 = scalar_lea.sflag [#allocation3], %s319
        %s321 = sand.u32 %s225, 1
        %s322 = scalar_lea.vmem [#allocation2], %s321
        %p323 = scmp.lt.s32.totalorder %s23, 1
        %s324 = scalar_select %p323, %s23, 1
        %s325 = smul.addr %s324, 7
        %s326 = scalar_lea.vmem %s0, %s325
        %v327 = vld [vmem:[%s326] sm:$0x7f]
        %v329 = vlaneseq
        %v330 = vshrl.u32 %v329, 7
        %v331 = vsub.s32 0, %v330
        %v332 = vrot.slane %v327, %v331
        %v333 = vlaneseq
        %v334 = vshrl.u32 %v333, 7
        %v335 = vsub.s32 1, %v334
        %v336 = vrot.slane %v327, %v335
        %v337 = vlaneseq
        %v338 = vshrl.u32 %v337, 7
        %v339 = vsub.s32 2, %v338
        %v340 = vrot.slane %v327, %v339
        %v341 = vlaneseq
        %v342 = vshrl.u32 %v341, 7
        %v343 = vsub.s32 3, %v342
        %v344 = vrot.slane %v327, %v343
        %v345 = vlaneseq
        %v346 = vshrl.u32 %v345, 7
        %v347 = vsub.s32 4, %v346
        %v348 = vrot.slane %v327, %v347
        %v349 = vlaneseq
        %v350 = vshrl.u32 %v349, 7
        %v351 = vsub.s32 5, %v350
        %v352 = vrot.slane %v327, %v351
        %359 = vrot.lane.b32.xlu0 %v332, 127
        %v360 = vpop.permute.xlu0 %359
        %361 = vrot.lane.b32.xlu0 %v336, 127
        %v362 = vpop.permute.xlu0 %361
        %363 = vrot.lane.b32.xlu0 %v340, 127
        %v364 = vpop.permute.xlu0 %363
        %365 = vrot.lane.b32.xlu0 %v344, 127
        %v366 = vpop.permute.xlu0 %365
        %367 = vrot.lane.b32.xlu0 %v348, 127
        %v368 = vpop.permute.xlu0 %367
        %369 = vrot.lane.b32.xlu0 %v352, 127
        %v370 = vpop.permute.xlu0 %369
        %vm371 = vcmask 1039360
        %v372 = vsel %vm371, %v360, %v362
        %v373 = vsel %vm371, %v362, %v364
        %v374 = vsel %vm371, %v364, %v366
        %v375 = vsel %vm371, %v366, %v368
        %v376 = vsel %vm371, %v368, %v370
        %383 = vrot.lane.b32.xlu0 %v332, 126
        %v384 = vpop.permute.xlu0 %383
        %385 = vrot.lane.b32.xlu0 %v336, 126
        %v386 = vpop.permute.xlu0 %385
        %387 = vrot.lane.b32.xlu0 %v340, 126
        %v388 = vpop.permute.xlu0 %387
        %389 = vrot.lane.b32.xlu0 %v344, 126
        %v390 = vpop.permute.xlu0 %389
        %391 = vrot.lane.b32.xlu0 %v348, 126
        %v392 = vpop.permute.xlu0 %391
        %393 = vrot.lane.b32.xlu0 %v352, 126
        %v394 = vpop.permute.xlu0 %393
        %vm395 = vcmask 1031168
        %v396 = vsel %vm395, %v384, %v386
        %v397 = vsel %vm395, %v386, %v388
        %v398 = vsel %vm395, %v388, %v390
        %v399 = vsel %vm395, %v390, %v392
        %v400 = vsel %vm395, %v392, %v394
        %407 = vrot.lane.b32.xlu0 %v332, 125
        %v408 = vpop.permute.xlu0 %407
        %409 = vrot.lane.b32.xlu0 %v336, 125
        %v410 = vpop.permute.xlu0 %409
        %411 = vrot.lane.b32.xlu0 %v340, 125
        %v412 = vpop.permute.xlu0 %411
        %413 = vrot.lane.b32.xlu0 %v344, 125
        %v414 = vpop.permute.xlu0 %413
        %415 = vrot.lane.b32.xlu0 %v348, 125
        %v416 = vpop.permute.xlu0 %415
        %417 = vrot.lane.b32.xlu0 %v352, 125
        %v418 = vpop.permute.xlu0 %417
        %vm419 = vcmask 1022976
        %v420 = vsel %vm419, %v408, %v410
        %v421 = vsel %vm419, %v410, %v412
        %v422 = vsel %vm419, %v412, %v414
        %v423 = vsel %vm419, %v414, %v416
        %v424 = vsel %vm419, %v416, %v418
        %431 = vrot.lane.b32.xlu0 %v332, 124
        %v432 = vpop.permute.xlu0 %431
        %433 = vrot.lane.b32.xlu0 %v336, 124
        %v434 = vpop.permute.xlu0 %433
        %435 = vrot.lane.b32.xlu0 %v340, 124
        %v436 = vpop.permute.xlu0 %435
        %437 = vrot.lane.b32.xlu0 %v344, 124
        %v438 = vpop.permute.xlu0 %437
        %439 = vrot.lane.b32.xlu0 %v348, 124
        %v440 = vpop.permute.xlu0 %439
        %441 = vrot.lane.b32.xlu0 %v352, 124
        %v442 = vpop.permute.xlu0 %441
        %vm443 = vcmask 1014784
        %v444 = vsel %vm443, %v432, %v434
        %v445 = vsel %vm443, %v434, %v436
        %v446 = vsel %vm443, %v436, %v438
        %v447 = vsel %vm443, %v438, %v440
        %v448 = vsel %vm443, %v440, %v442
        %455 = vrot.lane.b32.xlu0 %v332, 100
        %v456 = vpop.permute.xlu0 %455
        %457 = vrot.lane.b32.xlu0 %v336, 100
        %v458 = vpop.permute.xlu0 %457
        %459 = vrot.lane.b32.xlu0 %v340, 100
        %v460 = vpop.permute.xlu0 %459
        %461 = vrot.lane.b32.xlu0 %v344, 100
        %v462 = vpop.permute.xlu0 %461
        %463 = vrot.lane.b32.xlu0 %v348, 100
        %v464 = vpop.permute.xlu0 %463
        %465 = vrot.lane.b32.xlu0 %v352, 100
        %v466 = vpop.permute.xlu0 %465
        %vm467 = vcmask 818176
        %v468 = vsel %vm467, %v456, %v458
        %v469 = vsel %vm467, %v458, %v460
        %v470 = vsel %vm467, %v460, %v462
        %v471 = vsel %vm467, %v462, %v464
        %v472 = vsel %vm467, %v464, %v466
        %479 = vrot.lane.b32.xlu0 %v332, 99
        %v480 = vpop.permute.xlu0 %479
        %481 = vrot.lane.b32.xlu0 %v336, 99
        %v482 = vpop.permute.xlu0 %481
        %483 = vrot.lane.b32.xlu0 %v340, 99
        %v484 = vpop.permute.xlu0 %483
        %485 = vrot.lane.b32.xlu0 %v344, 99
        %v486 = vpop.permute.xlu0 %485
        %487 = vrot.lane.b32.xlu0 %v348, 99
        %v488 = vpop.permute.xlu0 %487
        %489 = vrot.lane.b32.xlu0 %v352, 99
        %v490 = vpop.permute.xlu0 %489
        %vm491 = vcmask 809984
        %v492 = vsel %vm491, %v480, %v482
        %v493 = vsel %vm491, %v482, %v484
        %v494 = vsel %vm491, %v484, %v486
        %v495 = vsel %vm491, %v486, %v488
        %v496 = vsel %vm491, %v488, %v490
        %503 = vrot.lane.b32.xlu0 %v332, 98
        %v504 = vpop.permute.xlu0 %503
        %505 = vrot.lane.b32.xlu0 %v336, 98
        %v506 = vpop.permute.xlu0 %505
        %507 = vrot.lane.b32.xlu0 %v340, 98
        %v508 = vpop.permute.xlu0 %507
        %509 = vrot.lane.b32.xlu0 %v344, 98
        %v510 = vpop.permute.xlu0 %509
        %511 = vrot.lane.b32.xlu0 %v348, 98
        %v512 = vpop.permute.xlu0 %511
        %513 = vrot.lane.b32.xlu0 %v352, 98
        %v514 = vpop.permute.xlu0 %513
        %vm515 = vcmask 801792
        %v516 = vsel %vm515, %v504, %v506
        %v517 = vsel %vm515, %v506, %v508
        %v518 = vsel %vm515, %v508, %v510
        %v519 = vsel %vm515, %v510, %v512
        %v520 = vsel %vm515, %v512, %v514
        %527 = vrot.lane.b32.xlu0 %v332, 97
        %v528 = vpop.permute.xlu0 %527
        %529 = vrot.lane.b32.xlu0 %v336, 97
        %v530 = vpop.permute.xlu0 %529
        %531 = vrot.lane.b32.xlu0 %v340, 97
        %v532 = vpop.permute.xlu0 %531
        %533 = vrot.lane.b32.xlu0 %v344, 97
        %v534 = vpop.permute.xlu0 %533
        %535 = vrot.lane.b32.xlu0 %v348, 97
        %v536 = vpop.permute.xlu0 %535
        %537 = vrot.lane.b32.xlu0 %v352, 97
        %v538 = vpop.permute.xlu0 %537
        %vm539 = vcmask 793600
        %v540 = vsel %vm539, %v528, %v530
        %v541 = vsel %vm539, %v530, %v532
        %v542 = vsel %vm539, %v532, %v534
        %v543 = vsel %vm539, %v534, %v536
        %v544 = vsel %vm539, %v536, %v538
        %551 = vrot.lane.b32.xlu0 %v332, 96
        %v552 = vpop.permute.xlu0 %551
        %553 = vrot.lane.b32.xlu0 %v336, 96
        %v554 = vpop.permute.xlu0 %553
        %555 = vrot.lane.b32.xlu0 %v340, 96
        %v556 = vpop.permute.xlu0 %555
        %557 = vrot.lane.b32.xlu0 %v344, 96
        %v558 = vpop.permute.xlu0 %557
        %559 = vrot.lane.b32.xlu0 %v348, 96
        %v560 = vpop.permute.xlu0 %559
        %561 = vrot.lane.b32.xlu0 %v352, 96
        %v562 = vpop.permute.xlu0 %561
        %vm563 = vcmask 785408
        %v564 = vsel %vm563, %v552, %v554
        %v565 = vsel %vm563, %v554, %v556
        %v566 = vsel %vm563, %v556, %v558
        %v567 = vsel %vm563, %v558, %v560
        %v568 = vsel %vm563, %v560, %v562
        %575 = vrot.lane.b32.xlu0 %v332, 72
        %v576 = vpop.permute.xlu0 %575
        %577 = vrot.lane.b32.xlu0 %v336, 72
        %v578 = vpop.permute.xlu0 %577
        %579 = vrot.lane.b32.xlu0 %v340, 72
        %v580 = vpop.permute.xlu0 %579
        %581 = vrot.lane.b32.xlu0 %v344, 72
        %v582 = vpop.permute.xlu0 %581
        %583 = vrot.lane.b32.xlu0 %v348, 72
        %v584 = vpop.permute.xlu0 %583
        %585 = vrot.lane.b32.xlu0 %v352, 72
        %v586 = vpop.permute.xlu0 %585
        %vm587 = vcmask 588800
        %v588 = vsel %vm587, %v576, %v578
        %v589 = vsel %vm587, %v578, %v580
        %v590 = vsel %vm587, %v580, %v582
        %v591 = vsel %vm587, %v582, %v584
        %v592 = vsel %vm587, %v584, %v586
        %599 = vrot.lane.b32.xlu0 %v332, 71
        %v600 = vpop.permute.xlu0 %599
        %601 = vrot.lane.b32.xlu0 %v336, 71
        %v602 = vpop.permute.xlu0 %601
        %603 = vrot.lane.b32.xlu0 %v340, 71
        %v604 = vpop.permute.xlu0 %603
        %605 = vrot.lane.b32.xlu0 %v344, 71
        %v606 = vpop.permute.xlu0 %605
        %607 = vrot.lane.b32.xlu0 %v348, 71
        %v608 = vpop.permute.xlu0 %607
        %609 = vrot.lane.b32.xlu0 %v352, 71
        %v610 = vpop.permute.xlu0 %609
        %vm611 = vcmask 580608
        %v612 = vsel %vm611, %v600, %v602
        %v613 = vsel %vm611, %v602, %v604
        %v614 = vsel %vm611, %v604, %v606
        %v615 = vsel %vm611, %v606, %v608
        %v616 = vsel %vm611, %v608, %v610
        %623 = vrot.lane.b32.xlu0 %v332, 70
        %v624 = vpop.permute.xlu0 %623
        %625 = vrot.lane.b32.xlu0 %v336, 70
        %v626 = vpop.permute.xlu0 %625
        %627 = vrot.lane.b32.xlu0 %v340, 70
        %v628 = vpop.permute.xlu0 %627
        %629 = vrot.lane.b32.xlu0 %v344, 70
        %v630 = vpop.permute.xlu0 %629
        %631 = vrot.lane.b32.xlu0 %v348, 70
        %v632 = vpop.permute.xlu0 %631
        %633 = vrot.lane.b32.xlu0 %v352, 70
        %v634 = vpop.permute.xlu0 %633
        %vm635 = vcmask 572416
        %v636 = vsel %vm635, %v624, %v626
        %v637 = vsel %vm635, %v626, %v628
        %v638 = vsel %vm635, %v628, %v630
        %v639 = vsel %vm635, %v630, %v632
        %v640 = vsel %vm635, %v632, %v634
        %647 = vrot.lane.b32.xlu0 %v332, 69
        %v648 = vpop.permute.xlu0 %647
        %649 = vrot.lane.b32.xlu0 %v336, 69
        %v650 = vpop.permute.xlu0 %649
        %651 = vrot.lane.b32.xlu0 %v340, 69
        %v652 = vpop.permute.xlu0 %651
        %653 = vrot.lane.b32.xlu0 %v344, 69
        %v654 = vpop.permute.xlu0 %653
        %655 = vrot.lane.b32.xlu0 %v348, 69
        %v656 = vpop.permute.xlu0 %655
        %657 = vrot.lane.b32.xlu0 %v352, 69
        %v658 = vpop.permute.xlu0 %657
        %vm659 = vcmask 564224
        %v660 = vsel %vm659, %v648, %v650
        %v661 = vsel %vm659, %v650, %v652
        %v662 = vsel %vm659, %v652, %v654
        %v663 = vsel %vm659, %v654, %v656
        %v664 = vsel %vm659, %v656, %v658
        %671 = vrot.lane.b32.xlu0 %v332, 68
        %v672 = vpop.permute.xlu0 %671
        %673 = vrot.lane.b32.xlu0 %v336, 68
        %v674 = vpop.permute.xlu0 %673
        %675 = vrot.lane.b32.xlu0 %v340, 68
        %v676 = vpop.permute.xlu0 %675
        %677 = vrot.lane.b32.xlu0 %v344, 68
        %v678 = vpop.permute.xlu0 %677
        %679 = vrot.lane.b32.xlu0 %v348, 68
        %v680 = vpop.permute.xlu0 %679
        %681 = vrot.lane.b32.xlu0 %v352, 68
        %v682 = vpop.permute.xlu0 %681
        %vm683 = vcmask 556032
        %v684 = vsel %vm683, %v672, %v674
        %v685 = vsel %vm683, %v674, %v676
        %v686 = vsel %vm683, %v676, %v678
        %v687 = vsel %vm683, %v678, %v680
        %v688 = vsel %vm683, %v680, %v682
        %695 = vrot.lane.b32.xlu0 %v332, 44
        %v696 = vpop.permute.xlu0 %695
        %697 = vrot.lane.b32.xlu0 %v336, 44
        %v698 = vpop.permute.xlu0 %697
        %699 = vrot.lane.b32.xlu0 %v340, 44
        %v700 = vpop.permute.xlu0 %699
        %701 = vrot.lane.b32.xlu0 %v344, 44
        %v702 = vpop.permute.xlu0 %701
        %703 = vrot.lane.b32.xlu0 %v348, 44
        %v704 = vpop.permute.xlu0 %703
        %705 = vrot.lane.b32.xlu0 %v352, 44
        %v706 = vpop.permute.xlu0 %705
        %vm707 = vcmask 359424
        %v708 = vsel %vm707, %v696, %v698
        %v709 = vsel %vm707, %v698, %v700
        %v710 = vsel %vm707, %v700, %v702
        %v711 = vsel %vm707, %v702, %v704
        %v712 = vsel %vm707, %v704, %v706
        %vm719 = vcmask 1040384
        %v720 = vsel %vm719, %v332, %v372
        %v721 = vsel %vm719, %v336, %v373
        %v722 = vsel %vm719, %v340, %v374
        %v723 = vsel %vm719, %v344, %v375
        %v724 = vsel %vm719, %v348, %v376
        %v725 = vsel %vm719, %v352, %v370
        %vm726 = vcmask 1041408
        %v727 = vsel %vm726, %v720, %v396
        %v728 = vsel %vm726, %v721, %v397
        %v729 = vsel %vm726, %v722, %v398
        %v730 = vsel %vm726, %v723, %v399
        %v731 = vsel %vm726, %v724, %v400
        %v732 = vsel %vm726, %v725, %v394
        %vm733 = vcmask 1042432
        %v734 = vsel %vm733, %v727, %v420
        %v735 = vsel %vm733, %v728, %v421
        %v736 = vsel %vm733, %v729, %v422
        %v737 = vsel %vm733, %v730, %v423
        %v738 = vsel %vm733, %v731, %v424
        %v739 = vsel %vm733, %v732, %v418
        %vm740 = vcmask 1043456
        %v741 = vsel %vm740, %v734, %v444
        %v742 = vsel %vm740, %v735, %v445
        %v743 = vsel %vm740, %v736, %v446
        %v744 = vsel %vm740, %v737, %v447
        %v745 = vsel %vm740, %v738, %v448
        %v746 = vsel %vm740, %v739, %v442
        %vm747 = vcmask 1044480
        %v748 = vsel %vm747, %v741, %v468
        %v749 = vsel %vm747, %v742, %v469
        %v750 = vsel %vm747, %v743, %v470
        %v751 = vsel %vm747, %v744, %v471
        %v752 = vsel %vm747, %v745, %v472
        %v753 = vsel %vm747, %v746, %v466
        %vm754 = vcmask 1045504
        %v755 = vsel %vm754, %v748, %v492
        %v756 = vsel %vm754, %v749, %v493
        %v757 = vsel %vm754, %v750, %v494
        %v758 = vsel %vm754, %v751, %v495
        %v759 = vsel %vm754, %v752, %v496
        %v760 = vsel %vm754, %v753, %v490
        %vm761 = vcmask 1046528
        %v762 = vsel %vm761, %v755, %v516
        %v763 = vsel %vm761, %v756, %v517
        %v764 = vsel %vm761, %v757, %v518
        %v765 = vsel %vm761, %v758, %v519
        %v766 = vsel %vm761, %v759, %v520
        %v767 = vsel %vm761, %v760, %v514
        %v768 = vsel %vm719, %v540, %v564
        %v769 = vsel %vm719, %v541, %v565
        %v770 = vsel %vm719, %v542, %v566
        %v771 = vsel %vm719, %v543, %v567
        %v772 = vsel %vm719, %v544, %v568
        %v773 = vsel %vm719, %v538, %v562
        %v774 = vsel %vm726, %v768, %v588
        %v775 = vsel %vm726, %v769, %v589
        %v776 = vsel %vm726, %v770, %v590
        %v777 = vsel %vm726, %v771, %v591
        %v778 = vsel %vm726, %v772, %v592
        %v779 = vsel %vm726, %v773, %v586
        %v780 = vsel %vm733, %v774, %v612
        %v781 = vsel %vm733, %v775, %v613
        %v782 = vsel %vm733, %v776, %v614
        %v783 = vsel %vm733, %v777, %v615
        %v784 = vsel %vm733, %v778, %v616
        %v785 = vsel %vm733, %v779, %v610
        %v786 = vsel %vm740, %v780, %v636
        %v787 = vsel %vm740, %v781, %v637
        %v788 = vsel %vm740, %v782, %v638
        %v789 = vsel %vm740, %v783, %v639
        %v790 = vsel %vm740, %v784, %v640
        %v791 = vsel %vm740, %v785, %v634
        %v792 = vsel %vm747, %v786, %v660
        %v793 = vsel %vm747, %v787, %v661
        %v794 = vsel %vm747, %v788, %v662
        %v795 = vsel %vm747, %v789, %v663
        %v796 = vsel %vm747, %v790, %v664
        %v797 = vsel %vm747, %v791, %v658
        %v798 = vsel %vm754, %v792, %v684
        %v799 = vsel %vm754, %v793, %v685
        %v800 = vsel %vm754, %v794, %v686
        %v801 = vsel %vm754, %v795, %v687
        %v802 = vsel %vm754, %v796, %v688
        %v803 = vsel %vm754, %v797, %v682
        %v804 = vsel %vm761, %v798, %v708
        %v805 = vsel %vm761, %v799, %v709
        %v806 = vsel %vm761, %v800, %v710
        %v807 = vsel %vm761, %v801, %v711
        %v808 = vsel %vm761, %v802, %v712
        %v809 = vsel %vm761, %v803, %v706
        %v810 = vlaneseq
        %v811 = vshrl.u32 %v810, 7
        %v812 = vsub.s32 6, %v811
        %v813 = vrot.slane %v327, %v812
        %814 = vrot.lane.b32.xlu0 %v332, 101
        %v815 = vpop.permute.xlu0 %814
        %816 = vrot.lane.b32.xlu0 %v336, 101
        %v817 = vpop.permute.xlu0 %816
        %818 = vrot.lane.b32.xlu0 %v340, 101
        %v819 = vpop.permute.xlu0 %818
        %820 = vrot.lane.b32.xlu0 %v344, 101
        %v821 = vpop.permute.xlu0 %820
        %822 = vrot.lane.b32.xlu0 %v348, 101
        %v823 = vpop.permute.xlu0 %822
        %824 = vrot.lane.b32.xlu0 %v352, 101
        %v825 = vpop.permute.xlu0 %824
        %826 = vrot.lane.b32.xlu0 %v813, 101
        %v827 = vpop.permute.xlu0 %826
        %vm828 = vcmask 826368
        %v829 = vsel %vm828, %v815, %v817
        %v830 = vsel %vm828, %v817, %v819
        %v831 = vsel %vm828, %v819, %v821
        %v832 = vsel %vm828, %v821, %v823
        %v833 = vsel %vm828, %v823, %v825
        %v834 = vsel %vm828, %v825, %v827
        %841 = vrot.lane.b32.xlu0 %v813, 100
        %v842 = vpop.permute.xlu0 %841
        %v843 = vsel %vm467, %v466, %v842
        %845 = vrot.lane.b32.xlu0 %v813, 99
        %v846 = vpop.permute.xlu0 %845
        %v847 = vsel %vm491, %v490, %v846
        %849 = vrot.lane.b32.xlu0 %v813, 98
        %v850 = vpop.permute.xlu0 %849
        %v851 = vsel %vm515, %v514, %v850
        %853 = vrot.lane.b32.xlu0 %v813, 97
        %v854 = vpop.permute.xlu0 %853
        %v855 = vsel %vm539, %v538, %v854
        %v856 = vsel %vm740, %v734, %v829
        %v857 = vsel %vm740, %v735, %v830
        %v858 = vsel %vm740, %v736, %v831
        %v859 = vsel %vm740, %v737, %v832
        %v860 = vsel %vm740, %v738, %v833
        %v861 = vsel %vm740, %v739, %v834
        %v862 = vsel %vm747, %v856, %v468
        %v863 = vsel %vm747, %v857, %v469
        %v864 = vsel %vm747, %v858, %v470
        %v865 = vsel %vm747, %v859, %v471
        %v866 = vsel %vm747, %v860, %v472
        %v867 = vsel %vm747, %v861, %v843
        %v868 = vsel %vm754, %v862, %v492
        %v869 = vsel %vm754, %v863, %v493
        %v870 = vsel %vm754, %v864, %v494
        %v871 = vsel %vm754, %v865, %v495
        %v872 = vsel %vm754, %v866, %v496
        %v873 = vsel %vm754, %v867, %v847
        %v874 = vsel %vm761, %v868, %v516
        %v875 = vsel %vm761, %v869, %v517
        %v876 = vsel %vm761, %v870, %v518
        %v877 = vsel %vm761, %v871, %v519
        %v878 = vsel %vm761, %v872, %v520
        %v879 = vsel %vm761, %v873, %v851
        %886 = vrot.lane.b32.xlu0 %v874, 43
        %v887 = vpop.permute.xlu0 %886
        %888 = vrot.lane.b32.xlu0 %v875, 43
        %v889 = vpop.permute.xlu0 %888
        %890 = vrot.lane.b32.xlu0 %v876, 43
        %v891 = vpop.permute.xlu0 %890
        %892 = vrot.lane.b32.xlu0 %v877, 43
        %v893 = vpop.permute.xlu0 %892
        %894 = vrot.lane.b32.xlu0 %v878, 43
        %v895 = vpop.permute.xlu0 %894
        %896 = vrot.lane.b32.xlu0 %v879, 43
        %v897 = vpop.permute.xlu0 %896
        %898 = vrot.lane.b32.xlu0 %v540, 43
        %v899 = vpop.permute.xlu0 %898
        %900 = vrot.lane.b32.xlu0 %v541, 43
        %v901 = vpop.permute.xlu0 %900
        %902 = vrot.lane.b32.xlu0 %v542, 43
        %v903 = vpop.permute.xlu0 %902
        %904 = vrot.lane.b32.xlu0 %v543, 43
        %v905 = vpop.permute.xlu0 %904
        %906 = vrot.lane.b32.xlu0 %v544, 43
        %v907 = vpop.permute.xlu0 %906
        %908 = vrot.lane.b32.xlu0 %v855, 43
        %v909 = vpop.permute.xlu0 %908
        %vm910 = vcmask 351232
        %v911 = vsel %vm910, %v887, %v889
        %v912 = vsel %vm910, %v889, %v891
        %v913 = vsel %vm910, %v891, %v893
        %v914 = vsel %vm910, %v893, %v895
        %v915 = vsel %vm910, %v895, %v897
        %v916 = vsel %vm910, %v899, %v901
        %v917 = vsel %vm910, %v901, %v903
        %v918 = vsel %vm910, %v903, %v905
        %v919 = vsel %vm910, %v905, %v907
        %v920 = vsel %vm910, %v907, %v909
        %v927 = vld [vmem:[%s1] sm:$0xff]
        %v928 = vld [vmem:[%s1 + $0x8] sm:$0xff]
        %v929 = vld [vmem:[%s1 + $0x10] sm:$0xff]
        %v930 = vld [vmem:[%s1 + $0x18] sm:$0xff]
        %vm931 = vcmask 203776
        %v933 = vsel %vm931, %v927, 0
        %v936 = vsel %vm931, %v928, 0
        %v939 = vsel %vm931, %v929, 0
        %v942 = vsel %vm931, %v930, 0
        %v944 = vsel %vm719, %v916, 0
        %v946 = vsel %vm719, %v917, 0
        %v948 = vsel %vm719, %v918, 0
        %v950 = vsel %vm719, %v919, 0
        %v952 = vsel %vm719, %v920, 0
        %v954 = vsel %vm719, %v909, 0
        %956 = vmatprep.subr.mxu0 %v763
        %957 = vmatpush1.msra.mxu0 %v762
        %958 = vmatprep.subr.mxu0 %v805
        %959 = vmatpush1.msra.mxu0 %v804
        %960 = vmatprep.subr.mxu0 %v912
        %961 = vmatpush1.msra.mxu0 %v911
        %962 = vmatprep.subr.mxu0 %v946
        %963 = vmatpush1.msra.mxu0 %v944
        %964 = vmatprep.subr.mxu0 0.0
        %965 = vmatpush1.msra.mxu0 0.0
        %966 = vmatprep.subr.mxu0 0.0
        %967 = vmatpush1.msra.mxu0 0.0
        %968 = vmatprep.subr.mxu0 0.0
        %969 = vmatpush1.msra.mxu0 0.0
        %970 = vmatprep.subr.mxu0 0.0
        %971 = vmatpush1.msra.mxu0 0.0
        %972 = vmatprep.subr.mxu0 0.0
        %973 = vmatpush1.msra.mxu0 0.0
        %974 = vmatprep.subr.mxu0 0.0
        %975 = vmatpush1.msra.mxu0 0.0
        %976 = vmatprep.subr.mxu0 0.0
        %977 = vmatpush1.msra.mxu0 0.0
        %978 = vmatprep.subr.mxu0 0.0
        %979 = vmatpush1.msra.mxu0 0.0
        %980 = vmatprep.subr.mxu0 0.0
        %981 = vmatpush1.msra.mxu0 0.0
        %982 = vmatprep.subr.mxu0 0.0
        %983 = vmatpush1.msra.mxu0 0.0
        %984 = vmatprep.subr.mxu0 0.0
        %985 = vmatpush1.msra.mxu0 0.0
        %986 = vmatprep.subr.mxu0 0.0
        %987 = vmatpush1.msra.mxu0 0.0
        %988 = vmatprep.subr.mxu0 0.0
        %989 = vmatpush1.msra.mxu0 0.0
        %990 = vmatprep.subr.mxu0 0.0
        %991 = vmatpush1.msra.mxu0 0.0
        %992 = vmatprep.subr.mxu0 0.0
        %993 = vmatpush1.msra.mxu0 0.0
        %994 = vmatprep.subr.mxu0 0.0
        %995 = vmatpush1.msra.mxu0 0.0
        %996 = vmatprep.subr.mxu0 0.0
        %997 = vmatpush1.msra.mxu0 0.0
        %998 = vmatprep.subr.mxu0 0.0
        %999 = vmatpush1.msra.mxu0 0.0
        %1000 = vmatprep.subr.mxu0 0.0
        %1001 = vmatpush1.msra.mxu0 0.0
        %1002 = vmatprep.subr.mxu0 0.0
        %1003 = vmatpush1.msra.mxu0 0.0
        %1004 = vmatprep.subr.mxu0 0.0
        %1005 = vmatpush1.msra.mxu0 0.0
        %1006 = vmatprep.subr.mxu0 0.0
        %1007 = vmatpush1.msra.mxu0 0.0
        %1008 = vmatprep.subr.mxu0 0.0
        %1009 = vmatpush1.msra.mxu0 0.0
        %1010 = vmatprep.subr.mxu0 0.0
        %1011 = vmatpush1.msra.mxu0 0.0
        %1012 = vmatprep.subr.mxu0 0.0
        %1013 = vmatpush1.msra.mxu0 0.0
        %1014 = vmatprep.subr.mxu0 0.0
        %1015 = vmatpush1.msra.mxu0 0.0
        %1016 = vmatprep.subr.mxu0 0.0
        %1017 = vmatpush1.msra.mxu0 0.0
        %1018 = vmatprep.subr.mxu0 0.0
        %1019 = vmatpush1.msra.mxu0 0.0
        %1020 = vmatprep.mubr.f32.mxu0 0.0
        %1021 = vmatmul.mubr.f32.gmra.mrb[0].mxu0 %v933
        %v1022 = vpop.f32.mrb[0].mxu0
        %v1023 = vadd.f32 0.0, %v1022
        %v1024 = vpop.f32.mrb[0].mxu0
        %v1025 = vadd.f32 0.0, %v1024
        %1026 = vmatprep.mubr.f32.mxu0 0.0
        %1027 = vmatmul.mubr.f32.gmra.mrb[0].mxu0 %v936
        %v1028 = vpop.f32.mrb[0].mxu0
        %v1029 = vadd.f32 0.0, %v1028
        %v1030 = vpop.f32.mrb[0].mxu0
        %v1031 = vadd.f32 0.0, %v1030
        %1032 = vmatprep.mubr.f32.mxu0 0.0
        %1033 = vmatmul.mubr.f32.gmra.mrb[0].mxu0 %v939
        %v1034 = vpop.f32.mrb[0].mxu0
        %v1035 = vadd.f32 0.0, %v1034
        %v1036 = vpop.f32.mrb[0].mxu0
        %v1037 = vadd.f32 0.0, %v1036
        %1038 = vmatprep.mubr.f32.mxu0 0.0
        %1039 = vmatmul.mubr.f32.gmra.mrb[0].mxu0 %v942
        %v1040 = vpop.f32.mrb[0].mxu0
        %v1041 = vadd.f32 0.0, %v1040
        %v1042 = vpop.f32.mrb[0].mxu0
        %v1043 = vadd.f32 0.0, %v1042
        %1044 = vdwg.mxu0
        %1045 = vmatprep.subr.mxu0 %v765
        %1046 = vmatpush1.msra.mxu0 %v764
        %1047 = vmatprep.subr.mxu0 %v807
        %1048 = vmatpush1.msra.mxu0 %v806
        %1049 = vmatprep.subr.mxu0 %v914
        %1050 = vmatpush1.msra.mxu0 %v913
        %1051 = vmatprep.subr.mxu0 %v950
        %1052 = vmatpush1.msra.mxu0 %v948
        %1053 = vmatprep.subr.mxu0 0.0
        %1054 = vmatpush1.msra.mxu0 0.0
        %1055 = vmatprep.subr.mxu0 0.0
        %1056 = vmatpush1.msra.mxu0 0.0
        %1057 = vmatprep.subr.mxu0 0.0
        %1058 = vmatpush1.msra.mxu0 0.0
        %1059 = vmatprep.subr.mxu0 0.0
        %1060 = vmatpush1.msra.mxu0 0.0
        %1061 = vmatprep.subr.mxu0 0.0
        %1062 = vmatpush1.msra.mxu0 0.0
        %1063 = vmatprep.subr.mxu0 0.0
        %1064 = vmatpush1.msra.mxu0 0.0
        %1065 = vmatprep.subr.mxu0 0.0
        %1066 = vmatpush1.msra.mxu0 0.0
        %1067 = vmatprep.subr.mxu0 0.0
        %1068 = vmatpush1.msra.mxu0 0.0
        %1069 = vmatprep.subr.mxu0 0.0
        %1070 = vmatpush1.msra.mxu0 0.0
        %1071 = vmatprep.subr.mxu0 0.0
        %1072 = vmatpush1.msra.mxu0 0.0
        %1073 = vmatprep.subr.mxu0 0.0
        %1074 = vmatpush1.msra.mxu0 0.0
        %1075 = vmatprep.subr.mxu0 0.0
        %1076 = vmatpush1.msra.mxu0 0.0
        %1077 = vmatprep.subr.mxu0 0.0
        %1078 = vmatpush1.msra.mxu0 0.0
        %1079 = vmatprep.subr.mxu0 0.0
        %1080 = vmatpush1.msra.mxu0 0.0
        %1081 = vmatprep.subr.mxu0 0.0
        %1082 = vmatpush1.msra.mxu0 0.0
        %1083 = vmatprep.subr.mxu0 0.0
        %1084 = vmatpush1.msra.mxu0 0.0
        %1085 = vmatprep.subr.mxu0 0.0
        %1086 = vmatpush1.msra.mxu0 0.0
        %1087 = vmatprep.subr.mxu0 0.0
        %1088 = vmatpush1.msra.mxu0 0.0
        %1089 = vmatprep.subr.mxu0 0.0
        %1090 = vmatpush1.msra.mxu0 0.0
        %1091 = vmatprep.subr.mxu0 0.0
        %1092 = vmatpush1.msra.mxu0 0.0
        %1093 = vmatprep.subr.mxu0 0.0
        %1094 = vmatpush1.msra.mxu0 0.0
        %1095 = vmatprep.subr.mxu0 0.0
        %1096 = vmatpush1.msra.mxu0 0.0
        %1097 = vmatprep.subr.mxu0 0.0
        %1098 = vmatpush1.msra.mxu0 0.0
        %1099 = vmatprep.subr.mxu0 0.0
        %1100 = vmatpush1.msra.mxu0 0.0
        %1101 = vmatprep.subr.mxu0 0.0
        %1102 = vmatpush1.msra.mxu0 0.0
        %1103 = vmatprep.subr.mxu0 0.0
        %1104 = vmatpush1.msra.mxu0 0.0
        %1105 = vmatprep.subr.mxu0 0.0
        %1106 = vmatpush1.msra.mxu0 0.0
        %1107 = vmatprep.subr.mxu0 0.0
        %1108 = vmatpush1.msra.mxu0 0.0
        %1109 = vmatprep.mubr.f32.mxu0 0.0
        %1110 = vmatmul.mubr.f32.gmra.mrb[0].mxu0 %v933
        %v1111 = vpop.f32.mrb[0].mxu0
        %v1112 = vadd.f32 0.0, %v1111
        %v1113 = vpop.f32.mrb[0].mxu0
        %v1114 = vadd.f32 0.0, %v1113
        %1115 = vmatprep.mubr.f32.mxu0 0.0
        %1116 = vmatmul.mubr.f32.gmra.mrb[0].mxu0 %v936
        %v1117 = vpop.f32.mrb[0].mxu0
        %v1118 = vadd.f32 0.0, %v1117
        %v1119 = vpop.f32.mrb[0].mxu0
        %v1120 = vadd.f32 0.0, %v1119
        %1121 = vmatprep.mubr.f32.mxu0 0.0
        %1122 = vmatmul.mubr.f32.gmra.mrb[0].mxu0 %v939
        %v1123 = vpop.f32.mrb[0].mxu0
        %v1124 = vadd.f32 0.0, %v1123
        %v1125 = vpop.f32.mrb[0].mxu0
        %v1126 = vadd.f32 0.0, %v1125
        %1127 = vmatprep.mubr.f32.mxu0 0.0
        %1128 = vmatmul.mubr.f32.gmra.mrb[0].mxu0 %v942
        %v1129 = vpop.f32.mrb[0].mxu0
        %v1130 = vadd.f32 0.0, %v1129
        %v1131 = vpop.f32.mrb[0].mxu0
        %v1132 = vadd.f32 0.0, %v1131
        %1133 = vdwg.mxu0
        %1134 = vmatprep.subr.mxu0 %v767
        %1135 = vmatpush1.msra.mxu0 %v766
        %1136 = vmatprep.subr.mxu0 %v809
        %1137 = vmatpush1.msra.mxu0 %v808
        %1138 = vmatprep.subr.mxu0 %v897
        %1139 = vmatpush1.msra.mxu0 %v915
        %1140 = vmatprep.subr.mxu0 %v954
        %1141 = vmatpush1.msra.mxu0 %v952
        %1142 = vmatprep.subr.mxu0 0.0
        %1143 = vmatpush1.msra.mxu0 0.0
        %1144 = vmatprep.subr.mxu0 0.0
        %1145 = vmatpush1.msra.mxu0 0.0
        %1146 = vmatprep.subr.mxu0 0.0
        %1147 = vmatpush1.msra.mxu0 0.0
        %1148 = vmatprep.subr.mxu0 0.0
        %1149 = vmatpush1.msra.mxu0 0.0
        %1150 = vmatprep.subr.mxu0 0.0
        %1151 = vmatpush1.msra.mxu0 0.0
        %1152 = vmatprep.subr.mxu0 0.0
        %1153 = vmatpush1.msra.mxu0 0.0
        %1154 = vmatprep.subr.mxu0 0.0
        %1155 = vmatpush1.msra.mxu0 0.0
        %1156 = vmatprep.subr.mxu0 0.0
        %1157 = vmatpush1.msra.mxu0 0.0
        %1158 = vmatprep.subr.mxu0 0.0
        %1159 = vmatpush1.msra.mxu0 0.0
        %1160 = vmatprep.subr.mxu0 0.0
        %1161 = vmatpush1.msra.mxu0 0.0
        %1162 = vmatprep.subr.mxu0 0.0
        %1163 = vmatpush1.msra.mxu0 0.0
        %1164 = vmatprep.subr.mxu0 0.0
        %1165 = vmatpush1.msra.mxu0 0.0
        %1166 = vmatprep.subr.mxu0 0.0
        %1167 = vmatpush1.msra.mxu0 0.0
        %1168 = vmatprep.subr.mxu0 0.0
        %1169 = vmatpush1.msra.mxu0 0.0
        %1170 = vmatprep.subr.mxu0 0.0
        %1171 = vmatpush1.msra.mxu0 0.0
        %1172 = vmatprep.subr.mxu0 0.0
        %1173 = vmatpush1.msra.mxu0 0.0
        %1174 = vmatprep.subr.mxu0 0.0
        %1175 = vmatpush1.msra.mxu0 0.0
        %1176 = vmatprep.subr.mxu0 0.0
        %1177 = vmatpush1.msra.mxu0 0.0
        %1178 = vmatprep.subr.mxu0 0.0
        %1179 = vmatpush1.msra.mxu0 0.0
        %1180 = vmatprep.subr.mxu0 0.0
        %1181 = vmatpush1.msra.mxu0 0.0
        %1182 = vmatprep.subr.mxu0 0.0
        %1183 = vmatpush1.msra.mxu0 0.0
        %1184 = vmatprep.subr.mxu0 0.0
        %1185 = vmatpush1.msra.mxu0 0.0
        %1186 = vmatprep.subr.mxu0 0.0
        %1187 = vmatpush1.msra.mxu0 0.0
        %1188 = vmatprep.subr.mxu0 0.0
        %1189 = vmatpush1.msra.mxu0 0.0
        %1190 = vmatprep.subr.mxu0 0.0
        %1191 = vmatpush1.msra.mxu0 0.0
        %1192 = vmatprep.subr.mxu0 0.0
        %1193 = vmatpush1.msra.mxu0 0.0
        %1194 = vmatprep.subr.mxu0 0.0
        %1195 = vmatpush1.msra.mxu0 0.0
        %1196 = vmatprep.subr.mxu0 0.0
        %1197 = vmatpush1.msra.mxu0 0.0
        %1198 = vmatprep.mubr.f32.mxu0 0.0
        %1199 = vmatmul.mubr.f32.gmra.mrb[0].mxu0 %v933
        %v1200 = vpop.f32.mrb[0].mxu0
        %v1201 = vadd.f32 0.0, %v1200
        %v1202 = vpop.f32.mrb[0].mxu0
        %v1203 = vadd.f32 0.0, %v1202
        %1204 = vmatprep.mubr.f32.mxu0 0.0
        %1205 = vmatmul.mubr.f32.gmra.mrb[0].mxu0 %v936
        %v1206 = vpop.f32.mrb[0].mxu0
        %v1207 = vadd.f32 0.0, %v1206
        %v1208 = vpop.f32.mrb[0].mxu0
        %v1209 = vadd.f32 0.0, %v1208
        %1210 = vmatprep.mubr.f32.mxu0 0.0
        %1211 = vmatmul.mubr.f32.gmra.mrb[0].mxu0 %v939
        %v1212 = vpop.f32.mrb[0].mxu0
        %v1213 = vadd.f32 0.0, %v1212
        %v1214 = vpop.f32.mrb[0].mxu0
        %v1215 = vadd.f32 0.0, %v1214
        %1216 = vmatprep.mubr.f32.mxu0 0.0
        %1217 = vmatmul.mubr.f32.gmra.mrb[0].mxu0 %v942
        %v1218 = vpop.f32.mrb[0].mxu0
        %v1219 = vadd.f32 0.0, %v1218
        %v1220 = vpop.f32.mrb[0].mxu0
        %v1221 = vadd.f32 0.0, %v1220
        %1222 = vdwg.mxu0
        %v1223 = vld [vmem:[%s2] sm:$0xff]
        %v1224 = vld [vmem:[%s2 + $0x8] sm:$0xff]
        %v1225 = vld [vmem:[%s2 + $0x10] sm:$0xff]
        %v1226 = vld [vmem:[%s2 + $0x18] sm:$0xff]
        %1228 = vset.pattern.permute.xlu0 0
        %1229 = vperm.xlu0 %1228, %v1223
        %v1230 = vpop.permute.xlu0 %1229
        %1233 = vset.pattern.permute.xlu0 0
        %1234 = vperm.xlu0 %1233, %v1224
        %v1235 = vpop.permute.xlu0 %1234
        %1238 = vset.pattern.permute.xlu0 0
        %1239 = vperm.xlu0 %1238, %v1225
        %v1240 = vpop.permute.xlu0 %1239
        %1243 = vset.pattern.permute.xlu0 0
        %1244 = vperm.xlu0 %1243, %v1226
        %v1245 = vpop.permute.xlu0 %1244
        %v1247 = vmul.f32 %v1023, %v1230
        %v1248 = vmul.f32 %v1025, %v1230
        %v1249 = vmul.f32 %v1112, %v1230
        %v1250 = vmul.f32 %v1114, %v1230
        %v1251 = vmul.f32 %v1201, %v1230
        %v1252 = vmul.f32 %v1203, %v1230
        %v1253 = vmul.f32 %v1029, %v1235
        %v1254 = vmul.f32 %v1031, %v1235
        %v1255 = vmul.f32 %v1118, %v1235
        %v1256 = vmul.f32 %v1120, %v1235
        %v1257 = vmul.f32 %v1207, %v1235
        %v1258 = vmul.f32 %v1209, %v1235
        %v1259 = vmul.f32 %v1035, %v1240
        %v1260 = vmul.f32 %v1037, %v1240
        %v1261 = vmul.f32 %v1124, %v1240
        %v1262 = vmul.f32 %v1126, %v1240
        %v1263 = vmul.f32 %v1213, %v1240
        %v1264 = vmul.f32 %v1215, %v1240
        %v1265 = vmul.f32 %v1041, %v1245
        %v1266 = vmul.f32 %v1043, %v1245
        %v1267 = vmul.f32 %v1130, %v1245
        %v1268 = vmul.f32 %v1132, %v1245
        %v1269 = vmul.f32 %v1219, %v1245
        %v1270 = vmul.f32 %v1221, %v1245
        %v1271 = vld [vmem:[%s3] sm:$0xff]
        %v1272 = vld [vmem:[%s3 + $0x8] sm:$0xff]
        %v1273 = vld [vmem:[%s3 + $0x10] sm:$0xff]
        %v1274 = vld [vmem:[%s3 + $0x18] sm:$0xff]
        %1276 = vset.pattern.permute.xlu0 0
        %1277 = vperm.xlu0 %1276, %v1271
        %v1278 = vpop.permute.xlu0 %1277
        %1281 = vset.pattern.permute.xlu0 0
        %1282 = vperm.xlu0 %1281, %v1272
        %v1283 = vpop.permute.xlu0 %1282
        %1286 = vset.pattern.permute.xlu0 0
        %1287 = vperm.xlu0 %1286, %v1273
        %v1288 = vpop.permute.xlu0 %1287
        %1291 = vset.pattern.permute.xlu0 0
        %1292 = vperm.xlu0 %1291, %v1274
        %v1293 = vpop.permute.xlu0 %1292
        %v1295 = vadd.f32 %v1247, %v1278
        %v1296 = vadd.f32 %v1248, %v1278
        %v1297 = vadd.f32 %v1249, %v1278
        %v1298 = vadd.f32 %v1250, %v1278
        %v1299 = vadd.f32 %v1251, %v1278
        %v1300 = vadd.f32 %v1252, %v1278
        %v1301 = vadd.f32 %v1253, %v1283
        %v1302 = vadd.f32 %v1254, %v1283
        %v1303 = vadd.f32 %v1255, %v1283
        %v1304 = vadd.f32 %v1256, %v1283
        %v1305 = vadd.f32 %v1257, %v1283
        %v1306 = vadd.f32 %v1258, %v1283
        %v1307 = vadd.f32 %v1259, %v1288
        %v1308 = vadd.f32 %v1260, %v1288
        %v1309 = vadd.f32 %v1261, %v1288
        %v1310 = vadd.f32 %v1262, %v1288
        %v1311 = vadd.f32 %v1263, %v1288
        %v1312 = vadd.f32 %v1264, %v1288
        %v1313 = vadd.f32 %v1265, %v1293
        %v1314 = vadd.f32 %v1266, %v1293
        %v1315 = vadd.f32 %v1267, %v1293
        %v1316 = vadd.f32 %v1268, %v1293
        %v1317 = vadd.f32 %v1269, %v1293
        %v1318 = vadd.f32 %v1270, %v1293
        %v1319 = vmax.f32 %v1295, 0.0
        %v1320 = vmax.f32 %v1296, 0.0
        %v1321 = vmax.f32 %v1297, 0.0
        %v1322 = vmax.f32 %v1298, 0.0
        %v1323 = vmax.f32 %v1299, 0.0
        %v1324 = vmax.f32 %v1300, 0.0
        %v1325 = vmax.f32 %v1301, 0.0
        %v1326 = vmax.f32 %v1302, 0.0
        %v1327 = vmax.f32 %v1303, 0.0
        %v1328 = vmax.f32 %v1304, 0.0
        %v1329 = vmax.f32 %v1305, 0.0
        %v1330 = vmax.f32 %v1306, 0.0
        %v1331 = vmax.f32 %v1307, 0.0
        %v1332 = vmax.f32 %v1308, 0.0
        %v1333 = vmax.f32 %v1309, 0.0
        %v1334 = vmax.f32 %v1310, 0.0
        %v1335 = vmax.f32 %v1311, 0.0
        %v1336 = vmax.f32 %v1312, 0.0
        %v1337 = vmax.f32 %v1313, 0.0
        %v1338 = vmax.f32 %v1314, 0.0
        %v1339 = vmax.f32 %v1315, 0.0
        %v1340 = vmax.f32 %v1316, 0.0
        %v1341 = vmax.f32 %v1317, 0.0
        %v1342 = vmax.f32 %v1318, 0.0
        %1363 = vrot.lane.b32.xlu0 %v1319, 127
        %v1364 = vpop.permute.xlu0 %1363
        %1365 = vrot.lane.b32.xlu0 %v1320, 127
        %v1366 = vpop.permute.xlu0 %1365
        %1367 = vrot.lane.b32.xlu0 %v1321, 127
        %v1368 = vpop.permute.xlu0 %1367
        %1369 = vrot.lane.b32.xlu0 %v1322, 127
        %v1370 = vpop.permute.xlu0 %1369
        %1371 = vrot.lane.b32.xlu0 %v1323, 127
        %v1372 = vpop.permute.xlu0 %1371
        %1373 = vrot.lane.b32.xlu0 %v1325, 127
        %v1374 = vpop.permute.xlu0 %1373
        %1375 = vrot.lane.b32.xlu0 %v1326, 127
        %v1376 = vpop.permute.xlu0 %1375
        %1377 = vrot.lane.b32.xlu0 %v1327, 127
        %v1378 = vpop.permute.xlu0 %1377
        %1379 = vrot.lane.b32.xlu0 %v1328, 127
        %v1380 = vpop.permute.xlu0 %1379
        %1381 = vrot.lane.b32.xlu0 %v1329, 127
        %v1382 = vpop.permute.xlu0 %1381
        %1383 = vrot.lane.b32.xlu0 %v1331, 127
        %v1384 = vpop.permute.xlu0 %1383
        %1385 = vrot.lane.b32.xlu0 %v1332, 127
        %v1386 = vpop.permute.xlu0 %1385
        %1387 = vrot.lane.b32.xlu0 %v1333, 127
        %v1388 = vpop.permute.xlu0 %1387
        %1389 = vrot.lane.b32.xlu0 %v1334, 127
        %v1390 = vpop.permute.xlu0 %1389
        %1391 = vrot.lane.b32.xlu0 %v1335, 127
        %v1392 = vpop.permute.xlu0 %1391
        %1393 = vrot.lane.b32.xlu0 %v1337, 127
        %v1394 = vpop.permute.xlu0 %1393
        %1395 = vrot.lane.b32.xlu0 %v1338, 127
        %v1396 = vpop.permute.xlu0 %1395
        %1397 = vrot.lane.b32.xlu0 %v1339, 127
        %v1398 = vpop.permute.xlu0 %1397
        %1399 = vrot.lane.b32.xlu0 %v1340, 127
        %v1400 = vpop.permute.xlu0 %1399
        %1401 = vrot.lane.b32.xlu0 %v1341, 127
        %v1402 = vpop.permute.xlu0 %1401
        %v1403 = vsel %vm371, %v1364, %v1366
        %v1404 = vsel %vm371, %v1366, %v1368
        %v1405 = vsel %vm371, %v1368, %v1370
        %v1406 = vsel %vm371, %v1370, %v1372
        %v1407 = vsel %vm371, %v1374, %v1376
        %v1408 = vsel %vm371, %v1376, %v1378
        %v1409 = vsel %vm371, %v1378, %v1380
        %v1410 = vsel %vm371, %v1380, %v1382
        %v1411 = vsel %vm371, %v1384, %v1386
        %v1412 = vsel %vm371, %v1386, %v1388
        %v1413 = vsel %vm371, %v1388, %v1390
        %v1414 = vsel %vm371, %v1390, %v1392
        %v1415 = vsel %vm371, %v1394, %v1396
        %v1416 = vsel %vm371, %v1396, %v1398
        %v1417 = vsel %vm371, %v1398, %v1400
        %v1418 = vsel %vm371, %v1400, %v1402
        %1439 = vrot.lane.b32.xlu0 %v1319, 126
        %v1440 = vpop.permute.xlu0 %1439
        %1441 = vrot.lane.b32.xlu0 %v1320, 126
        %v1442 = vpop.permute.xlu0 %1441
        %1443 = vrot.lane.b32.xlu0 %v1321, 126
        %v1444 = vpop.permute.xlu0 %1443
        %1445 = vrot.lane.b32.xlu0 %v1322, 126
        %v1446 = vpop.permute.xlu0 %1445
        %1447 = vrot.lane.b32.xlu0 %v1323, 126
        %v1448 = vpop.permute.xlu0 %1447
        %1449 = vrot.lane.b32.xlu0 %v1325, 126
        %v1450 = vpop.permute.xlu0 %1449
        %1451 = vrot.lane.b32.xlu0 %v1326, 126
        %v1452 = vpop.permute.xlu0 %1451
        %1453 = vrot.lane.b32.xlu0 %v1327, 126
        %v1454 = vpop.permute.xlu0 %1453
        %1455 = vrot.lane.b32.xlu0 %v1328, 126
        %v1456 = vpop.permute.xlu0 %1455
        %1457 = vrot.lane.b32.xlu0 %v1329, 126
        %v1458 = vpop.permute.xlu0 %1457
        %1459 = vrot.lane.b32.xlu0 %v1331, 126
        %v1460 = vpop.permute.xlu0 %1459
        %1461 = vrot.lane.b32.xlu0 %v1332, 126
        %v1462 = vpop.permute.xlu0 %1461
        %1463 = vrot.lane.b32.xlu0 %v1333, 126
        %v1464 = vpop.permute.xlu0 %1463
        %1465 = vrot.lane.b32.xlu0 %v1334, 126
        %v1466 = vpop.permute.xlu0 %1465
        %1467 = vrot.lane.b32.xlu0 %v1335, 126
        %v1468 = vpop.permute.xlu0 %1467
        %1469 = vrot.lane.b32.xlu0 %v1337, 126
        %v1470 = vpop.permute.xlu0 %1469
        %1471 = vrot.lane.b32.xlu0 %v1338, 126
        %v1472 = vpop.permute.xlu0 %1471
        %1473 = vrot.lane.b32.xlu0 %v1339, 126
        %v1474 = vpop.permute.xlu0 %1473
        %1475 = vrot.lane.b32.xlu0 %v1340, 126
        %v1476 = vpop.permute.xlu0 %1475
        %1477 = vrot.lane.b32.xlu0 %v1341, 126
        %v1478 = vpop.permute.xlu0 %1477
        %v1479 = vsel %vm395, %v1440, %v1442
        %v1480 = vsel %vm395, %v1442, %v1444
        %v1481 = vsel %vm395, %v1444, %v1446
        %v1482 = vsel %vm395, %v1446, %v1448
        %v1483 = vsel %vm395, %v1450, %v1452
        %v1484 = vsel %vm395, %v1452, %v1454
        %v1485 = vsel %vm395, %v1454, %v1456
        %v1486 = vsel %vm395, %v1456, %v1458
        %v1487 = vsel %vm395, %v1460, %v1462
        %v1488 = vsel %vm395, %v1462, %v1464
        %v1489 = vsel %vm395, %v1464, %v1466
        %v1490 = vsel %vm395, %v1466, %v1468
        %v1491 = vsel %vm395, %v1470, %v1472
        %v1492 = vsel %vm395, %v1472, %v1474
        %v1493 = vsel %vm395, %v1474, %v1476
        %v1494 = vsel %vm395, %v1476, %v1478
        %1515 = vrot.lane.b32.xlu0 %v1319, 125
        %v1516 = vpop.permute.xlu0 %1515
        %1517 = vrot.lane.b32.xlu0 %v1320, 125
        %v1518 = vpop.permute.xlu0 %1517
        %1519 = vrot.lane.b32.xlu0 %v1321, 125
        %v1520 = vpop.permute.xlu0 %1519
        %1521 = vrot.lane.b32.xlu0 %v1322, 125
        %v1522 = vpop.permute.xlu0 %1521
        %1523 = vrot.lane.b32.xlu0 %v1323, 125
        %v1524 = vpop.permute.xlu0 %1523
        %1525 = vrot.lane.b32.xlu0 %v1325, 125
        %v1526 = vpop.permute.xlu0 %1525
        %1527 = vrot.lane.b32.xlu0 %v1326, 125
        %v1528 = vpop.permute.xlu0 %1527
        %1529 = vrot.lane.b32.xlu0 %v1327, 125
        %v1530 = vpop.permute.xlu0 %1529
        %1531 = vrot.lane.b32.xlu0 %v1328, 125
        %v1532 = vpop.permute.xlu0 %1531
        %1533 = vrot.lane.b32.xlu0 %v1329, 125
        %v1534 = vpop.permute.xlu0 %1533
        %1535 = vrot.lane.b32.xlu0 %v1331, 125
        %v1536 = vpop.permute.xlu0 %1535
        %1537 = vrot.lane.b32.xlu0 %v1332, 125
        %v1538 = vpop.permute.xlu0 %1537
        %1539 = vrot.lane.b32.xlu0 %v1333, 125
        %v1540 = vpop.permute.xlu0 %1539
        %1541 = vrot.lane.b32.xlu0 %v1334, 125
        %v1542 = vpop.permute.xlu0 %1541
        %1543 = vrot.lane.b32.xlu0 %v1335, 125
        %v1544 = vpop.permute.xlu0 %1543
        %1545 = vrot.lane.b32.xlu0 %v1337, 125
        %v1546 = vpop.permute.xlu0 %1545
        %1547 = vrot.lane.b32.xlu0 %v1338, 125
        %v1548 = vpop.permute.xlu0 %1547
        %1549 = vrot.lane.b32.xlu0 %v1339, 125
        %v1550 = vpop.permute.xlu0 %1549
        %1551 = vrot.lane.b32.xlu0 %v1340, 125
        %v1552 = vpop.permute.xlu0 %1551
        %1553 = vrot.lane.b32.xlu0 %v1341, 125
        %v1554 = vpop.permute.xlu0 %1553
        %v1555 = vsel %vm419, %v1516, %v1518
        %v1556 = vsel %vm419, %v1518, %v1520
        %v1557 = vsel %vm419, %v1520, %v1522
        %v1558 = vsel %vm419, %v1522, %v1524
        %v1559 = vsel %vm419, %v1526, %v1528
        %v1560 = vsel %vm419, %v1528, %v1530
        %v1561 = vsel %vm419, %v1530, %v1532
        %v1562 = vsel %vm419, %v1532, %v1534
        %v1563 = vsel %vm419, %v1536, %v1538
        %v1564 = vsel %vm419, %v1538, %v1540
        %v1565 = vsel %vm419, %v1540, %v1542
        %v1566 = vsel %vm419, %v1542, %v1544
        %v1567 = vsel %vm419, %v1546, %v1548
        %v1568 = vsel %vm419, %v1548, %v1550
        %v1569 = vsel %vm419, %v1550, %v1552
        %v1570 = vsel %vm419, %v1552, %v1554
        %1591 = vrot.lane.b32.xlu0 %v1319, 124
        %v1592 = vpop.permute.xlu0 %1591
        %1593 = vrot.lane.b32.xlu0 %v1320, 124
        %v1594 = vpop.permute.xlu0 %1593
        %1595 = vrot.lane.b32.xlu0 %v1321, 124
        %v1596 = vpop.permute.xlu0 %1595
        %1597 = vrot.lane.b32.xlu0 %v1322, 124
        %v1598 = vpop.permute.xlu0 %1597
        %1599 = vrot.lane.b32.xlu0 %v1323, 124
        %v1600 = vpop.permute.xlu0 %1599
        %1601 = vrot.lane.b32.xlu0 %v1325, 124
        %v1602 = vpop.permute.xlu0 %1601
        %1603 = vrot.lane.b32.xlu0 %v1326, 124
        %v1604 = vpop.permute.xlu0 %1603
        %1605 = vrot.lane.b32.xlu0 %v1327, 124
        %v1606 = vpop.permute.xlu0 %1605
        %1607 = vrot.lane.b32.xlu0 %v1328, 124
        %v1608 = vpop.permute.xlu0 %1607
        %1609 = vrot.lane.b32.xlu0 %v1329, 124
        %v1610 = vpop.permute.xlu0 %1609
        %1611 = vrot.lane.b32.xlu0 %v1331, 124
        %v1612 = vpop.permute.xlu0 %1611
        %1613 = vrot.lane.b32.xlu0 %v1332, 124
        %v1614 = vpop.permute.xlu0 %1613
        %1615 = vrot.lane.b32.xlu0 %v1333, 124
        %v1616 = vpop.permute.xlu0 %1615
        %1617 = vrot.lane.b32.xlu0 %v1334, 124
        %v1618 = vpop.permute.xlu0 %1617
        %1619 = vrot.lane.b32.xlu0 %v1335, 124
        %v1620 = vpop.permute.xlu0 %1619
        %1621 = vrot.lane.b32.xlu0 %v1337, 124
        %v1622 = vpop.permute.xlu0 %1621
        %1623 = vrot.lane.b32.xlu0 %v1338, 124
        %v1624 = vpop.permute.xlu0 %1623
        %1625 = vrot.lane.b32.xlu0 %v1339, 124
        %v1626 = vpop.permute.xlu0 %1625
        %1627 = vrot.lane.b32.xlu0 %v1340, 124
        %v1628 = vpop.permute.xlu0 %1627
        %1629 = vrot.lane.b32.xlu0 %v1341, 124
        %v1630 = vpop.permute.xlu0 %1629
        %v1631 = vsel %vm443, %v1592, %v1594
        %v1632 = vsel %vm443, %v1594, %v1596
        %v1633 = vsel %vm443, %v1596, %v1598
        %v1634 = vsel %vm443, %v1598, %v1600
        %v1635 = vsel %vm443, %v1602, %v1604
        %v1636 = vsel %vm443, %v1604, %v1606
        %v1637 = vsel %vm443, %v1606, %v1608
        %v1638 = vsel %vm443, %v1608, %v1610
        %v1639 = vsel %vm443, %v1612, %v1614
        %v1640 = vsel %vm443, %v1614, %v1616
        %v1641 = vsel %vm443, %v1616, %v1618
        %v1642 = vsel %vm443, %v1618, %v1620
        %v1643 = vsel %vm443, %v1622, %v1624
        %v1644 = vsel %vm443, %v1624, %v1626
        %v1645 = vsel %vm443, %v1626, %v1628
        %v1646 = vsel %vm443, %v1628, %v1630
        %1667 = vrot.lane.b32.xlu0 %v1319, 100
        %v1668 = vpop.permute.xlu0 %1667
        %1669 = vrot.lane.b32.xlu0 %v1320, 100
        %v1670 = vpop.permute.xlu0 %1669
        %1671 = vrot.lane.b32.xlu0 %v1321, 100
        %v1672 = vpop.permute.xlu0 %1671
        %1673 = vrot.lane.b32.xlu0 %v1322, 100
        %v1674 = vpop.permute.xlu0 %1673
        %1675 = vrot.lane.b32.xlu0 %v1323, 100
        %v1676 = vpop.permute.xlu0 %1675
        %1677 = vrot.lane.b32.xlu0 %v1325, 100
        %v1678 = vpop.permute.xlu0 %1677
        %1679 = vrot.lane.b32.xlu0 %v1326, 100
        %v1680 = vpop.permute.xlu0 %1679
        %1681 = vrot.lane.b32.xlu0 %v1327, 100
        %v1682 = vpop.permute.xlu0 %1681
        %1683 = vrot.lane.b32.xlu0 %v1328, 100
        %v1684 = vpop.permute.xlu0 %1683
        %1685 = vrot.lane.b32.xlu0 %v1329, 100
        %v1686 = vpop.permute.xlu0 %1685
        %1687 = vrot.lane.b32.xlu0 %v1331, 100
        %v1688 = vpop.permute.xlu0 %1687
        %1689 = vrot.lane.b32.xlu0 %v1332, 100
        %v1690 = vpop.permute.xlu0 %1689
        %1691 = vrot.lane.b32.xlu0 %v1333, 100
        %v1692 = vpop.permute.xlu0 %1691
        %1693 = vrot.lane.b32.xlu0 %v1334, 100
        %v1694 = vpop.permute.xlu0 %1693
        %1695 = vrot.lane.b32.xlu0 %v1335, 100
        %v1696 = vpop.permute.xlu0 %1695
        %1697 = vrot.lane.b32.xlu0 %v1337, 100
        %v1698 = vpop.permute.xlu0 %1697
        %1699 = vrot.lane.b32.xlu0 %v1338, 100
        %v1700 = vpop.permute.xlu0 %1699
        %1701 = vrot.lane.b32.xlu0 %v1339, 100
        %v1702 = vpop.permute.xlu0 %1701
        %1703 = vrot.lane.b32.xlu0 %v1340, 100
        %v1704 = vpop.permute.xlu0 %1703
        %1705 = vrot.lane.b32.xlu0 %v1341, 100
        %v1706 = vpop.permute.xlu0 %1705
        %v1707 = vsel %vm467, %v1668, %v1670
        %v1708 = vsel %vm467, %v1670, %v1672
        %v1709 = vsel %vm467, %v1672, %v1674
        %v1710 = vsel %vm467, %v1674, %v1676
        %v1711 = vsel %vm467, %v1678, %v1680
        %v1712 = vsel %vm467, %v1680, %v1682
        %v1713 = vsel %vm467, %v1682, %v1684
        %v1714 = vsel %vm467, %v1684, %v1686
        %v1715 = vsel %vm467, %v1688, %v1690
        %v1716 = vsel %vm467, %v1690, %v1692
        %v1717 = vsel %vm467, %v1692, %v1694
        %v1718 = vsel %vm467, %v1694, %v1696
        %v1719 = vsel %vm467, %v1698, %v1700
        %v1720 = vsel %vm467, %v1700, %v1702
        %v1721 = vsel %vm467, %v1702, %v1704
        %v1722 = vsel %vm467, %v1704, %v1706
        %1743 = vrot.lane.b32.xlu0 %v1319, 99
        %v1744 = vpop.permute.xlu0 %1743
        %1745 = vrot.lane.b32.xlu0 %v1320, 99
        %v1746 = vpop.permute.xlu0 %1745
        %1747 = vrot.lane.b32.xlu0 %v1321, 99
        %v1748 = vpop.permute.xlu0 %1747
        %1749 = vrot.lane.b32.xlu0 %v1322, 99
        %v1750 = vpop.permute.xlu0 %1749
        %1751 = vrot.lane.b32.xlu0 %v1323, 99
        %v1752 = vpop.permute.xlu0 %1751
        %1753 = vrot.lane.b32.xlu0 %v1325, 99
        %v1754 = vpop.permute.xlu0 %1753
        %1755 = vrot.lane.b32.xlu0 %v1326, 99
        %v1756 = vpop.permute.xlu0 %1755
        %1757 = vrot.lane.b32.xlu0 %v1327, 99
        %v1758 = vpop.permute.xlu0 %1757
        %1759 = vrot.lane.b32.xlu0 %v1328, 99
        %v1760 = vpop.permute.xlu0 %1759
        %1761 = vrot.lane.b32.xlu0 %v1329, 99
        %v1762 = vpop.permute.xlu0 %1761
        %1763 = vrot.lane.b32.xlu0 %v1331, 99
        %v1764 = vpop.permute.xlu0 %1763
        %1765 = vrot.lane.b32.xlu0 %v1332, 99
        %v1766 = vpop.permute.xlu0 %1765
        %1767 = vrot.lane.b32.xlu0 %v1333, 99
        %v1768 = vpop.permute.xlu0 %1767
        %1769 = vrot.lane.b32.xlu0 %v1334, 99
        %v1770 = vpop.permute.xlu0 %1769
        %1771 = vrot.lane.b32.xlu0 %v1335, 99
        %v1772 = vpop.permute.xlu0 %1771
        %1773 = vrot.lane.b32.xlu0 %v1337, 99
        %v1774 = vpop.permute.xlu0 %1773
        %1775 = vrot.lane.b32.xlu0 %v1338, 99
        %v1776 = vpop.permute.xlu0 %1775
        %1777 = vrot.lane.b32.xlu0 %v1339, 99
        %v1778 = vpop.permute.xlu0 %1777
        %1779 = vrot.lane.b32.xlu0 %v1340, 99
        %v1780 = vpop.permute.xlu0 %1779
        %1781 = vrot.lane.b32.xlu0 %v1341, 99
        %v1782 = vpop.permute.xlu0 %1781
        %v1783 = vsel %vm491, %v1744, %v1746
        %v1784 = vsel %vm491, %v1746, %v1748
        %v1785 = vsel %vm491, %v1748, %v1750
        %v1786 = vsel %vm491, %v1750, %v1752
        %v1787 = vsel %vm491, %v1754, %v1756
        %v1788 = vsel %vm491, %v1756, %v1758
        %v1789 = vsel %vm491, %v1758, %v1760
        %v1790 = vsel %vm491, %v1760, %v1762
        %v1791 = vsel %vm491, %v1764, %v1766
        %v1792 = vsel %vm491, %v1766, %v1768
        %v1793 = vsel %vm491, %v1768, %v1770
        %v1794 = vsel %vm491, %v1770, %v1772
        %v1795 = vsel %vm491, %v1774, %v1776
        %v1796 = vsel %vm491, %v1776, %v1778
        %v1797 = vsel %vm491, %v1778, %v1780
        %v1798 = vsel %vm491, %v1780, %v1782
        %1819 = vrot.lane.b32.xlu0 %v1319, 98
        %v1820 = vpop.permute.xlu0 %1819
        %1821 = vrot.lane.b32.xlu0 %v1320, 98
        %v1822 = vpop.permute.xlu0 %1821
        %1823 = vrot.lane.b32.xlu0 %v1321, 98
        %v1824 = vpop.permute.xlu0 %1823
        %1825 = vrot.lane.b32.xlu0 %v1322, 98
        %v1826 = vpop.permute.xlu0 %1825
        %1827 = vrot.lane.b32.xlu0 %v1323, 98
        %v1828 = vpop.permute.xlu0 %1827
        %1829 = vrot.lane.b32.xlu0 %v1325, 98
        %v1830 = vpop.permute.xlu0 %1829
        %1831 = vrot.lane.b32.xlu0 %v1326, 98
        %v1832 = vpop.permute.xlu0 %1831
        %1833 = vrot.lane.b32.xlu0 %v1327, 98
        %v1834 = vpop.permute.xlu0 %1833
        %1835 = vrot.lane.b32.xlu0 %v1328, 98
        %v1836 = vpop.permute.xlu0 %1835
        %1837 = vrot.lane.b32.xlu0 %v1329, 98
        %v1838 = vpop.permute.xlu0 %1837
        %1839 = vrot.lane.b32.xlu0 %v1331, 98
        %v1840 = vpop.permute.xlu0 %1839
        %1841 = vrot.lane.b32.xlu0 %v1332, 98
        %v1842 = vpop.permute.xlu0 %1841
        %1843 = vrot.lane.b32.xlu0 %v1333, 98
        %v1844 = vpop.permute.xlu0 %1843
        %1845 = vrot.lane.b32.xlu0 %v1334, 98
        %v1846 = vpop.permute.xlu0 %1845
        %1847 = vrot.lane.b32.xlu0 %v1335, 98
        %v1848 = vpop.permute.xlu0 %1847
        %1849 = vrot.lane.b32.xlu0 %v1337, 98
        %v1850 = vpop.permute.xlu0 %1849
        %1851 = vrot.lane.b32.xlu0 %v1338, 98
        %v1852 = vpop.permute.xlu0 %1851
        %1853 = vrot.lane.b32.xlu0 %v1339, 98
        %v1854 = vpop.permute.xlu0 %1853
        %1855 = vrot.lane.b32.xlu0 %v1340, 98
        %v1856 = vpop.permute.xlu0 %1855
        %1857 = vrot.lane.b32.xlu0 %v1341, 98
        %v1858 = vpop.permute.xlu0 %1857
        %v1859 = vsel %vm515, %v1820, %v1822
        %v1860 = vsel %vm515, %v1822, %v1824
        %v1861 = vsel %vm515, %v1824, %v1826
        %v1862 = vsel %vm515, %v1826, %v1828
        %v1863 = vsel %vm515, %v1830, %v1832
        %v1864 = vsel %vm515, %v1832, %v1834
        %v1865 = vsel %vm515, %v1834, %v1836
        %v1866 = vsel %vm515, %v1836, %v1838
        %v1867 = vsel %vm515, %v1840, %v1842
        %v1868 = vsel %vm515, %v1842, %v1844
        %v1869 = vsel %vm515, %v1844, %v1846
        %v1870 = vsel %vm515, %v1846, %v1848
        %v1871 = vsel %vm515, %v1850, %v1852
        %v1872 = vsel %vm515, %v1852, %v1854
        %v1873 = vsel %vm515, %v1854, %v1856
        %v1874 = vsel %vm515, %v1856, %v1858
        %1895 = vrot.lane.b32.xlu0 %v1319, 97
        %v1896 = vpop.permute.xlu0 %1895
        %1897 = vrot.lane.b32.xlu0 %v1320, 97
        %v1898 = vpop.permute.xlu0 %1897
        %1899 = vrot.lane.b32.xlu0 %v1321, 97
        %v1900 = vpop.permute.xlu0 %1899
        %1901 = vrot.lane.b32.xlu0 %v1322, 97
        %v1902 = vpop.permute.xlu0 %1901
        %1903 = vrot.lane.b32.xlu0 %v1323, 97
        %v1904 = vpop.permute.xlu0 %1903
        %1905 = vrot.lane.b32.xlu0 %v1325, 97
        %v1906 = vpop.permute.xlu0 %1905
        %1907 = vrot.lane.b32.xlu0 %v1326, 97
        %v1908 = vpop.permute.xlu0 %1907
        %1909 = vrot.lane.b32.xlu0 %v1327, 97
        %v1910 = vpop.permute.xlu0 %1909
        %1911 = vrot.lane.b32.xlu0 %v1328, 97
        %v1912 = vpop.permute.xlu0 %1911
        %1913 = vrot.lane.b32.xlu0 %v1329, 97
        %v1914 = vpop.permute.xlu0 %1913
        %1915 = vrot.lane.b32.xlu0 %v1331, 97
        %v1916 = vpop.permute.xlu0 %1915
        %1917 = vrot.lane.b32.xlu0 %v1332, 97
        %v1918 = vpop.permute.xlu0 %1917
        %1919 = vrot.lane.b32.xlu0 %v1333, 97
        %v1920 = vpop.permute.xlu0 %1919
        %1921 = vrot.lane.b32.xlu0 %v1334, 97
        %v1922 = vpop.permute.xlu0 %1921
        %1923 = vrot.lane.b32.xlu0 %v1335, 97
        %v1924 = vpop.permute.xlu0 %1923
        %1925 = vrot.lane.b32.xlu0 %v1337, 97
        %v1926 = vpop.permute.xlu0 %1925
        %1927 = vrot.lane.b32.xlu0 %v1338, 97
        %v1928 = vpop.permute.xlu0 %1927
        %1929 = vrot.lane.b32.xlu0 %v1339, 97
        %v1930 = vpop.permute.xlu0 %1929
        %1931 = vrot.lane.b32.xlu0 %v1340, 97
        %v1932 = vpop.permute.xlu0 %1931
        %1933 = vrot.lane.b32.xlu0 %v1341, 97
        %v1934 = vpop.permute.xlu0 %1933
        %v1935 = vsel %vm539, %v1896, %v1898
        %v1936 = vsel %vm539, %v1898, %v1900
        %v1937 = vsel %vm539, %v1900, %v1902
        %v1938 = vsel %vm539, %v1902, %v1904
        %v1939 = vsel %vm539, %v1906, %v1908
        %v1940 = vsel %vm539, %v1908, %v1910
        %v1941 = vsel %vm539, %v1910, %v1912
        %v1942 = vsel %vm539, %v1912, %v1914
        %v1943 = vsel %vm539, %v1916, %v1918
        %v1944 = vsel %vm539, %v1918, %v1920
        %v1945 = vsel %vm539, %v1920, %v1922
        %v1946 = vsel %vm539, %v1922, %v1924
        %v1947 = vsel %vm539, %v1926, %v1928
        %v1948 = vsel %vm539, %v1928, %v1930
        %v1949 = vsel %vm539, %v1930, %v1932
        %v1950 = vsel %vm539, %v1932, %v1934
        %1971 = vrot.lane.b32.xlu0 %v1319, 96
        %v1972 = vpop.permute.xlu0 %1971
        %1973 = vrot.lane.b32.xlu0 %v1320, 96
        %v1974 = vpop.permute.xlu0 %1973
        %1975 = vrot.lane.b32.xlu0 %v1321, 96
        %v1976 = vpop.permute.xlu0 %1975
        %1977 = vrot.lane.b32.xlu0 %v1322, 96
        %v1978 = vpop.permute.xlu0 %1977
        %1979 = vrot.lane.b32.xlu0 %v1323, 96
        %v1980 = vpop.permute.xlu0 %1979
        %1981 = vrot.lane.b32.xlu0 %v1325, 96
        %v1982 = vpop.permute.xlu0 %1981
        %1983 = vrot.lane.b32.xlu0 %v1326, 96
        %v1984 = vpop.permute.xlu0 %1983
        %1985 = vrot.lane.b32.xlu0 %v1327, 96
        %v1986 = vpop.permute.xlu0 %1985
        %1987 = vrot.lane.b32.xlu0 %v1328, 96
        %v1988 = vpop.permute.xlu0 %1987
        %1989 = vrot.lane.b32.xlu0 %v1329, 96
        %v1990 = vpop.permute.xlu0 %1989
        %1991 = vrot.lane.b32.xlu0 %v1331, 96
        %v1992 = vpop.permute.xlu0 %1991
        %1993 = vrot.lane.b32.xlu0 %v1332, 96
        %v1994 = vpop.permute.xlu0 %1993
        %1995 = vrot.lane.b32.xlu0 %v1333, 96
        %v1996 = vpop.permute.xlu0 %1995
        %1997 = vrot.lane.b32.xlu0 %v1334, 96
        %v1998 = vpop.permute.xlu0 %1997
        %1999 = vrot.lane.b32.xlu0 %v1335, 96
        %v2000 = vpop.permute.xlu0 %1999
        %2001 = vrot.lane.b32.xlu0 %v1337, 96
        %v2002 = vpop.permute.xlu0 %2001
        %2003 = vrot.lane.b32.xlu0 %v1338, 96
        %v2004 = vpop.permute.xlu0 %2003
        %2005 = vrot.lane.b32.xlu0 %v1339, 96
        %v2006 = vpop.permute.xlu0 %2005
        %2007 = vrot.lane.b32.xlu0 %v1340, 96
        %v2008 = vpop.permute.xlu0 %2007
        %2009 = vrot.lane.b32.xlu0 %v1341, 96
        %v2010 = vpop.permute.xlu0 %2009
        %v2011 = vsel %vm563, %v1972, %v1974
        %v2012 = vsel %vm563, %v1974, %v1976
        %v2013 = vsel %vm563, %v1976, %v1978
        %v2014 = vsel %vm563, %v1978, %v1980
        %v2015 = vsel %vm563, %v1982, %v1984
        %v2016 = vsel %vm563, %v1984, %v1986
        %v2017 = vsel %vm563, %v1986, %v1988
        %v2018 = vsel %vm563, %v1988, %v1990
        %v2019 = vsel %vm563, %v1992, %v1994
        %v2020 = vsel %vm563, %v1994, %v1996
        %v2021 = vsel %vm563, %v1996, %v1998
        %v2022 = vsel %vm563, %v1998, %v2000
        %v2023 = vsel %vm563, %v2002, %v2004
        %v2024 = vsel %vm563, %v2004, %v2006
        %v2025 = vsel %vm563, %v2006, %v2008
        %v2026 = vsel %vm563, %v2008, %v2010
        %2047 = vrot.lane.b32.xlu0 %v1319, 72
        %v2048 = vpop.permute.xlu0 %2047
        %2049 = vrot.lane.b32.xlu0 %v1320, 72
        %v2050 = vpop.permute.xlu0 %2049
        %2051 = vrot.lane.b32.xlu0 %v1321, 72
        %v2052 = vpop.permute.xlu0 %2051
        %2053 = vrot.lane.b32.xlu0 %v1322, 72
        %v2054 = vpop.permute.xlu0 %2053
        %2055 = vrot.lane.b32.xlu0 %v1323, 72
        %v2056 = vpop.permute.xlu0 %2055
        %2057 = vrot.lane.b32.xlu0 %v1325, 72
        %v2058 = vpop.permute.xlu0 %2057
        %2059 = vrot.lane.b32.xlu0 %v1326, 72
        %v2060 = vpop.permute.xlu0 %2059
        %2061 = vrot.lane.b32.xlu0 %v1327, 72
        %v2062 = vpop.permute.xlu0 %2061
        %2063 = vrot.lane.b32.xlu0 %v1328, 72
        %v2064 = vpop.permute.xlu0 %2063
        %2065 = vrot.lane.b32.xlu0 %v1329, 72
        %v2066 = vpop.permute.xlu0 %2065
        %2067 = vrot.lane.b32.xlu0 %v1331, 72
        %v2068 = vpop.permute.xlu0 %2067
        %2069 = vrot.lane.b32.xlu0 %v1332, 72
        %v2070 = vpop.permute.xlu0 %2069
        %2071 = vrot.lane.b32.xlu0 %v1333, 72
        %v2072 = vpop.permute.xlu0 %2071
        %2073 = vrot.lane.b32.xlu0 %v1334, 72
        %v2074 = vpop.permute.xlu0 %2073
        %2075 = vrot.lane.b32.xlu0 %v1335, 72
        %v2076 = vpop.permute.xlu0 %2075
        %2077 = vrot.lane.b32.xlu0 %v1337, 72
        %v2078 = vpop.permute.xlu0 %2077
        %2079 = vrot.lane.b32.xlu0 %v1338, 72
        %v2080 = vpop.permute.xlu0 %2079
        %2081 = vrot.lane.b32.xlu0 %v1339, 72
        %v2082 = vpop.permute.xlu0 %2081
        %2083 = vrot.lane.b32.xlu0 %v1340, 72
        %v2084 = vpop.permute.xlu0 %2083
        %2085 = vrot.lane.b32.xlu0 %v1341, 72
        %v2086 = vpop.permute.xlu0 %2085
        %v2087 = vsel %vm587, %v2048, %v2050
        %v2088 = vsel %vm587, %v2050, %v2052
        %v2089 = vsel %vm587, %v2052, %v2054
        %v2090 = vsel %vm587, %v2054, %v2056
        %v2091 = vsel %vm587, %v2058, %v2060
        %v2092 = vsel %vm587, %v2060, %v2062
        %v2093 = vsel %vm587, %v2062, %v2064
        %v2094 = vsel %vm587, %v2064, %v2066
        %v2095 = vsel %vm587, %v2068, %v2070
        %v2096 = vsel %vm587, %v2070, %v2072
        %v2097 = vsel %vm587, %v2072, %v2074
        %v2098 = vsel %vm587, %v2074, %v2076
        %v2099 = vsel %vm587, %v2078, %v2080
        %v2100 = vsel %vm587, %v2080, %v2082
        %v2101 = vsel %vm587, %v2082, %v2084
        %v2102 = vsel %vm587, %v2084, %v2086
        %2123 = vrot.lane.b32.xlu0 %v1319, 71
        %v2124 = vpop.permute.xlu0 %2123
        %2125 = vrot.lane.b32.xlu0 %v1320, 71
        %v2126 = vpop.permute.xlu0 %2125
        %2127 = vrot.lane.b32.xlu0 %v1321, 71
        %v2128 = vpop.permute.xlu0 %2127
        %2129 = vrot.lane.b32.xlu0 %v1322, 71
        %v2130 = vpop.permute.xlu0 %2129
        %2131 = vrot.lane.b32.xlu0 %v1323, 71
        %v2132 = vpop.permute.xlu0 %2131
        %2133 = vrot.lane.b32.xlu0 %v1325, 71
        %v2134 = vpop.permute.xlu0 %2133
        %2135 = vrot.lane.b32.xlu0 %v1326, 71
        %v2136 = vpop.permute.xlu0 %2135
        %2137 = vrot.lane.b32.xlu0 %v1327, 71
        %v2138 = vpop.permute.xlu0 %2137
        %2139 = vrot.lane.b32.xlu0 %v1328, 71
        %v2140 = vpop.permute.xlu0 %2139
        %2141 = vrot.lane.b32.xlu0 %v1329, 71
        %v2142 = vpop.permute.xlu0 %2141
        %2143 = vrot.lane.b32.xlu0 %v1331, 71
        %v2144 = vpop.permute.xlu0 %2143
        %2145 = vrot.lane.b32.xlu0 %v1332, 71
        %v2146 = vpop.permute.xlu0 %2145
        %2147 = vrot.lane.b32.xlu0 %v1333, 71
        %v2148 = vpop.permute.xlu0 %2147
        %2149 = vrot.lane.b32.xlu0 %v1334, 71
        %v2150 = vpop.permute.xlu0 %2149
        %2151 = vrot.lane.b32.xlu0 %v1335, 71
        %v2152 = vpop.permute.xlu0 %2151
        %2153 = vrot.lane.b32.xlu0 %v1337, 71
        %v2154 = vpop.permute.xlu0 %2153
        %2155 = vrot.lane.b32.xlu0 %v1338, 71
        %v2156 = vpop.permute.xlu0 %2155
        %2157 = vrot.lane.b32.xlu0 %v1339, 71
        %v2158 = vpop.permute.xlu0 %2157
        %2159 = vrot.lane.b32.xlu0 %v1340, 71
        %v2160 = vpop.permute.xlu0 %2159
        %2161 = vrot.lane.b32.xlu0 %v1341, 71
        %v2162 = vpop.permute.xlu0 %2161
        %v2163 = vsel %vm611, %v2124, %v2126
        %v2164 = vsel %vm611, %v2126, %v2128
        %v2165 = vsel %vm611, %v2128, %v2130
        %v2166 = vsel %vm611, %v2130, %v2132
        %v2167 = vsel %vm611, %v2134, %v2136
        %v2168 = vsel %vm611, %v2136, %v2138
        %v2169 = vsel %vm611, %v2138, %v2140
        %v2170 = vsel %vm611, %v2140, %v2142
        %v2171 = vsel %vm611, %v2144, %v2146
        %v2172 = vsel %vm611, %v2146, %v2148
        %v2173 = vsel %vm611, %v2148, %v2150
        %v2174 = vsel %vm611, %v2150, %v2152
        %v2175 = vsel %vm611, %v2154, %v2156
        %v2176 = vsel %vm611, %v2156, %v2158
        %v2177 = vsel %vm611, %v2158, %v2160
        %v2178 = vsel %vm611, %v2160, %v2162
        %2199 = vrot.lane.b32.xlu0 %v1319, 70
        %v2200 = vpop.permute.xlu0 %2199
        %2201 = vrot.lane.b32.xlu0 %v1320, 70
        %v2202 = vpop.permute.xlu0 %2201
        %2203 = vrot.lane.b32.xlu0 %v1321, 70
        %v2204 = vpop.permute.xlu0 %2203
        %2205 = vrot.lane.b32.xlu0 %v1322, 70
        %v2206 = vpop.permute.xlu0 %2205
        %2207 = vrot.lane.b32.xlu0 %v1323, 70
        %v2208 = vpop.permute.xlu0 %2207
        %2209 = vrot.lane.b32.xlu0 %v1325, 70
        %v2210 = vpop.permute.xlu0 %2209
        %2211 = vrot.lane.b32.xlu0 %v1326, 70
        %v2212 = vpop.permute.xlu0 %2211
        %2213 = vrot.lane.b32.xlu0 %v1327, 70
        %v2214 = vpop.permute.xlu0 %2213
        %2215 = vrot.lane.b32.xlu0 %v1328, 70
        %v2216 = vpop.permute.xlu0 %2215
        %2217 = vrot.lane.b32.xlu0 %v1329, 70
        %v2218 = vpop.permute.xlu0 %2217
        %2219 = vrot.lane.b32.xlu0 %v1331, 70
        %v2220 = vpop.permute.xlu0 %2219
        %2221 = vrot.lane.b32.xlu0 %v1332, 70
        %v2222 = vpop.permute.xlu0 %2221
        %2223 = vrot.lane.b32.xlu0 %v1333, 70
        %v2224 = vpop.permute.xlu0 %2223
        %2225 = vrot.lane.b32.xlu0 %v1334, 70
        %v2226 = vpop.permute.xlu0 %2225
        %2227 = vrot.lane.b32.xlu0 %v1335, 70
        %v2228 = vpop.permute.xlu0 %2227
        %2229 = vrot.lane.b32.xlu0 %v1337, 70
        %v2230 = vpop.permute.xlu0 %2229
        %2231 = vrot.lane.b32.xlu0 %v1338, 70
        %v2232 = vpop.permute.xlu0 %2231
        %2233 = vrot.lane.b32.xlu0 %v1339, 70
        %v2234 = vpop.permute.xlu0 %2233
        %2235 = vrot.lane.b32.xlu0 %v1340, 70
        %v2236 = vpop.permute.xlu0 %2235
        %2237 = vrot.lane.b32.xlu0 %v1341, 70
        %v2238 = vpop.permute.xlu0 %2237
        %v2239 = vsel %vm635, %v2200, %v2202
        %v2240 = vsel %vm635, %v2202, %v2204
        %v2241 = vsel %vm635, %v2204, %v2206
        %v2242 = vsel %vm635, %v2206, %v2208
        %v2243 = vsel %vm635, %v2210, %v2212
        %v2244 = vsel %vm635, %v2212, %v2214
        %v2245 = vsel %vm635, %v2214, %v2216
        %v2246 = vsel %vm635, %v2216, %v2218
        %v2247 = vsel %vm635, %v2220, %v2222
        %v2248 = vsel %vm635, %v2222, %v2224
        %v2249 = vsel %vm635, %v2224, %v2226
        %v2250 = vsel %vm635, %v2226, %v2228
        %v2251 = vsel %vm635, %v2230, %v2232
        %v2252 = vsel %vm635, %v2232, %v2234
        %v2253 = vsel %vm635, %v2234, %v2236
        %v2254 = vsel %vm635, %v2236, %v2238
        %2275 = vrot.lane.b32.xlu0 %v1319, 69
        %v2276 = vpop.permute.xlu0 %2275
        %2277 = vrot.lane.b32.xlu0 %v1320, 69
        %v2278 = vpop.permute.xlu0 %2277
        %2279 = vrot.lane.b32.xlu0 %v1321, 69
        %v2280 = vpop.permute.xlu0 %2279
        %2281 = vrot.lane.b32.xlu0 %v1322, 69
        %v2282 = vpop.permute.xlu0 %2281
        %2283 = vrot.lane.b32.xlu0 %v1323, 69
        %v2284 = vpop.permute.xlu0 %2283
        %2285 = vrot.lane.b32.xlu0 %v1325, 69
        %v2286 = vpop.permute.xlu0 %2285
        %2287 = vrot.lane.b32.xlu0 %v1326, 69
        %v2288 = vpop.permute.xlu0 %2287
        %2289 = vrot.lane.b32.xlu0 %v1327, 69
        %v2290 = vpop.permute.xlu0 %2289
        %2291 = vrot.lane.b32.xlu0 %v1328, 69
        %v2292 = vpop.permute.xlu0 %2291
        %2293 = vrot.lane.b32.xlu0 %v1329, 69
        %v2294 = vpop.permute.xlu0 %2293
        %2295 = vrot.lane.b32.xlu0 %v1331, 69
        %v2296 = vpop.permute.xlu0 %2295
        %2297 = vrot.lane.b32.xlu0 %v1332, 69
        %v2298 = vpop.permute.xlu0 %2297
        %2299 = vrot.lane.b32.xlu0 %v1333, 69
        %v2300 = vpop.permute.xlu0 %2299
        %2301 = vrot.lane.b32.xlu0 %v1334, 69
        %v2302 = vpop.permute.xlu0 %2301
        %2303 = vrot.lane.b32.xlu0 %v1335, 69
        %v2304 = vpop.permute.xlu0 %2303
        %2305 = vrot.lane.b32.xlu0 %v1337, 69
        %v2306 = vpop.permute.xlu0 %2305
        %2307 = vrot.lane.b32.xlu0 %v1338, 69
        %v2308 = vpop.permute.xlu0 %2307
        %2309 = vrot.lane.b32.xlu0 %v1339, 69
        %v2310 = vpop.permute.xlu0 %2309
        %2311 = vrot.lane.b32.xlu0 %v1340, 69
        %v2312 = vpop.permute.xlu0 %2311
        %2313 = vrot.lane.b32.xlu0 %v1341, 69
        %v2314 = vpop.permute.xlu0 %2313
        %v2315 = vsel %vm659, %v2276, %v2278
        %v2316 = vsel %vm659, %v2278, %v2280
        %v2317 = vsel %vm659, %v2280, %v2282
        %v2318 = vsel %vm659, %v2282, %v2284
        %v2319 = vsel %vm659, %v2286, %v2288
        %v2320 = vsel %vm659, %v2288, %v2290
        %v2321 = vsel %vm659, %v2290, %v2292
        %v2322 = vsel %vm659, %v2292, %v2294
        %v2323 = vsel %vm659, %v2296, %v2298
        %v2324 = vsel %vm659, %v2298, %v2300
        %v2325 = vsel %vm659, %v2300, %v2302
        %v2326 = vsel %vm659, %v2302, %v2304
        %v2327 = vsel %vm659, %v2306, %v2308
        %v2328 = vsel %vm659, %v2308, %v2310
        %v2329 = vsel %vm659, %v2310, %v2312
        %v2330 = vsel %vm659, %v2312, %v2314
        %2351 = vrot.lane.b32.xlu0 %v1319, 68
        %v2352 = vpop.permute.xlu0 %2351
        %2353 = vrot.lane.b32.xlu0 %v1320, 68
        %v2354 = vpop.permute.xlu0 %2353
        %2355 = vrot.lane.b32.xlu0 %v1321, 68
        %v2356 = vpop.permute.xlu0 %2355
        %2357 = vrot.lane.b32.xlu0 %v1322, 68
        %v2358 = vpop.permute.xlu0 %2357
        %2359 = vrot.lane.b32.xlu0 %v1323, 68
        %v2360 = vpop.permute.xlu0 %2359
        %2361 = vrot.lane.b32.xlu0 %v1325, 68
        %v2362 = vpop.permute.xlu0 %2361
        %2363 = vrot.lane.b32.xlu0 %v1326, 68
        %v2364 = vpop.permute.xlu0 %2363
        %2365 = vrot.lane.b32.xlu0 %v1327, 68
        %v2366 = vpop.permute.xlu0 %2365
        %2367 = vrot.lane.b32.xlu0 %v1328, 68
        %v2368 = vpop.permute.xlu0 %2367
        %2369 = vrot.lane.b32.xlu0 %v1329, 68
        %v2370 = vpop.permute.xlu0 %2369
        %2371 = vrot.lane.b32.xlu0 %v1331, 68
        %v2372 = vpop.permute.xlu0 %2371
        %2373 = vrot.lane.b32.xlu0 %v1332, 68
        %v2374 = vpop.permute.xlu0 %2373
        %2375 = vrot.lane.b32.xlu0 %v1333, 68
        %v2376 = vpop.permute.xlu0 %2375
        %2377 = vrot.lane.b32.xlu0 %v1334, 68
        %v2378 = vpop.permute.xlu0 %2377
        %2379 = vrot.lane.b32.xlu0 %v1335, 68
        %v2380 = vpop.permute.xlu0 %2379
        %2381 = vrot.lane.b32.xlu0 %v1337, 68
        %v2382 = vpop.permute.xlu0 %2381
        %2383 = vrot.lane.b32.xlu0 %v1338, 68
        %v2384 = vpop.permute.xlu0 %2383
        %2385 = vrot.lane.b32.xlu0 %v1339, 68
        %v2386 = vpop.permute.xlu0 %2385
        %2387 = vrot.lane.b32.xlu0 %v1340, 68
        %v2388 = vpop.permute.xlu0 %2387
        %2389 = vrot.lane.b32.xlu0 %v1341, 68
        %v2390 = vpop.permute.xlu0 %2389
        %v2391 = vsel %vm683, %v2352, %v2354
        %v2392 = vsel %vm683, %v2354, %v2356
        %v2393 = vsel %vm683, %v2356, %v2358
        %v2394 = vsel %vm683, %v2358, %v2360
        %v2395 = vsel %vm683, %v2362, %v2364
        %v2396 = vsel %vm683, %v2364, %v2366
        %v2397 = vsel %vm683, %v2366, %v2368
        %v2398 = vsel %vm683, %v2368, %v2370
        %v2399 = vsel %vm683, %v2372, %v2374
        %v2400 = vsel %vm683, %v2374, %v2376
        %v2401 = vsel %vm683, %v2376, %v2378
        %v2402 = vsel %vm683, %v2378, %v2380
        %v2403 = vsel %vm683, %v2382, %v2384
        %v2404 = vsel %vm683, %v2384, %v2386
        %v2405 = vsel %vm683, %v2386, %v2388
        %v2406 = vsel %vm683, %v2388, %v2390
        %2427 = vrot.lane.b32.xlu0 %v1319, 44
        %v2428 = vpop.permute.xlu0 %2427
        %2429 = vrot.lane.b32.xlu0 %v1320, 44
        %v2430 = vpop.permute.xlu0 %2429
        %2431 = vrot.lane.b32.xlu0 %v1321, 44
        %v2432 = vpop.permute.xlu0 %2431
        %2433 = vrot.lane.b32.xlu0 %v1322, 44
        %v2434 = vpop.permute.xlu0 %2433
        %2435 = vrot.lane.b32.xlu0 %v1323, 44
        %v2436 = vpop.permute.xlu0 %2435
        %2437 = vrot.lane.b32.xlu0 %v1325, 44
        %v2438 = vpop.permute.xlu0 %2437
        %2439 = vrot.lane.b32.xlu0 %v1326, 44
        %v2440 = vpop.permute.xlu0 %2439
        %2441 = vrot.lane.b32.xlu0 %v1327, 44
        %v2442 = vpop.permute.xlu0 %2441
        %2443 = vrot.lane.b32.xlu0 %v1328, 44
        %v2444 = vpop.permute.xlu0 %2443
        %2445 = vrot.lane.b32.xlu0 %v1329, 44
        %v2446 = vpop.permute.xlu0 %2445
        %2447 = vrot.lane.b32.xlu0 %v1331, 44
        %v2448 = vpop.permute.xlu0 %2447
        %2449 = vrot.lane.b32.xlu0 %v1332, 44
        %v2450 = vpop.permute.xlu0 %2449
        %2451 = vrot.lane.b32.xlu0 %v1333, 44
        %v2452 = vpop.permute.xlu0 %2451
        %2453 = vrot.lane.b32.xlu0 %v1334, 44
        %v2454 = vpop.permute.xlu0 %2453
        %2455 = vrot.lane.b32.xlu0 %v1335, 44
        %v2456 = vpop.permute.xlu0 %2455
        %2457 = vrot.lane.b32.xlu0 %v1337, 44
        %v2458 = vpop.permute.xlu0 %2457
        %2459 = vrot.lane.b32.xlu0 %v1338, 44
        %v2460 = vpop.permute.xlu0 %2459
        %2461 = vrot.lane.b32.xlu0 %v1339, 44
        %v2462 = vpop.permute.xlu0 %2461
        %2463 = vrot.lane.b32.xlu0 %v1340, 44
        %v2464 = vpop.permute.xlu0 %2463
        %2465 = vrot.lane.b32.xlu0 %v1341, 44
        %v2466 = vpop.permute.xlu0 %2465
        %v2467 = vsel %vm707, %v2428, %v2430
        %v2468 = vsel %vm707, %v2430, %v2432
        %v2469 = vsel %vm707, %v2432, %v2434
        %v2470 = vsel %vm707, %v2434, %v2436
        %v2471 = vsel %vm707, %v2438, %v2440
        %v2472 = vsel %vm707, %v2440, %v2442
        %v2473 = vsel %vm707, %v2442, %v2444
        %v2474 = vsel %vm707, %v2444, %v2446
        %v2475 = vsel %vm707, %v2448, %v2450
        %v2476 = vsel %vm707, %v2450, %v2452
        %v2477 = vsel %vm707, %v2452, %v2454
        %v2478 = vsel %vm707, %v2454, %v2456
        %v2479 = vsel %vm707, %v2458, %v2460
        %v2480 = vsel %vm707, %v2460, %v2462
        %v2481 = vsel %vm707, %v2462, %v2464
        %v2482 = vsel %vm707, %v2464, %v2466
        %2507 = vrot.lane.b32.xlu0 %v1319, 101
        %v2508 = vpop.permute.xlu0 %2507
        %2509 = vrot.lane.b32.xlu0 %v1320, 101
        %v2510 = vpop.permute.xlu0 %2509
        %2511 = vrot.lane.b32.xlu0 %v1321, 101
        %v2512 = vpop.permute.xlu0 %2511
        %2513 = vrot.lane.b32.xlu0 %v1322, 101
        %v2514 = vpop.permute.xlu0 %2513
        %2515 = vrot.lane.b32.xlu0 %v1323, 101
        %v2516 = vpop.permute.xlu0 %2515
        %2517 = vrot.lane.b32.xlu0 %v1324, 101
        %v2518 = vpop.permute.xlu0 %2517
        %2519 = vrot.lane.b32.xlu0 %v1325, 101
        %v2520 = vpop.permute.xlu0 %2519
        %2521 = vrot.lane.b32.xlu0 %v1326, 101
        %v2522 = vpop.permute.xlu0 %2521
        %2523 = vrot.lane.b32.xlu0 %v1327, 101
        %v2524 = vpop.permute.xlu0 %2523
        %2525 = vrot.lane.b32.xlu0 %v1328, 101
        %v2526 = vpop.permute.xlu0 %2525
        %2527 = vrot.lane.b32.xlu0 %v1329, 101
        %v2528 = vpop.permute.xlu0 %2527
        %2529 = vrot.lane.b32.xlu0 %v1330, 101
        %v2530 = vpop.permute.xlu0 %2529
        %2531 = vrot.lane.b32.xlu0 %v1331, 101
        %v2532 = vpop.permute.xlu0 %2531
        %2533 = vrot.lane.b32.xlu0 %v1332, 101
        %v2534 = vpop.permute.xlu0 %2533
        %2535 = vrot.lane.b32.xlu0 %v1333, 101
        %v2536 = vpop.permute.xlu0 %2535
        %2537 = vrot.lane.b32.xlu0 %v1334, 101
        %v2538 = vpop.permute.xlu0 %2537
        %2539 = vrot.lane.b32.xlu0 %v1335, 101
        %v2540 = vpop.permute.xlu0 %2539
        %2541 = vrot.lane.b32.xlu0 %v1336, 101
        %v2542 = vpop.permute.xlu0 %2541
        %2543 = vrot.lane.b32.xlu0 %v1337, 101
        %v2544 = vpop.permute.xlu0 %2543
        %2545 = vrot.lane.b32.xlu0 %v1338, 101
        %v2546 = vpop.permute.xlu0 %2545
        %2547 = vrot.lane.b32.xlu0 %v1339, 101
        %v2548 = vpop.permute.xlu0 %2547
        %2549 = vrot.lane.b32.xlu0 %v1340, 101
        %v2550 = vpop.permute.xlu0 %2549
        %2551 = vrot.lane.b32.xlu0 %v1341, 101
        %v2552 = vpop.permute.xlu0 %2551
        %2553 = vrot.lane.b32.xlu0 %v1342, 101
        %v2554 = vpop.permute.xlu0 %2553
        %v2555 = vsel %vm828, %v2508, %v2510
        %v2556 = vsel %vm828, %v2510, %v2512
        %v2557 = vsel %vm828, %v2512, %v2514
        %v2558 = vsel %vm828, %v2514, %v2516
        %v2559 = vsel %vm828, %v2516, %v2518
        %v2560 = vsel %vm828, %v2520, %v2522
        %v2561 = vsel %vm828, %v2522, %v2524
        %v2562 = vsel %vm828, %v2524, %v2526
        %v2563 = vsel %vm828, %v2526, %v2528
        %v2564 = vsel %vm828, %v2528, %v2530
        %v2565 = vsel %vm828, %v2532, %v2534
        %v2566 = vsel %vm828, %v2534, %v2536
        %v2567 = vsel %vm828, %v2536, %v2538
        %v2568 = vsel %vm828, %v2538, %v2540
        %v2569 = vsel %vm828, %v2540, %v2542
        %v2570 = vsel %vm828, %v2544, %v2546
        %v2571 = vsel %vm828, %v2546, %v2548
        %v2572 = vsel %vm828, %v2548, %v2550
        %v2573 = vsel %vm828, %v2550, %v2552
        %v2574 = vsel %vm828, %v2552, %v2554
        %2575 = vrot.lane.b32.xlu0 %v1324, 100
        %v2576 = vpop.permute.xlu0 %2575
        %2577 = vrot.lane.b32.xlu0 %v1330, 100
        %v2578 = vpop.permute.xlu0 %2577
        %2579 = vrot.lane.b32.xlu0 %v1336, 100
        %v2580 = vpop.permute.xlu0 %2579
        %2581 = vrot.lane.b32.xlu0 %v1342, 100
        %v2582 = vpop.permute.xlu0 %2581
        %v2583 = vsel %vm467, %v1676, %v2576
        %v2584 = vsel %vm467, %v1686, %v2578
        %v2585 = vsel %vm467, %v1696, %v2580
        %v2586 = vsel %vm467, %v1706, %v2582
        %2587 = vrot.lane.b32.xlu0 %v1324, 99
        %v2588 = vpop.permute.xlu0 %2587
        %2589 = vrot.lane.b32.xlu0 %v1330, 99
        %v2590 = vpop.permute.xlu0 %2589
        %2591 = vrot.lane.b32.xlu0 %v1336, 99
        %v2592 = vpop.permute.xlu0 %2591
        %2593 = vrot.lane.b32.xlu0 %v1342, 99
        %v2594 = vpop.permute.xlu0 %2593
        %v2595 = vsel %vm491, %v1752, %v2588
        %v2596 = vsel %vm491, %v1762, %v2590
        %v2597 = vsel %vm491, %v1772, %v2592
        %v2598 = vsel %vm491, %v1782, %v2594
        %2599 = vrot.lane.b32.xlu0 %v1324, 98
        %v2600 = vpop.permute.xlu0 %2599
        %2601 = vrot.lane.b32.xlu0 %v1330, 98
        %v2602 = vpop.permute.xlu0 %2601
        %2603 = vrot.lane.b32.xlu0 %v1336, 98
        %v2604 = vpop.permute.xlu0 %2603
        %2605 = vrot.lane.b32.xlu0 %v1342, 98
        %v2606 = vpop.permute.xlu0 %2605
        %v2607 = vsel %vm515, %v1828, %v2600
        %v2608 = vsel %vm515, %v1838, %v2602
        %v2609 = vsel %vm515, %v1848, %v2604
        %v2610 = vsel %vm515, %v1858, %v2606
        %2611 = vrot.lane.b32.xlu0 %v1324, 97
        %v2612 = vpop.permute.xlu0 %2611
        %2613 = vrot.lane.b32.xlu0 %v1330, 97
        %v2614 = vpop.permute.xlu0 %2613
        %2615 = vrot.lane.b32.xlu0 %v1336, 97
        %v2616 = vpop.permute.xlu0 %2615
        %2617 = vrot.lane.b32.xlu0 %v1342, 97
        %v2618 = vpop.permute.xlu0 %2617
        %v2619 = vsel %vm539, %v1904, %v2612
        %v2620 = vsel %vm539, %v1914, %v2614
        %v2621 = vsel %vm539, %v1924, %v2616
        %v2622 = vsel %vm539, %v1934, %v2618
        %2623 = vrot.lane.b32.xlu0 %v1319, 43
        %v2624 = vpop.permute.xlu0 %2623
        %2625 = vrot.lane.b32.xlu0 %v1320, 43
        %v2626 = vpop.permute.xlu0 %2625
        %2627 = vrot.lane.b32.xlu0 %v1321, 43
        %v2628 = vpop.permute.xlu0 %2627
        %2629 = vrot.lane.b32.xlu0 %v1322, 43
        %v2630 = vpop.permute.xlu0 %2629
        %2631 = vrot.lane.b32.xlu0 %v1323, 43
        %v2632 = vpop.permute.xlu0 %2631
        %2633 = vrot.lane.b32.xlu0 %v1325, 43
        %v2634 = vpop.permute.xlu0 %2633
        %2635 = vrot.lane.b32.xlu0 %v1326, 43
        %v2636 = vpop.permute.xlu0 %2635
        %2637 = vrot.lane.b32.xlu0 %v1327, 43
        %v2638 = vpop.permute.xlu0 %2637
        %2639 = vrot.lane.b32.xlu0 %v1328, 43
        %v2640 = vpop.permute.xlu0 %2639
        %2641 = vrot.lane.b32.xlu0 %v1329, 43
        %v2642 = vpop.permute.xlu0 %2641
        %2643 = vrot.lane.b32.xlu0 %v1331, 43
        %v2644 = vpop.permute.xlu0 %2643
        %2645 = vrot.lane.b32.xlu0 %v1332, 43
        %v2646 = vpop.permute.xlu0 %2645
        %2647 = vrot.lane.b32.xlu0 %v1333, 43
        %v2648 = vpop.permute.xlu0 %2647
        %2649 = vrot.lane.b32.xlu0 %v1334, 43
        %v2650 = vpop.permute.xlu0 %2649
        %2651 = vrot.lane.b32.xlu0 %v1335, 43
        %v2652 = vpop.permute.xlu0 %2651
        %2653 = vrot.lane.b32.xlu0 %v1337, 43
        %v2654 = vpop.permute.xlu0 %2653
        %2655 = vrot.lane.b32.xlu0 %v1338, 43
        %v2656 = vpop.permute.xlu0 %2655
        %2657 = vrot.lane.b32.xlu0 %v1339, 43
        %v2658 = vpop.permute.xlu0 %2657
        %2659 = vrot.lane.b32.xlu0 %v1340, 43
        %v2660 = vpop.permute.xlu0 %2659
        %2661 = vrot.lane.b32.xlu0 %v1341, 43
        %v2662 = vpop.permute.xlu0 %2661
        %2663 = vrot.lane.b32.xlu0 %v1403, 43
        %v2664 = vpop.permute.xlu0 %2663
        %2665 = vrot.lane.b32.xlu0 %v1404, 43
        %v2666 = vpop.permute.xlu0 %2665
        %2667 = vrot.lane.b32.xlu0 %v1405, 43
        %v2668 = vpop.permute.xlu0 %2667
        %2669 = vrot.lane.b32.xlu0 %v1406, 43
        %v2670 = vpop.permute.xlu0 %2669
        %2671 = vrot.lane.b32.xlu0 %v1372, 43
        %v2672 = vpop.permute.xlu0 %2671
        %2673 = vrot.lane.b32.xlu0 %v1407, 43
        %v2674 = vpop.permute.xlu0 %2673
        %2675 = vrot.lane.b32.xlu0 %v1408, 43
        %v2676 = vpop.permute.xlu0 %2675
        %2677 = vrot.lane.b32.xlu0 %v1409, 43
        %v2678 = vpop.permute.xlu0 %2677
        %2679 = vrot.lane.b32.xlu0 %v1410, 43
        %v2680 = vpop.permute.xlu0 %2679
        %2681 = vrot.lane.b32.xlu0 %v1382, 43
        %v2682 = vpop.permute.xlu0 %2681
        %2683 = vrot.lane.b32.xlu0 %v1411, 43
        %v2684 = vpop.permute.xlu0 %2683
        %2685 = vrot.lane.b32.xlu0 %v1412, 43
        %v2686 = vpop.permute.xlu0 %2685
        %2687 = vrot.lane.b32.xlu0 %v1413, 43
        %v2688 = vpop.permute.xlu0 %2687
        %2689 = vrot.lane.b32.xlu0 %v1414, 43
        %v2690 = vpop.permute.xlu0 %2689
        %2691 = vrot.lane.b32.xlu0 %v1392, 43
        %v2692 = vpop.permute.xlu0 %2691
        %2693 = vrot.lane.b32.xlu0 %v1415, 43
        %v2694 = vpop.permute.xlu0 %2693
        %2695 = vrot.lane.b32.xlu0 %v1416, 43
        %v2696 = vpop.permute.xlu0 %2695
        %2697 = vrot.lane.b32.xlu0 %v1417, 43
        %v2698 = vpop.permute.xlu0 %2697
        %2699 = vrot.lane.b32.xlu0 %v1418, 43
        %v2700 = vpop.permute.xlu0 %2699
        %2701 = vrot.lane.b32.xlu0 %v1402, 43
        %v2702 = vpop.permute.xlu0 %2701
        %2703 = vrot.lane.b32.xlu0 %v1479, 43
        %v2704 = vpop.permute.xlu0 %2703
        %2705 = vrot.lane.b32.xlu0 %v1480, 43
        %v2706 = vpop.permute.xlu0 %2705
        %2707 = vrot.lane.b32.xlu0 %v1481, 43
        %v2708 = vpop.permute.xlu0 %2707
        %2709 = vrot.lane.b32.xlu0 %v1482, 43
        %v2710 = vpop.permute.xlu0 %2709
        %2711 = vrot.lane.b32.xlu0 %v1448, 43
        %v2712 = vpop.permute.xlu0 %2711
        %2713 = vrot.lane.b32.xlu0 %v1483, 43
        %v2714 = vpop.permute.xlu0 %2713
        %2715 = vrot.lane.b32.xlu0 %v1484, 43
        %v2716 = vpop.permute.xlu0 %2715
        %2717 = vrot.lane.b32.xlu0 %v1485, 43
        %v2718 = vpop.permute.xlu0 %2717
        %2719 = vrot.lane.b32.xlu0 %v1486, 43
        %v2720 = vpop.permute.xlu0 %2719
        %2721 = vrot.lane.b32.xlu0 %v1458, 43
        %v2722 = vpop.permute.xlu0 %2721
        %2723 = vrot.lane.b32.xlu0 %v1487, 43
        %v2724 = vpop.permute.xlu0 %2723
        %2725 = vrot.lane.b32.xlu0 %v1488, 43
        %v2726 = vpop.permute.xlu0 %2725
        %2727 = vrot.lane.b32.xlu0 %v1489, 43
        %v2728 = vpop.permute.xlu0 %2727
        %2729 = vrot.lane.b32.xlu0 %v1490, 43
        %v2730 = vpop.permute.xlu0 %2729
        %2731 = vrot.lane.b32.xlu0 %v1468, 43
        %v2732 = vpop.permute.xlu0 %2731
        %2733 = vrot.lane.b32.xlu0 %v1491, 43
        %v2734 = vpop.permute.xlu0 %2733
        %2735 = vrot.lane.b32.xlu0 %v1492, 43
        %v2736 = vpop.permute.xlu0 %2735
        %2737 = vrot.lane.b32.xlu0 %v1493, 43
        %v2738 = vpop.permute.xlu0 %2737
        %2739 = vrot.lane.b32.xlu0 %v1494, 43
        %v2740 = vpop.permute.xlu0 %2739
        %2741 = vrot.lane.b32.xlu0 %v1478, 43
        %v2742 = vpop.permute.xlu0 %2741
        %2743 = vrot.lane.b32.xlu0 %v1555, 43
        %v2744 = vpop.permute.xlu0 %2743
        %2745 = vrot.lane.b32.xlu0 %v1556, 43
        %v2746 = vpop.permute.xlu0 %2745
        %2747 = vrot.lane.b32.xlu0 %v1557, 43
        %v2748 = vpop.permute.xlu0 %2747
        %2749 = vrot.lane.b32.xlu0 %v1558, 43
        %v2750 = vpop.permute.xlu0 %2749
        %2751 = vrot.lane.b32.xlu0 %v1524, 43
        %v2752 = vpop.permute.xlu0 %2751
        %2753 = vrot.lane.b32.xlu0 %v1559, 43
        %v2754 = vpop.permute.xlu0 %2753
        %2755 = vrot.lane.b32.xlu0 %v1560, 43
        %v2756 = vpop.permute.xlu0 %2755
        %2757 = vrot.lane.b32.xlu0 %v1561, 43
        %v2758 = vpop.permute.xlu0 %2757
        %2759 = vrot.lane.b32.xlu0 %v1562, 43
        %v2760 = vpop.permute.xlu0 %2759
        %2761 = vrot.lane.b32.xlu0 %v1534, 43
        %v2762 = vpop.permute.xlu0 %2761
        %2763 = vrot.lane.b32.xlu0 %v1563, 43
        %v2764 = vpop.permute.xlu0 %2763
        %2765 = vrot.lane.b32.xlu0 %v1564, 43
        %v2766 = vpop.permute.xlu0 %2765
        %2767 = vrot.lane.b32.xlu0 %v1565, 43
        %v2768 = vpop.permute.xlu0 %2767
        %2769 = vrot.lane.b32.xlu0 %v1566, 43
        %v2770 = vpop.permute.xlu0 %2769
        %2771 = vrot.lane.b32.xlu0 %v1544, 43
        %v2772 = vpop.permute.xlu0 %2771
        %2773 = vrot.lane.b32.xlu0 %v1567, 43
        %v2774 = vpop.permute.xlu0 %2773
        %2775 = vrot.lane.b32.xlu0 %v1568, 43
        %v2776 = vpop.permute.xlu0 %2775
        %2777 = vrot.lane.b32.xlu0 %v1569, 43
        %v2778 = vpop.permute.xlu0 %2777
        %2779 = vrot.lane.b32.xlu0 %v1570, 43
        %v2780 = vpop.permute.xlu0 %2779
        %2781 = vrot.lane.b32.xlu0 %v1554, 43
        %v2782 = vpop.permute.xlu0 %2781
        %2783 = vrot.lane.b32.xlu0 %v2555, 43
        %v2784 = vpop.permute.xlu0 %2783
        %2785 = vrot.lane.b32.xlu0 %v2556, 43
        %v2786 = vpop.permute.xlu0 %2785
        %2787 = vrot.lane.b32.xlu0 %v2557, 43
        %v2788 = vpop.permute.xlu0 %2787
        %2789 = vrot.lane.b32.xlu0 %v2558, 43
        %v2790 = vpop.permute.xlu0 %2789
        %2791 = vrot.lane.b32.xlu0 %v2559, 43
        %v2792 = vpop.permute.xlu0 %2791
        %2793 = vrot.lane.b32.xlu0 %v2560, 43
        %v2794 = vpop.permute.xlu0 %2793
        %2795 = vrot.lane.b32.xlu0 %v2561, 43
        %v2796 = vpop.permute.xlu0 %2795
        %2797 = vrot.lane.b32.xlu0 %v2562, 43
        %v2798 = vpop.permute.xlu0 %2797
        %2799 = vrot.lane.b32.xlu0 %v2563, 43
        %v2800 = vpop.permute.xlu0 %2799
        %2801 = vrot.lane.b32.xlu0 %v2564, 43
        %v2802 = vpop.permute.xlu0 %2801
        %2803 = vrot.lane.b32.xlu0 %v2565, 43
        %v2804 = vpop.permute.xlu0 %2803
        %2805 = vrot.lane.b32.xlu0 %v2566, 43
        %v2806 = vpop.permute.xlu0 %2805
        %2807 = vrot.lane.b32.xlu0 %v2567, 43
        %v2808 = vpop.permute.xlu0 %2807
        %2809 = vrot.lane.b32.xlu0 %v2568, 43
        %v2810 = vpop.permute.xlu0 %2809
        %2811 = vrot.lane.b32.xlu0 %v2569, 43
        %v2812 = vpop.permute.xlu0 %2811
        %2813 = vrot.lane.b32.xlu0 %v2570, 43
        %v2814 = vpop.permute.xlu0 %2813
        %2815 = vrot.lane.b32.xlu0 %v2571, 43
        %v2816 = vpop.permute.xlu0 %2815
        %2817 = vrot.lane.b32.xlu0 %v2572, 43
        %v2818 = vpop.permute.xlu0 %2817
        %2819 = vrot.lane.b32.xlu0 %v2573, 43
        %v2820 = vpop.permute.xlu0 %2819
        %2821 = vrot.lane.b32.xlu0 %v2574, 43
        %v2822 = vpop.permute.xlu0 %2821
        %2823 = vrot.lane.b32.xlu0 %v1707, 43
        %v2824 = vpop.permute.xlu0 %2823
        %2825 = vrot.lane.b32.xlu0 %v1708, 43
        %v2826 = vpop.permute.xlu0 %2825
        %2827 = vrot.lane.b32.xlu0 %v1709, 43
        %v2828 = vpop.permute.xlu0 %2827
        %2829 = vrot.lane.b32.xlu0 %v1710, 43
        %v2830 = vpop.permute.xlu0 %2829
        %2831 = vrot.lane.b32.xlu0 %v2583, 43
        %v2832 = vpop.permute.xlu0 %2831
        %2833 = vrot.lane.b32.xlu0 %v1711, 43
        %v2834 = vpop.permute.xlu0 %2833
        %2835 = vrot.lane.b32.xlu0 %v1712, 43
        %v2836 = vpop.permute.xlu0 %2835
        %2837 = vrot.lane.b32.xlu0 %v1713, 43
        %v2838 = vpop.permute.xlu0 %2837
        %2839 = vrot.lane.b32.xlu0 %v1714, 43
        %v2840 = vpop.permute.xlu0 %2839
        %2841 = vrot.lane.b32.xlu0 %v2584, 43
        %v2842 = vpop.permute.xlu0 %2841
        %2843 = vrot.lane.b32.xlu0 %v1715, 43
        %v2844 = vpop.permute.xlu0 %2843
        %2845 = vrot.lane.b32.xlu0 %v1716, 43
        %v2846 = vpop.permute.xlu0 %2845
        %2847 = vrot.lane.b32.xlu0 %v1717, 43
        %v2848 = vpop.permute.xlu0 %2847
        %2849 = vrot.lane.b32.xlu0 %v1718, 43
        %v2850 = vpop.permute.xlu0 %2849
        %2851 = vrot.lane.b32.xlu0 %v2585, 43
        %v2852 = vpop.permute.xlu0 %2851
        %2853 = vrot.lane.b32.xlu0 %v1719, 43
        %v2854 = vpop.permute.xlu0 %2853
        %2855 = vrot.lane.b32.xlu0 %v1720, 43
        %v2856 = vpop.permute.xlu0 %2855
        %2857 = vrot.lane.b32.xlu0 %v1721, 43
        %v2858 = vpop.permute.xlu0 %2857
        %2859 = vrot.lane.b32.xlu0 %v1722, 43
        %v2860 = vpop.permute.xlu0 %2859
        %2861 = vrot.lane.b32.xlu0 %v2586, 43
        %v2862 = vpop.permute.xlu0 %2861
        %2863 = vrot.lane.b32.xlu0 %v1783, 43
        %v2864 = vpop.permute.xlu0 %2863
        %2865 = vrot.lane.b32.xlu0 %v1784, 43
        %v2866 = vpop.permute.xlu0 %2865
        %2867 = vrot.lane.b32.xlu0 %v1785, 43
        %v2868 = vpop.permute.xlu0 %2867
        %2869 = vrot.lane.b32.xlu0 %v1786, 43
        %v2870 = vpop.permute.xlu0 %2869
        %2871 = vrot.lane.b32.xlu0 %v2595, 43
        %v2872 = vpop.permute.xlu0 %2871
        %2873 = vrot.lane.b32.xlu0 %v1787, 43
        %v2874 = vpop.permute.xlu0 %2873
        %2875 = vrot.lane.b32.xlu0 %v1788, 43
        %v2876 = vpop.permute.xlu0 %2875
        %2877 = vrot.lane.b32.xlu0 %v1789, 43
        %v2878 = vpop.permute.xlu0 %2877
        %2879 = vrot.lane.b32.xlu0 %v1790, 43
        %v2880 = vpop.permute.xlu0 %2879
        %2881 = vrot.lane.b32.xlu0 %v2596, 43
        %v2882 = vpop.permute.xlu0 %2881
        %2883 = vrot.lane.b32.xlu0 %v1791, 43
        %v2884 = vpop.permute.xlu0 %2883
        %2885 = vrot.lane.b32.xlu0 %v1792, 43
        %v2886 = vpop.permute.xlu0 %2885
        %2887 = vrot.lane.b32.xlu0 %v1793, 43
        %v2888 = vpop.permute.xlu0 %2887
        %2889 = vrot.lane.b32.xlu0 %v1794, 43
        %v2890 = vpop.permute.xlu0 %2889
        %2891 = vrot.lane.b32.xlu0 %v2597, 43
        %v2892 = vpop.permute.xlu0 %2891
        %2893 = vrot.lane.b32.xlu0 %v1795, 43
        %v2894 = vpop.permute.xlu0 %2893
        %2895 = vrot.lane.b32.xlu0 %v1796, 43
        %v2896 = vpop.permute.xlu0 %2895
        %2897 = vrot.lane.b32.xlu0 %v1797, 43
        %v2898 = vpop.permute.xlu0 %2897
        %2899 = vrot.lane.b32.xlu0 %v1798, 43
        %v2900 = vpop.permute.xlu0 %2899
        %2901 = vrot.lane.b32.xlu0 %v2598, 43
        %v2902 = vpop.permute.xlu0 %2901
        %2903 = vrot.lane.b32.xlu0 %v1859, 43
        %v2904 = vpop.permute.xlu0 %2903
        %2905 = vrot.lane.b32.xlu0 %v1860, 43
        %v2906 = vpop.permute.xlu0 %2905
        %2907 = vrot.lane.b32.xlu0 %v1861, 43
        %v2908 = vpop.permute.xlu0 %2907
        %2909 = vrot.lane.b32.xlu0 %v1862, 43
        %v2910 = vpop.permute.xlu0 %2909
        %2911 = vrot.lane.b32.xlu0 %v2607, 43
        %v2912 = vpop.permute.xlu0 %2911
        %2913 = vrot.lane.b32.xlu0 %v1863, 43
        %v2914 = vpop.permute.xlu0 %2913
        %2915 = vrot.lane.b32.xlu0 %v1864, 43
        %v2916 = vpop.permute.xlu0 %2915
        %2917 = vrot.lane.b32.xlu0 %v1865, 43
        %v2918 = vpop.permute.xlu0 %2917
        %2919 = vrot.lane.b32.xlu0 %v1866, 43
        %v2920 = vpop.permute.xlu0 %2919
        %2921 = vrot.lane.b32.xlu0 %v2608, 43
        %v2922 = vpop.permute.xlu0 %2921
        %2923 = vrot.lane.b32.xlu0 %v1867, 43
        %v2924 = vpop.permute.xlu0 %2923
        %2925 = vrot.lane.b32.xlu0 %v1868, 43
        %v2926 = vpop.permute.xlu0 %2925
        %2927 = vrot.lane.b32.xlu0 %v1869, 43
        %v2928 = vpop.permute.xlu0 %2927
        %2929 = vrot.lane.b32.xlu0 %v1870, 43
        %v2930 = vpop.permute.xlu0 %2929
        %2931 = vrot.lane.b32.xlu0 %v2609, 43
        %v2932 = vpop.permute.xlu0 %2931
        %2933 = vrot.lane.b32.xlu0 %v1871, 43
        %v2934 = vpop.permute.xlu0 %2933
        %2935 = vrot.lane.b32.xlu0 %v1872, 43
        %v2936 = vpop.permute.xlu0 %2935
        %2937 = vrot.lane.b32.xlu0 %v1873, 43
        %v2938 = vpop.permute.xlu0 %2937
        %2939 = vrot.lane.b32.xlu0 %v1874, 43
        %v2940 = vpop.permute.xlu0 %2939
        %2941 = vrot.lane.b32.xlu0 %v2610, 43
        %v2942 = vpop.permute.xlu0 %2941
        %2943 = vrot.lane.b32.xlu0 %v1935, 43
        %v2944 = vpop.permute.xlu0 %2943
        %2945 = vrot.lane.b32.xlu0 %v1936, 43
        %v2946 = vpop.permute.xlu0 %2945
        %2947 = vrot.lane.b32.xlu0 %v1937, 43
        %v2948 = vpop.permute.xlu0 %2947
        %2949 = vrot.lane.b32.xlu0 %v1938, 43
        %v2950 = vpop.permute.xlu0 %2949
        %2951 = vrot.lane.b32.xlu0 %v2619, 43
        %v2952 = vpop.permute.xlu0 %2951
        %2953 = vrot.lane.b32.xlu0 %v1939, 43
        %v2954 = vpop.permute.xlu0 %2953
        %2955 = vrot.lane.b32.xlu0 %v1940, 43
        %v2956 = vpop.permute.xlu0 %2955
        %2957 = vrot.lane.b32.xlu0 %v1941, 43
        %v2958 = vpop.permute.xlu0 %2957
        %2959 = vrot.lane.b32.xlu0 %v1942, 43
        %v2960 = vpop.permute.xlu0 %2959
        %2961 = vrot.lane.b32.xlu0 %v2620, 43
        %v2962 = vpop.permute.xlu0 %2961
        %2963 = vrot.lane.b32.xlu0 %v1943, 43
        %v2964 = vpop.permute.xlu0 %2963
        %2965 = vrot.lane.b32.xlu0 %v1944, 43
        %v2966 = vpop.permute.xlu0 %2965
        %2967 = vrot.lane.b32.xlu0 %v1945, 43
        %v2968 = vpop.permute.xlu0 %2967
        %2969 = vrot.lane.b32.xlu0 %v1946, 43
        %v2970 = vpop.permute.xlu0 %2969
        %2971 = vrot.lane.b32.xlu0 %v2621, 43
        %v2972 = vpop.permute.xlu0 %2971
        %2973 = vrot.lane.b32.xlu0 %v1947, 43
        %v2974 = vpop.permute.xlu0 %2973
        %2975 = vrot.lane.b32.xlu0 %v1948, 43
        %v2976 = vpop.permute.xlu0 %2975
        %2977 = vrot.lane.b32.xlu0 %v1949, 43
        %v2978 = vpop.permute.xlu0 %2977
        %2979 = vrot.lane.b32.xlu0 %v1950, 43
        %v2980 = vpop.permute.xlu0 %2979
        %2981 = vrot.lane.b32.xlu0 %v2622, 43
        %v2982 = vpop.permute.xlu0 %2981
        %v2983 = vsel %vm910, %v2624, %v2626
        %v2984 = vsel %vm910, %v2626, %v2628
        %v2985 = vsel %vm910, %v2628, %v2630
        %v2986 = vsel %vm910, %v2630, %v2632
        %v2987 = vsel %vm910, %v2634, %v2636
        %v2988 = vsel %vm910, %v2636, %v2638
        %v2989 = vsel %vm910, %v2638, %v2640
        %v2990 = vsel %vm910, %v2640, %v2642
        %v2991 = vsel %vm910, %v2644, %v2646
        %v2992 = vsel %vm910, %v2646, %v2648
        %v2993 = vsel %vm910, %v2648, %v2650
        %v2994 = vsel %vm910, %v2650, %v2652
        %v2995 = vsel %vm910, %v2654, %v2656
        %v2996 = vsel %vm910, %v2656, %v2658
        %v2997 = vsel %vm910, %v2658, %v2660
        %v2998 = vsel %vm910, %v2660, %v2662
        %v2999 = vsel %vm910, %v2664, %v2666
        %v3000 = vsel %vm910, %v2666, %v2668
        %v3001 = vsel %vm910, %v2668, %v2670
        %v3002 = vsel %vm910, %v2670, %v2672
        %v3003 = vsel %vm910, %v2674, %v2676
        %v3004 = vsel %vm910, %v2676, %v2678
        %v3005 = vsel %vm910, %v2678, %v2680
        %v3006 = vsel %vm910, %v2680, %v2682
        %v3007 = vsel %vm910, %v2684, %v2686
        %v3008 = vsel %vm910, %v2686, %v2688
        %v3009 = vsel %vm910, %v2688, %v2690
        %v3010 = vsel %vm910, %v2690, %v2692
        %v3011 = vsel %vm910, %v2694, %v2696
        %v3012 = vsel %vm910, %v2696, %v2698
        %v3013 = vsel %vm910, %v2698, %v2700
        %v3014 = vsel %vm910, %v2700, %v2702
        %v3015 = vsel %vm910, %v2704, %v2706
        %v3016 = vsel %vm910, %v2706, %v2708
        %v3017 = vsel %vm910, %v2708, %v2710
        %v3018 = vsel %vm910, %v2710, %v2712
        %v3019 = vsel %vm910, %v2714, %v2716
        %v3020 = vsel %vm910, %v2716, %v2718
        %v3021 = vsel %vm910, %v2718, %v2720
        %v3022 = vsel %vm910, %v2720, %v2722
        %v3023 = vsel %vm910, %v2724, %v2726
        %v3024 = vsel %vm910, %v2726, %v2728
        %v3025 = vsel %vm910, %v2728, %v2730
        %v3026 = vsel %vm910, %v2730, %v2732
        %v3027 = vsel %vm910, %v2734, %v2736
        %v3028 = vsel %vm910, %v2736, %v2738
        %v3029 = vsel %vm910, %v2738, %v2740
        %v3030 = vsel %vm910, %v2740, %v2742
        %v3031 = vsel %vm910, %v2744, %v2746
        %v3032 = vsel %vm910, %v2746, %v2748
        %v3033 = vsel %vm910, %v2748, %v2750
        %v3034 = vsel %vm910, %v2750, %v2752
        %v3035 = vsel %vm910, %v2754, %v2756
        %v3036 = vsel %vm910, %v2756, %v2758
        %v3037 = vsel %vm910, %v2758, %v2760
        %v3038 = vsel %vm910, %v2760, %v2762
        %v3039 = vsel %vm910, %v2764, %v2766
        %v3040 = vsel %vm910, %v2766, %v2768
        %v3041 = vsel %vm910, %v2768, %v2770
        %v3042 = vsel %vm910, %v2770, %v2772
        %v3043 = vsel %vm910, %v2774, %v2776
        %v3044 = vsel %vm910, %v2776, %v2778
        %v3045 = vsel %vm910, %v2778, %v2780
        %v3046 = vsel %vm910, %v2780, %v2782
        %v3047 = vsel %vm910, %v2784, %v2786
        %v3048 = vsel %vm910, %v2786, %v2788
        %v3049 = vsel %vm910, %v2788, %v2790
        %v3050 = vsel %vm910, %v2790, %v2792
        %v3051 = vsel %vm910, %v2794, %v2796
        %v3052 = vsel %vm910, %v2796, %v2798
        %v3053 = vsel %vm910, %v2798, %v2800
        %v3054 = vsel %vm910, %v2800, %v2802
        %v3055 = vsel %vm910, %v2804, %v2806
        %v3056 = vsel %vm910, %v2806, %v2808
        %v3057 = vsel %vm910, %v2808, %v2810
        %v3058 = vsel %vm910, %v2810, %v2812
        %v3059 = vsel %vm910, %v2814, %v2816
        %v3060 = vsel %vm910, %v2816, %v2818
        %v3061 = vsel %vm910, %v2818, %v2820
        %v3062 = vsel %vm910, %v2820, %v2822
        %v3063 = vsel %vm910, %v2824, %v2826
        %v3064 = vsel %vm910, %v2826, %v2828
        %v3065 = vsel %vm910, %v2828, %v2830
        %v3066 = vsel %vm910, %v2830, %v2832
        %v3067 = vsel %vm910, %v2834, %v2836
        %v3068 = vsel %vm910, %v2836, %v2838
        %v3069 = vsel %vm910, %v2838, %v2840
        %v3070 = vsel %vm910, %v2840, %v2842
        %v3071 = vsel %vm910, %v2844, %v2846
        %v3072 = vsel %vm910, %v2846, %v2848
        %v3073 = vsel %vm910, %v2848, %v2850
        %v3074 = vsel %vm910, %v2850, %v2852
        %v3075 = vsel %vm910, %v2854, %v2856
        %v3076 = vsel %vm910, %v2856, %v2858
        %v3077 = vsel %vm910, %v2858, %v2860
        %v3078 = vsel %vm910, %v2860, %v2862
        %v3079 = vsel %vm910, %v2864, %v2866
        %v3080 = vsel %vm910, %v2866, %v2868
        %v3081 = vsel %vm910, %v2868, %v2870
        %v3082 = vsel %vm910, %v2870, %v2872
        %v3083 = vsel %vm910, %v2874, %v2876
        %v3084 = vsel %vm910, %v2876, %v2878
        %v3085 = vsel %vm910, %v2878, %v2880
        %v3086 = vsel %vm910, %v2880, %v2882
        %v3087 = vsel %vm910, %v2884, %v2886
        %v3088 = vsel %vm910, %v2886, %v2888
        %v3089 = vsel %vm910, %v2888, %v2890
        %v3090 = vsel %vm910, %v2890, %v2892
        %v3091 = vsel %vm910, %v2894, %v2896
        %v3092 = vsel %vm910, %v2896, %v2898
        %v3093 = vsel %vm910, %v2898, %v2900
        %v3094 = vsel %vm910, %v2900, %v2902
        %v3095 = vsel %vm910, %v2904, %v2906
        %v3096 = vsel %vm910, %v2906, %v2908
        %v3097 = vsel %vm910, %v2908, %v2910
        %v3098 = vsel %vm910, %v2910, %v2912
        %v3099 = vsel %vm910, %v2914, %v2916
        %v3100 = vsel %vm910, %v2916, %v2918
        %v3101 = vsel %vm910, %v2918, %v2920
        %v3102 = vsel %vm910, %v2920, %v2922
        %v3103 = vsel %vm910, %v2924, %v2926
        %v3104 = vsel %vm910, %v2926, %v2928
        %v3105 = vsel %vm910, %v2928, %v2930
        %v3106 = vsel %vm910, %v2930, %v2932
        %v3107 = vsel %vm910, %v2934, %v2936
        %v3108 = vsel %vm910, %v2936, %v2938
        %v3109 = vsel %vm910, %v2938, %v2940
        %v3110 = vsel %vm910, %v2940, %v2942
        %v3111 = vsel %vm910, %v2944, %v2946
        %v3112 = vsel %vm910, %v2946, %v2948
        %v3113 = vsel %vm910, %v2948, %v2950
        %v3114 = vsel %vm910, %v2950, %v2952
        %v3115 = vsel %vm910, %v2954, %v2956
        %v3116 = vsel %vm910, %v2956, %v2958
        %v3117 = vsel %vm910, %v2958, %v2960
        %v3118 = vsel %vm910, %v2960, %v2962
        %v3119 = vsel %vm910, %v2964, %v2966
        %v3120 = vsel %vm910, %v2966, %v2968
        %v3121 = vsel %vm910, %v2968, %v2970
        %v3122 = vsel %vm910, %v2970, %v2972
        %v3123 = vsel %vm910, %v2974, %v2976
        %v3124 = vsel %vm910, %v2976, %v2978
        %v3125 = vsel %vm910, %v2978, %v2980
        %v3126 = vsel %vm910, %v2980, %v2982
        %v3307 = vld [vmem:[%s4] sm:$0xff]
        %v3308 = vld [vmem:[%s4 + $0x8] sm:$0xff]
        %v3309 = vld [vmem:[%s4 + $0x10] sm:$0xff]
        %v3310 = vld [vmem:[%s4 + $0x18] sm:$0xff]
        %v3311 = vld [vmem:[%s4 + $0x20] sm:$0xff]
        %v3312 = vld [vmem:[%s4 + $0x28] sm:$0xff]
        %v3313 = vld [vmem:[%s4 + $0x30] sm:$0xff]
        %v3314 = vld [vmem:[%s4 + $0x38] sm:$0xff]
        %v3315 = vld [vmem:[%s4 + $0x40] sm:$0xff]
        %v3316 = vld [vmem:[%s4 + $0x48] sm:$0xff]
        %v3317 = vld [vmem:[%s4 + $0x50] sm:$0xff]
        %v3318 = vld [vmem:[%s4 + $0x58] sm:$0xff]
        %v3319 = vld [vmem:[%s4 + $0x60] sm:$0xff]
        %v3320 = vld [vmem:[%s4 + $0x68] sm:$0xff]
        %vm3321 = vcmask 261120
        %v3323 = vsel %vm3321, %v3313, 0
        %v3326 = vsel %vm3321, %v3320, 0
        %3328 = vmatprep.subr.mxu0 %v1320
        %3329 = vmatpush1.msra.mxu0 %v1319
        %3330 = vmatprep.subr.mxu0 %v1326
        %3331 = vmatpush1.msra.mxu0 %v1325
        %3332 = vmatprep.subr.mxu0 %v1332
        %3333 = vmatpush1.msra.mxu0 %v1331
        %3334 = vmatprep.subr.mxu0 %v1338
        %3335 = vmatpush1.msra.mxu0 %v1337
        %3336 = vmatprep.subr.mxu0 %v1404
        %3337 = vmatpush1.msra.mxu0 %v1403
        %3338 = vmatprep.subr.mxu0 %v1408
        %3339 = vmatpush1.msra.mxu0 %v1407
        %3340 = vmatprep.subr.mxu0 %v1412
        %3341 = vmatpush1.msra.mxu0 %v1411
        %3342 = vmatprep.subr.mxu0 %v1416
        %3343 = vmatpush1.msra.mxu0 %v1415
        %3344 = vmatprep.subr.mxu0 %v1480
        %3345 = vmatpush1.msra.mxu0 %v1479
        %3346 = vmatprep.subr.mxu0 %v1484
        %3347 = vmatpush1.msra.mxu0 %v1483
        %3348 = vmatprep.subr.mxu0 %v1488
        %3349 = vmatpush1.msra.mxu0 %v1487
        %3350 = vmatprep.subr.mxu0 %v1492
        %3351 = vmatpush1.msra.mxu0 %v1491
        %3352 = vmatprep.subr.mxu0 %v1556
        %3353 = vmatpush1.msra.mxu0 %v1555
        %3354 = vmatprep.subr.mxu0 %v1560
        %3355 = vmatpush1.msra.mxu0 %v1559
        %3356 = vmatprep.subr.mxu0 %v1564
        %3357 = vmatpush1.msra.mxu0 %v1563
        %3358 = vmatprep.subr.mxu0 %v1568
        %3359 = vmatpush1.msra.mxu0 %v1567
        %3360 = vmatprep.subr.mxu0 %v1632
        %3361 = vmatpush1.msra.mxu0 %v1631
        %3362 = vmatprep.subr.mxu0 %v1636
        %3363 = vmatpush1.msra.mxu0 %v1635
        %3364 = vmatprep.subr.mxu0 %v1640
        %3365 = vmatpush1.msra.mxu0 %v1639
        %3366 = vmatprep.subr.mxu0 %v1644
        %3367 = vmatpush1.msra.mxu0 %v1643
        %3368 = vmatprep.subr.mxu0 %v1708
        %3369 = vmatpush1.msra.mxu0 %v1707
        %3370 = vmatprep.subr.mxu0 %v1712
        %3371 = vmatpush1.msra.mxu0 %v1711
        %3372 = vmatprep.subr.mxu0 %v1716
        %3373 = vmatpush1.msra.mxu0 %v1715
        %3374 = vmatprep.subr.mxu0 %v1720
        %3375 = vmatpush1.msra.mxu0 %v1719
        %3376 = vmatprep.subr.mxu0 %v1784
        %3377 = vmatpush1.msra.mxu0 %v1783
        %3378 = vmatprep.subr.mxu0 %v1788
        %3379 = vmatpush1.msra.mxu0 %v1787
        %3380 = vmatprep.subr.mxu0 %v1792
        %3381 = vmatpush1.msra.mxu0 %v1791
        %3382 = vmatprep.subr.mxu0 %v1796
        %3383 = vmatpush1.msra.mxu0 %v1795
        %3384 = vmatprep.subr.mxu0 %v1860
        %3385 = vmatpush1.msra.mxu0 %v1859
        %3386 = vmatprep.subr.mxu0 %v1864
        %3387 = vmatpush1.msra.mxu0 %v1863
        %3388 = vmatprep.subr.mxu0 %v1868
        %3389 = vmatpush1.msra.mxu0 %v1867
        %3390 = vmatprep.subr.mxu0 %v1872
        %3391 = vmatpush1.msra.mxu0 %v1871
        %3392 = vmatprep.mubr.f32.mxu0 %v3308
        %3393 = vmatmul.mubr.f32.gmra.mrb[0].mxu0 %v3307
        %v3394 = vpop.f32.mrb[0].mxu0
        %v3395 = vadd.f32 0.0, %v3394
        %v3396 = vpop.f32.mrb[0].mxu0
        %v3397 = vadd.f32 0.0, %v3396
        %3398 = vmatprep.mubr.f32.mxu0 %v3315
        %3399 = vmatmul.mubr.f32.gmra.mrb[0].mxu0 %v3314
        %v3400 = vpop.f32.mrb[0].mxu0
        %v3401 = vadd.f32 0.0, %v3400
        %v3402 = vpop.f32.mrb[0].mxu0
        %v3403 = vadd.f32 0.0, %v3402
        %3404 = vdwg.mxu0
        %3405 = vmatprep.subr.mxu0 %v1936
        %3406 = vmatpush1.msra.mxu0 %v1935
        %3407 = vmatprep.subr.mxu0 %v1940
        %3408 = vmatpush1.msra.mxu0 %v1939
        %3409 = vmatprep.subr.mxu0 %v1944
        %3410 = vmatpush1.msra.mxu0 %v1943
        %3411 = vmatprep.subr.mxu0 %v1948
        %3412 = vmatpush1.msra.mxu0 %v1947
        %3413 = vmatprep.subr.mxu0 %v2012
        %3414 = vmatpush1.msra.mxu0 %v2011
        %3415 = vmatprep.subr.mxu0 %v2016
        %3416 = vmatpush1.msra.mxu0 %v2015
        %3417 = vmatprep.subr.mxu0 %v2020
        %3418 = vmatpush1.msra.mxu0 %v2019
        %3419 = vmatprep.subr.mxu0 %v2024
        %3420 = vmatpush1.msra.mxu0 %v2023
        %3421 = vmatprep.subr.mxu0 %v2088
        %3422 = vmatpush1.msra.mxu0 %v2087
        %3423 = vmatprep.subr.mxu0 %v2092
        %3424 = vmatpush1.msra.mxu0 %v2091
        %3425 = vmatprep.subr.mxu0 %v2096
        %3426 = vmatpush1.msra.mxu0 %v2095
        %3427 = vmatprep.subr.mxu0 %v2100
        %3428 = vmatpush1.msra.mxu0 %v2099
        %3429 = vmatprep.subr.mxu0 %v2164
        %3430 = vmatpush1.msra.mxu0 %v2163
        %3431 = vmatprep.subr.mxu0 %v2168
        %3432 = vmatpush1.msra.mxu0 %v2167
        %3433 = vmatprep.subr.mxu0 %v2172
        %3434 = vmatpush1.msra.mxu0 %v2171
        %3435 = vmatprep.subr.mxu0 %v2176
        %3436 = vmatpush1.msra.mxu0 %v2175
        %3437 = vmatprep.subr.mxu0 %v2240
        %3438 = vmatpush1.msra.mxu0 %v2239
        %3439 = vmatprep.subr.mxu0 %v2244
        %3440 = vmatpush1.msra.mxu0 %v2243
        %3441 = vmatprep.subr.mxu0 %v2248
        %3442 = vmatpush1.msra.mxu0 %v2247
        %3443 = vmatprep.subr.mxu0 %v2252
        %3444 = vmatpush1.msra.mxu0 %v2251
        %3445 = vmatprep.subr.mxu0 %v2316
        %3446 = vmatpush1.msra.mxu0 %v2315
        %3447 = vmatprep.subr.mxu0 %v2320
        %3448 = vmatpush1.msra.mxu0 %v2319
        %3449 = vmatprep.subr.mxu0 %v2324
        %3450 = vmatpush1.msra.mxu0 %v2323
        %3451 = vmatprep.subr.mxu0 %v2328
        %3452 = vmatpush1.msra.mxu0 %v2327
        %3453 = vmatprep.subr.mxu0 %v2392
        %3454 = vmatpush1.msra.mxu0 %v2391
        %3455 = vmatprep.subr.mxu0 %v2396
        %3456 = vmatpush1.msra.mxu0 %v2395
        %3457 = vmatprep.subr.mxu0 %v2400
        %3458 = vmatpush1.msra.mxu0 %v2399
        %3459 = vmatprep.subr.mxu0 %v2404
        %3460 = vmatpush1.msra.mxu0 %v2403
        %3461 = vmatprep.subr.mxu0 %v2468
        %3462 = vmatpush1.msra.mxu0 %v2467
        %3463 = vmatprep.subr.mxu0 %v2472
        %3464 = vmatpush1.msra.mxu0 %v2471
        %3465 = vmatprep.subr.mxu0 %v2476
        %3466 = vmatpush1.msra.mxu0 %v2475
        %3467 = vmatprep.subr.mxu0 %v2480
        %3468 = vmatpush1.msra.mxu0 %v2479
        %3469 = vmatprep.mubr.f32.mxu0 %v3310
        %3470 = vmatmul.mubr.f32.gmra.mrb[0].mxu0 %v3309
        %v3471 = vpop.f32.mrb[0].mxu0
        %v3472 = vadd.f32 %v3395, %v3471
        %v3473 = vpop.f32.mrb[0].mxu0
        %v3474 = vadd.f32 %v3397, %v3473
        %3475 = vmatprep.mubr.f32.mxu0 %v3317
        %3476 = vmatmul.mubr.f32.gmra.mrb[0].mxu0 %v3316
        %v3477 = vpop.f32.mrb[0].mxu0
        %v3478 = vadd.f32 %v3401, %v3477
        %v3479 = vpop.f32.mrb[0].mxu0
        %v3480 = vadd.f32 %v3403, %v3479
        %3481 = vdwg.mxu0
        %3482 = vmatprep.subr.mxu0 %v2984
        %3483 = vmatpush1.msra.mxu0 %v2983
        %3484 = vmatprep.subr.mxu0 %v2988
        %3485 = vmatpush1.msra.mxu0 %v2987
        %3486 = vmatprep.subr.mxu0 %v2992
        %3487 = vmatpush1.msra.mxu0 %v2991
        %3488 = vmatprep.subr.mxu0 %v2996
        %3489 = vmatpush1.msra.mxu0 %v2995
        %3490 = vmatprep.subr.mxu0 %v3000
        %3491 = vmatpush1.msra.mxu0 %v2999
        %3492 = vmatprep.subr.mxu0 %v3004
        %3493 = vmatpush1.msra.mxu0 %v3003
        %3494 = vmatprep.subr.mxu0 %v3008
        %3495 = vmatpush1.msra.mxu0 %v3007
        %3496 = vmatprep.subr.mxu0 %v3012
        %3497 = vmatpush1.msra.mxu0 %v3011
        %3498 = vmatprep.subr.mxu0 %v3016
        %3499 = vmatpush1.msra.mxu0 %v3015
        %3500 = vmatprep.subr.mxu0 %v3020
        %3501 = vmatpush1.msra.mxu0 %v3019
        %3502 = vmatprep.subr.mxu0 %v3024
        %3503 = vmatpush1.msra.mxu0 %v3023
        %3504 = vmatprep.subr.mxu0 %v3028
        %3505 = vmatpush1.msra.mxu0 %v3027
        %3506 = vmatprep.subr.mxu0 %v3032
        %3507 = vmatpush1.msra.mxu0 %v3031
        %3508 = vmatprep.subr.mxu0 %v3036
        %3509 = vmatpush1.msra.mxu0 %v3035
        %3510 = vmatprep.subr.mxu0 %v3040
        %3511 = vmatpush1.msra.mxu0 %v3039
        %3512 = vmatprep.subr.mxu0 %v3044
        %3513 = vmatpush1.msra.mxu0 %v3043
        %3514 = vmatprep.subr.mxu0 %v3048
        %3515 = vmatpush1.msra.mxu0 %v3047
        %3516 = vmatprep.subr.mxu0 %v3052
        %3517 = vmatpush1.msra.mxu0 %v3051
        %3518 = vmatprep.subr.mxu0 %v3056
        %3519 = vmatpush1.msra.mxu0 %v3055
        %3520 = vmatprep.subr.mxu0 %v3060
        %3521 = vmatpush1.msra.mxu0 %v3059
        %3522 = vmatprep.subr.mxu0 %v3064
        %3523 = vmatpush1.msra.mxu0 %v3063
        %3524 = vmatprep.subr.mxu0 %v3068
        %3525 = vmatpush1.msra.mxu0 %v3067
        %3526 = vmatprep.subr.mxu0 %v3072
        %3527 = vmatpush1.msra.mxu0 %v3071
        %3528 = vmatprep.subr.mxu0 %v3076
        %3529 = vmatpush1.msra.mxu0 %v3075
        %3530 = vmatprep.subr.mxu0 %v3080
        %3531 = vmatpush1.msra.mxu0 %v3079
        %3532 = vmatprep.subr.mxu0 %v3084
        %3533 = vmatpush1.msra.mxu0 %v3083
        %3534 = vmatprep.subr.mxu0 %v3088
        %3535 = vmatpush1.msra.mxu0 %v3087
        %3536 = vmatprep.subr.mxu0 %v3092
        %3537 = vmatpush1.msra.mxu0 %v3091
        %3538 = vmatprep.subr.mxu0 %v3096
        %3539 = vmatpush1.msra.mxu0 %v3095
        %3540 = vmatprep.subr.mxu0 %v3100
        %3541 = vmatpush1.msra.mxu0 %v3099
        %3542 = vmatprep.subr.mxu0 %v3104
        %3543 = vmatpush1.msra.mxu0 %v3103
        %3544 = vmatprep.subr.mxu0 %v3108
        %3545 = vmatpush1.msra.mxu0 %v3107
        %3546 = vmatprep.mubr.f32.mxu0 %v3312
        %3547 = vmatmul.mubr.f32.gmra.mrb[0].mxu0 %v3311
        %v3548 = vpop.f32.mrb[0].mxu0
        %v3549 = vadd.f32 %v3472, %v3548
        %v3550 = vpop.f32.mrb[0].mxu0
        %v3551 = vadd.f32 %v3474, %v3550
        %3552 = vmatprep.mubr.f32.mxu0 %v3319
        %3553 = vmatmul.mubr.f32.gmra.mrb[0].mxu0 %v3318
        %v3554 = vpop.f32.mrb[0].mxu0
        %v3555 = vadd.f32 %v3478, %v3554
        %v3556 = vpop.f32.mrb[0].mxu0
        %v3557 = vadd.f32 %v3480, %v3556
        %3558 = vdwg.mxu0
        %3559 = vmatprep.subr.mxu0 %v3112
        %3560 = vmatpush1.msra.mxu0 %v3111
        %3561 = vmatprep.subr.mxu0 %v3116
        %3562 = vmatpush1.msra.mxu0 %v3115
        %3563 = vmatprep.subr.mxu0 %v3120
        %3564 = vmatpush1.msra.mxu0 %v3119
        %3565 = vmatprep.subr.mxu0 %v3124
        %3566 = vmatpush1.msra.mxu0 %v3123
        %3567 = vmatprep.subr.mxu0 0.0
        %3568 = vmatpush1.msra.mxu0 0.0
        %3569 = vmatprep.subr.mxu0 0.0
        %3570 = vmatpush1.msra.mxu0 0.0
        %3571 = vmatprep.subr.mxu0 0.0
        %3572 = vmatpush1.msra.mxu0 0.0
        %3573 = vmatprep.subr.mxu0 0.0
        %3574 = vmatpush1.msra.mxu0 0.0
        %3575 = vmatprep.subr.mxu0 0.0
        %3576 = vmatpush1.msra.mxu0 0.0
        %3577 = vmatprep.subr.mxu0 0.0
        %3578 = vmatpush1.msra.mxu0 0.0
        %3579 = vmatprep.subr.mxu0 0.0
        %3580 = vmatpush1.msra.mxu0 0.0
        %3581 = vmatprep.subr.mxu0 0.0
        %3582 = vmatpush1.msra.mxu0 0.0
        %3583 = vmatprep.subr.mxu0 0.0
        %3584 = vmatpush1.msra.mxu0 0.0
        %3585 = vmatprep.subr.mxu0 0.0
        %3586 = vmatpush1.msra.mxu0 0.0
        %3587 = vmatprep.subr.mxu0 0.0
        %3588 = vmatpush1.msra.mxu0 0.0
        %3589 = vmatprep.subr.mxu0 0.0
        %3590 = vmatpush1.msra.mxu0 0.0
        %3591 = vmatprep.subr.mxu0 0.0
        %3592 = vmatpush1.msra.mxu0 0.0
        %3593 = vmatprep.subr.mxu0 0.0
        %3594 = vmatpush1.msra.mxu0 0.0
        %3595 = vmatprep.subr.mxu0 0.0
        %3596 = vmatpush1.msra.mxu0 0.0
        %3597 = vmatprep.subr.mxu0 0.0
        %3598 = vmatpush1.msra.mxu0 0.0
        %3599 = vmatprep.subr.mxu0 0.0
        %3600 = vmatpush1.msra.mxu0 0.0
        %3601 = vmatprep.subr.mxu0 0.0
        %3602 = vmatpush1.msra.mxu0 0.0
        %3603 = vmatprep.subr.mxu0 0.0
        %3604 = vmatpush1.msra.mxu0 0.0
        %3605 = vmatprep.subr.mxu0 0.0
        %3606 = vmatpush1.msra.mxu0 0.0
        %3607 = vmatprep.subr.mxu0 0.0
        %3608 = vmatpush1.msra.mxu0 0.0
        %3609 = vmatprep.subr.mxu0 0.0
        %3610 = vmatpush1.msra.mxu0 0.0
        %3611 = vmatprep.subr.mxu0 0.0
        %3612 = vmatpush1.msra.mxu0 0.0
        %3613 = vmatprep.subr.mxu0 0.0
        %3614 = vmatpush1.msra.mxu0 0.0
        %3615 = vmatprep.subr.mxu0 0.0
        %3616 = vmatpush1.msra.mxu0 0.0
        %3617 = vmatprep.subr.mxu0 0.0
        %3618 = vmatpush1.msra.mxu0 0.0
        %3619 = vmatprep.subr.mxu0 0.0
        %3620 = vmatpush1.msra.mxu0 0.0
        %3621 = vmatprep.subr.mxu0 0.0
        %3622 = vmatpush1.msra.mxu0 0.0
        %3623 = vmatprep.mubr.f32.mxu0 0.0
        %3624 = vmatmul.mubr.f32.gmra.mrb[0].mxu0 %v3323
        %v3625 = vpop.f32.mrb[0].mxu0
        %v3626 = vadd.f32 %v3549, %v3625
        %v3627 = vpop.f32.mrb[0].mxu0
        %v3628 = vadd.f32 %v3551, %v3627
        %3629 = vmatprep.mubr.f32.mxu0 0.0
        %3630 = vmatmul.mubr.f32.gmra.mrb[0].mxu0 %v3326
        %v3631 = vpop.f32.mrb[0].mxu0
        %v3632 = vadd.f32 %v3555, %v3631
        %v3633 = vpop.f32.mrb[0].mxu0
        %v3634 = vadd.f32 %v3557, %v3633
        %3635 = vdwg.mxu0
        %3636 = vmatprep.subr.mxu0 %v1322
        %3637 = vmatpush1.msra.mxu0 %v1321
        %3638 = vmatprep.subr.mxu0 %v1328
        %3639 = vmatpush1.msra.mxu0 %v1327
        %3640 = vmatprep.subr.mxu0 %v1334
        %3641 = vmatpush1.msra.mxu0 %v1333
        %3642 = vmatprep.subr.mxu0 %v1340
        %3643 = vmatpush1.msra.mxu0 %v1339
        %3644 = vmatprep.subr.mxu0 %v1406
        %3645 = vmatpush1.msra.mxu0 %v1405
        %3646 = vmatprep.subr.mxu0 %v1410
        %3647 = vmatpush1.msra.mxu0 %v1409
        %3648 = vmatprep.subr.mxu0 %v1414
        %3649 = vmatpush1.msra.mxu0 %v1413
        %3650 = vmatprep.subr.mxu0 %v1418
        %3651 = vmatpush1.msra.mxu0 %v1417
        %3652 = vmatprep.subr.mxu0 %v1482
        %3653 = vmatpush1.msra.mxu0 %v1481
        %3654 = vmatprep.subr.mxu0 %v1486
        %3655 = vmatpush1.msra.mxu0 %v1485
        %3656 = vmatprep.subr.mxu0 %v1490
        %3657 = vmatpush1.msra.mxu0 %v1489
        %3658 = vmatprep.subr.mxu0 %v1494
        %3659 = vmatpush1.msra.mxu0 %v1493
        %3660 = vmatprep.subr.mxu0 %v1558
        %3661 = vmatpush1.msra.mxu0 %v1557
        %3662 = vmatprep.subr.mxu0 %v1562
        %3663 = vmatpush1.msra.mxu0 %v1561
        %3664 = vmatprep.subr.mxu0 %v1566
        %3665 = vmatpush1.msra.mxu0 %v1565
        %3666 = vmatprep.subr.mxu0 %v1570
        %3667 = vmatpush1.msra.mxu0 %v1569
        %3668 = vmatprep.subr.mxu0 %v1634
        %3669 = vmatpush1.msra.mxu0 %v1633
        %3670 = vmatprep.subr.mxu0 %v1638
        %3671 = vmatpush1.msra.mxu0 %v1637
        %3672 = vmatprep.subr.mxu0 %v1642
        %3673 = vmatpush1.msra.mxu0 %v1641
        %3674 = vmatprep.subr.mxu0 %v1646
        %3675 = vmatpush1.msra.mxu0 %v1645
        %3676 = vmatprep.subr.mxu0 %v1710
        %3677 = vmatpush1.msra.mxu0 %v1709
        %3678 = vmatprep.subr.mxu0 %v1714
        %3679 = vmatpush1.msra.mxu0 %v1713
        %3680 = vmatprep.subr.mxu0 %v1718
        %3681 = vmatpush1.msra.mxu0 %v1717
        %3682 = vmatprep.subr.mxu0 %v1722
        %3683 = vmatpush1.msra.mxu0 %v1721
        %3684 = vmatprep.subr.mxu0 %v1786
        %3685 = vmatpush1.msra.mxu0 %v1785
        %3686 = vmatprep.subr.mxu0 %v1790
        %3687 = vmatpush1.msra.mxu0 %v1789
        %3688 = vmatprep.subr.mxu0 %v1794
        %3689 = vmatpush1.msra.mxu0 %v1793
        %3690 = vmatprep.subr.mxu0 %v1798
        %3691 = vmatpush1.msra.mxu0 %v1797
        %3692 = vmatprep.subr.mxu0 %v1862
        %3693 = vmatpush1.msra.mxu0 %v1861
        %3694 = vmatprep.subr.mxu0 %v1866
        %3695 = vmatpush1.msra.mxu0 %v1865
        %3696 = vmatprep.subr.mxu0 %v1870
        %3697 = vmatpush1.msra.mxu0 %v1869
        %3698 = vmatprep.subr.mxu0 %v1874
        %3699 = vmatpush1.msra.mxu0 %v1873
        %3700 = vmatprep.mubr.f32.mxu0 %v3308
        %3701 = vmatmul.mubr.f32.gmra.mrb[0].mxu0 %v3307
        %v3702 = vpop.f32.mrb[0].mxu0
        %v3703 = vadd.f32 0.0, %v3702
        %v3704 = vpop.f32.mrb[0].mxu0
        %v3705 = vadd.f32 0.0, %v3704
        %3706 = vmatprep.mubr.f32.mxu0 %v3315
        %3707 = vmatmul.mubr.f32.gmra.mrb[0].mxu0 %v3314
        %v3708 = vpop.f32.mrb[0].mxu0
        %v3709 = vadd.f32 0.0, %v3708
        %v3710 = vpop.f32.mrb[0].mxu0
        %v3711 = vadd.f32 0.0, %v3710
        %3712 = vdwg.mxu0
        %3713 = vmatprep.subr.mxu0 %v1938
        %3714 = vmatpush1.msra.mxu0 %v1937
        %3715 = vmatprep.subr.mxu0 %v1942
        %3716 = vmatpush1.msra.mxu0 %v1941
        %3717 = vmatprep.subr.mxu0 %v1946
        %3718 = vmatpush1.msra.mxu0 %v1945
        %3719 = vmatprep.subr.mxu0 %v1950
        %3720 = vmatpush1.msra.mxu0 %v1949
        %3721 = vmatprep.subr.mxu0 %v2014
        %3722 = vmatpush1.msra.mxu0 %v2013
        %3723 = vmatprep.subr.mxu0 %v2018
        %3724 = vmatpush1.msra.mxu0 %v2017
        %3725 = vmatprep.subr.mxu0 %v2022
        %3726 = vmatpush1.msra.mxu0 %v2021
        %3727 = vmatprep.subr.mxu0 %v2026
        %3728 = vmatpush1.msra.mxu0 %v2025
        %3729 = vmatprep.subr.mxu0 %v2090
        %3730 = vmatpush1.msra.mxu0 %v2089
        %3731 = vmatprep.subr.mxu0 %v2094
        %3732 = vmatpush1.msra.mxu0 %v2093
        %3733 = vmatprep.subr.mxu0 %v2098
        %3734 = vmatpush1.msra.mxu0 %v2097
        %3735 = vmatprep.subr.mxu0 %v2102
        %3736 = vmatpush1.msra.mxu0 %v2101
        %3737 = vmatprep.subr.mxu0 %v2166
        %3738 = vmatpush1.msra.mxu0 %v2165
        %3739 = vmatprep.subr.mxu0 %v2170
        %3740 = vmatpush1.msra.mxu0 %v2169
        %3741 = vmatprep.subr.mxu0 %v2174
        %3742 = vmatpush1.msra.mxu0 %v2173
        %3743 = vmatprep.subr.mxu0 %v2178
        %3744 = vmatpush1.msra.mxu0 %v2177
        %3745 = vmatprep.subr.mxu0 %v2242
        %3746 = vmatpush1.msra.mxu0 %v2241
        %3747 = vmatprep.subr.mxu0 %v2246
        %3748 = vmatpush1.msra.mxu0 %v2245
        %3749 = vmatprep.subr.mxu0 %v2250
        %3750 = vmatpush1.msra.mxu0 %v2249
        %3751 = vmatprep.subr.mxu0 %v2254
        %3752 = vmatpush1.msra.mxu0 %v2253
        %3753 = vmatprep.subr.mxu0 %v2318
        %3754 = vmatpush1.msra.mxu0 %v2317
        %3755 = vmatprep.subr.mxu0 %v2322
        %3756 = vmatpush1.msra.mxu0 %v2321
        %3757 = vmatprep.subr.mxu0 %v2326
        %3758 = vmatpush1.msra.mxu0 %v2325
        %3759 = vmatprep.subr.mxu0 %v2330
        %3760 = vmatpush1.msra.mxu0 %v2329
        %3761 = vmatprep.subr.mxu0 %v2394
        %3762 = vmatpush1.msra.mxu0 %v2393
        %3763 = vmatprep.subr.mxu0 %v2398
        %3764 = vmatpush1.msra.mxu0 %v2397
        %3765 = vmatprep.subr.mxu0 %v2402
        %3766 = vmatpush1.msra.mxu0 %v2401
        %3767 = vmatprep.subr.mxu0 %v2406
        %3768 = vmatpush1.msra.mxu0 %v2405
        %3769 = vmatprep.subr.mxu0 %v2470
        %3770 = vmatpush1.msra.mxu0 %v2469
        %3771 = vmatprep.subr.mxu0 %v2474
        %3772 = vmatpush1.msra.mxu0 %v2473
        %3773 = vmatprep.subr.mxu0 %v2478
        %3774 = vmatpush1.msra.mxu0 %v2477
        %3775 = vmatprep.subr.mxu0 %v2482
        %3776 = vmatpush1.msra.mxu0 %v2481
        %3777 = vmatprep.mubr.f32.mxu0 %v3310
        %3778 = vmatmul.mubr.f32.gmra.mrb[0].mxu0 %v3309
        %v3779 = vpop.f32.mrb[0].mxu0
        %v3780 = vadd.f32 %v3703, %v3779
        %v3781 = vpop.f32.mrb[0].mxu0
        %v3782 = vadd.f32 %v3705, %v3781
        %3783 = vmatprep.mubr.f32.mxu0 %v3317
        %3784 = vmatmul.mubr.f32.gmra.mrb[0].mxu0 %v3316
        %v3785 = vpop.f32.mrb[0].mxu0
        %v3786 = vadd.f32 %v3709, %v3785
        %v3787 = vpop.f32.mrb[0].mxu0
        %v3788 = vadd.f32 %v3711, %v3787
        %3789 = vdwg.mxu0
        %3790 = vmatprep.subr.mxu0 %v2986
        %3791 = vmatpush1.msra.mxu0 %v2985
        %3792 = vmatprep.subr.mxu0 %v2990
        %3793 = vmatpush1.msra.mxu0 %v2989
        %3794 = vmatprep.subr.mxu0 %v2994
        %3795 = vmatpush1.msra.mxu0 %v2993
        %3796 = vmatprep.subr.mxu0 %v2998
        %3797 = vmatpush1.msra.mxu0 %v2997
        %3798 = vmatprep.subr.mxu0 %v3002
        %3799 = vmatpush1.msra.mxu0 %v3001
        %3800 = vmatprep.subr.mxu0 %v3006
        %3801 = vmatpush1.msra.mxu0 %v3005
        %3802 = vmatprep.subr.mxu0 %v3010
        %3803 = vmatpush1.msra.mxu0 %v3009
        %3804 = vmatprep.subr.mxu0 %v3014
        %3805 = vmatpush1.msra.mxu0 %v3013
        %3806 = vmatprep.subr.mxu0 %v3018
        %3807 = vmatpush1.msra.mxu0 %v3017
        %3808 = vmatprep.subr.mxu0 %v3022
        %3809 = vmatpush1.msra.mxu0 %v3021
        %3810 = vmatprep.subr.mxu0 %v3026
        %3811 = vmatpush1.msra.mxu0 %v3025
        %3812 = vmatprep.subr.mxu0 %v3030
        %3813 = vmatpush1.msra.mxu0 %v3029
        %3814 = vmatprep.subr.mxu0 %v3034
        %3815 = vmatpush1.msra.mxu0 %v3033
        %3816 = vmatprep.subr.mxu0 %v3038
        %3817 = vmatpush1.msra.mxu0 %v3037
        %3818 = vmatprep.subr.mxu0 %v3042
        %3819 = vmatpush1.msra.mxu0 %v3041
        %3820 = vmatprep.subr.mxu0 %v3046
        %3821 = vmatpush1.msra.mxu0 %v3045
        %3822 = vmatprep.subr.mxu0 %v3050
        %3823 = vmatpush1.msra.mxu0 %v3049
        %3824 = vmatprep.subr.mxu0 %v3054
        %3825 = vmatpush1.msra.mxu0 %v3053
        %3826 = vmatprep.subr.mxu0 %v3058
        %3827 = vmatpush1.msra.mxu0 %v3057
        %3828 = vmatprep.subr.mxu0 %v3062
        %3829 = vmatpush1.msra.mxu0 %v3061
        %3830 = vmatprep.subr.mxu0 %v3066
        %3831 = vmatpush1.msra.mxu0 %v3065
        %3832 = vmatprep.subr.mxu0 %v3070
        %3833 = vmatpush1.msra.mxu0 %v3069
        %3834 = vmatprep.subr.mxu0 %v3074
        %3835 = vmatpush1.msra.mxu0 %v3073
        %3836 = vmatprep.subr.mxu0 %v3078
        %3837 = vmatpush1.msra.mxu0 %v3077
        %3838 = vmatprep.subr.mxu0 %v3082
        %3839 = vmatpush1.msra.mxu0 %v3081
        %3840 = vmatprep.subr.mxu0 %v3086
        %3841 = vmatpush1.msra.mxu0 %v3085
        %3842 = vmatprep.subr.mxu0 %v3090
        %3843 = vmatpush1.msra.mxu0 %v3089
        %3844 = vmatprep.subr.mxu0 %v3094
        %3845 = vmatpush1.msra.mxu0 %v3093
        %3846 = vmatprep.subr.mxu0 %v3098
        %3847 = vmatpush1.msra.mxu0 %v3097
        %3848 = vmatprep.subr.mxu0 %v3102
        %3849 = vmatpush1.msra.mxu0 %v3101
        %3850 = vmatprep.subr.mxu0 %v3106
        %3851 = vmatpush1.msra.mxu0 %v3105
        %3852 = vmatprep.subr.mxu0 %v3110
        %3853 = vmatpush1.msra.mxu0 %v3109
        %3854 = vmatprep.mubr.f32.mxu0 %v3312
        %3855 = vmatmul.mubr.f32.gmra.mrb[0].mxu0 %v3311
        %v3856 = vpop.f32.mrb[0].mxu0
        %v3857 = vadd.f32 %v3780, %v3856
        %v3858 = vpop.f32.mrb[0].mxu0
        %v3859 = vadd.f32 %v3782, %v3858
        %3860 = vmatprep.mubr.f32.mxu0 %v3319
        %3861 = vmatmul.mubr.f32.gmra.mrb[0].mxu0 %v3318
        %v3862 = vpop.f32.mrb[0].mxu0
        %v3863 = vadd.f32 %v3786, %v3862
        %v3864 = vpop.f32.mrb[0].mxu0
        %v3865 = vadd.f32 %v3788, %v3864
        %3866 = vdwg.mxu0
        %3867 = vmatprep.subr.mxu0 %v3114
        %3868 = vmatpush1.msra.mxu0 %v3113
        %3869 = vmatprep.subr.mxu0 %v3118
        %3870 = vmatpush1.msra.mxu0 %v3117
        %3871 = vmatprep.subr.mxu0 %v3122
        %3872 = vmatpush1.msra.mxu0 %v3121
        %3873 = vmatprep.subr.mxu0 %v3126
        %3874 = vmatpush1.msra.mxu0 %v3125
        %3875 = vmatprep.subr.mxu0 0.0
        %3876 = vmatpush1.msra.mxu0 0.0
        %3877 = vmatprep.subr.mxu0 0.0
        %3878 = vmatpush1.msra.mxu0 0.0
        %3879 = vmatprep.subr.mxu0 0.0
        %3880 = vmatpush1.msra.mxu0 0.0
        %3881 = vmatprep.subr.mxu0 0.0
        %3882 = vmatpush1.msra.mxu0 0.0
        %3883 = vmatprep.subr.mxu0 0.0
        %3884 = vmatpush1.msra.mxu0 0.0
        %3885 = vmatprep.subr.mxu0 0.0
        %3886 = vmatpush1.msra.mxu0 0.0
        %3887 = vmatprep.subr.mxu0 0.0
        %3888 = vmatpush1.msra.mxu0 0.0
        %3889 = vmatprep.subr.mxu0 0.0
        %3890 = vmatpush1.msra.mxu0 0.0
        %3891 = vmatprep.subr.mxu0 0.0
        %3892 = vmatpush1.msra.mxu0 0.0
        %3893 = vmatprep.subr.mxu0 0.0
        %3894 = vmatpush1.msra.mxu0 0.0
        %3895 = vmatprep.subr.mxu0 0.0
        %3896 = vmatpush1.msra.mxu0 0.0
        %3897 = vmatprep.subr.mxu0 0.0
        %3898 = vmatpush1.msra.mxu0 0.0
        %3899 = vmatprep.subr.mxu0 0.0
        %3900 = vmatpush1.msra.mxu0 0.0
        %3901 = vmatprep.subr.mxu0 0.0
        %3902 = vmatpush1.msra.mxu0 0.0
        %3903 = vmatprep.subr.mxu0 0.0
        %3904 = vmatpush1.msra.mxu0 0.0
        %3905 = vmatprep.subr.mxu0 0.0
        %3906 = vmatpush1.msra.mxu0 0.0
        %3907 = vmatprep.subr.mxu0 0.0
        %3908 = vmatpush1.msra.mxu0 0.0
        %3909 = vmatprep.subr.mxu0 0.0
        %3910 = vmatpush1.msra.mxu0 0.0
        %3911 = vmatprep.subr.mxu0 0.0
        %3912 = vmatpush1.msra.mxu0 0.0
        %3913 = vmatprep.subr.mxu0 0.0
        %3914 = vmatpush1.msra.mxu0 0.0
        %3915 = vmatprep.subr.mxu0 0.0
        %3916 = vmatpush1.msra.mxu0 0.0
        %3917 = vmatprep.subr.mxu0 0.0
        %3918 = vmatpush1.msra.mxu0 0.0
        %3919 = vmatprep.subr.mxu0 0.0
        %3920 = vmatpush1.msra.mxu0 0.0
        %3921 = vmatprep.subr.mxu0 0.0
        %3922 = vmatpush1.msra.mxu0 0.0
        %3923 = vmatprep.subr.mxu0 0.0
        %3924 = vmatpush1.msra.mxu0 0.0
        %3925 = vmatprep.subr.mxu0 0.0
        %3926 = vmatpush1.msra.mxu0 0.0
        %3927 = vmatprep.subr.mxu0 0.0
        %3928 = vmatpush1.msra.mxu0 0.0
        %3929 = vmatprep.subr.mxu0 0.0
        %3930 = vmatpush1.msra.mxu0 0.0
        %3931 = vmatprep.mubr.f32.mxu0 0.0
        %3932 = vmatmul.mubr.f32.gmra.mrb[0].mxu0 %v3323
        %v3933 = vpop.f32.mrb[0].mxu0
        %v3934 = vadd.f32 %v3857, %v3933
        %v3935 = vpop.f32.mrb[0].mxu0
        %v3936 = vadd.f32 %v3859, %v3935
        %3937 = vmatprep.mubr.f32.mxu0 0.0
        %3938 = vmatmul.mubr.f32.gmra.mrb[0].mxu0 %v3326
        %v3939 = vpop.f32.mrb[0].mxu0
        %v3940 = vadd.f32 %v3863, %v3939
        %v3941 = vpop.f32.mrb[0].mxu0
        %v3942 = vadd.f32 %v3865, %v3941
        %3943 = vdwg.mxu0
        %3944 = vmatprep.subr.mxu0 0.0
        %3945 = vmatpush1.msra.mxu0 %v1323
        %3946 = vmatprep.subr.mxu0 0.0
        %3947 = vmatpush1.msra.mxu0 %v1329
        %3948 = vmatprep.subr.mxu0 0.0
        %3949 = vmatpush1.msra.mxu0 %v1335
        %3950 = vmatprep.subr.mxu0 0.0
        %3951 = vmatpush1.msra.mxu0 %v1341
        %3952 = vmatprep.subr.mxu0 0.0
        %3953 = vmatpush1.msra.mxu0 %v1372
        %3954 = vmatprep.subr.mxu0 0.0
        %3955 = vmatpush1.msra.mxu0 %v1382
        %3956 = vmatprep.subr.mxu0 0.0
        %3957 = vmatpush1.msra.mxu0 %v1392
        %3958 = vmatprep.subr.mxu0 0.0
        %3959 = vmatpush1.msra.mxu0 %v1402
        %3960 = vmatprep.subr.mxu0 0.0
        %3961 = vmatpush1.msra.mxu0 %v1448
        %3962 = vmatprep.subr.mxu0 0.0
        %3963 = vmatpush1.msra.mxu0 %v1458
        %3964 = vmatprep.subr.mxu0 0.0
        %3965 = vmatpush1.msra.mxu0 %v1468
        %3966 = vmatprep.subr.mxu0 0.0
        %3967 = vmatpush1.msra.mxu0 %v1478
        %3968 = vmatprep.subr.mxu0 0.0
        %3969 = vmatpush1.msra.mxu0 %v1524
        %3970 = vmatprep.subr.mxu0 0.0
        %3971 = vmatpush1.msra.mxu0 %v1534
        %3972 = vmatprep.subr.mxu0 0.0
        %3973 = vmatpush1.msra.mxu0 %v1544
        %3974 = vmatprep.subr.mxu0 0.0
        %3975 = vmatpush1.msra.mxu0 %v1554
        %3976 = vmatprep.subr.mxu0 0.0
        %3977 = vmatpush1.msra.mxu0 %v1600
        %3978 = vmatprep.subr.mxu0 0.0
        %3979 = vmatpush1.msra.mxu0 %v1610
        %3980 = vmatprep.subr.mxu0 0.0
        %3981 = vmatpush1.msra.mxu0 %v1620
        %3982 = vmatprep.subr.mxu0 0.0
        %3983 = vmatpush1.msra.mxu0 %v1630
        %3984 = vmatprep.subr.mxu0 0.0
        %3985 = vmatpush1.msra.mxu0 %v1676
        %3986 = vmatprep.subr.mxu0 0.0
        %3987 = vmatpush1.msra.mxu0 %v1686
        %3988 = vmatprep.subr.mxu0 0.0
        %3989 = vmatpush1.msra.mxu0 %v1696
        %3990 = vmatprep.subr.mxu0 0.0
        %3991 = vmatpush1.msra.mxu0 %v1706
        %3992 = vmatprep.subr.mxu0 0.0
        %3993 = vmatpush1.msra.mxu0 %v1752
        %3994 = vmatprep.subr.mxu0 0.0
        %3995 = vmatpush1.msra.mxu0 %v1762
        %3996 = vmatprep.subr.mxu0 0.0
        %3997 = vmatpush1.msra.mxu0 %v1772
        %3998 = vmatprep.subr.mxu0 0.0
        %3999 = vmatpush1.msra.mxu0 %v1782
        %4000 = vmatprep.subr.mxu0 0.0
        %4001 = vmatpush1.msra.mxu0 %v1828
        %4002 = vmatprep.subr.mxu0 0.0
        %4003 = vmatpush1.msra.mxu0 %v1838
        %4004 = vmatprep.subr.mxu0 0.0
        %4005 = vmatpush1.msra.mxu0 %v1848
        %4006 = vmatprep.subr.mxu0 0.0
        %4007 = vmatpush1.msra.mxu0 %v1858
        %4008 = vmatprep.mubr.f32.mxu0 %v3308
        %4009 = vmatmul.mubr.f32.gmra.mrb[0].mxu0 %v3307
        %v4010 = vpop.f32.mrb[0].mxu0
        %v4011 = vadd.f32 0.0, %v4010
        %v4012 = vpop.f32.mrb[0].mxu0
        %4013 = vmatprep.mubr.f32.mxu0 %v3315
        %4014 = vmatmul.mubr.f32.gmra.mrb[0].mxu0 %v3314
        %v4015 = vpop.f32.mrb[0].mxu0
        %v4016 = vadd.f32 0.0, %v4015
        %v4017 = vpop.f32.mrb[0].mxu0
        %4018 = vdwg.mxu0
        %4019 = vmatprep.subr.mxu0 0.0
        %4020 = vmatpush1.msra.mxu0 %v1904
        %4021 = vmatprep.subr.mxu0 0.0
        %4022 = vmatpush1.msra.mxu0 %v1914
        %4023 = vmatprep.subr.mxu0 0.0
        %4024 = vmatpush1.msra.mxu0 %v1924
        %4025 = vmatprep.subr.mxu0 0.0
        %4026 = vmatpush1.msra.mxu0 %v1934
        %4027 = vmatprep.subr.mxu0 0.0
        %4028 = vmatpush1.msra.mxu0 %v1980
        %4029 = vmatprep.subr.mxu0 0.0
        %4030 = vmatpush1.msra.mxu0 %v1990
        %4031 = vmatprep.subr.mxu0 0.0
        %4032 = vmatpush1.msra.mxu0 %v2000
        %4033 = vmatprep.subr.mxu0 0.0
        %4034 = vmatpush1.msra.mxu0 %v2010
        %4035 = vmatprep.subr.mxu0 0.0
        %4036 = vmatpush1.msra.mxu0 %v2056
        %4037 = vmatprep.subr.mxu0 0.0
        %4038 = vmatpush1.msra.mxu0 %v2066
        %4039 = vmatprep.subr.mxu0 0.0
        %4040 = vmatpush1.msra.mxu0 %v2076
        %4041 = vmatprep.subr.mxu0 0.0
        %4042 = vmatpush1.msra.mxu0 %v2086
        %4043 = vmatprep.subr.mxu0 0.0
        %4044 = vmatpush1.msra.mxu0 %v2132
        %4045 = vmatprep.subr.mxu0 0.0
        %4046 = vmatpush1.msra.mxu0 %v2142
        %4047 = vmatprep.subr.mxu0 0.0
        %4048 = vmatpush1.msra.mxu0 %v2152
        %4049 = vmatprep.subr.mxu0 0.0
        %4050 = vmatpush1.msra.mxu0 %v2162
        %4051 = vmatprep.subr.mxu0 0.0
        %4052 = vmatpush1.msra.mxu0 %v2208
        %4053 = vmatprep.subr.mxu0 0.0
        %4054 = vmatpush1.msra.mxu0 %v2218
        %4055 = vmatprep.subr.mxu0 0.0
        %4056 = vmatpush1.msra.mxu0 %v2228
        %4057 = vmatprep.subr.mxu0 0.0
        %4058 = vmatpush1.msra.mxu0 %v2238
        %4059 = vmatprep.subr.mxu0 0.0
        %4060 = vmatpush1.msra.mxu0 %v2284
        %4061 = vmatprep.subr.mxu0 0.0
        %4062 = vmatpush1.msra.mxu0 %v2294
        %4063 = vmatprep.subr.mxu0 0.0
        %4064 = vmatpush1.msra.mxu0 %v2304
        %4065 = vmatprep.subr.mxu0 0.0
        %4066 = vmatpush1.msra.mxu0 %v2314
        %4067 = vmatprep.subr.mxu0 0.0
        %4068 = vmatpush1.msra.mxu0 %v2360
        %4069 = vmatprep.subr.mxu0 0.0
        %4070 = vmatpush1.msra.mxu0 %v2370
        %4071 = vmatprep.subr.mxu0 0.0
        %4072 = vmatpush1.msra.mxu0 %v2380
        %4073 = vmatprep.subr.mxu0 0.0
        %4074 = vmatpush1.msra.mxu0 %v2390
        %4075 = vmatprep.subr.mxu0 0.0
        %4076 = vmatpush1.msra.mxu0 %v2436
        %4077 = vmatprep.subr.mxu0 0.0
        %4078 = vmatpush1.msra.mxu0 %v2446
        %4079 = vmatprep.subr.mxu0 0.0
        %4080 = vmatpush1.msra.mxu0 %v2456
        %4081 = vmatprep.subr.mxu0 0.0
        %4082 = vmatpush1.msra.mxu0 %v2466
        %4083 = vmatprep.mubr.f32.mxu0 %v3310
        %4084 = vmatmul.mubr.f32.gmra.mrb[0].mxu0 %v3309
        %v4085 = vpop.f32.mrb[0].mxu0
        %v4086 = vadd.f32 %v4011, %v4085
        %v4087 = vpop.f32.mrb[0].mxu0
        %4088 = vmatprep.mubr.f32.mxu0 %v3317
        %4089 = vmatmul.mubr.f32.gmra.mrb[0].mxu0 %v3316
        %v4090 = vpop.f32.mrb[0].mxu0
        %v4091 = vadd.f32 %v4016, %v4090
        %v4092 = vpop.f32.mrb[0].mxu0
        %4093 = vdwg.mxu0
        %4094 = vmatprep.subr.mxu0 0.0
        %4095 = vmatpush1.msra.mxu0 %v2632
        %4096 = vmatprep.subr.mxu0 0.0
        %4097 = vmatpush1.msra.mxu0 %v2642
        %4098 = vmatprep.subr.mxu0 0.0
        %4099 = vmatpush1.msra.mxu0 %v2652
        %4100 = vmatprep.subr.mxu0 0.0
        %4101 = vmatpush1.msra.mxu0 %v2662
        %4102 = vmatprep.subr.mxu0 0.0
        %4103 = vmatpush1.msra.mxu0 %v2672
        %4104 = vmatprep.subr.mxu0 0.0
        %4105 = vmatpush1.msra.mxu0 %v2682
        %4106 = vmatprep.subr.mxu0 0.0
        %4107 = vmatpush1.msra.mxu0 %v2692
        %4108 = vmatprep.subr.mxu0 0.0
        %4109 = vmatpush1.msra.mxu0 %v2702
        %4110 = vmatprep.subr.mxu0 0.0
        %4111 = vmatpush1.msra.mxu0 %v2712
        %4112 = vmatprep.subr.mxu0 0.0
        %4113 = vmatpush1.msra.mxu0 %v2722
        %4114 = vmatprep.subr.mxu0 0.0
        %4115 = vmatpush1.msra.mxu0 %v2732
        %4116 = vmatprep.subr.mxu0 0.0
        %4117 = vmatpush1.msra.mxu0 %v2742
        %4118 = vmatprep.subr.mxu0 0.0
        %4119 = vmatpush1.msra.mxu0 %v2752
        %4120 = vmatprep.subr.mxu0 0.0
        %4121 = vmatpush1.msra.mxu0 %v2762
        %4122 = vmatprep.subr.mxu0 0.0
        %4123 = vmatpush1.msra.mxu0 %v2772
        %4124 = vmatprep.subr.mxu0 0.0
        %4125 = vmatpush1.msra.mxu0 %v2782
        %4126 = vmatprep.subr.mxu0 0.0
        %4127 = vmatpush1.msra.mxu0 %v2792
        %4128 = vmatprep.subr.mxu0 0.0
        %4129 = vmatpush1.msra.mxu0 %v2802
        %4130 = vmatprep.subr.mxu0 0.0
        %4131 = vmatpush1.msra.mxu0 %v2812
        %4132 = vmatprep.subr.mxu0 0.0
        %4133 = vmatpush1.msra.mxu0 %v2822
        %4134 = vmatprep.subr.mxu0 0.0
        %4135 = vmatpush1.msra.mxu0 %v2832
        %4136 = vmatprep.subr.mxu0 0.0
        %4137 = vmatpush1.msra.mxu0 %v2842
        %4138 = vmatprep.subr.mxu0 0.0
        %4139 = vmatpush1.msra.mxu0 %v2852
        %4140 = vmatprep.subr.mxu0 0.0
        %4141 = vmatpush1.msra.mxu0 %v2862
        %4142 = vmatprep.subr.mxu0 0.0
        %4143 = vmatpush1.msra.mxu0 %v2872
        %4144 = vmatprep.subr.mxu0 0.0
        %4145 = vmatpush1.msra.mxu0 %v2882
        %4146 = vmatprep.subr.mxu0 0.0
        %4147 = vmatpush1.msra.mxu0 %v2892
        %4148 = vmatprep.subr.mxu0 0.0
        %4149 = vmatpush1.msra.mxu0 %v2902
        %4150 = vmatprep.subr.mxu0 0.0
        %4151 = vmatpush1.msra.mxu0 %v2912
        %4152 = vmatprep.subr.mxu0 0.0
        %4153 = vmatpush1.msra.mxu0 %v2922
        %4154 = vmatprep.subr.mxu0 0.0
        %4155 = vmatpush1.msra.mxu0 %v2932
        %4156 = vmatprep.subr.mxu0 0.0
        %4157 = vmatpush1.msra.mxu0 %v2942
        %4158 = vmatprep.mubr.f32.mxu0 %v3312
        %4159 = vmatmul.mubr.f32.gmra.mrb[0].mxu0 %v3311
        %v4160 = vpop.f32.mrb[0].mxu0
        %v4161 = vadd.f32 %v4086, %v4160
        %v4162 = vpop.f32.mrb[0].mxu0
        %4163 = vmatprep.mubr.f32.mxu0 %v3319
        %4164 = vmatmul.mubr.f32.gmra.mrb[0].mxu0 %v3318
        %v4165 = vpop.f32.mrb[0].mxu0
        %v4166 = vadd.f32 %v4091, %v4165
        %v4167 = vpop.f32.mrb[0].mxu0
        %4168 = vdwg.mxu0
        %4169 = vmatprep.subr.mxu0 0.0
        %4170 = vmatpush1.msra.mxu0 %v2952
        %4171 = vmatprep.subr.mxu0 0.0
        %4172 = vmatpush1.msra.mxu0 %v2962
        %4173 = vmatprep.subr.mxu0 0.0
        %4174 = vmatpush1.msra.mxu0 %v2972
        %4175 = vmatprep.subr.mxu0 0.0
        %4176 = vmatpush1.msra.mxu0 %v2982
        %4177 = vmatprep.subr.mxu0 0.0
        %4178 = vmatpush1.msra.mxu0 0.0
        %4179 = vmatprep.subr.mxu0 0.0
        %4180 = vmatpush1.msra.mxu0 0.0
        %4181 = vmatprep.subr.mxu0 0.0
        %4182 = vmatpush1.msra.mxu0 0.0
        %4183 = vmatprep.subr.mxu0 0.0
        %4184 = vmatpush1.msra.mxu0 0.0
        %4185 = vmatprep.subr.mxu0 0.0
        %4186 = vmatpush1.msra.mxu0 0.0
        %4187 = vmatprep.subr.mxu0 0.0
        %4188 = vmatpush1.msra.mxu0 0.0
        %4189 = vmatprep.subr.mxu0 0.0
        %4190 = vmatpush1.msra.mxu0 0.0
        %4191 = vmatprep.subr.mxu0 0.0
        %4192 = vmatpush1.msra.mxu0 0.0
        %4193 = vmatprep.subr.mxu0 0.0
        %4194 = vmatpush1.msra.mxu0 0.0
        %4195 = vmatprep.subr.mxu0 0.0
        %4196 = vmatpush1.msra.mxu0 0.0
        %4197 = vmatprep.subr.mxu0 0.0
        %4198 = vmatpush1.msra.mxu0 0.0
        %4199 = vmatprep.subr.mxu0 0.0
        %4200 = vmatpush1.msra.mxu0 0.0
        %4201 = vmatprep.subr.mxu0 0.0
        %4202 = vmatpush1.msra.mxu0 0.0
        %4203 = vmatprep.subr.mxu0 0.0
        %4204 = vmatpush1.msra.mxu0 0.0
        %4205 = vmatprep.subr.mxu0 0.0
        %4206 = vmatpush1.msra.mxu0 0.0
        %4207 = vmatprep.subr.mxu0 0.0
        %4208 = vmatpush1.msra.mxu0 0.0
        %4209 = vmatprep.subr.mxu0 0.0
        %4210 = vmatpush1.msra.mxu0 0.0
        %4211 = vmatprep.subr.mxu0 0.0
        %4212 = vmatpush1.msra.mxu0 0.0
        %4213 = vmatprep.subr.mxu0 0.0
        %4214 = vmatpush1.msra.mxu0 0.0
        %4215 = vmatprep.subr.mxu0 0.0
        %4216 = vmatpush1.msra.mxu0 0.0
        %4217 = vmatprep.subr.mxu0 0.0
        %4218 = vmatpush1.msra.mxu0 0.0
        %4219 = vmatprep.subr.mxu0 0.0
        %4220 = vmatpush1.msra.mxu0 0.0
        %4221 = vmatprep.subr.mxu0 0.0
        %4222 = vmatpush1.msra.mxu0 0.0
        %4223 = vmatprep.subr.mxu0 0.0
        %4224 = vmatpush1.msra.mxu0 0.0
        %4225 = vmatprep.subr.mxu0 0.0
        %4226 = vmatpush1.msra.mxu0 0.0
        %4227 = vmatprep.subr.mxu0 0.0
        %4228 = vmatpush1.msra.mxu0 0.0
        %4229 = vmatprep.subr.mxu0 0.0
        %4230 = vmatpush1.msra.mxu0 0.0
        %4231 = vmatprep.subr.mxu0 0.0
        %4232 = vmatpush1.msra.mxu0 0.0
        %4233 = vmatprep.mubr.f32.mxu0 0.0
        %4234 = vmatmul.mubr.f32.gmra.mrb[0].mxu0 %v3323
        %v4235 = vpop.f32.mrb[0].mxu0
        %v4236 = vadd.f32 %v4161, %v4235
        %v4237 = vpop.f32.mrb[0].mxu0
        %4238 = vmatprep.mubr.f32.mxu0 0.0
        %4239 = vmatmul.mubr.f32.gmra.mrb[0].mxu0 %v3326
        %v4240 = vpop.f32.mrb[0].mxu0
        %v4241 = vadd.f32 %v4166, %v4240
        %v4242 = vpop.f32.mrb[0].mxu0
        %4243 = vdwg.mxu0
        %v4244 = vld [vmem:[%s5] sm:$0xff]
        %v4245 = vld [vmem:[%s5 + $0x8] sm:$0xff]
        %4247 = vset.pattern.permute.xlu0 0
        %4248 = vperm.xlu0 %4247, %v4244
        %v4249 = vpop.permute.xlu0 %4248
        %4252 = vset.pattern.permute.xlu0 0
        %4253 = vperm.xlu0 %4252, %v4245
        %v4254 = vpop.permute.xlu0 %4253
        %v4256 = vmul.f32 %v3626, %v4249
        %v4257 = vmul.f32 %v3628, %v4249
        %v4258 = vmul.f32 %v3934, %v4249
        %v4259 = vmul.f32 %v3936, %v4249
        %v4260 = vmul.f32 %v4236, %v4249
        %v4261 = vmul.f32 %v3632, %v4254
        %v4262 = vmul.f32 %v3634, %v4254
        %v4263 = vmul.f32 %v3940, %v4254
        %v4264 = vmul.f32 %v3942, %v4254
        %v4265 = vmul.f32 %v4241, %v4254
        %v4266 = vld [vmem:[%s6] sm:$0xff]
        %v4267 = vld [vmem:[%s6 + $0x8] sm:$0xff]
        %4269 = vset.pattern.permute.xlu0 0
        %4270 = vperm.xlu0 %4269, %v4266
        %v4271 = vpop.permute.xlu0 %4270
        %4274 = vset.pattern.permute.xlu0 0
        %4275 = vperm.xlu0 %4274, %v4267
        %v4276 = vpop.permute.xlu0 %4275
        %v4278 = vadd.f32 %v4256, %v4271
        %v4279 = vadd.f32 %v4257, %v4271
        %v4280 = vadd.f32 %v4258, %v4271
        %v4281 = vadd.f32 %v4259, %v4271
        %v4282 = vadd.f32 %v4260, %v4271
        %v4283 = vadd.f32 %v4261, %v4276
        %v4284 = vadd.f32 %v4262, %v4276
        %v4285 = vadd.f32 %v4263, %v4276
        %v4286 = vadd.f32 %v4264, %v4276
        %v4287 = vadd.f32 %v4265, %v4276
        %v4288 = vmax.f32 %v4278, 0.0
        %v4289 = vmax.f32 %v4279, 0.0
        %v4290 = vmax.f32 %v4280, 0.0
        %v4291 = vmax.f32 %v4281, 0.0
        %v4292 = vmax.f32 %v4282, 0.0
        %v4293 = vmax.f32 %v4283, 0.0
        %v4294 = vmax.f32 %v4284, 0.0
        %v4295 = vmax.f32 %v4285, 0.0
        %v4296 = vmax.f32 %v4286, 0.0
        %v4297 = vmax.f32 %v4287, 0.0
        %v4308 = vcombine.low %v4288, %v4289
        %v4309 = vcombine.high %v4288, %v4289
        %v4310 = vcombine.low %v4290, %v4291
        %v4311 = vcombine.high %v4290, %v4291
        %v4312 = vcombine.high %v4292, %v4292
        %v4314 = vunpack.c.l.s4 1966171168
        %v4315 = vunpack.c.0.s8 %v4314
        %v4316 = vlaneseq
        %v4317 = vshrl.u32 %v4316, 7
        %v4318 = vsub.s32 %v4315, %v4317
        %v4319 = vrot.slane %v4308, %v4318
        %v4321 = vunpack.c.l.s4 1966171168
        %v4322 = vunpack.c.0.s8 %v4321
        %v4323 = vlaneseq
        %v4324 = vshrl.u32 %v4323, 7
        %v4325 = vsub.s32 %v4322, %v4324
        %v4326 = vrot.slane %v4309, %v4325
        %v4328 = vunpack.c.l.s4 1966171168
        %v4329 = vunpack.c.0.s8 %v4328
        %v4330 = vlaneseq
        %v4331 = vshrl.u32 %v4330, 7
        %v4332 = vsub.s32 %v4329, %v4331
        %v4333 = vrot.slane %v4310, %v4332
        %v4335 = vunpack.c.l.s4 1966171168
        %v4336 = vunpack.c.0.s8 %v4335
        %v4337 = vlaneseq
        %v4338 = vshrl.u32 %v4337, 7
        %v4339 = vsub.s32 %v4336, %v4338
        %v4340 = vrot.slane %v4311, %v4339
        %v4342 = vunpack.c.l.s4 1966171168
        %v4343 = vunpack.c.0.s8 %v4342
        %v4344 = vlaneseq
        %v4345 = vshrl.u32 %v4344, 7
        %v4346 = vsub.s32 %v4343, %v4345
        %v4347 = vrot.slane %v4292, %v4346
        %v4349 = vunpack.c.l.s4 1966171168
        %v4350 = vunpack.c.0.s8 %v4349
        %v4351 = vlaneseq
        %v4352 = vshrl.u32 %v4351, 7
        %v4353 = vsub.s32 %v4350, %v4352
        %v4354 = vrot.slane %v4312, %v4353
        %v4355 = vcombine.low %v4319, %v4333
        %v4356 = vcombine.high %v4319, %v4333
        %v4357 = vcombine.low %v4326, %v4340
        %v4358 = vcombine.high %v4326, %v4340
        %v4359 = vcombine.high %v4347, %v4347
        %v4360 = vcombine.high %v4354, %v4354
        %v4362 = vunpack.c.l.s4 1966171168
        %v4363 = vunpack.c.0.s8 %v4362
        %v4364 = vlaneseq
        %v4365 = vshrl.u32 %v4364, 7
        %v4366 = vsub.s32 %v4363, %v4365
        %v4367 = vrot.slane %v4355, %v4366
        %v4369 = vunpack.c.l.s4 1966171168
        %v4370 = vunpack.c.0.s8 %v4369
        %v4371 = vlaneseq
        %v4372 = vshrl.u32 %v4371, 7
        %v4373 = vsub.s32 %v4370, %v4372
        %v4374 = vrot.slane %v4357, %v4373
        %v4376 = vunpack.c.l.s4 1966171168
        %v4377 = vunpack.c.0.s8 %v4376
        %v4378 = vlaneseq
        %v4379 = vshrl.u32 %v4378, 7
        %v4380 = vsub.s32 %v4377, %v4379
        %v4381 = vrot.slane %v4356, %v4380
        %v4383 = vunpack.c.l.s4 1966171168
        %v4384 = vunpack.c.0.s8 %v4383
        %v4385 = vlaneseq
        %v4386 = vshrl.u32 %v4385, 7
        %v4387 = vsub.s32 %v4384, %v4386
        %v4388 = vrot.slane %v4358, %v4387
        %v4390 = vunpack.c.l.s4 1966171168
        %v4391 = vunpack.c.0.s8 %v4390
        %v4392 = vlaneseq
        %v4393 = vshrl.u32 %v4392, 7
        %v4394 = vsub.s32 %v4391, %v4393
        %v4395 = vrot.slane %v4347, %v4394
        %v4397 = vunpack.c.l.s4 1966171168
        %v4398 = vunpack.c.0.s8 %v4397
        %v4399 = vlaneseq
        %v4400 = vshrl.u32 %v4399, 7
        %v4401 = vsub.s32 %v4398, %v4400
        %v4402 = vrot.slane %v4354, %v4401
        %v4404 = vunpack.c.l.s4 1966171168
        %v4405 = vunpack.c.0.s8 %v4404
        %v4406 = vlaneseq
        %v4407 = vshrl.u32 %v4406, 7
        %v4408 = vsub.s32 %v4405, %v4407
        %v4409 = vrot.slane %v4359, %v4408
        %v4411 = vunpack.c.l.s4 1966171168
        %v4412 = vunpack.c.0.s8 %v4411
        %v4413 = vlaneseq
        %v4414 = vshrl.u32 %v4413, 7
        %v4415 = vsub.s32 %v4412, %v4414
        %v4416 = vrot.slane %v4360, %v4415
        %v4417 = vcombine.low %v4367, %v4395
        %v4418 = vcombine.high %v4367, %v4395
        %v4419 = vcombine.low %v4374, %v4402
        %v4420 = vcombine.high %v4374, %v4402
        %v4421 = vcombine.low %v4381, %v4409
        %v4422 = vcombine.high %v4381, %v4409
        %v4423 = vcombine.low %v4388, %v4416
        %v4424 = vcombine.high %v4388, %v4416
        %v4425 = vcombine.low %v4293, %v4294
        %v4426 = vcombine.high %v4293, %v4294
        %v4427 = vcombine.low %v4295, %v4296
        %v4428 = vcombine.high %v4295, %v4296
        %v4429 = vcombine.high %v4297, %v4297
        %v4431 = vunpack.c.l.s4 1966171168
        %v4432 = vunpack.c.0.s8 %v4431
        %v4433 = vlaneseq
        %v4434 = vshrl.u32 %v4433, 7
        %v4435 = vsub.s32 %v4432, %v4434
        %v4436 = vrot.slane %v4425, %v4435
        %v4438 = vunpack.c.l.s4 1966171168
        %v4439 = vunpack.c.0.s8 %v4438
        %v4440 = vlaneseq
        %v4441 = vshrl.u32 %v4440, 7
        %v4442 = vsub.s32 %v4439, %v4441
        %v4443 = vrot.slane %v4426, %v4442
        %v4445 = vunpack.c.l.s4 1966171168
        %v4446 = vunpack.c.0.s8 %v4445
        %v4447 = vlaneseq
        %v4448 = vshrl.u32 %v4447, 7
        %v4449 = vsub.s32 %v4446, %v4448
        %v4450 = vrot.slane %v4427, %v4449
        %v4452 = vunpack.c.l.s4 1966171168
        %v4453 = vunpack.c.0.s8 %v4452
        %v4454 = vlaneseq
        %v4455 = vshrl.u32 %v4454, 7
        %v4456 = vsub.s32 %v4453, %v4455
        %v4457 = vrot.slane %v4428, %v4456
        %v4459 = vunpack.c.l.s4 1966171168
        %v4460 = vunpack.c.0.s8 %v4459
        %v4461 = vlaneseq
        %v4462 = vshrl.u32 %v4461, 7
        %v4463 = vsub.s32 %v4460, %v4462
        %v4464 = vrot.slane %v4297, %v4463
        %v4466 = vunpack.c.l.s4 1966171168
        %v4467 = vunpack.c.0.s8 %v4466
        %v4468 = vlaneseq
        %v4469 = vshrl.u32 %v4468, 7
        %v4470 = vsub.s32 %v4467, %v4469
        %v4471 = vrot.slane %v4429, %v4470
        %v4472 = vcombine.low %v4436, %v4450
        %v4473 = vcombine.high %v4436, %v4450
        %v4474 = vcombine.low %v4443, %v4457
        %v4475 = vcombine.high %v4443, %v4457
        %v4476 = vcombine.high %v4464, %v4464
        %v4477 = vcombine.high %v4471, %v4471
        %v4479 = vunpack.c.l.s4 1966171168
        %v4480 = vunpack.c.0.s8 %v4479
        %v4481 = vlaneseq
        %v4482 = vshrl.u32 %v4481, 7
        %v4483 = vsub.s32 %v4480, %v4482
        %v4484 = vrot.slane %v4472, %v4483
        %v4486 = vunpack.c.l.s4 1966171168
        %v4487 = vunpack.c.0.s8 %v4486
        %v4488 = vlaneseq
        %v4489 = vshrl.u32 %v4488, 7
        %v4490 = vsub.s32 %v4487, %v4489
        %v4491 = vrot.slane %v4474, %v4490
        %v4493 = vunpack.c.l.s4 1966171168
        %v4494 = vunpack.c.0.s8 %v4493
        %v4495 = vlaneseq
        %v4496 = vshrl.u32 %v4495, 7
        %v4497 = vsub.s32 %v4494, %v4496
        %v4498 = vrot.slane %v4473, %v4497
        %v4500 = vunpack.c.l.s4 1966171168
        %v4501 = vunpack.c.0.s8 %v4500
        %v4502 = vlaneseq
        %v4503 = vshrl.u32 %v4502, 7
        %v4504 = vsub.s32 %v4501, %v4503
        %v4505 = vrot.slane %v4475, %v4504
        %v4507 = vunpack.c.l.s4 1966171168
        %v4508 = vunpack.c.0.s8 %v4507
        %v4509 = vlaneseq
        %v4510 = vshrl.u32 %v4509, 7
        %v4511 = vsub.s32 %v4508, %v4510
        %v4512 = vrot.slane %v4464, %v4511
        %v4514 = vunpack.c.l.s4 1966171168
        %v4515 = vunpack.c.0.s8 %v4514
        %v4516 = vlaneseq
        %v4517 = vshrl.u32 %v4516, 7
        %v4518 = vsub.s32 %v4515, %v4517
        %v4519 = vrot.slane %v4471, %v4518
        %v4521 = vunpack.c.l.s4 1966171168
        %v4522 = vunpack.c.0.s8 %v4521
        %v4523 = vlaneseq
        %v4524 = vshrl.u32 %v4523, 7
        %v4525 = vsub.s32 %v4522, %v4524
        %v4526 = vrot.slane %v4476, %v4525
        %v4528 = vunpack.c.l.s4 1966171168
        %v4529 = vunpack.c.0.s8 %v4528
        %v4530 = vlaneseq
        %v4531 = vshrl.u32 %v4530, 7
        %v4532 = vsub.s32 %v4529, %v4531
        %v4533 = vrot.slane %v4477, %v4532
        %v4534 = vcombine.low %v4484, %v4512
        %v4535 = vcombine.high %v4484, %v4512
        %v4536 = vcombine.low %v4491, %v4519
        %v4537 = vcombine.high %v4491, %v4519
        %v4538 = vcombine.low %v4498, %v4526
        %v4539 = vcombine.high %v4498, %v4526
        %v4540 = vcombine.low %v4505, %v4533
        %v4541 = vcombine.high %v4505, %v4533
        %v4542 = vld [vmem:[%s7] sm:$0xff]
        %v4543 = vld [vmem:[%s7 + $0x8] sm:$0xff]
        %v4544 = vld [vmem:[%s7 + $0x10] sm:$0xff]
        %v4545 = vld [vmem:[%s7 + $0x18] sm:$0xff]
        %v4546 = vld [vmem:[%s7 + $0x20] sm:$0xff]
        %v4547 = vld [vmem:[%s7 + $0x28] sm:$0x3]
        %v4548 = vld [vmem:[%s7 + $0x30] sm:$0x3]
        %v4549 = vld [vmem:[%s7 + $0x38] sm:$0x3]
        %v4550 = vld [vmem:[%s7 + $0x40] sm:$0x3]
        %v4551 = vld [vmem:[%s7 + $0x48] sm:$0x3]
        %v4552 = vld [vmem:[%s7 + $0x50] sm:$0xff]
        %v4553 = vld [vmem:[%s7 + $0x58] sm:$0xff]
        %v4554 = vld [vmem:[%s7 + $0x60] sm:$0xff]
        %v4555 = vld [vmem:[%s7 + $0x68] sm:$0xff]
        %v4556 = vld [vmem:[%s7 + $0x70] sm:$0xff]
        %v4557 = vld [vmem:[%s7 + $0x78] sm:$0x3]
        %v4558 = vld [vmem:[%s7 + $0x80] sm:$0x3]
        %v4559 = vld [vmem:[%s7 + $0x88] sm:$0x3]
        %v4560 = vld [vmem:[%s7 + $0x90] sm:$0x3]
        %v4561 = vld [vmem:[%s7 + $0x98] sm:$0x3]
        %v4562 = vld [vmem:[%s7 + $0xa0] sm:$0xff]
        %v4563 = vld [vmem:[%s7 + $0xa8] sm:$0xff]
        %v4564 = vld [vmem:[%s7 + $0xb0] sm:$0xff]
        %v4565 = vld [vmem:[%s7 + $0xb8] sm:$0xff]
        %v4566 = vld [vmem:[%s7 + $0xc0] sm:$0xff]
        %v4567 = vld [vmem:[%s7 + $0xc8] sm:$0x3]
        %v4568 = vld [vmem:[%s7 + $0xd0] sm:$0x3]
        %v4569 = vld [vmem:[%s7 + $0xd8] sm:$0x3]
        %v4570 = vld [vmem:[%s7 + $0xe0] sm:$0x3]
        %v4571 = vld [vmem:[%s7 + $0xe8] sm:$0x3]
        %v4572 = vld [vmem:[%s7 + $0xf0] sm:$0xff]
        %v4573 = vld [vmem:[%s7 + $0xf8] sm:$0xff]
        %v4574 = vld [vmem:[%s7 + $0x100] sm:$0xff]
        %v4575 = vld [vmem:[%s7 + $0x108] sm:$0xff]
        %v4576 = vld [vmem:[%s7 + $0x110] sm:$0xff]
        %v4577 = vld [vmem:[%s7 + $0x118] sm:$0x3]
        %v4578 = vld [vmem:[%s7 + $0x120] sm:$0x3]
        %v4579 = vld [vmem:[%s7 + $0x128] sm:$0x3]
        %v4580 = vld [vmem:[%s7 + $0x130] sm:$0x3]
        %v4581 = vld [vmem:[%s7 + $0x138] sm:$0x3]
        %v4582 = vld [vmem:[%s7 + $0x140] sm:$0xff]
        %v4583 = vld [vmem:[%s7 + $0x148] sm:$0xff]
        %v4584 = vld [vmem:[%s7 + $0x150] sm:$0xff]
        %v4585 = vld [vmem:[%s7 + $0x158] sm:$0xff]
        %v4586 = vld [vmem:[%s7 + $0x160] sm:$0xff]
        %v4587 = vld [vmem:[%s7 + $0x168] sm:$0x3]
        %v4588 = vld [vmem:[%s7 + $0x170] sm:$0x3]
        %v4589 = vld [vmem:[%s7 + $0x178] sm:$0x3]
        %v4590 = vld [vmem:[%s7 + $0x180] sm:$0x3]
        %v4591 = vld [vmem:[%s7 + $0x188] sm:$0x3]
        %v4592 = vld [vmem:[%s7 + $0x190] sm:$0xff]
        %v4593 = vld [vmem:[%s7 + $0x198] sm:$0xff]
        %v4594 = vld [vmem:[%s7 + $0x1a0] sm:$0xff]
        %v4595 = vld [vmem:[%s7 + $0x1a8] sm:$0xff]
        %v4596 = vld [vmem:[%s7 + $0x1b0] sm:$0xff]
        %v4597 = vld [vmem:[%s7 + $0x1b8] sm:$0x3]
        %v4598 = vld [vmem:[%s7 + $0x1c0] sm:$0x3]
        %v4599 = vld [vmem:[%s7 + $0x1c8] sm:$0x3]
        %v4600 = vld [vmem:[%s7 + $0x1d0] sm:$0x3]
        %v4601 = vld [vmem:[%s7 + $0x1d8] sm:$0x3]
        %v4602 = vld [vmem:[%s7 + $0x1e0] sm:$0xff]
        %v4603 = vld [vmem:[%s7 + $0x1e8] sm:$0xff]
        %v4604 = vld [vmem:[%s7 + $0x1f0] sm:$0xff]
        %v4605 = vld [vmem:[%s7 + $0x1f8] sm:$0xff]
        %v4606 = vld [vmem:[%s7 + $0x200] sm:$0xff]
        %v4607 = vld [vmem:[%s7 + $0x208] sm:$0x3]
        %v4608 = vld [vmem:[%s7 + $0x210] sm:$0x3]
        %v4609 = vld [vmem:[%s7 + $0x218] sm:$0x3]
        %v4610 = vld [vmem:[%s7 + $0x220] sm:$0x3]
        %v4611 = vld [vmem:[%s7 + $0x228] sm:$0x3]
        %v4612 = vld [vmem:[%s7 + $0x230] sm:$0xff]
        %v4613 = vld [vmem:[%s7 + $0x238] sm:$0xff]
        %v4614 = vld [vmem:[%s7 + $0x240] sm:$0xff]
        %v4615 = vld [vmem:[%s7 + $0x248] sm:$0xff]
        %v4616 = vld [vmem:[%s7 + $0x250] sm:$0xff]
        %v4617 = vld [vmem:[%s7 + $0x258] sm:$0x3]
        %v4618 = vld [vmem:[%s7 + $0x260] sm:$0x3]
        %v4619 = vld [vmem:[%s7 + $0x268] sm:$0x3]
        %v4620 = vld [vmem:[%s7 + $0x270] sm:$0x3]
        %v4621 = vld [vmem:[%s7 + $0x278] sm:$0x3]
        %v4622 = vld [vmem:[%s7 + $0x280] sm:$0xff]
        %v4623 = vld [vmem:[%s7 + $0x288] sm:$0xff]
        %v4624 = vld [vmem:[%s7 + $0x290] sm:$0xff]
        %v4625 = vld [vmem:[%s7 + $0x298] sm:$0xff]
        %v4626 = vld [vmem:[%s7 + $0x2a0] sm:$0xff]
        %v4627 = vld [vmem:[%s7 + $0x2a8] sm:$0x3]
        %v4628 = vld [vmem:[%s7 + $0x2b0] sm:$0x3]
        %v4629 = vld [vmem:[%s7 + $0x2b8] sm:$0x3]
        %v4630 = vld [vmem:[%s7 + $0x2c0] sm:$0x3]
        %v4631 = vld [vmem:[%s7 + $0x2c8] sm:$0x3]
        %v4632 = vld [vmem:[%s7 + $0x2d0] sm:$0xff]
        %v4633 = vld [vmem:[%s7 + $0x2d8] sm:$0xff]
        %v4634 = vld [vmem:[%s7 + $0x2e0] sm:$0xff]
        %v4635 = vld [vmem:[%s7 + $0x2e8] sm:$0xff]
        %v4636 = vld [vmem:[%s7 + $0x2f0] sm:$0xff]
        %v4637 = vld [vmem:[%s7 + $0x2f8] sm:$0x3]
        %v4638 = vld [vmem:[%s7 + $0x300] sm:$0x3]
        %v4639 = vld [vmem:[%s7 + $0x308] sm:$0x3]
        %v4640 = vld [vmem:[%s7 + $0x310] sm:$0x3]
        %v4641 = vld [vmem:[%s7 + $0x318] sm:$0x3]
        %v4642 = vld [vmem:[%s7 + $0x320] sm:$0xff]
        %v4643 = vld [vmem:[%s7 + $0x328] sm:$0xff]
        %v4644 = vld [vmem:[%s7 + $0x330] sm:$0xff]
        %v4645 = vld [vmem:[%s7 + $0x338] sm:$0xff]
        %v4646 = vld [vmem:[%s7 + $0x340] sm:$0xff]
        %v4647 = vld [vmem:[%s7 + $0x348] sm:$0x3]
        %v4648 = vld [vmem:[%s7 + $0x350] sm:$0x3]
        %v4649 = vld [vmem:[%s7 + $0x358] sm:$0x3]
        %v4650 = vld [vmem:[%s7 + $0x360] sm:$0x3]
        %v4651 = vld [vmem:[%s7 + $0x368] sm:$0x3]
        %v4652 = vld [vmem:[%s7 + $0x370] sm:$0xff]
        %v4653 = vld [vmem:[%s7 + $0x378] sm:$0xff]
        %v4654 = vld [vmem:[%s7 + $0x380] sm:$0xff]
        %v4655 = vld [vmem:[%s7 + $0x388] sm:$0xff]
        %v4656 = vld [vmem:[%s7 + $0x390] sm:$0xff]
        %v4657 = vld [vmem:[%s7 + $0x398] sm:$0x3]
        %v4658 = vld [vmem:[%s7 + $0x3a0] sm:$0x3]
        %v4659 = vld [vmem:[%s7 + $0x3a8] sm:$0x3]
        %v4660 = vld [vmem:[%s7 + $0x3b0] sm:$0x3]
        %v4661 = vld [vmem:[%s7 + $0x3b8] sm:$0x3]
        %v4662 = vld [vmem:[%s7 + $0x3c0] sm:$0xff]
        %v4663 = vld [vmem:[%s7 + $0x3c8] sm:$0xff]
        %v4664 = vld [vmem:[%s7 + $0x3d0] sm:$0xff]
        %v4665 = vld [vmem:[%s7 + $0x3d8] sm:$0xff]
        %v4666 = vld [vmem:[%s7 + $0x3e0] sm:$0xff]
        %v4667 = vld [vmem:[%s7 + $0x3e8] sm:$0x3]
        %v4668 = vld [vmem:[%s7 + $0x3f0] sm:$0x3]
        %v4669 = vld [vmem:[%s7 + $0x3f8] sm:$0x3]
        %v4670 = vld [vmem:[%s7 + $0x400] sm:$0x3]
        %v4671 = vld [vmem:[%s7 + $0x408] sm:$0x3]
        %v4672 = vld [vmem:[%s7 + $0x410] sm:$0xff]
        %v4673 = vld [vmem:[%s7 + $0x418] sm:$0xff]
        %v4674 = vld [vmem:[%s7 + $0x420] sm:$0xff]
        %v4675 = vld [vmem:[%s7 + $0x428] sm:$0xff]
        %v4676 = vld [vmem:[%s7 + $0x430] sm:$0xff]
        %v4677 = vld [vmem:[%s7 + $0x438] sm:$0x3]
        %v4678 = vld [vmem:[%s7 + $0x440] sm:$0x3]
        %v4679 = vld [vmem:[%s7 + $0x448] sm:$0x3]
        %v4680 = vld [vmem:[%s7 + $0x450] sm:$0x3]
        %v4681 = vld [vmem:[%s7 + $0x458] sm:$0x3]
        %v4682 = vld [vmem:[%s7 + $0x460] sm:$0xff]
        %v4683 = vld [vmem:[%s7 + $0x468] sm:$0xff]
        %v4684 = vld [vmem:[%s7 + $0x470] sm:$0xff]
        %v4685 = vld [vmem:[%s7 + $0x478] sm:$0xff]
        %v4686 = vld [vmem:[%s7 + $0x480] sm:$0xff]
        %v4687 = vld [vmem:[%s7 + $0x488] sm:$0x3]
        %v4688 = vld [vmem:[%s7 + $0x490] sm:$0x3]
        %v4689 = vld [vmem:[%s7 + $0x498] sm:$0x3]
        %v4690 = vld [vmem:[%s7 + $0x4a0] sm:$0x3]
        %v4691 = vld [vmem:[%s7 + $0x4a8] sm:$0x3]
        %v4692 = vld [vmem:[%s7 + $0x4b0] sm:$0xff]
        %v4693 = vld [vmem:[%s7 + $0x4b8] sm:$0xff]
        %v4694 = vld [vmem:[%s7 + $0x4c0] sm:$0xff]
        %v4695 = vld [vmem:[%s7 + $0x4c8] sm:$0xff]
        %v4696 = vld [vmem:[%s7 + $0x4d0] sm:$0xff]
        %v4697 = vld [vmem:[%s7 + $0x4d8] sm:$0x3]
        %v4698 = vld [vmem:[%s7 + $0x4e0] sm:$0x3]
        %v4699 = vld [vmem:[%s7 + $0x4e8] sm:$0x3]
        %v4700 = vld [vmem:[%s7 + $0x4f0] sm:$0x3]
        %v4701 = vld [vmem:[%s7 + $0x4f8] sm:$0x3]
        %v4702 = vlaneseq
        %v4703 = vshrl.u32 %v4702, 7
        %v4704 = vsub.s32 0, %v4703
        %v4705 = vrot.slane %v4417, %v4704
        %v4706 = vlaneseq
        %v4707 = vshrl.u32 %v4706, 7
        %v4708 = vsub.s32 1, %v4707
        %v4709 = vrot.slane %v4417, %v4708
        %v4710 = vlaneseq
        %v4711 = vshrl.u32 %v4710, 7
        %v4712 = vsub.s32 2, %v4711
        %v4713 = vrot.slane %v4417, %v4712
        %v4714 = vlaneseq
        %v4715 = vshrl.u32 %v4714, 7
        %v4716 = vsub.s32 3, %v4715
        %v4717 = vrot.slane %v4417, %v4716
        %v4718 = vlaneseq
        %v4719 = vshrl.u32 %v4718, 7
        %v4720 = vsub.s32 4, %v4719
        %v4721 = vrot.slane %v4417, %v4720
        %vm4726 = vcmask 326656
        %v4727 = vsel %vm4726, %v4721, 0
        %v4730 = vsel %vm4726, %v4546, 0
        %v4733 = vsel %vm4726, %v4551, 0
        %4735 = vmatprep.subr.mxu0 %v4543
        %4736 = vmatpush1.xpose.msra.mxu0 %v4542
        %4737 = vmatprep.subr.mxu0 %v4548
        %4738 = vmatpush1.xpose.msra.mxu0 %v4547
        %4739 = vmatprep.subr.mxu0 0.0
        %4740 = vmatpush1.xpose.msra.mxu0 0.0
        %4741 = vmatprep.subr.mxu0 0.0
        %4742 = vmatpush1.xpose.msra.mxu0 0.0
        %4743 = vmatprep.subr.mxu0 0.0
        %4744 = vmatpush1.xpose.msra.mxu0 0.0
        %4745 = vmatprep.subr.mxu0 0.0
        %4746 = vmatpush1.xpose.msra.mxu0 0.0
        %4747 = vmatprep.subr.mxu0 0.0
        %4748 = vmatpush1.xpose.msra.mxu0 0.0
        %4749 = vmatprep.subr.mxu0 0.0
        %4750 = vmatpush1.xpose.msra.mxu0 0.0
        %4751 = vmatprep.subr.mxu0 0.0
        %4752 = vmatpush1.xpose.msra.mxu0 0.0
        %4753 = vmatprep.subr.mxu0 0.0
        %4754 = vmatpush1.xpose.msra.mxu0 0.0
        %4755 = vmatprep.subr.mxu0 0.0
        %4756 = vmatpush1.xpose.msra.mxu0 0.0
        %4757 = vmatprep.subr.mxu0 0.0
        %4758 = vmatpush1.xpose.msra.mxu0 0.0
        %4759 = vmatprep.subr.mxu0 0.0
        %4760 = vmatpush1.xpose.msra.mxu0 0.0
        %4761 = vmatprep.subr.mxu0 0.0
        %4762 = vmatpush1.xpose.msra.mxu0 0.0
        %4763 = vmatprep.subr.mxu0 0.0
        %4764 = vmatpush1.xpose.msra.mxu0 0.0
        %4765 = vmatprep.subr.mxu0 0.0
        %4766 = vmatpush1.xpose.msra.mxu0 0.0
        %4767 = vmatprep.subr.mxu0 0.0
        %4768 = vmatpush1.xpose.msra.mxu0 0.0
        %4769 = vmatprep.subr.mxu0 0.0
        %4770 = vmatpush1.xpose.msra.mxu0 0.0
        %4771 = vmatprep.subr.mxu0 0.0
        %4772 = vmatpush1.xpose.msra.mxu0 0.0
        %4773 = vmatprep.subr.mxu0 0.0
        %4774 = vmatpush1.xpose.msra.mxu0 0.0
        %4775 = vmatprep.subr.mxu0 0.0
        %4776 = vmatpush1.xpose.msra.mxu0 0.0
        %4777 = vmatprep.subr.mxu0 0.0
        %4778 = vmatpush1.xpose.msra.mxu0 0.0
        %4779 = vmatprep.subr.mxu0 0.0
        %4780 = vmatpush1.xpose.msra.mxu0 0.0
        %4781 = vmatprep.subr.mxu0 0.0
        %4782 = vmatpush1.xpose.msra.mxu0 0.0
        %4783 = vmatprep.subr.mxu0 0.0
        %4784 = vmatpush1.xpose.msra.mxu0 0.0
        %4785 = vmatprep.subr.mxu0 0.0
        %4786 = vmatpush1.xpose.msra.mxu0 0.0
        %4787 = vmatprep.subr.mxu0 0.0
        %4788 = vmatpush1.xpose.msra.mxu0 0.0
        %4789 = vmatprep.subr.mxu0 0.0
        %4790 = vmatpush1.xpose.msra.mxu0 0.0
        %4791 = vmatprep.subr.mxu0 0.0
        %4792 = vmatpush1.xpose.msra.mxu0 0.0
        %4793 = vmatprep.subr.mxu0 0.0
        %4794 = vmatpush1.xpose.msra.mxu0 0.0
        %4795 = vmatprep.subr.mxu0 0.0
        %4796 = vmatpush1.xpose.msra.mxu0 0.0
        %4797 = vmatprep.subr.mxu0 0.0
        %4798 = vmatpush1.xpose.msra.mxu0 0.0
        %4799 = vmatprep.mubr.f32.mxu0 %v4709
        %4800 = vmatmul.mubr.f32.gmra.mrb[0].mxu0 %v4705
        %v4801 = vpop.f32.mrb[0].mxu0
        %v4802 = vadd.f32 0.0, %v4801
        %v4803 = vpop.f32.mrb[0].mxu0
        %4804 = vdwg.mxu0
        %4805 = vmatprep.subr.mxu0 %v4545
        %4806 = vmatpush1.xpose.msra.mxu0 %v4544
        %4807 = vmatprep.subr.mxu0 %v4550
        %4808 = vmatpush1.xpose.msra.mxu0 %v4549
        %4809 = vmatprep.subr.mxu0 0.0
        %4810 = vmatpush1.xpose.msra.mxu0 0.0
        %4811 = vmatprep.subr.mxu0 0.0
        %4812 = vmatpush1.xpose.msra.mxu0 0.0
        %4813 = vmatprep.subr.mxu0 0.0
        %4814 = vmatpush1.xpose.msra.mxu0 0.0
        %4815 = vmatprep.subr.mxu0 0.0
        %4816 = vmatpush1.xpose.msra.mxu0 0.0
        %4817 = vmatprep.subr.mxu0 0.0
        %4818 = vmatpush1.xpose.msra.mxu0 0.0
        %4819 = vmatprep.subr.mxu0 0.0
        %4820 = vmatpush1.xpose.msra.mxu0 0.0
        %4821 = vmatprep.subr.mxu0 0.0
        %4822 = vmatpush1.xpose.msra.mxu0 0.0
        %4823 = vmatprep.subr.mxu0 0.0
        %4824 = vmatpush1.xpose.msra.mxu0 0.0
        %4825 = vmatprep.subr.mxu0 0.0
        %4826 = vmatpush1.xpose.msra.mxu0 0.0
        %4827 = vmatprep.subr.mxu0 0.0
        %4828 = vmatpush1.xpose.msra.mxu0 0.0
        %4829 = vmatprep.subr.mxu0 0.0
        %4830 = vmatpush1.xpose.msra.mxu0 0.0
        %4831 = vmatprep.subr.mxu0 0.0
        %4832 = vmatpush1.xpose.msra.mxu0 0.0
        %4833 = vmatprep.subr.mxu0 0.0
        %4834 = vmatpush1.xpose.msra.mxu0 0.0
        %4835 = vmatprep.subr.mxu0 0.0
        %4836 = vmatpush1.xpose.msra.mxu0 0.0
        %4837 = vmatprep.subr.mxu0 0.0
        %4838 = vmatpush1.xpose.msra.mxu0 0.0
        %4839 = vmatprep.subr.mxu0 0.0
        %4840 = vmatpush1.xpose.msra.mxu0 0.0
        %4841 = vmatprep.subr.mxu0 0.0
        %4842 = vmatpush1.xpose.msra.mxu0 0.0
        %4843 = vmatprep.subr.mxu0 0.0
        %4844 = vmatpush1.xpose.msra.mxu0 0.0
        %4845 = vmatprep.subr.mxu0 0.0
        %4846 = vmatpush1.xpose.msra.mxu0 0.0
        %4847 = vmatprep.subr.mxu0 0.0
        %4848 = vmatpush1.xpose.msra.mxu0 0.0
        %4849 = vmatprep.subr.mxu0 0.0
        %4850 = vmatpush1.xpose.msra.mxu0 0.0
        %4851 = vmatprep.subr.mxu0 0.0
        %4852 = vmatpush1.xpose.msra.mxu0 0.0
        %4853 = vmatprep.subr.mxu0 0.0
        %4854 = vmatpush1.xpose.msra.mxu0 0.0
        %4855 = vmatprep.subr.mxu0 0.0
        %4856 = vmatpush1.xpose.msra.mxu0 0.0
        %4857 = vmatprep.subr.mxu0 0.0
        %4858 = vmatpush1.xpose.msra.mxu0 0.0
        %4859 = vmatprep.subr.mxu0 0.0
        %4860 = vmatpush1.xpose.msra.mxu0 0.0
        %4861 = vmatprep.subr.mxu0 0.0
        %4862 = vmatpush1.xpose.msra.mxu0 0.0
        %4863 = vmatprep.subr.mxu0 0.0
        %4864 = vmatpush1.xpose.msra.mxu0 0.0
        %4865 = vmatprep.subr.mxu0 0.0
        %4866 = vmatpush1.xpose.msra.mxu0 0.0
        %4867 = vmatprep.subr.mxu0 0.0
        %4868 = vmatpush1.xpose.msra.mxu0 0.0
        %4869 = vmatprep.mubr.f32.mxu0 %v4717
        %4870 = vmatmul.mubr.f32.gmra.mrb[0].mxu0 %v4713
        %v4871 = vpop.f32.mrb[0].mxu0
        %v4872 = vadd.f32 %v4802, %v4871
        %v4873 = vpop.f32.mrb[0].mxu0
        %4874 = vdwg.mxu0
        %4875 = vmatprep.subr.mxu0 0.0
        %4876 = vmatpush1.xpose.msra.mxu0 %v4730
        %4877 = vmatprep.subr.mxu0 0.0
        %4878 = vmatpush1.xpose.msra.mxu0 %v4733
        %4879 = vmatprep.subr.mxu0 0.0
        %4880 = vmatpush1.xpose.msra.mxu0 0.0
        %4881 = vmatprep.subr.mxu0 0.0
        %4882 = vmatpush1.xpose.msra.mxu0 0.0
        %4883 = vmatprep.subr.mxu0 0.0
        %4884 = vmatpush1.xpose.msra.mxu0 0.0
        %4885 = vmatprep.subr.mxu0 0.0
        %4886 = vmatpush1.xpose.msra.mxu0 0.0
        %4887 = vmatprep.subr.mxu0 0.0
        %4888 = vmatpush1.xpose.msra.mxu0 0.0
        %4889 = vmatprep.subr.mxu0 0.0
        %4890 = vmatpush1.xpose.msra.mxu0 0.0
        %4891 = vmatprep.subr.mxu0 0.0
        %4892 = vmatpush1.xpose.msra.mxu0 0.0
        %4893 = vmatprep.subr.mxu0 0.0
        %4894 = vmatpush1.xpose.msra.mxu0 0.0
        %4895 = vmatprep.subr.mxu0 0.0
        %4896 = vmatpush1.xpose.msra.mxu0 0.0
        %4897 = vmatprep.subr.mxu0 0.0
        %4898 = vmatpush1.xpose.msra.mxu0 0.0
        %4899 = vmatprep.subr.mxu0 0.0
        %4900 = vmatpush1.xpose.msra.mxu0 0.0
        %4901 = vmatprep.subr.mxu0 0.0
        %4902 = vmatpush1.xpose.msra.mxu0 0.0
        %4903 = vmatprep.subr.mxu0 0.0
        %4904 = vmatpush1.xpose.msra.mxu0 0.0
        %4905 = vmatprep.subr.mxu0 0.0
        %4906 = vmatpush1.xpose.msra.mxu0 0.0
        %4907 = vmatprep.subr.mxu0 0.0
        %4908 = vmatpush1.xpose.msra.mxu0 0.0
        %4909 = vmatprep.subr.mxu0 0.0
        %4910 = vmatpush1.xpose.msra.mxu0 0.0
        %4911 = vmatprep.subr.mxu0 0.0
        %4912 = vmatpush1.xpose.msra.mxu0 0.0
        %4913 = vmatprep.subr.mxu0 0.0
        %4914 = vmatpush1.xpose.msra.mxu0 0.0
        %4915 = vmatprep.subr.mxu0 0.0
        %4916 = vmatpush1.xpose.msra.mxu0 0.0
        %4917 = vmatprep.subr.mxu0 0.0
        %4918 = vmatpush1.xpose.msra.mxu0 0.0
        %4919 = vmatprep.subr.mxu0 0.0
        %4920 = vmatpush1.xpose.msra.mxu0 0.0
        %4921 = vmatprep.subr.mxu0 0.0
        %4922 = vmatpush1.xpose.msra.mxu0 0.0
        %4923 = vmatprep.subr.mxu0 0.0
        %4924 = vmatpush1.xpose.msra.mxu0 0.0
        %4925 = vmatprep.subr.mxu0 0.0
        %4926 = vmatpush1.xpose.msra.mxu0 0.0
        %4927 = vmatprep.subr.mxu0 0.0
        %4928 = vmatpush1.xpose.msra.mxu0 0.0
        %4929 = vmatprep.subr.mxu0 0.0
        %4930 = vmatpush1.xpose.msra.mxu0 0.0
        %4931 = vmatprep.subr.mxu0 0.0
        %4932 = vmatpush1.xpose.msra.mxu0 0.0
        %4933 = vmatprep.subr.mxu0 0.0
        %4934 = vmatpush1.xpose.msra.mxu0 0.0
        %4935 = vmatprep.subr.mxu0 0.0
        %4936 = vmatpush1.xpose.msra.mxu0 0.0
        %4937 = vmatprep.subr.mxu0 0.0
        %4938 = vmatpush1.xpose.msra.mxu0 0.0
        %4939 = vmatprep.mubr.f32.mxu0 0.0
        %4940 = vmatmul.mubr.f32.gmra.mrb[0].mxu0 %v4727
        %v4941 = vpop.f32.mrb[0].mxu0
        %v4942 = vadd.f32 %v4872, %v4941
        %v4943 = vpop.f32.mrb[0].mxu0
        %4944 = vdwg.mxu0
        %v4945 = vlaneseq
        %v4946 = vshrl.u32 %v4945, 7
        %v4947 = vsub.s32 0, %v4946
        %v4948 = vrot.slane %v4421, %v4947
        %v4949 = vlaneseq
        %v4950 = vshrl.u32 %v4949, 7
        %v4951 = vsub.s32 1, %v4950
        %v4952 = vrot.slane %v4421, %v4951
        %v4953 = vlaneseq
        %v4954 = vshrl.u32 %v4953, 7
        %v4955 = vsub.s32 2, %v4954
        %v4956 = vrot.slane %v4421, %v4955
        %v4957 = vlaneseq
        %v4958 = vshrl.u32 %v4957, 7
        %v4959 = vsub.s32 3, %v4958
        %v4960 = vrot.slane %v4421, %v4959
        %v4961 = vlaneseq
        %v4962 = vshrl.u32 %v4961, 7
        %v4963 = vsub.s32 4, %v4962
        %v4964 = vrot.slane %v4421, %v4963
        %v4969 = vsel %vm4726, %v4964, 0
        %v4972 = vsel %vm4726, %v4556, 0
        %v4975 = vsel %vm4726, %v4561, 0
        %4977 = vmatprep.subr.mxu0 %v4553
        %4978 = vmatpush1.xpose.msra.mxu0 %v4552
        %4979 = vmatprep.subr.mxu0 %v4558
        %4980 = vmatpush1.xpose.msra.mxu0 %v4557
        %4981 = vmatprep.subr.mxu0 0.0
        %4982 = vmatpush1.xpose.msra.mxu0 0.0
        %4983 = vmatprep.subr.mxu0 0.0
        %4984 = vmatpush1.xpose.msra.mxu0 0.0
        %4985 = vmatprep.subr.mxu0 0.0
        %4986 = vmatpush1.xpose.msra.mxu0 0.0
        %4987 = vmatprep.subr.mxu0 0.0
        %4988 = vmatpush1.xpose.msra.mxu0 0.0
        %4989 = vmatprep.subr.mxu0 0.0
        %4990 = vmatpush1.xpose.msra.mxu0 0.0
        %4991 = vmatprep.subr.mxu0 0.0
        %4992 = vmatpush1.xpose.msra.mxu0 0.0
        %4993 = vmatprep.subr.mxu0 0.0
        %4994 = vmatpush1.xpose.msra.mxu0 0.0
        %4995 = vmatprep.subr.mxu0 0.0
        %4996 = vmatpush1.xpose.msra.mxu0 0.0
        %4997 = vmatprep.subr.mxu0 0.0
        %4998 = vmatpush1.xpose.msra.mxu0 0.0
        %4999 = vmatprep.subr.mxu0 0.0
        %5000 = vmatpush1.xpose.msra.mxu0 0.0
        %5001 = vmatprep.subr.mxu0 0.0
        %5002 = vmatpush1.xpose.msra.mxu0 0.0
        %5003 = vmatprep.subr.mxu0 0.0
        %5004 = vmatpush1.xpose.msra.mxu0 0.0
        %5005 = vmatprep.subr.mxu0 0.0
        %5006 = vmatpush1.xpose.msra.mxu0 0.0
        %5007 = vmatprep.subr.mxu0 0.0
        %5008 = vmatpush1.xpose.msra.mxu0 0.0
        %5009 = vmatprep.subr.mxu0 0.0
        %5010 = vmatpush1.xpose.msra.mxu0 0.0
        %5011 = vmatprep.subr.mxu0 0.0
        %5012 = vmatpush1.xpose.msra.mxu0 0.0
        %5013 = vmatprep.subr.mxu0 0.0
        %5014 = vmatpush1.xpose.msra.mxu0 0.0
        %5015 = vmatprep.subr.mxu0 0.0
        %5016 = vmatpush1.xpose.msra.mxu0 0.0
        %5017 = vmatprep.subr.mxu0 0.0
        %5018 = vmatpush1.xpose.msra.mxu0 0.0
        %5019 = vmatprep.subr.mxu0 0.0
        %5020 = vmatpush1.xpose.msra.mxu0 0.0
        %5021 = vmatprep.subr.mxu0 0.0
        %5022 = vmatpush1.xpose.msra.mxu0 0.0
        %5023 = vmatprep.subr.mxu0 0.0
        %5024 = vmatpush1.xpose.msra.mxu0 0.0
        %5025 = vmatprep.subr.mxu0 0.0
        %5026 = vmatpush1.xpose.msra.mxu0 0.0
        %5027 = vmatprep.subr.mxu0 0.0
        %5028 = vmatpush1.xpose.msra.mxu0 0.0
        %5029 = vmatprep.subr.mxu0 0.0
        %5030 = vmatpush1.xpose.msra.mxu0 0.0
        %5031 = vmatprep.subr.mxu0 0.0
        %5032 = vmatpush1.xpose.msra.mxu0 0.0
        %5033 = vmatprep.subr.mxu0 0.0
        %5034 = vmatpush1.xpose.msra.mxu0 0.0
        %5035 = vmatprep.subr.mxu0 0.0
        %5036 = vmatpush1.xpose.msra.mxu0 0.0
        %5037 = vmatprep.subr.mxu0 0.0
        %5038 = vmatpush1.xpose.msra.mxu0 0.0
        %5039 = vmatprep.subr.mxu0 0.0
        %5040 = vmatpush1.xpose.msra.mxu0 0.0
        %5041 = vmatprep.mubr.f32.mxu0 %v4952
        %5042 = vmatmul.mubr.f32.gmra.mrb[0].mxu0 %v4948
        %v5043 = vpop.f32.mrb[0].mxu0
        %v5044 = vadd.f32 0.0, %v5043
        %v5045 = vpop.f32.mrb[0].mxu0
        %5046 = vdwg.mxu0
        %5047 = vmatprep.subr.mxu0 %v4555
        %5048 = vmatpush1.xpose.msra.mxu0 %v4554
        %5049 = vmatprep.subr.mxu0 %v4560
        %5050 = vmatpush1.xpose.msra.mxu0 %v4559
        %5051 = vmatprep.subr.mxu0 0.0
        %5052 = vmatpush1.xpose.msra.mxu0 0.0
        %5053 = vmatprep.subr.mxu0 0.0
        %5054 = vmatpush1.xpose.msra.mxu0 0.0
        %5055 = vmatprep.subr.mxu0 0.0
        %5056 = vmatpush1.xpose.msra.mxu0 0.0
        %5057 = vmatprep.subr.mxu0 0.0
        %5058 = vmatpush1.xpose.msra.mxu0 0.0
        %5059 = vmatprep.subr.mxu0 0.0
        %5060 = vmatpush1.xpose.msra.mxu0 0.0
        %5061 = vmatprep.subr.mxu0 0.0
        %5062 = vmatpush1.xpose.msra.mxu0 0.0
        %5063 = vmatprep.subr.mxu0 0.0
        %5064 = vmatpush1.xpose.msra.mxu0 0.0
        %5065 = vmatprep.subr.mxu0 0.0
        %5066 = vmatpush1.xpose.msra.mxu0 0.0
        %5067 = vmatprep.subr.mxu0 0.0
        %5068 = vmatpush1.xpose.msra.mxu0 0.0
        %5069 = vmatprep.subr.mxu0 0.0
        %5070 = vmatpush1.xpose.msra.mxu0 0.0
        %5071 = vmatprep.subr.mxu0 0.0
        %5072 = vmatpush1.xpose.msra.mxu0 0.0
        %5073 = vmatprep.subr.mxu0 0.0
        %5074 = vmatpush1.xpose.msra.mxu0 0.0
        %5075 = vmatprep.subr.mxu0 0.0
        %5076 = vmatpush1.xpose.msra.mxu0 0.0
        %5077 = vmatprep.subr.mxu0 0.0
        %5078 = vmatpush1.xpose.msra.mxu0 0.0
        %5079 = vmatprep.subr.mxu0 0.0
        %5080 = vmatpush1.xpose.msra.mxu0 0.0
        %5081 = vmatprep.subr.mxu0 0.0
        %5082 = vmatpush1.xpose.msra.mxu0 0.0
        %5083 = vmatprep.subr.mxu0 0.0
        %5084 = vmatpush1.xpose.msra.mxu0 0.0
        %5085 = vmatprep.subr.mxu0 0.0
        %5086 = vmatpush1.xpose.msra.mxu0 0.0
        %5087 = vmatprep.subr.mxu0 0.0
        %5088 = vmatpush1.xpose.msra.mxu0 0.0
        %5089 = vmatprep.subr.mxu0 0.0
        %5090 = vmatpush1.xpose.msra.mxu0 0.0
        %5091 = vmatprep.subr.mxu0 0.0
        %5092 = vmatpush1.xpose.msra.mxu0 0.0
        %5093 = vmatprep.subr.mxu0 0.0
        %5094 = vmatpush1.xpose.msra.mxu0 0.0
        %5095 = vmatprep.subr.mxu0 0.0
        %5096 = vmatpush1.xpose.msra.mxu0 0.0
        %5097 = vmatprep.subr.mxu0 0.0
        %5098 = vmatpush1.xpose.msra.mxu0 0.0
        %5099 = vmatprep.subr.mxu0 0.0
        %5100 = vmatpush1.xpose.msra.mxu0 0.0
        %5101 = vmatprep.subr.mxu0 0.0
        %5102 = vmatpush1.xpose.msra.mxu0 0.0
        %5103 = vmatprep.subr.mxu0 0.0
        %5104 = vmatpush1.xpose.msra.mxu0 0.0
        %5105 = vmatprep.subr.mxu0 0.0
        %5106 = vmatpush1.xpose.msra.mxu0 0.0
        %5107 = vmatprep.subr.mxu0 0.0
        %5108 = vmatpush1.xpose.msra.mxu0 0.0
        %5109 = vmatprep.subr.mxu0 0.0
        %5110 = vmatpush1.xpose.msra.mxu0 0.0
        %5111 = vmatprep.mubr.f32.mxu0 %v4960
        %5112 = vmatmul.mubr.f32.gmra.mrb[0].mxu0 %v4956
        %v5113 = vpop.f32.mrb[0].mxu0
        %v5114 = vadd.f32 %v5044, %v5113
        %v5115 = vpop.f32.mrb[0].mxu0
        %5116 = vdwg.mxu0
        %5117 = vmatprep.subr.mxu0 0.0
        %5118 = vmatpush1.xpose.msra.mxu0 %v4972
        %5119 = vmatprep.subr.mxu0 0.0
        %5120 = vmatpush1.xpose.msra.mxu0 %v4975
        %5121 = vmatprep.subr.mxu0 0.0
        %5122 = vmatpush1.xpose.msra.mxu0 0.0
        %5123 = vmatprep.subr.mxu0 0.0
        %5124 = vmatpush1.xpose.msra.mxu0 0.0
        %5125 = vmatprep.subr.mxu0 0.0
        %5126 = vmatpush1.xpose.msra.mxu0 0.0
        %5127 = vmatprep.subr.mxu0 0.0
        %5128 = vmatpush1.xpose.msra.mxu0 0.0
        %5129 = vmatprep.subr.mxu0 0.0
        %5130 = vmatpush1.xpose.msra.mxu0 0.0
        %5131 = vmatprep.subr.mxu0 0.0
        %5132 = vmatpush1.xpose.msra.mxu0 0.0
        %5133 = vmatprep.subr.mxu0 0.0
        %5134 = vmatpush1.xpose.msra.mxu0 0.0
        %5135 = vmatprep.subr.mxu0 0.0
        %5136 = vmatpush1.xpose.msra.mxu0 0.0
        %5137 = vmatprep.subr.mxu0 0.0
        %5138 = vmatpush1.xpose.msra.mxu0 0.0
        %5139 = vmatprep.subr.mxu0 0.0
        %5140 = vmatpush1.xpose.msra.mxu0 0.0
        %5141 = vmatprep.subr.mxu0 0.0
        %5142 = vmatpush1.xpose.msra.mxu0 0.0
        %5143 = vmatprep.subr.mxu0 0.0
        %5144 = vmatpush1.xpose.msra.mxu0 0.0
        %5145 = vmatprep.subr.mxu0 0.0
        %5146 = vmatpush1.xpose.msra.mxu0 0.0
        %5147 = vmatprep.subr.mxu0 0.0
        %5148 = vmatpush1.xpose.msra.mxu0 0.0
        %5149 = vmatprep.subr.mxu0 0.0
        %5150 = vmatpush1.xpose.msra.mxu0 0.0
        %5151 = vmatprep.subr.mxu0 0.0
        %5152 = vmatpush1.xpose.msra.mxu0 0.0
        %5153 = vmatprep.subr.mxu0 0.0
        %5154 = vmatpush1.xpose.msra.mxu0 0.0
        %5155 = vmatprep.subr.mxu0 0.0
        %5156 = vmatpush1.xpose.msra.mxu0 0.0
        %5157 = vmatprep.subr.mxu0 0.0
        %5158 = vmatpush1.xpose.msra.mxu0 0.0
        %5159 = vmatprep.subr.mxu0 0.0
        %5160 = vmatpush1.xpose.msra.mxu0 0.0
        %5161 = vmatprep.subr.mxu0 0.0
        %5162 = vmatpush1.xpose.msra.mxu0 0.0
        %5163 = vmatprep.subr.mxu0 0.0
        %5164 = vmatpush1.xpose.msra.mxu0 0.0
        %5165 = vmatprep.subr.mxu0 0.0
        %5166 = vmatpush1.xpose.msra.mxu0 0.0
        %5167 = vmatprep.subr.mxu0 0.0
        %5168 = vmatpush1.xpose.msra.mxu0 0.0
        %5169 = vmatprep.subr.mxu0 0.0
        %5170 = vmatpush1.xpose.msra.mxu0 0.0
        %5171 = vmatprep.subr.mxu0 0.0
        %5172 = vmatpush1.xpose.msra.mxu0 0.0
        %5173 = vmatprep.subr.mxu0 0.0
        %5174 = vmatpush1.xpose.msra.mxu0 0.0
        %5175 = vmatprep.subr.mxu0 0.0
        %5176 = vmatpush1.xpose.msra.mxu0 0.0
        %5177 = vmatprep.subr.mxu0 0.0
        %5178 = vmatpush1.xpose.msra.mxu0 0.0
        %5179 = vmatprep.subr.mxu0 0.0
        %5180 = vmatpush1.xpose.msra.mxu0 0.0
        %5181 = vmatprep.mubr.f32.mxu0 0.0
        %5182 = vmatmul.mubr.f32.gmra.mrb[0].mxu0 %v4969
        %v5183 = vpop.f32.mrb[0].mxu0
        %v5184 = vadd.f32 %v5114, %v5183
        %v5185 = vpop.f32.mrb[0].mxu0
        %5186 = vdwg.mxu0
        %v5187 = vlaneseq
        %v5188 = vshrl.u32 %v5187, 7
        %v5189 = vsub.s32 0, %v5188
        %v5190 = vrot.slane %v4418, %v5189
        %v5191 = vlaneseq
        %v5192 = vshrl.u32 %v5191, 7
        %v5193 = vsub.s32 1, %v5192
        %v5194 = vrot.slane %v4418, %v5193
        %v5195 = vlaneseq
        %v5196 = vshrl.u32 %v5195, 7
        %v5197 = vsub.s32 2, %v5196
        %v5198 = vrot.slane %v4418, %v5197
        %v5199 = vlaneseq
        %v5200 = vshrl.u32 %v5199, 7
        %v5201 = vsub.s32 3, %v5200
        %v5202 = vrot.slane %v4418, %v5201
        %v5203 = vlaneseq
        %v5204 = vshrl.u32 %v5203, 7
        %v5205 = vsub.s32 4, %v5204
        %v5206 = vrot.slane %v4418, %v5205
        %v5211 = vsel %vm4726, %v5206, 0
        %v5214 = vsel %vm4726, %v4566, 0
        %v5217 = vsel %vm4726, %v4571, 0
        %5219 = vmatprep.subr.mxu0 %v4563
        %5220 = vmatpush1.xpose.msra.mxu0 %v4562
        %5221 = vmatprep.subr.mxu0 %v4568
        %5222 = vmatpush1.xpose.msra.mxu0 %v4567
        %5223 = vmatprep.subr.mxu0 0.0
        %5224 = vmatpush1.xpose.msra.mxu0 0.0
        %5225 = vmatprep.subr.mxu0 0.0
        %5226 = vmatpush1.xpose.msra.mxu0 0.0
        %5227 = vmatprep.subr.mxu0 0.0
        %5228 = vmatpush1.xpose.msra.mxu0 0.0
        %5229 = vmatprep.subr.mxu0 0.0
        %5230 = vmatpush1.xpose.msra.mxu0 0.0
        %5231 = vmatprep.subr.mxu0 0.0
        %5232 = vmatpush1.xpose.msra.mxu0 0.0
        %5233 = vmatprep.subr.mxu0 0.0
        %5234 = vmatpush1.xpose.msra.mxu0 0.0
        %5235 = vmatprep.subr.mxu0 0.0
        %5236 = vmatpush1.xpose.msra.mxu0 0.0
        %5237 = vmatprep.subr.mxu0 0.0
        %5238 = vmatpush1.xpose.msra.mxu0 0.0
        %5239 = vmatprep.subr.mxu0 0.0
        %5240 = vmatpush1.xpose.msra.mxu0 0.0
        %5241 = vmatprep.subr.mxu0 0.0
        %5242 = vmatpush1.xpose.msra.mxu0 0.0
        %5243 = vmatprep.subr.mxu0 0.0
        %5244 = vmatpush1.xpose.msra.mxu0 0.0
        %5245 = vmatprep.subr.mxu0 0.0
        %5246 = vmatpush1.xpose.msra.mxu0 0.0
        %5247 = vmatprep.subr.mxu0 0.0
        %5248 = vmatpush1.xpose.msra.mxu0 0.0
        %5249 = vmatprep.subr.mxu0 0.0
        %5250 = vmatpush1.xpose.msra.mxu0 0.0
        %5251 = vmatprep.subr.mxu0 0.0
        %5252 = vmatpush1.xpose.msra.mxu0 0.0
        %5253 = vmatprep.subr.mxu0 0.0
        %5254 = vmatpush1.xpose.msra.mxu0 0.0
        %5255 = vmatprep.subr.mxu0 0.0
        %5256 = vmatpush1.xpose.msra.mxu0 0.0
        %5257 = vmatprep.subr.mxu0 0.0
        %5258 = vmatpush1.xpose.msra.mxu0 0.0
        %5259 = vmatprep.subr.mxu0 0.0
        %5260 = vmatpush1.xpose.msra.mxu0 0.0
        %5261 = vmatprep.subr.mxu0 0.0
        %5262 = vmatpush1.xpose.msra.mxu0 0.0
        %5263 = vmatprep.subr.mxu0 0.0
        %5264 = vmatpush1.xpose.msra.mxu0 0.0
        %5265 = vmatprep.subr.mxu0 0.0
        %5266 = vmatpush1.xpose.msra.mxu0 0.0
        %5267 = vmatprep.subr.mxu0 0.0
        %5268 = vmatpush1.xpose.msra.mxu0 0.0
        %5269 = vmatprep.subr.mxu0 0.0
        %5270 = vmatpush1.xpose.msra.mxu0 0.0
        %5271 = vmatprep.subr.mxu0 0.0
        %5272 = vmatpush1.xpose.msra.mxu0 0.0
        %5273 = vmatprep.subr.mxu0 0.0
        %5274 = vmatpush1.xpose.msra.mxu0 0.0
        %5275 = vmatprep.subr.mxu0 0.0
        %5276 = vmatpush1.xpose.msra.mxu0 0.0
        %5277 = vmatprep.subr.mxu0 0.0
        %5278 = vmatpush1.xpose.msra.mxu0 0.0
        %5279 = vmatprep.subr.mxu0 0.0
        %5280 = vmatpush1.xpose.msra.mxu0 0.0
        %5281 = vmatprep.subr.mxu0 0.0
        %5282 = vmatpush1.xpose.msra.mxu0 0.0
        %5283 = vmatprep.mubr.f32.mxu0 %v5194
        %5284 = vmatmul.mubr.f32.gmra.mrb[0].mxu0 %v5190
        %v5285 = vpop.f32.mrb[0].mxu0
        %v5286 = vadd.f32 0.0, %v5285
        %v5287 = vpop.f32.mrb[0].mxu0
        %5288 = vdwg.mxu0
        %5289 = vmatprep.subr.mxu0 %v4565
        %5290 = vmatpush1.xpose.msra.mxu0 %v4564
        %5291 = vmatprep.subr.mxu0 %v4570
        %5292 = vmatpush1.xpose.msra.mxu0 %v4569
        %5293 = vmatprep.subr.mxu0 0.0
        %5294 = vmatpush1.xpose.msra.mxu0 0.0
        %5295 = vmatprep.subr.mxu0 0.0
        %5296 = vmatpush1.xpose.msra.mxu0 0.0
        %5297 = vmatprep.subr.mxu0 0.0
        %5298 = vmatpush1.xpose.msra.mxu0 0.0
        %5299 = vmatprep.subr.mxu0 0.0
        %5300 = vmatpush1.xpose.msra.mxu0 0.0
        %5301 = vmatprep.subr.mxu0 0.0
        %5302 = vmatpush1.xpose.msra.mxu0 0.0
        %5303 = vmatprep.subr.mxu0 0.0
        %5304 = vmatpush1.xpose.msra.mxu0 0.0
        %5305 = vmatprep.subr.mxu0 0.0
        %5306 = vmatpush1.xpose.msra.mxu0 0.0
        %5307 = vmatprep.subr.mxu0 0.0
        %5308 = vmatpush1.xpose.msra.mxu0 0.0
        %5309 = vmatprep.subr.mxu0 0.0
        %5310 = vmatpush1.xpose.msra.mxu0 0.0
        %5311 = vmatprep.subr.mxu0 0.0
        %5312 = vmatpush1.xpose.msra.mxu0 0.0
        %5313 = vmatprep.subr.mxu0 0.0
        %5314 = vmatpush1.xpose.msra.mxu0 0.0
        %5315 = vmatprep.subr.mxu0 0.0
        %5316 = vmatpush1.xpose.msra.mxu0 0.0
        %5317 = vmatprep.subr.mxu0 0.0
        %5318 = vmatpush1.xpose.msra.mxu0 0.0
        %5319 = vmatprep.subr.mxu0 0.0
        %5320 = vmatpush1.xpose.msra.mxu0 0.0
        %5321 = vmatprep.subr.mxu0 0.0
        %5322 = vmatpush1.xpose.msra.mxu0 0.0
        %5323 = vmatprep.subr.mxu0 0.0
        %5324 = vmatpush1.xpose.msra.mxu0 0.0
        %5325 = vmatprep.subr.mxu0 0.0
        %5326 = vmatpush1.xpose.msra.mxu0 0.0
        %5327 = vmatprep.subr.mxu0 0.0
        %5328 = vmatpush1.xpose.msra.mxu0 0.0
        %5329 = vmatprep.subr.mxu0 0.0
        %5330 = vmatpush1.xpose.msra.mxu0 0.0
        %5331 = vmatprep.subr.mxu0 0.0
        %5332 = vmatpush1.xpose.msra.mxu0 0.0
        %5333 = vmatprep.subr.mxu0 0.0
        %5334 = vmatpush1.xpose.msra.mxu0 0.0
        %5335 = vmatprep.subr.mxu0 0.0
        %5336 = vmatpush1.xpose.msra.mxu0 0.0
        %5337 = vmatprep.subr.mxu0 0.0
        %5338 = vmatpush1.xpose.msra.mxu0 0.0
        %5339 = vmatprep.subr.mxu0 0.0
        %5340 = vmatpush1.xpose.msra.mxu0 0.0
        %5341 = vmatprep.subr.mxu0 0.0
        %5342 = vmatpush1.xpose.msra.mxu0 0.0
        %5343 = vmatprep.subr.mxu0 0.0
        %5344 = vmatpush1.xpose.msra.mxu0 0.0
        %5345 = vmatprep.subr.mxu0 0.0
        %5346 = vmatpush1.xpose.msra.mxu0 0.0
        %5347 = vmatprep.subr.mxu0 0.0
        %5348 = vmatpush1.xpose.msra.mxu0 0.0
        %5349 = vmatprep.subr.mxu0 0.0
        %5350 = vmatpush1.xpose.msra.mxu0 0.0
        %5351 = vmatprep.subr.mxu0 0.0
        %5352 = vmatpush1.xpose.msra.mxu0 0.0
        %5353 = vmatprep.mubr.f32.mxu0 %v5202
        %5354 = vmatmul.mubr.f32.gmra.mrb[0].mxu0 %v5198
        %v5355 = vpop.f32.mrb[0].mxu0
        %v5356 = vadd.f32 %v5286, %v5355
        %v5357 = vpop.f32.mrb[0].mxu0
        %5358 = vdwg.mxu0
        %5359 = vmatprep.subr.mxu0 0.0
        %5360 = vmatpush1.xpose.msra.mxu0 %v5214
        %5361 = vmatprep.subr.mxu0 0.0
        %5362 = vmatpush1.xpose.msra.mxu0 %v5217
        %5363 = vmatprep.subr.mxu0 0.0
        %5364 = vmatpush1.xpose.msra.mxu0 0.0
        %5365 = vmatprep.subr.mxu0 0.0
        %5366 = vmatpush1.xpose.msra.mxu0 0.0
        %5367 = vmatprep.subr.mxu0 0.0
        %5368 = vmatpush1.xpose.msra.mxu0 0.0
        %5369 = vmatprep.subr.mxu0 0.0
        %5370 = vmatpush1.xpose.msra.mxu0 0.0
        %5371 = vmatprep.subr.mxu0 0.0
        %5372 = vmatpush1.xpose.msra.mxu0 0.0
        %5373 = vmatprep.subr.mxu0 0.0
        %5374 = vmatpush1.xpose.msra.mxu0 0.0
        %5375 = vmatprep.subr.mxu0 0.0
        %5376 = vmatpush1.xpose.msra.mxu0 0.0
        %5377 = vmatprep.subr.mxu0 0.0
        %5378 = vmatpush1.xpose.msra.mxu0 0.0
        %5379 = vmatprep.subr.mxu0 0.0
        %5380 = vmatpush1.xpose.msra.mxu0 0.0
        %5381 = vmatprep.subr.mxu0 0.0
        %5382 = vmatpush1.xpose.msra.mxu0 0.0
        %5383 = vmatprep.subr.mxu0 0.0
        %5384 = vmatpush1.xpose.msra.mxu0 0.0
        %5385 = vmatprep.subr.mxu0 0.0
        %5386 = vmatpush1.xpose.msra.mxu0 0.0
        %5387 = vmatprep.subr.mxu0 0.0
        %5388 = vmatpush1.xpose.msra.mxu0 0.0
        %5389 = vmatprep.subr.mxu0 0.0
        %5390 = vmatpush1.xpose.msra.mxu0 0.0
        %5391 = vmatprep.subr.mxu0 0.0
        %5392 = vmatpush1.xpose.msra.mxu0 0.0
        %5393 = vmatprep.subr.mxu0 0.0
        %5394 = vmatpush1.xpose.msra.mxu0 0.0
        %5395 = vmatprep.subr.mxu0 0.0
        %5396 = vmatpush1.xpose.msra.mxu0 0.0
        %5397 = vmatprep.subr.mxu0 0.0
        %5398 = vmatpush1.xpose.msra.mxu0 0.0
        %5399 = vmatprep.subr.mxu0 0.0
        %5400 = vmatpush1.xpose.msra.mxu0 0.0
        %5401 = vmatprep.subr.mxu0 0.0
        %5402 = vmatpush1.xpose.msra.mxu0 0.0
        %5403 = vmatprep.subr.mxu0 0.0
        %5404 = vmatpush1.xpose.msra.mxu0 0.0
        %5405 = vmatprep.subr.mxu0 0.0
        %5406 = vmatpush1.xpose.msra.mxu0 0.0
        %5407 = vmatprep.subr.mxu0 0.0
        %5408 = vmatpush1.xpose.msra.mxu0 0.0
        %5409 = vmatprep.subr.mxu0 0.0
        %5410 = vmatpush1.xpose.msra.mxu0 0.0
        %5411 = vmatprep.subr.mxu0 0.0
        %5412 = vmatpush1.xpose.msra.mxu0 0.0
        %5413 = vmatprep.subr.mxu0 0.0
        %5414 = vmatpush1.xpose.msra.mxu0 0.0
        %5415 = vmatprep.subr.mxu0 0.0
        %5416 = vmatpush1.xpose.msra.mxu0 0.0
        %5417 = vmatprep.subr.mxu0 0.0
        %5418 = vmatpush1.xpose.msra.mxu0 0.0
        %5419 = vmatprep.subr.mxu0 0.0
        %5420 = vmatpush1.xpose.msra.mxu0 0.0
        %5421 = vmatprep.subr.mxu0 0.0
        %5422 = vmatpush1.xpose.msra.mxu0 0.0
        %5423 = vmatprep.mubr.f32.mxu0 0.0
        %5424 = vmatmul.mubr.f32.gmra.mrb[0].mxu0 %v5211
        %v5425 = vpop.f32.mrb[0].mxu0
        %v5426 = vadd.f32 %v5356, %v5425
        %v5427 = vpop.f32.mrb[0].mxu0
        %5428 = vdwg.mxu0
        %v5429 = vlaneseq
        %v5430 = vshrl.u32 %v5429, 7
        %v5431 = vsub.s32 0, %v5430
        %v5432 = vrot.slane %v4422, %v5431
        %v5433 = vlaneseq
        %v5434 = vshrl.u32 %v5433, 7
        %v5435 = vsub.s32 1, %v5434
        %v5436 = vrot.slane %v4422, %v5435
        %v5437 = vlaneseq
        %v5438 = vshrl.u32 %v5437, 7
        %v5439 = vsub.s32 2, %v5438
        %v5440 = vrot.slane %v4422, %v5439
        %v5441 = vlaneseq
        %v5442 = vshrl.u32 %v5441, 7
        %v5443 = vsub.s32 3, %v5442
        %v5444 = vrot.slane %v4422, %v5443
        %v5445 = vlaneseq
        %v5446 = vshrl.u32 %v5445, 7
        %v5447 = vsub.s32 4, %v5446
        %v5448 = vrot.slane %v4422, %v5447
        %v5453 = vsel %vm4726, %v5448, 0
        %v5456 = vsel %vm4726, %v4576, 0
        %v5459 = vsel %vm4726, %v4581, 0
        %5461 = vmatprep.subr.mxu0 %v4573
        %5462 = vmatpush1.xpose.msra.mxu0 %v4572
        %5463 = vmatprep.subr.mxu0 %v4578
        %5464 = vmatpush1.xpose.msra.mxu0 %v4577
        %5465 = vmatprep.subr.mxu0 0.0
        %5466 = vmatpush1.xpose.msra.mxu0 0.0
        %5467 = vmatprep.subr.mxu0 0.0
        %5468 = vmatpush1.xpose.msra.mxu0 0.0
        %5469 = vmatprep.subr.mxu0 0.0
        %5470 = vmatpush1.xpose.msra.mxu0 0.0
        %5471 = vmatprep.subr.mxu0 0.0
        %5472 = vmatpush1.xpose.msra.mxu0 0.0
        %5473 = vmatprep.subr.mxu0 0.0
        %5474 = vmatpush1.xpose.msra.mxu0 0.0
        %5475 = vmatprep.subr.mxu0 0.0
        %5476 = vmatpush1.xpose.msra.mxu0 0.0
        %5477 = vmatprep.subr.mxu0 0.0
        %5478 = vmatpush1.xpose.msra.mxu0 0.0
        %5479 = vmatprep.subr.mxu0 0.0
        %5480 = vmatpush1.xpose.msra.mxu0 0.0
        %5481 = vmatprep.subr.mxu0 0.0
        %5482 = vmatpush1.xpose.msra.mxu0 0.0
        %5483 = vmatprep.subr.mxu0 0.0
        %5484 = vmatpush1.xpose.msra.mxu0 0.0
        %5485 = vmatprep.subr.mxu0 0.0
        %5486 = vmatpush1.xpose.msra.mxu0 0.0
        %5487 = vmatprep.subr.mxu0 0.0
        %5488 = vmatpush1.xpose.msra.mxu0 0.0
        %5489 = vmatprep.subr.mxu0 0.0
        %5490 = vmatpush1.xpose.msra.mxu0 0.0
        %5491 = vmatprep.subr.mxu0 0.0
        %5492 = vmatpush1.xpose.msra.mxu0 0.0
        %5493 = vmatprep.subr.mxu0 0.0
        %5494 = vmatpush1.xpose.msra.mxu0 0.0
        %5495 = vmatprep.subr.mxu0 0.0
        %5496 = vmatpush1.xpose.msra.mxu0 0.0
        %5497 = vmatprep.subr.mxu0 0.0
        %5498 = vmatpush1.xpose.msra.mxu0 0.0
        %5499 = vmatprep.subr.mxu0 0.0
        %5500 = vmatpush1.xpose.msra.mxu0 0.0
        %5501 = vmatprep.subr.mxu0 0.0
        %5502 = vmatpush1.xpose.msra.mxu0 0.0
        %5503 = vmatprep.subr.mxu0 0.0
        %5504 = vmatpush1.xpose.msra.mxu0 0.0
        %5505 = vmatprep.subr.mxu0 0.0
        %5506 = vmatpush1.xpose.msra.mxu0 0.0
        %5507 = vmatprep.subr.mxu0 0.0
        %5508 = vmatpush1.xpose.msra.mxu0 0.0
        %5509 = vmatprep.subr.mxu0 0.0
        %5510 = vmatpush1.xpose.msra.mxu0 0.0
        %5511 = vmatprep.subr.mxu0 0.0
        %5512 = vmatpush1.xpose.msra.mxu0 0.0
        %5513 = vmatprep.subr.mxu0 0.0
        %5514 = vmatpush1.xpose.msra.mxu0 0.0
        %5515 = vmatprep.subr.mxu0 0.0
        %5516 = vmatpush1.xpose.msra.mxu0 0.0
        %5517 = vmatprep.subr.mxu0 0.0
        %5518 = vmatpush1.xpose.msra.mxu0 0.0
        %5519 = vmatprep.subr.mxu0 0.0
        %5520 = vmatpush1.xpose.msra.mxu0 0.0
        %5521 = vmatprep.subr.mxu0 0.0
        %5522 = vmatpush1.xpose.msra.mxu0 0.0
        %5523 = vmatprep.subr.mxu0 0.0
        %5524 = vmatpush1.xpose.msra.mxu0 0.0
        %5525 = vmatprep.mubr.f32.mxu0 %v5436
        %5526 = vmatmul.mubr.f32.gmra.mrb[0].mxu0 %v5432
        %v5527 = vpop.f32.mrb[0].mxu0
        %v5528 = vadd.f32 0.0, %v5527
        %v5529 = vpop.f32.mrb[0].mxu0
        %5530 = vdwg.mxu0
        %5531 = vmatprep.subr.mxu0 %v4575
        %5532 = vmatpush1.xpose.msra.mxu0 %v4574
        %5533 = vmatprep.subr.mxu0 %v4580
        %5534 = vmatpush1.xpose.msra.mxu0 %v4579
        %5535 = vmatprep.subr.mxu0 0.0
        %5536 = vmatpush1.xpose.msra.mxu0 0.0
        %5537 = vmatprep.subr.mxu0 0.0
        %5538 = vmatpush1.xpose.msra.mxu0 0.0
        %5539 = vmatprep.subr.mxu0 0.0
        %5540 = vmatpush1.xpose.msra.mxu0 0.0
        %5541 = vmatprep.subr.mxu0 0.0
        %5542 = vmatpush1.xpose.msra.mxu0 0.0
        %5543 = vmatprep.subr.mxu0 0.0
        %5544 = vmatpush1.xpose.msra.mxu0 0.0
        %5545 = vmatprep.subr.mxu0 0.0
        %5546 = vmatpush1.xpose.msra.mxu0 0.0
        %5547 = vmatprep.subr.mxu0 0.0
        %5548 = vmatpush1.xpose.msra.mxu0 0.0
        %5549 = vmatprep.subr.mxu0 0.0
        %5550 = vmatpush1.xpose.msra.mxu0 0.0
        %5551 = vmatprep.subr.mxu0 0.0
        %5552 = vmatpush1.xpose.msra.mxu0 0.0
        %5553 = vmatprep.subr.mxu0 0.0
        %5554 = vmatpush1.xpose.msra.mxu0 0.0
        %5555 = vmatprep.subr.mxu0 0.0
        %5556 = vmatpush1.xpose.msra.mxu0 0.0
        %5557 = vmatprep.subr.mxu0 0.0
        %5558 = vmatpush1.xpose.msra.mxu0 0.0
        %5559 = vmatprep.subr.mxu0 0.0
        %5560 = vmatpush1.xpose.msra.mxu0 0.0
        %5561 = vmatprep.subr.mxu0 0.0
        %5562 = vmatpush1.xpose.msra.mxu0 0.0
        %5563 = vmatprep.subr.mxu0 0.0
        %5564 = vmatpush1.xpose.msra.mxu0 0.0
        %5565 = vmatprep.subr.mxu0 0.0
        %5566 = vmatpush1.xpose.msra.mxu0 0.0
        %5567 = vmatprep.subr.mxu0 0.0
        %5568 = vmatpush1.xpose.msra.mxu0 0.0
        %5569 = vmatprep.subr.mxu0 0.0
        %5570 = vmatpush1.xpose.msra.mxu0 0.0
        %5571 = vmatprep.subr.mxu0 0.0
        %5572 = vmatpush1.xpose.msra.mxu0 0.0
        %5573 = vmatprep.subr.mxu0 0.0
        %5574 = vmatpush1.xpose.msra.mxu0 0.0
        %5575 = vmatprep.subr.mxu0 0.0
        %5576 = vmatpush1.xpose.msra.mxu0 0.0
        %5577 = vmatprep.subr.mxu0 0.0
        %5578 = vmatpush1.xpose.msra.mxu0 0.0
        %5579 = vmatprep.subr.mxu0 0.0
        %5580 = vmatpush1.xpose.msra.mxu0 0.0
        %5581 = vmatprep.subr.mxu0 0.0
        %5582 = vmatpush1.xpose.msra.mxu0 0.0
        %5583 = vmatprep.subr.mxu0 0.0
        %5584 = vmatpush1.xpose.msra.mxu0 0.0
        %5585 = vmatprep.subr.mxu0 0.0
        %5586 = vmatpush1.xpose.msra.mxu0 0.0
        %5587 = vmatprep.subr.mxu0 0.0
        %5588 = vmatpush1.xpose.msra.mxu0 0.0
        %5589 = vmatprep.subr.mxu0 0.0
        %5590 = vmatpush1.xpose.msra.mxu0 0.0
        %5591 = vmatprep.subr.mxu0 0.0
        %5592 = vmatpush1.xpose.msra.mxu0 0.0
        %5593 = vmatprep.subr.mxu0 0.0
        %5594 = vmatpush1.xpose.msra.mxu0 0.0
        %5595 = vmatprep.mubr.f32.mxu0 %v5444
        %5596 = vmatmul.mubr.f32.gmra.mrb[0].mxu0 %v5440
        %v5597 = vpop.f32.mrb[0].mxu0
        %v5598 = vadd.f32 %v5528, %v5597
        %v5599 = vpop.f32.mrb[0].mxu0
        %5600 = vdwg.mxu0
        %5601 = vmatprep.subr.mxu0 0.0
        %5602 = vmatpush1.xpose.msra.mxu0 %v5456
        %5603 = vmatprep.subr.mxu0 0.0
        %5604 = vmatpush1.xpose.msra.mxu0 %v5459
        %5605 = vmatprep.subr.mxu0 0.0
        %5606 = vmatpush1.xpose.msra.mxu0 0.0
        %5607 = vmatprep.subr.mxu0 0.0
        %5608 = vmatpush1.xpose.msra.mxu0 0.0
        %5609 = vmatprep.subr.mxu0 0.0
        %5610 = vmatpush1.xpose.msra.mxu0 0.0
        %5611 = vmatprep.subr.mxu0 0.0
        %5612 = vmatpush1.xpose.msra.mxu0 0.0
        %5613 = vmatprep.subr.mxu0 0.0
        %5614 = vmatpush1.xpose.msra.mxu0 0.0
        %5615 = vmatprep.subr.mxu0 0.0
        %5616 = vmatpush1.xpose.msra.mxu0 0.0
        %5617 = vmatprep.subr.mxu0 0.0
        %5618 = vmatpush1.xpose.msra.mxu0 0.0
        %5619 = vmatprep.subr.mxu0 0.0
        %5620 = vmatpush1.xpose.msra.mxu0 0.0
        %5621 = vmatprep.subr.mxu0 0.0
        %5622 = vmatpush1.xpose.msra.mxu0 0.0
        %5623 = vmatprep.subr.mxu0 0.0
        %5624 = vmatpush1.xpose.msra.mxu0 0.0
        %5625 = vmatprep.subr.mxu0 0.0
        %5626 = vmatpush1.xpose.msra.mxu0 0.0
        %5627 = vmatprep.subr.mxu0 0.0
        %5628 = vmatpush1.xpose.msra.mxu0 0.0
        %5629 = vmatprep.subr.mxu0 0.0
        %5630 = vmatpush1.xpose.msra.mxu0 0.0
        %5631 = vmatprep.subr.mxu0 0.0
        %5632 = vmatpush1.xpose.msra.mxu0 0.0
        %5633 = vmatprep.subr.mxu0 0.0
        %5634 = vmatpush1.xpose.msra.mxu0 0.0
        %5635 = vmatprep.subr.mxu0 0.0
        %5636 = vmatpush1.xpose.msra.mxu0 0.0
        %5637 = vmatprep.subr.mxu0 0.0
        %5638 = vmatpush1.xpose.msra.mxu0 0.0
        %5639 = vmatprep.subr.mxu0 0.0
        %5640 = vmatpush1.xpose.msra.mxu0 0.0
        %5641 = vmatprep.subr.mxu0 0.0
        %5642 = vmatpush1.xpose.msra.mxu0 0.0
        %5643 = vmatprep.subr.mxu0 0.0
        %5644 = vmatpush1.xpose.msra.mxu0 0.0
        %5645 = vmatprep.subr.mxu0 0.0
        %5646 = vmatpush1.xpose.msra.mxu0 0.0
        %5647 = vmatprep.subr.mxu0 0.0
        %5648 = vmatpush1.xpose.msra.mxu0 0.0
        %5649 = vmatprep.subr.mxu0 0.0
        %5650 = vmatpush1.xpose.msra.mxu0 0.0
        %5651 = vmatprep.subr.mxu0 0.0
        %5652 = vmatpush1.xpose.msra.mxu0 0.0
        %5653 = vmatprep.subr.mxu0 0.0
        %5654 = vmatpush1.xpose.msra.mxu0 0.0
        %5655 = vmatprep.subr.mxu0 0.0
        %5656 = vmatpush1.xpose.msra.mxu0 0.0
        %5657 = vmatprep.subr.mxu0 0.0
        %5658 = vmatpush1.xpose.msra.mxu0 0.0
        %5659 = vmatprep.subr.mxu0 0.0
        %5660 = vmatpush1.xpose.msra.mxu0 0.0
        %5661 = vmatprep.subr.mxu0 0.0
        %5662 = vmatpush1.xpose.msra.mxu0 0.0
        %5663 = vmatprep.subr.mxu0 0.0
        %5664 = vmatpush1.xpose.msra.mxu0 0.0
        %5665 = vmatprep.mubr.f32.mxu0 0.0
        %5666 = vmatmul.mubr.f32.gmra.mrb[0].mxu0 %v5453
        %v5667 = vpop.f32.mrb[0].mxu0
        %v5668 = vadd.f32 %v5598, %v5667
        %v5669 = vpop.f32.mrb[0].mxu0
        %5670 = vdwg.mxu0
        %v5671 = vlaneseq
        %v5672 = vshrl.u32 %v5671, 7
        %v5673 = vsub.s32 0, %v5672
        %v5674 = vrot.slane %v4419, %v5673
        %v5675 = vlaneseq
        %v5676 = vshrl.u32 %v5675, 7
        %v5677 = vsub.s32 1, %v5676
        %v5678 = vrot.slane %v4419, %v5677
        %v5679 = vlaneseq
        %v5680 = vshrl.u32 %v5679, 7
        %v5681 = vsub.s32 2, %v5680
        %v5682 = vrot.slane %v4419, %v5681
        %v5683 = vlaneseq
        %v5684 = vshrl.u32 %v5683, 7
        %v5685 = vsub.s32 3, %v5684
        %v5686 = vrot.slane %v4419, %v5685
        %v5687 = vlaneseq
        %v5688 = vshrl.u32 %v5687, 7
        %v5689 = vsub.s32 4, %v5688
        %v5690 = vrot.slane %v4419, %v5689
        %v5695 = vsel %vm4726, %v5690, 0
        %v5698 = vsel %vm4726, %v4586, 0
        %v5701 = vsel %vm4726, %v4591, 0
        %5703 = vmatprep.subr.mxu0 %v4583
        %5704 = vmatpush1.xpose.msra.mxu0 %v4582
        %5705 = vmatprep.subr.mxu0 %v4588
        %5706 = vmatpush1.xpose.msra.mxu0 %v4587
        %5707 = vmatprep.subr.mxu0 0.0
        %5708 = vmatpush1.xpose.msra.mxu0 0.0
        %5709 = vmatprep.subr.mxu0 0.0
        %5710 = vmatpush1.xpose.msra.mxu0 0.0
        %5711 = vmatprep.subr.mxu0 0.0
        %5712 = vmatpush1.xpose.msra.mxu0 0.0
        %5713 = vmatprep.subr.mxu0 0.0
        %5714 = vmatpush1.xpose.msra.mxu0 0.0
        %5715 = vmatprep.subr.mxu0 0.0
        %5716 = vmatpush1.xpose.msra.mxu0 0.0
        %5717 = vmatprep.subr.mxu0 0.0
        %5718 = vmatpush1.xpose.msra.mxu0 0.0
        %5719 = vmatprep.subr.mxu0 0.0
        %5720 = vmatpush1.xpose.msra.mxu0 0.0
        %5721 = vmatprep.subr.mxu0 0.0
        %5722 = vmatpush1.xpose.msra.mxu0 0.0
        %5723 = vmatprep.subr.mxu0 0.0
        %5724 = vmatpush1.xpose.msra.mxu0 0.0
        %5725 = vmatprep.subr.mxu0 0.0
        %5726 = vmatpush1.xpose.msra.mxu0 0.0
        %5727 = vmatprep.subr.mxu0 0.0
        %5728 = vmatpush1.xpose.msra.mxu0 0.0
        %5729 = vmatprep.subr.mxu0 0.0
        %5730 = vmatpush1.xpose.msra.mxu0 0.0
        %5731 = vmatprep.subr.mxu0 0.0
        %5732 = vmatpush1.xpose.msra.mxu0 0.0
        %5733 = vmatprep.subr.mxu0 0.0
        %5734 = vmatpush1.xpose.msra.mxu0 0.0
        %5735 = vmatprep.subr.mxu0 0.0
        %5736 = vmatpush1.xpose.msra.mxu0 0.0
        %5737 = vmatprep.subr.mxu0 0.0
        %5738 = vmatpush1.xpose.msra.mxu0 0.0
        %5739 = vmatprep.subr.mxu0 0.0
        %5740 = vmatpush1.xpose.msra.mxu0 0.0
        %5741 = vmatprep.subr.mxu0 0.0
        %5742 = vmatpush1.xpose.msra.mxu0 0.0
        %5743 = vmatprep.subr.mxu0 0.0
        %5744 = vmatpush1.xpose.msra.mxu0 0.0
        %5745 = vmatprep.subr.mxu0 0.0
        %5746 = vmatpush1.xpose.msra.mxu0 0.0
        %5747 = vmatprep.subr.mxu0 0.0
        %5748 = vmatpush1.xpose.msra.mxu0 0.0
        %5749 = vmatprep.subr.mxu0 0.0
        %5750 = vmatpush1.xpose.msra.mxu0 0.0
        %5751 = vmatprep.subr.mxu0 0.0
        %5752 = vmatpush1.xpose.msra.mxu0 0.0
        %5753 = vmatprep.subr.mxu0 0.0
        %5754 = vmatpush1.xpose.msra.mxu0 0.0
        %5755 = vmatprep.subr.mxu0 0.0
        %5756 = vmatpush1.xpose.msra.mxu0 0.0
        %5757 = vmatprep.subr.mxu0 0.0
        %5758 = vmatpush1.xpose.msra.mxu0 0.0
        %5759 = vmatprep.subr.mxu0 0.0
        %5760 = vmatpush1.xpose.msra.mxu0 0.0
        %5761 = vmatprep.subr.mxu0 0.0
        %5762 = vmatpush1.xpose.msra.mxu0 0.0
        %5763 = vmatprep.subr.mxu0 0.0
        %5764 = vmatpush1.xpose.msra.mxu0 0.0
        %5765 = vmatprep.subr.mxu0 0.0
        %5766 = vmatpush1.xpose.msra.mxu0 0.0
        %5767 = vmatprep.mubr.f32.mxu0 %v5678
        %5768 = vmatmul.mubr.f32.gmra.mrb[0].mxu0 %v5674
        %v5769 = vpop.f32.mrb[0].mxu0
        %v5770 = vadd.f32 0.0, %v5769
        %v5771 = vpop.f32.mrb[0].mxu0
        %5772 = vdwg.mxu0
        %5773 = vmatprep.subr.mxu0 %v4585
        %5774 = vmatpush1.xpose.msra.mxu0 %v4584
        %5775 = vmatprep.subr.mxu0 %v4590
        %5776 = vmatpush1.xpose.msra.mxu0 %v4589
        %5777 = vmatprep.subr.mxu0 0.0
        %5778 = vmatpush1.xpose.msra.mxu0 0.0
        %5779 = vmatprep.subr.mxu0 0.0
        %5780 = vmatpush1.xpose.msra.mxu0 0.0
        %5781 = vmatprep.subr.mxu0 0.0
        %5782 = vmatpush1.xpose.msra.mxu0 0.0
        %5783 = vmatprep.subr.mxu0 0.0
        %5784 = vmatpush1.xpose.msra.mxu0 0.0
        %5785 = vmatprep.subr.mxu0 0.0
        %5786 = vmatpush1.xpose.msra.mxu0 0.0
        %5787 = vmatprep.subr.mxu0 0.0
        %5788 = vmatpush1.xpose.msra.mxu0 0.0
        %5789 = vmatprep.subr.mxu0 0.0
        %5790 = vmatpush1.xpose.msra.mxu0 0.0
        %5791 = vmatprep.subr.mxu0 0.0
        %5792 = vmatpush1.xpose.msra.mxu0 0.0
        %5793 = vmatprep.subr.mxu0 0.0
        %5794 = vmatpush1.xpose.msra.mxu0 0.0
        %5795 = vmatprep.subr.mxu0 0.0
        %5796 = vmatpush1.xpose.msra.mxu0 0.0
        %5797 = vmatprep.subr.mxu0 0.0
        %5798 = vmatpush1.xpose.msra.mxu0 0.0
        %5799 = vmatprep.subr.mxu0 0.0
        %5800 = vmatpush1.xpose.msra.mxu0 0.0
        %5801 = vmatprep.subr.mxu0 0.0
        %5802 = vmatpush1.xpose.msra.mxu0 0.0
        %5803 = vmatprep.subr.mxu0 0.0
        %5804 = vmatpush1.xpose.msra.mxu0 0.0
        %5805 = vmatprep.subr.mxu0 0.0
        %5806 = vmatpush1.xpose.msra.mxu0 0.0
        %5807 = vmatprep.subr.mxu0 0.0
        %5808 = vmatpush1.xpose.msra.mxu0 0.0
        %5809 = vmatprep.subr.mxu0 0.0
        %5810 = vmatpush1.xpose.msra.mxu0 0.0
        %5811 = vmatprep.subr.mxu0 0.0
        %5812 = vmatpush1.xpose.msra.mxu0 0.0
        %5813 = vmatprep.subr.mxu0 0.0
        %5814 = vmatpush1.xpose.msra.mxu0 0.0
        %5815 = vmatprep.subr.mxu0 0.0
        %5816 = vmatpush1.xpose.msra.mxu0 0.0
        %5817 = vmatprep.subr.mxu0 0.0
        %5818 = vmatpush1.xpose.msra.mxu0 0.0
        %5819 = vmatprep.subr.mxu0 0.0
        %5820 = vmatpush1.xpose.msra.mxu0 0.0
        %5821 = vmatprep.subr.mxu0 0.0
        %5822 = vmatpush1.xpose.msra.mxu0 0.0
        %5823 = vmatprep.subr.mxu0 0.0
        %5824 = vmatpush1.xpose.msra.mxu0 0.0
        %5825 = vmatprep.subr.mxu0 0.0
        %5826 = vmatpush1.xpose.msra.mxu0 0.0
        %5827 = vmatprep.subr.mxu0 0.0
        %5828 = vmatpush1.xpose.msra.mxu0 0.0
        %5829 = vmatprep.subr.mxu0 0.0
        %5830 = vmatpush1.xpose.msra.mxu0 0.0
        %5831 = vmatprep.subr.mxu0 0.0
        %5832 = vmatpush1.xpose.msra.mxu0 0.0
        %5833 = vmatprep.subr.mxu0 0.0
        %5834 = vmatpush1.xpose.msra.mxu0 0.0
        %5835 = vmatprep.subr.mxu0 0.0
        %5836 = vmatpush1.xpose.msra.mxu0 0.0
        %5837 = vmatprep.mubr.f32.mxu0 %v5686
        %5838 = vmatmul.mubr.f32.gmra.mrb[0].mxu0 %v5682
        %v5839 = vpop.f32.mrb[0].mxu0
        %v5840 = vadd.f32 %v5770, %v5839
        %v5841 = vpop.f32.mrb[0].mxu0
        %5842 = vdwg.mxu0
        %5843 = vmatprep.subr.mxu0 0.0
        %5844 = vmatpush1.xpose.msra.mxu0 %v5698
        %5845 = vmatprep.subr.mxu0 0.0
        %5846 = vmatpush1.xpose.msra.mxu0 %v5701
        %5847 = vmatprep.subr.mxu0 0.0
        %5848 = vmatpush1.xpose.msra.mxu0 0.0
        %5849 = vmatprep.subr.mxu0 0.0
        %5850 = vmatpush1.xpose.msra.mxu0 0.0
        %5851 = vmatprep.subr.mxu0 0.0
        %5852 = vmatpush1.xpose.msra.mxu0 0.0
        %5853 = vmatprep.subr.mxu0 0.0
        %5854 = vmatpush1.xpose.msra.mxu0 0.0
        %5855 = vmatprep.subr.mxu0 0.0
        %5856 = vmatpush1.xpose.msra.mxu0 0.0
        %5857 = vmatprep.subr.mxu0 0.0
        %5858 = vmatpush1.xpose.msra.mxu0 0.0
        %5859 = vmatprep.subr.mxu0 0.0
        %5860 = vmatpush1.xpose.msra.mxu0 0.0
        %5861 = vmatprep.subr.mxu0 0.0
        %5862 = vmatpush1.xpose.msra.mxu0 0.0
        %5863 = vmatprep.subr.mxu0 0.0
        %5864 = vmatpush1.xpose.msra.mxu0 0.0
        %5865 = vmatprep.subr.mxu0 0.0
        %5866 = vmatpush1.xpose.msra.mxu0 0.0
        %5867 = vmatprep.subr.mxu0 0.0
        %5868 = vmatpush1.xpose.msra.mxu0 0.0
        %5869 = vmatprep.subr.mxu0 0.0
        %5870 = vmatpush1.xpose.msra.mxu0 0.0
        %5871 = vmatprep.subr.mxu0 0.0
        %5872 = vmatpush1.xpose.msra.mxu0 0.0
        %5873 = vmatprep.subr.mxu0 0.0
        %5874 = vmatpush1.xpose.msra.mxu0 0.0
        %5875 = vmatprep.subr.mxu0 0.0
        %5876 = vmatpush1.xpose.msra.mxu0 0.0
        %5877 = vmatprep.subr.mxu0 0.0
        %5878 = vmatpush1.xpose.msra.mxu0 0.0
        %5879 = vmatprep.subr.mxu0 0.0
        %5880 = vmatpush1.xpose.msra.mxu0 0.0
        %5881 = vmatprep.subr.mxu0 0.0
        %5882 = vmatpush1.xpose.msra.mxu0 0.0
        %5883 = vmatprep.subr.mxu0 0.0
        %5884 = vmatpush1.xpose.msra.mxu0 0.0
        %5885 = vmatprep.subr.mxu0 0.0
        %5886 = vmatpush1.xpose.msra.mxu0 0.0
        %5887 = vmatprep.subr.mxu0 0.0
        %5888 = vmatpush1.xpose.msra.mxu0 0.0
        %5889 = vmatprep.subr.mxu0 0.0
        %5890 = vmatpush1.xpose.msra.mxu0 0.0
        %5891 = vmatprep.subr.mxu0 0.0
        %5892 = vmatpush1.xpose.msra.mxu0 0.0
        %5893 = vmatprep.subr.mxu0 0.0
        %5894 = vmatpush1.xpose.msra.mxu0 0.0
        %5895 = vmatprep.subr.mxu0 0.0
        %5896 = vmatpush1.xpose.msra.mxu0 0.0
        %5897 = vmatprep.subr.mxu0 0.0
        %5898 = vmatpush1.xpose.msra.mxu0 0.0
        %5899 = vmatprep.subr.mxu0 0.0
        %5900 = vmatpush1.xpose.msra.mxu0 0.0
        %5901 = vmatprep.subr.mxu0 0.0
        %5902 = vmatpush1.xpose.msra.mxu0 0.0
        %5903 = vmatprep.subr.mxu0 0.0
        %5904 = vmatpush1.xpose.msra.mxu0 0.0
        %5905 = vmatprep.subr.mxu0 0.0
        %5906 = vmatpush1.xpose.msra.mxu0 0.0
        %5907 = vmatprep.mubr.f32.mxu0 0.0
        %5908 = vmatmul.mubr.f32.gmra.mrb[0].mxu0 %v5695
        %v5909 = vpop.f32.mrb[0].mxu0
        %v5910 = vadd.f32 %v5840, %v5909
        %v5911 = vpop.f32.mrb[0].mxu0
        %5912 = vdwg.mxu0
        %v5913 = vlaneseq
        %v5914 = vshrl.u32 %v5913, 7
        %v5915 = vsub.s32 0, %v5914
        %v5916 = vrot.slane %v4423, %v5915
        %v5917 = vlaneseq
        %v5918 = vshrl.u32 %v5917, 7
        %v5919 = vsub.s32 1, %v5918
        %v5920 = vrot.slane %v4423, %v5919
        %v5921 = vlaneseq
        %v5922 = vshrl.u32 %v5921, 7
        %v5923 = vsub.s32 2, %v5922
        %v5924 = vrot.slane %v4423, %v5923
        %v5925 = vlaneseq
        %v5926 = vshrl.u32 %v5925, 7
        %v5927 = vsub.s32 3, %v5926
        %v5928 = vrot.slane %v4423, %v5927
        %v5929 = vlaneseq
        %v5930 = vshrl.u32 %v5929, 7
        %v5931 = vsub.s32 4, %v5930
        %v5932 = vrot.slane %v4423, %v5931
        %v5937 = vsel %vm4726, %v5932, 0
        %v5940 = vsel %vm4726, %v4596, 0
        %v5943 = vsel %vm4726, %v4601, 0
        %5945 = vmatprep.subr.mxu0 %v4593
        %5946 = vmatpush1.xpose.msra.mxu0 %v4592
        %5947 = vmatprep.subr.mxu0 %v4598
        %5948 = vmatpush1.xpose.msra.mxu0 %v4597
        %5949 = vmatprep.subr.mxu0 0.0
        %5950 = vmatpush1.xpose.msra.mxu0 0.0
        %5951 = vmatprep.subr.mxu0 0.0
        %5952 = vmatpush1.xpose.msra.mxu0 0.0
        %5953 = vmatprep.subr.mxu0 0.0
        %5954 = vmatpush1.xpose.msra.mxu0 0.0
        %5955 = vmatprep.subr.mxu0 0.0
        %5956 = vmatpush1.xpose.msra.mxu0 0.0
        %5957 = vmatprep.subr.mxu0 0.0
        %5958 = vmatpush1.xpose.msra.mxu0 0.0
        %5959 = vmatprep.subr.mxu0 0.0
        %5960 = vmatpush1.xpose.msra.mxu0 0.0
        %5961 = vmatprep.subr.mxu0 0.0
        %5962 = vmatpush1.xpose.msra.mxu0 0.0
        %5963 = vmatprep.subr.mxu0 0.0
        %5964 = vmatpush1.xpose.msra.mxu0 0.0
        %5965 = vmatprep.subr.mxu0 0.0
        %5966 = vmatpush1.xpose.msra.mxu0 0.0
        %5967 = vmatprep.subr.mxu0 0.0
        %5968 = vmatpush1.xpose.msra.mxu0 0.0
        %5969 = vmatprep.subr.mxu0 0.0
        %5970 = vmatpush1.xpose.msra.mxu0 0.0
        %5971 = vmatprep.subr.mxu0 0.0
        %5972 = vmatpush1.xpose.msra.mxu0 0.0
        %5973 = vmatprep.subr.mxu0 0.0
        %5974 = vmatpush1.xpose.msra.mxu0 0.0
        %5975 = vmatprep.subr.mxu0 0.0
        %5976 = vmatpush1.xpose.msra.mxu0 0.0
        %5977 = vmatprep.subr.mxu0 0.0
        %5978 = vmatpush1.xpose.msra.mxu0 0.0
        %5979 = vmatprep.subr.mxu0 0.0
        %5980 = vmatpush1.xpose.msra.mxu0 0.0
        %5981 = vmatprep.subr.mxu0 0.0
        %5982 = vmatpush1.xpose.msra.mxu0 0.0
        %5983 = vmatprep.subr.mxu0 0.0
        %5984 = vmatpush1.xpose.msra.mxu0 0.0
        %5985 = vmatprep.subr.mxu0 0.0
        %5986 = vmatpush1.xpose.msra.mxu0 0.0
        %5987 = vmatprep.subr.mxu0 0.0
        %5988 = vmatpush1.xpose.msra.mxu0 0.0
        %5989 = vmatprep.subr.mxu0 0.0
        %5990 = vmatpush1.xpose.msra.mxu0 0.0
        %5991 = vmatprep.subr.mxu0 0.0
        %5992 = vmatpush1.xpose.msra.mxu0 0.0
        %5993 = vmatprep.subr.mxu0 0.0
        %5994 = vmatpush1.xpose.msra.mxu0 0.0
        %5995 = vmatprep.subr.mxu0 0.0
        %5996 = vmatpush1.xpose.msra.mxu0 0.0
        %5997 = vmatprep.subr.mxu0 0.0
        %5998 = vmatpush1.xpose.msra.mxu0 0.0
        %5999 = vmatprep.subr.mxu0 0.0
        %6000 = vmatpush1.xpose.msra.mxu0 0.0
        %6001 = vmatprep.subr.mxu0 0.0
        %6002 = vmatpush1.xpose.msra.mxu0 0.0
        %6003 = vmatprep.subr.mxu0 0.0
        %6004 = vmatpush1.xpose.msra.mxu0 0.0
        %6005 = vmatprep.subr.mxu0 0.0
        %6006 = vmatpush1.xpose.msra.mxu0 0.0
        %6007 = vmatprep.subr.mxu0 0.0
        %6008 = vmatpush1.xpose.msra.mxu0 0.0
        %6009 = vmatprep.mubr.f32.mxu0 %v5920
        %6010 = vmatmul.mubr.f32.gmra.mrb[0].mxu0 %v5916
        %v6011 = vpop.f32.mrb[0].mxu0
        %v6012 = vadd.f32 0.0, %v6011
        %v6013 = vpop.f32.mrb[0].mxu0
        %6014 = vdwg.mxu0
        %6015 = vmatprep.subr.mxu0 %v4595
        %6016 = vmatpush1.xpose.msra.mxu0 %v4594
        %6017 = vmatprep.subr.mxu0 %v4600
        %6018 = vmatpush1.xpose.msra.mxu0 %v4599
        %6019 = vmatprep.subr.mxu0 0.0
        %6020 = vmatpush1.xpose.msra.mxu0 0.0
        %6021 = vmatprep.subr.mxu0 0.0
        %6022 = vmatpush1.xpose.msra.mxu0 0.0
        %6023 = vmatprep.subr.mxu0 0.0
        %6024 = vmatpush1.xpose.msra.mxu0 0.0
        %6025 = vmatprep.subr.mxu0 0.0
        %6026 = vmatpush1.xpose.msra.mxu0 0.0
        %6027 = vmatprep.subr.mxu0 0.0
        %6028 = vmatpush1.xpose.msra.mxu0 0.0
        %6029 = vmatprep.subr.mxu0 0.0
        %6030 = vmatpush1.xpose.msra.mxu0 0.0
        %6031 = vmatprep.subr.mxu0 0.0
        %6032 = vmatpush1.xpose.msra.mxu0 0.0
        %6033 = vmatprep.subr.mxu0 0.0
        %6034 = vmatpush1.xpose.msra.mxu0 0.0
        %6035 = vmatprep.subr.mxu0 0.0
        %6036 = vmatpush1.xpose.msra.mxu0 0.0
        %6037 = vmatprep.subr.mxu0 0.0
        %6038 = vmatpush1.xpose.msra.mxu0 0.0
        %6039 = vmatprep.subr.mxu0 0.0
        %6040 = vmatpush1.xpose.msra.mxu0 0.0
        %6041 = vmatprep.subr.mxu0 0.0
        %6042 = vmatpush1.xpose.msra.mxu0 0.0
        %6043 = vmatprep.subr.mxu0 0.0
        %6044 = vmatpush1.xpose.msra.mxu0 0.0
        %6045 = vmatprep.subr.mxu0 0.0
        %6046 = vmatpush1.xpose.msra.mxu0 0.0
        %6047 = vmatprep.subr.mxu0 0.0
        %6048 = vmatpush1.xpose.msra.mxu0 0.0
        %6049 = vmatprep.subr.mxu0 0.0
        %6050 = vmatpush1.xpose.msra.mxu0 0.0
        %6051 = vmatprep.subr.mxu0 0.0
        %6052 = vmatpush1.xpose.msra.mxu0 0.0
        %6053 = vmatprep.subr.mxu0 0.0
        %6054 = vmatpush1.xpose.msra.mxu0 0.0
        %6055 = vmatprep.subr.mxu0 0.0
        %6056 = vmatpush1.xpose.msra.mxu0 0.0
        %6057 = vmatprep.subr.mxu0 0.0
        %6058 = vmatpush1.xpose.msra.mxu0 0.0
        %6059 = vmatprep.subr.mxu0 0.0
        %6060 = vmatpush1.xpose.msra.mxu0 0.0
        %6061 = vmatprep.subr.mxu0 0.0
        %6062 = vmatpush1.xpose.msra.mxu0 0.0
        %6063 = vmatprep.subr.mxu0 0.0
        %6064 = vmatpush1.xpose.msra.mxu0 0.0
        %6065 = vmatprep.subr.mxu0 0.0
        %6066 = vmatpush1.xpose.msra.mxu0 0.0
        %6067 = vmatprep.subr.mxu0 0.0
        %6068 = vmatpush1.xpose.msra.mxu0 0.0
        %6069 = vmatprep.subr.mxu0 0.0
        %6070 = vmatpush1.xpose.msra.mxu0 0.0
        %6071 = vmatprep.subr.mxu0 0.0
        %6072 = vmatpush1.xpose.msra.mxu0 0.0
        %6073 = vmatprep.subr.mxu0 0.0
        %6074 = vmatpush1.xpose.msra.mxu0 0.0
        %6075 = vmatprep.subr.mxu0 0.0
        %6076 = vmatpush1.xpose.msra.mxu0 0.0
        %6077 = vmatprep.subr.mxu0 0.0
        %6078 = vmatpush1.xpose.msra.mxu0 0.0
        %6079 = vmatprep.mubr.f32.mxu0 %v5928
        %6080 = vmatmul.mubr.f32.gmra.mrb[0].mxu0 %v5924
        %v6081 = vpop.f32.mrb[0].mxu0
        %v6082 = vadd.f32 %v6012, %v6081
        %v6083 = vpop.f32.mrb[0].mxu0
        %6084 = vdwg.mxu0
        %6085 = vmatprep.subr.mxu0 0.0
        %6086 = vmatpush1.xpose.msra.mxu0 %v5940
        %6087 = vmatprep.subr.mxu0 0.0
        %6088 = vmatpush1.xpose.msra.mxu0 %v5943
        %6089 = vmatprep.subr.mxu0 0.0
        %6090 = vmatpush1.xpose.msra.mxu0 0.0
        %6091 = vmatprep.subr.mxu0 0.0
        %6092 = vmatpush1.xpose.msra.mxu0 0.0
        %6093 = vmatprep.subr.mxu0 0.0
        %6094 = vmatpush1.xpose.msra.mxu0 0.0
        %6095 = vmatprep.subr.mxu0 0.0
        %6096 = vmatpush1.xpose.msra.mxu0 0.0
        %6097 = vmatprep.subr.mxu0 0.0
        %6098 = vmatpush1.xpose.msra.mxu0 0.0
        %6099 = vmatprep.subr.mxu0 0.0
        %6100 = vmatpush1.xpose.msra.mxu0 0.0
        %6101 = vmatprep.subr.mxu0 0.0
        %6102 = vmatpush1.xpose.msra.mxu0 0.0
        %6103 = vmatprep.subr.mxu0 0.0
        %6104 = vmatpush1.xpose.msra.mxu0 0.0
        %6105 = vmatprep.subr.mxu0 0.0
        %6106 = vmatpush1.xpose.msra.mxu0 0.0
        %6107 = vmatprep.subr.mxu0 0.0
        %6108 = vmatpush1.xpose.msra.mxu0 0.0
        %6109 = vmatprep.subr.mxu0 0.0
        %6110 = vmatpush1.xpose.msra.mxu0 0.0
        %6111 = vmatprep.subr.mxu0 0.0
        %6112 = vmatpush1.xpose.msra.mxu0 0.0
        %6113 = vmatprep.subr.mxu0 0.0
        %6114 = vmatpush1.xpose.msra.mxu0 0.0
        %6115 = vmatprep.subr.mxu0 0.0
        %6116 = vmatpush1.xpose.msra.mxu0 0.0
        %6117 = vmatprep.subr.mxu0 0.0
        %6118 = vmatpush1.xpose.msra.mxu0 0.0
        %6119 = vmatprep.subr.mxu0 0.0
        %6120 = vmatpush1.xpose.msra.mxu0 0.0
        %6121 = vmatprep.subr.mxu0 0.0
        %6122 = vmatpush1.xpose.msra.mxu0 0.0
        %6123 = vmatprep.subr.mxu0 0.0
        %6124 = vmatpush1.xpose.msra.mxu0 0.0
        %6125 = vmatprep.subr.mxu0 0.0
        %6126 = vmatpush1.xpose.msra.mxu0 0.0
        %6127 = vmatprep.subr.mxu0 0.0
        %6128 = vmatpush1.xpose.msra.mxu0 0.0
        %6129 = vmatprep.subr.mxu0 0.0
        %6130 = vmatpush1.xpose.msra.mxu0 0.0
        %6131 = vmatprep.subr.mxu0 0.0
        %6132 = vmatpush1.xpose.msra.mxu0 0.0
        %6133 = vmatprep.subr.mxu0 0.0
        %6134 = vmatpush1.xpose.msra.mxu0 0.0
        %6135 = vmatprep.subr.mxu0 0.0
        %6136 = vmatpush1.xpose.msra.mxu0 0.0
        %6137 = vmatprep.subr.mxu0 0.0
        %6138 = vmatpush1.xpose.msra.mxu0 0.0
        %6139 = vmatprep.subr.mxu0 0.0
        %6140 = vmatpush1.xpose.msra.mxu0 0.0
        %6141 = vmatprep.subr.mxu0 0.0
        %6142 = vmatpush1.xpose.msra.mxu0 0.0
        %6143 = vmatprep.subr.mxu0 0.0
        %6144 = vmatpush1.xpose.msra.mxu0 0.0
        %6145 = vmatprep.subr.mxu0 0.0
        %6146 = vmatpush1.xpose.msra.mxu0 0.0
        %6147 = vmatprep.subr.mxu0 0.0
        %6148 = vmatpush1.xpose.msra.mxu0 0.0
        %6149 = vmatprep.mubr.f32.mxu0 0.0
        %6150 = vmatmul.mubr.f32.gmra.mrb[0].mxu0 %v5937
        %v6151 = vpop.f32.mrb[0].mxu0
        %v6152 = vadd.f32 %v6082, %v6151
        %v6153 = vpop.f32.mrb[0].mxu0
        %6154 = vdwg.mxu0
        %v6155 = vlaneseq
        %v6156 = vshrl.u32 %v6155, 7
        %v6157 = vsub.s32 0, %v6156
        %v6158 = vrot.slane %v4420, %v6157
        %v6159 = vlaneseq
        %v6160 = vshrl.u32 %v6159, 7
        %v6161 = vsub.s32 1, %v6160
        %v6162 = vrot.slane %v4420, %v6161
        %v6163 = vlaneseq
        %v6164 = vshrl.u32 %v6163, 7
        %v6165 = vsub.s32 2, %v6164
        %v6166 = vrot.slane %v4420, %v6165
        %v6167 = vlaneseq
        %v6168 = vshrl.u32 %v6167, 7
        %v6169 = vsub.s32 3, %v6168
        %v6170 = vrot.slane %v4420, %v6169
        %v6171 = vlaneseq
        %v6172 = vshrl.u32 %v6171, 7
        %v6173 = vsub.s32 4, %v6172
        %v6174 = vrot.slane %v4420, %v6173
        %v6179 = vsel %vm4726, %v6174, 0
        %v6182 = vsel %vm4726, %v4606, 0
        %v6185 = vsel %vm4726, %v4611, 0
        %6187 = vmatprep.subr.mxu0 %v4603
        %6188 = vmatpush1.xpose.msra.mxu0 %v4602
        %6189 = vmatprep.subr.mxu0 %v4608
        %6190 = vmatpush1.xpose.msra.mxu0 %v4607
        %6191 = vmatprep.subr.mxu0 0.0
        %6192 = vmatpush1.xpose.msra.mxu0 0.0
        %6193 = vmatprep.subr.mxu0 0.0
        %6194 = vmatpush1.xpose.msra.mxu0 0.0
        %6195 = vmatprep.subr.mxu0 0.0
        %6196 = vmatpush1.xpose.msra.mxu0 0.0
        %6197 = vmatprep.subr.mxu0 0.0
        %6198 = vmatpush1.xpose.msra.mxu0 0.0
        %6199 = vmatprep.subr.mxu0 0.0
        %6200 = vmatpush1.xpose.msra.mxu0 0.0
        %6201 = vmatprep.subr.mxu0 0.0
        %6202 = vmatpush1.xpose.msra.mxu0 0.0
        %6203 = vmatprep.subr.mxu0 0.0
        %6204 = vmatpush1.xpose.msra.mxu0 0.0
        %6205 = vmatprep.subr.mxu0 0.0
        %6206 = vmatpush1.xpose.msra.mxu0 0.0
        %6207 = vmatprep.subr.mxu0 0.0
        %6208 = vmatpush1.xpose.msra.mxu0 0.0
        %6209 = vmatprep.subr.mxu0 0.0
        %6210 = vmatpush1.xpose.msra.mxu0 0.0
        %6211 = vmatprep.subr.mxu0 0.0
        %6212 = vmatpush1.xpose.msra.mxu0 0.0
        %6213 = vmatprep.subr.mxu0 0.0
        %6214 = vmatpush1.xpose.msra.mxu0 0.0
        %6215 = vmatprep.subr.mxu0 0.0
        %6216 = vmatpush1.xpose.msra.mxu0 0.0
        %6217 = vmatprep.subr.mxu0 0.0
        %6218 = vmatpush1.xpose.msra.mxu0 0.0
        %6219 = vmatprep.subr.mxu0 0.0
        %6220 = vmatpush1.xpose.msra.mxu0 0.0
        %6221 = vmatprep.subr.mxu0 0.0
        %6222 = vmatpush1.xpose.msra.mxu0 0.0
        %6223 = vmatprep.subr.mxu0 0.0
        %6224 = vmatpush1.xpose.msra.mxu0 0.0
        %6225 = vmatprep.subr.mxu0 0.0
        %6226 = vmatpush1.xpose.msra.mxu0 0.0
        %6227 = vmatprep.subr.mxu0 0.0
        %6228 = vmatpush1.xpose.msra.mxu0 0.0
        %6229 = vmatprep.subr.mxu0 0.0
        %6230 = vmatpush1.xpose.msra.mxu0 0.0
        %6231 = vmatprep.subr.mxu0 0.0
        %6232 = vmatpush1.xpose.msra.mxu0 0.0
        %6233 = vmatprep.subr.mxu0 0.0
        %6234 = vmatpush1.xpose.msra.mxu0 0.0
        %6235 = vmatprep.subr.mxu0 0.0
        %6236 = vmatpush1.xpose.msra.mxu0 0.0
        %6237 = vmatprep.subr.mxu0 0.0
        %6238 = vmatpush1.xpose.msra.mxu0 0.0
        %6239 = vmatprep.subr.mxu0 0.0
        %6240 = vmatpush1.xpose.msra.mxu0 0.0
        %6241 = vmatprep.subr.mxu0 0.0
        %6242 = vmatpush1.xpose.msra.mxu0 0.0
        %6243 = vmatprep.subr.mxu0 0.0
        %6244 = vmatpush1.xpose.msra.mxu0 0.0
        %6245 = vmatprep.subr.mxu0 0.0
        %6246 = vmatpush1.xpose.msra.mxu0 0.0
        %6247 = vmatprep.subr.mxu0 0.0
        %6248 = vmatpush1.xpose.msra.mxu0 0.0
        %6249 = vmatprep.subr.mxu0 0.0
        %6250 = vmatpush1.xpose.msra.mxu0 0.0
        %6251 = vmatprep.mubr.f32.mxu0 %v6162
        %6252 = vmatmul.mubr.f32.gmra.mrb[0].mxu0 %v6158
        %v6253 = vpop.f32.mrb[0].mxu0
        %v6254 = vadd.f32 0.0, %v6253
        %v6255 = vpop.f32.mrb[0].mxu0
        %6256 = vdwg.mxu0
        %6257 = vmatprep.subr.mxu0 %v4605
        %6258 = vmatpush1.xpose.msra.mxu0 %v4604
        %6259 = vmatprep.subr.mxu0 %v4610
        %6260 = vmatpush1.xpose.msra.mxu0 %v4609
        %6261 = vmatprep.subr.mxu0 0.0
        %6262 = vmatpush1.xpose.msra.mxu0 0.0
        %6263 = vmatprep.subr.mxu0 0.0
        %6264 = vmatpush1.xpose.msra.mxu0 0.0
        %6265 = vmatprep.subr.mxu0 0.0
        %6266 = vmatpush1.xpose.msra.mxu0 0.0
        %6267 = vmatprep.subr.mxu0 0.0
        %6268 = vmatpush1.xpose.msra.mxu0 0.0
        %6269 = vmatprep.subr.mxu0 0.0
        %6270 = vmatpush1.xpose.msra.mxu0 0.0
        %6271 = vmatprep.subr.mxu0 0.0
        %6272 = vmatpush1.xpose.msra.mxu0 0.0
        %6273 = vmatprep.subr.mxu0 0.0
        %6274 = vmatpush1.xpose.msra.mxu0 0.0
        %6275 = vmatprep.subr.mxu0 0.0
        %6276 = vmatpush1.xpose.msra.mxu0 0.0
        %6277 = vmatprep.subr.mxu0 0.0
        %6278 = vmatpush1.xpose.msra.mxu0 0.0
        %6279 = vmatprep.subr.mxu0 0.0
        %6280 = vmatpush1.xpose.msra.mxu0 0.0
        %6281 = vmatprep.subr.mxu0 0.0
        %6282 = vmatpush1.xpose.msra.mxu0 0.0
        %6283 = vmatprep.subr.mxu0 0.0
        %6284 = vmatpush1.xpose.msra.mxu0 0.0
        %6285 = vmatprep.subr.mxu0 0.0
        %6286 = vmatpush1.xpose.msra.mxu0 0.0
        %6287 = vmatprep.subr.mxu0 0.0
        %6288 = vmatpush1.xpose.msra.mxu0 0.0
        %6289 = vmatprep.subr.mxu0 0.0
        %6290 = vmatpush1.xpose.msra.mxu0 0.0
        %6291 = vmatprep.subr.mxu0 0.0
        %6292 = vmatpush1.xpose.msra.mxu0 0.0
        %6293 = vmatprep.subr.mxu0 0.0
        %6294 = vmatpush1.xpose.msra.mxu0 0.0
        %6295 = vmatprep.subr.mxu0 0.0
        %6296 = vmatpush1.xpose.msra.mxu0 0.0
        %6297 = vmatprep.subr.mxu0 0.0
        %6298 = vmatpush1.xpose.msra.mxu0 0.0
        %6299 = vmatprep.subr.mxu0 0.0
        %6300 = vmatpush1.xpose.msra.mxu0 0.0
        %6301 = vmatprep.subr.mxu0 0.0
        %6302 = vmatpush1.xpose.msra.mxu0 0.0
        %6303 = vmatprep.subr.mxu0 0.0
        %6304 = vmatpush1.xpose.msra.mxu0 0.0
        %6305 = vmatprep.subr.mxu0 0.0
        %6306 = vmatpush1.xpose.msra.mxu0 0.0
        %6307 = vmatprep.subr.mxu0 0.0
        %6308 = vmatpush1.xpose.msra.mxu0 0.0
        %6309 = vmatprep.subr.mxu0 0.0
        %6310 = vmatpush1.xpose.msra.mxu0 0.0
        %6311 = vmatprep.subr.mxu0 0.0
        %6312 = vmatpush1.xpose.msra.mxu0 0.0
        %6313 = vmatprep.subr.mxu0 0.0
        %6314 = vmatpush1.xpose.msra.mxu0 0.0
        %6315 = vmatprep.subr.mxu0 0.0
        %6316 = vmatpush1.xpose.msra.mxu0 0.0
        %6317 = vmatprep.subr.mxu0 0.0
        %6318 = vmatpush1.xpose.msra.mxu0 0.0
        %6319 = vmatprep.subr.mxu0 0.0
        %6320 = vmatpush1.xpose.msra.mxu0 0.0
        %6321 = vmatprep.mubr.f32.mxu0 %v6170
        %6322 = vmatmul.mubr.f32.gmra.mrb[0].mxu0 %v6166
        %v6323 = vpop.f32.mrb[0].mxu0
        %v6324 = vadd.f32 %v6254, %v6323
        %v6325 = vpop.f32.mrb[0].mxu0
        %6326 = vdwg.mxu0
        %6327 = vmatprep.subr.mxu0 0.0
        %6328 = vmatpush1.xpose.msra.mxu0 %v6182
        %6329 = vmatprep.subr.mxu0 0.0
        %6330 = vmatpush1.xpose.msra.mxu0 %v6185
        %6331 = vmatprep.subr.mxu0 0.0
        %6332 = vmatpush1.xpose.msra.mxu0 0.0
        %6333 = vmatprep.subr.mxu0 0.0
        %6334 = vmatpush1.xpose.msra.mxu0 0.0
        %6335 = vmatprep.subr.mxu0 0.0
        %6336 = vmatpush1.xpose.msra.mxu0 0.0
        %6337 = vmatprep.subr.mxu0 0.0
        %6338 = vmatpush1.xpose.msra.mxu0 0.0
        %6339 = vmatprep.subr.mxu0 0.0
        %6340 = vmatpush1.xpose.msra.mxu0 0.0
        %6341 = vmatprep.subr.mxu0 0.0
        %6342 = vmatpush1.xpose.msra.mxu0 0.0
        %6343 = vmatprep.subr.mxu0 0.0
        %6344 = vmatpush1.xpose.msra.mxu0 0.0
        %6345 = vmatprep.subr.mxu0 0.0
        %6346 = vmatpush1.xpose.msra.mxu0 0.0
        %6347 = vmatprep.subr.mxu0 0.0
        %6348 = vmatpush1.xpose.msra.mxu0 0.0
        %6349 = vmatprep.subr.mxu0 0.0
        %6350 = vmatpush1.xpose.msra.mxu0 0.0
        %6351 = vmatprep.subr.mxu0 0.0
        %6352 = vmatpush1.xpose.msra.mxu0 0.0
        %6353 = vmatprep.subr.mxu0 0.0
        %6354 = vmatpush1.xpose.msra.mxu0 0.0
        %6355 = vmatprep.subr.mxu0 0.0
        %6356 = vmatpush1.xpose.msra.mxu0 0.0
        %6357 = vmatprep.subr.mxu0 0.0
        %6358 = vmatpush1.xpose.msra.mxu0 0.0
        %6359 = vmatprep.subr.mxu0 0.0
        %6360 = vmatpush1.xpose.msra.mxu0 0.0
        %6361 = vmatprep.subr.mxu0 0.0
        %6362 = vmatpush1.xpose.msra.mxu0 0.0
        %6363 = vmatprep.subr.mxu0 0.0
        %6364 = vmatpush1.xpose.msra.mxu0 0.0
        %6365 = vmatprep.subr.mxu0 0.0
        %6366 = vmatpush1.xpose.msra.mxu0 0.0
        %6367 = vmatprep.subr.mxu0 0.0
        %6368 = vmatpush1.xpose.msra.mxu0 0.0
        %6369 = vmatprep.subr.mxu0 0.0
        %6370 = vmatpush1.xpose.msra.mxu0 0.0
        %6371 = vmatprep.subr.mxu0 0.0
        %6372 = vmatpush1.xpose.msra.mxu0 0.0
        %6373 = vmatprep.subr.mxu0 0.0
        %6374 = vmatpush1.xpose.msra.mxu0 0.0
        %6375 = vmatprep.subr.mxu0 0.0
        %6376 = vmatpush1.xpose.msra.mxu0 0.0
        %6377 = vmatprep.subr.mxu0 0.0
        %6378 = vmatpush1.xpose.msra.mxu0 0.0
        %6379 = vmatprep.subr.mxu0 0.0
        %6380 = vmatpush1.xpose.msra.mxu0 0.0
        %6381 = vmatprep.subr.mxu0 0.0
        %6382 = vmatpush1.xpose.msra.mxu0 0.0
        %6383 = vmatprep.subr.mxu0 0.0
        %6384 = vmatpush1.xpose.msra.mxu0 0.0
        %6385 = vmatprep.subr.mxu0 0.0
        %6386 = vmatpush1.xpose.msra.mxu0 0.0
        %6387 = vmatprep.subr.mxu0 0.0
        %6388 = vmatpush1.xpose.msra.mxu0 0.0
        %6389 = vmatprep.subr.mxu0 0.0
        %6390 = vmatpush1.xpose.msra.mxu0 0.0
        %6391 = vmatprep.mubr.f32.mxu0 0.0
        %6392 = vmatmul.mubr.f32.gmra.mrb[0].mxu0 %v6179
        %v6393 = vpop.f32.mrb[0].mxu0
        %v6394 = vadd.f32 %v6324, %v6393
        %v6395 = vpop.f32.mrb[0].mxu0
        %6396 = vdwg.mxu0
        %v6397 = vlaneseq
        %v6398 = vshrl.u32 %v6397, 7
        %v6399 = vsub.s32 0, %v6398
        %v6400 = vrot.slane %v4424, %v6399
        %v6401 = vlaneseq
        %v6402 = vshrl.u32 %v6401, 7
        %v6403 = vsub.s32 1, %v6402
        %v6404 = vrot.slane %v4424, %v6403
        %v6405 = vlaneseq
        %v6406 = vshrl.u32 %v6405, 7
        %v6407 = vsub.s32 2, %v6406
        %v6408 = vrot.slane %v4424, %v6407
        %v6409 = vlaneseq
        %v6410 = vshrl.u32 %v6409, 7
        %v6411 = vsub.s32 3, %v6410
        %v6412 = vrot.slane %v4424, %v6411
        %v6413 = vlaneseq
        %v6414 = vshrl.u32 %v6413, 7
        %v6415 = vsub.s32 4, %v6414
        %v6416 = vrot.slane %v4424, %v6415
        %v6421 = vsel %vm4726, %v6416, 0
        %v6424 = vsel %vm4726, %v4616, 0
        %v6427 = vsel %vm4726, %v4621, 0
        %6429 = vmatprep.subr.mxu0 %v4613
        %6430 = vmatpush1.xpose.msra.mxu0 %v4612
        %6431 = vmatprep.subr.mxu0 %v4618
        %6432 = vmatpush1.xpose.msra.mxu0 %v4617
        %6433 = vmatprep.subr.mxu0 0.0
        %6434 = vmatpush1.xpose.msra.mxu0 0.0
        %6435 = vmatprep.subr.mxu0 0.0
        %6436 = vmatpush1.xpose.msra.mxu0 0.0
        %6437 = vmatprep.subr.mxu0 0.0
        %6438 = vmatpush1.xpose.msra.mxu0 0.0
        %6439 = vmatprep.subr.mxu0 0.0
        %6440 = vmatpush1.xpose.msra.mxu0 0.0
        %6441 = vmatprep.subr.mxu0 0.0
        %6442 = vmatpush1.xpose.msra.mxu0 0.0
        %6443 = vmatprep.subr.mxu0 0.0
        %6444 = vmatpush1.xpose.msra.mxu0 0.0
        %6445 = vmatprep.subr.mxu0 0.0
        %6446 = vmatpush1.xpose.msra.mxu0 0.0
        %6447 = vmatprep.subr.mxu0 0.0
        %6448 = vmatpush1.xpose.msra.mxu0 0.0
        %6449 = vmatprep.subr.mxu0 0.0
        %6450 = vmatpush1.xpose.msra.mxu0 0.0
        %6451 = vmatprep.subr.mxu0 0.0
        %6452 = vmatpush1.xpose.msra.mxu0 0.0
        %6453 = vmatprep.subr.mxu0 0.0
        %6454 = vmatpush1.xpose.msra.mxu0 0.0
        %6455 = vmatprep.subr.mxu0 0.0
        %6456 = vmatpush1.xpose.msra.mxu0 0.0
        %6457 = vmatprep.subr.mxu0 0.0
        %6458 = vmatpush1.xpose.msra.mxu0 0.0
        %6459 = vmatprep.subr.mxu0 0.0
        %6460 = vmatpush1.xpose.msra.mxu0 0.0
        %6461 = vmatprep.subr.mxu0 0.0
        %6462 = vmatpush1.xpose.msra.mxu0 0.0
        %6463 = vmatprep.subr.mxu0 0.0
        %6464 = vmatpush1.xpose.msra.mxu0 0.0
        %6465 = vmatprep.subr.mxu0 0.0
        %6466 = vmatpush1.xpose.msra.mxu0 0.0
        %6467 = vmatprep.subr.mxu0 0.0
        %6468 = vmatpush1.xpose.msra.mxu0 0.0
        %6469 = vmatprep.subr.mxu0 0.0
        %6470 = vmatpush1.xpose.msra.mxu0 0.0
        %6471 = vmatprep.subr.mxu0 0.0
        %6472 = vmatpush1.xpose.msra.mxu0 0.0
        %6473 = vmatprep.subr.mxu0 0.0
        %6474 = vmatpush1.xpose.msra.mxu0 0.0
        %6475 = vmatprep.subr.mxu0 0.0
        %6476 = vmatpush1.xpose.msra.mxu0 0.0
        %6477 = vmatprep.subr.mxu0 0.0
        %6478 = vmatpush1.xpose.msra.mxu0 0.0
        %6479 = vmatprep.subr.mxu0 0.0
        %6480 = vmatpush1.xpose.msra.mxu0 0.0
        %6481 = vmatprep.subr.mxu0 0.0
        %6482 = vmatpush1.xpose.msra.mxu0 0.0
        %6483 = vmatprep.subr.mxu0 0.0
        %6484 = vmatpush1.xpose.msra.mxu0 0.0
        %6485 = vmatprep.subr.mxu0 0.0
        %6486 = vmatpush1.xpose.msra.mxu0 0.0
        %6487 = vmatprep.subr.mxu0 0.0
        %6488 = vmatpush1.xpose.msra.mxu0 0.0
        %6489 = vmatprep.subr.mxu0 0.0
        %6490 = vmatpush1.xpose.msra.mxu0 0.0
        %6491 = vmatprep.subr.mxu0 0.0
        %6492 = vmatpush1.xpose.msra.mxu0 0.0
        %6493 = vmatprep.mubr.f32.mxu0 %v6404
        %6494 = vmatmul.mubr.f32.gmra.mrb[0].mxu0 %v6400
        %v6495 = vpop.f32.mrb[0].mxu0
        %v6496 = vadd.f32 0.0, %v6495
        %v6497 = vpop.f32.mrb[0].mxu0
        %6498 = vdwg.mxu0
        %6499 = vmatprep.subr.mxu0 %v4615
        %6500 = vmatpush1.xpose.msra.mxu0 %v4614
        %6501 = vmatprep.subr.mxu0 %v4620
        %6502 = vmatpush1.xpose.msra.mxu0 %v4619
        %6503 = vmatprep.subr.mxu0 0.0
        %6504 = vmatpush1.xpose.msra.mxu0 0.0
        %6505 = vmatprep.subr.mxu0 0.0
        %6506 = vmatpush1.xpose.msra.mxu0 0.0
        %6507 = vmatprep.subr.mxu0 0.0
        %6508 = vmatpush1.xpose.msra.mxu0 0.0
        %6509 = vmatprep.subr.mxu0 0.0
        %6510 = vmatpush1.xpose.msra.mxu0 0.0
        %6511 = vmatprep.subr.mxu0 0.0
        %6512 = vmatpush1.xpose.msra.mxu0 0.0
        %6513 = vmatprep.subr.mxu0 0.0
        %6514 = vmatpush1.xpose.msra.mxu0 0.0
        %6515 = vmatprep.subr.mxu0 0.0
        %6516 = vmatpush1.xpose.msra.mxu0 0.0
        %6517 = vmatprep.subr.mxu0 0.0
        %6518 = vmatpush1.xpose.msra.mxu0 0.0
        %6519 = vmatprep.subr.mxu0 0.0
        %6520 = vmatpush1.xpose.msra.mxu0 0.0
        %6521 = vmatprep.subr.mxu0 0.0
        %6522 = vmatpush1.xpose.msra.mxu0 0.0
        %6523 = vmatprep.subr.mxu0 0.0
        %6524 = vmatpush1.xpose.msra.mxu0 0.0
        %6525 = vmatprep.subr.mxu0 0.0
        %6526 = vmatpush1.xpose.msra.mxu0 0.0
        %6527 = vmatprep.subr.mxu0 0.0
        %6528 = vmatpush1.xpose.msra.mxu0 0.0
        %6529 = vmatprep.subr.mxu0 0.0
        %6530 = vmatpush1.xpose.msra.mxu0 0.0
        %6531 = vmatprep.subr.mxu0 0.0
        %6532 = vmatpush1.xpose.msra.mxu0 0.0
        %6533 = vmatprep.subr.mxu0 0.0
        %6534 = vmatpush1.xpose.msra.mxu0 0.0
        %6535 = vmatprep.subr.mxu0 0.0
        %6536 = vmatpush1.xpose.msra.mxu0 0.0
        %6537 = vmatprep.subr.mxu0 0.0
        %6538 = vmatpush1.xpose.msra.mxu0 0.0
        %6539 = vmatprep.subr.mxu0 0.0
        %6540 = vmatpush1.xpose.msra.mxu0 0.0
        %6541 = vmatprep.subr.mxu0 0.0
        %6542 = vmatpush1.xpose.msra.mxu0 0.0
        %6543 = vmatprep.subr.mxu0 0.0
        %6544 = vmatpush1.xpose.msra.mxu0 0.0
        %6545 = vmatprep.subr.mxu0 0.0
        %6546 = vmatpush1.xpose.msra.mxu0 0.0
        %6547 = vmatprep.subr.mxu0 0.0
        %6548 = vmatpush1.xpose.msra.mxu0 0.0
        %6549 = vmatprep.subr.mxu0 0.0
        %6550 = vmatpush1.xpose.msra.mxu0 0.0
        %6551 = vmatprep.subr.mxu0 0.0
        %6552 = vmatpush1.xpose.msra.mxu0 0.0
        %6553 = vmatprep.subr.mxu0 0.0
        %6554 = vmatpush1.xpose.msra.mxu0 0.0
        %6555 = vmatprep.subr.mxu0 0.0
        %6556 = vmatpush1.xpose.msra.mxu0 0.0
        %6557 = vmatprep.subr.mxu0 0.0
        %6558 = vmatpush1.xpose.msra.mxu0 0.0
        %6559 = vmatprep.subr.mxu0 0.0
        %6560 = vmatpush1.xpose.msra.mxu0 0.0
        %6561 = vmatprep.subr.mxu0 0.0
        %6562 = vmatpush1.xpose.msra.mxu0 0.0
        %6563 = vmatprep.mubr.f32.mxu0 %v6412
        %6564 = vmatmul.mubr.f32.gmra.mrb[0].mxu0 %v6408
        %v6565 = vpop.f32.mrb[0].mxu0
        %v6566 = vadd.f32 %v6496, %v6565
        %v6567 = vpop.f32.mrb[0].mxu0
        %6568 = vdwg.mxu0
        %6569 = vmatprep.subr.mxu0 0.0
        %6570 = vmatpush1.xpose.msra.mxu0 %v6424
        %6571 = vmatprep.subr.mxu0 0.0
        %6572 = vmatpush1.xpose.msra.mxu0 %v6427
        %6573 = vmatprep.subr.mxu0 0.0
        %6574 = vmatpush1.xpose.msra.mxu0 0.0
        %6575 = vmatprep.subr.mxu0 0.0
        %6576 = vmatpush1.xpose.msra.mxu0 0.0
        %6577 = vmatprep.subr.mxu0 0.0
        %6578 = vmatpush1.xpose.msra.mxu0 0.0
        %6579 = vmatprep.subr.mxu0 0.0
        %6580 = vmatpush1.xpose.msra.mxu0 0.0
        %6581 = vmatprep.subr.mxu0 0.0
        %6582 = vmatpush1.xpose.msra.mxu0 0.0
        %6583 = vmatprep.subr.mxu0 0.0
        %6584 = vmatpush1.xpose.msra.mxu0 0.0
        %6585 = vmatprep.subr.mxu0 0.0
        %6586 = vmatpush1.xpose.msra.mxu0 0.0
        %6587 = vmatprep.subr.mxu0 0.0
        %6588 = vmatpush1.xpose.msra.mxu0 0.0
        %6589 = vmatprep.subr.mxu0 0.0
        %6590 = vmatpush1.xpose.msra.mxu0 0.0
        %6591 = vmatprep.subr.mxu0 0.0
        %6592 = vmatpush1.xpose.msra.mxu0 0.0
        %6593 = vmatprep.subr.mxu0 0.0
        %6594 = vmatpush1.xpose.msra.mxu0 0.0
        %6595 = vmatprep.subr.mxu0 0.0
        %6596 = vmatpush1.xpose.msra.mxu0 0.0
        %6597 = vmatprep.subr.mxu0 0.0
        %6598 = vmatpush1.xpose.msra.mxu0 0.0
        %6599 = vmatprep.subr.mxu0 0.0
        %6600 = vmatpush1.xpose.msra.mxu0 0.0
        %6601 = vmatprep.subr.mxu0 0.0
        %6602 = vmatpush1.xpose.msra.mxu0 0.0
        %6603 = vmatprep.subr.mxu0 0.0
        %6604 = vmatpush1.xpose.msra.mxu0 0.0
        %6605 = vmatprep.subr.mxu0 0.0
        %6606 = vmatpush1.xpose.msra.mxu0 0.0
        %6607 = vmatprep.subr.mxu0 0.0
        %6608 = vmatpush1.xpose.msra.mxu0 0.0
        %6609 = vmatprep.subr.mxu0 0.0
        %6610 = vmatpush1.xpose.msra.mxu0 0.0
        %6611 = vmatprep.subr.mxu0 0.0
        %6612 = vmatpush1.xpose.msra.mxu0 0.0
        %6613 = vmatprep.subr.mxu0 0.0
        %6614 = vmatpush1.xpose.msra.mxu0 0.0
        %6615 = vmatprep.subr.mxu0 0.0
        %6616 = vmatpush1.xpose.msra.mxu0 0.0
        %6617 = vmatprep.subr.mxu0 0.0
        %6618 = vmatpush1.xpose.msra.mxu0 0.0
        %6619 = vmatprep.subr.mxu0 0.0
        %6620 = vmatpush1.xpose.msra.mxu0 0.0
        %6621 = vmatprep.subr.mxu0 0.0
        %6622 = vmatpush1.xpose.msra.mxu0 0.0
        %6623 = vmatprep.subr.mxu0 0.0
        %6624 = vmatpush1.xpose.msra.mxu0 0.0
        %6625 = vmatprep.subr.mxu0 0.0
        %6626 = vmatpush1.xpose.msra.mxu0 0.0
        %6627 = vmatprep.subr.mxu0 0.0
        %6628 = vmatpush1.xpose.msra.mxu0 0.0
        %6629 = vmatprep.subr.mxu0 0.0
        %6630 = vmatpush1.xpose.msra.mxu0 0.0
        %6631 = vmatprep.subr.mxu0 0.0
        %6632 = vmatpush1.xpose.msra.mxu0 0.0
        %6633 = vmatprep.mubr.f32.mxu0 0.0
        %6634 = vmatmul.mubr.f32.gmra.mrb[0].mxu0 %v6421
        %v6635 = vpop.f32.mrb[0].mxu0
        %v6636 = vadd.f32 %v6566, %v6635
        %v6637 = vpop.f32.mrb[0].mxu0
        %6638 = vdwg.mxu0
        %v6639 = vlaneseq
        %v6640 = vshrl.u32 %v6639, 7
        %v6641 = vsub.s32 0, %v6640
        %v6642 = vrot.slane %v4534, %v6641
        %v6643 = vlaneseq
        %v6644 = vshrl.u32 %v6643, 7
        %v6645 = vsub.s32 1, %v6644
        %v6646 = vrot.slane %v4534, %v6645
        %v6647 = vlaneseq
        %v6648 = vshrl.u32 %v6647, 7
        %v6649 = vsub.s32 2, %v6648
        %v6650 = vrot.slane %v4534, %v6649
        %v6651 = vlaneseq
        %v6652 = vshrl.u32 %v6651, 7
        %v6653 = vsub.s32 3, %v6652
        %v6654 = vrot.slane %v4534, %v6653
        %v6655 = vlaneseq
        %v6656 = vshrl.u32 %v6655, 7
        %v6657 = vsub.s32 4, %v6656
        %v6658 = vrot.slane %v4534, %v6657
        %v6663 = vsel %vm4726, %v6658, 0
        %v6666 = vsel %vm4726, %v4626, 0
        %v6669 = vsel %vm4726, %v4631, 0
        %6671 = vmatprep.subr.mxu0 %v4623
        %6672 = vmatpush1.xpose.msra.mxu0 %v4622
        %6673 = vmatprep.subr.mxu0 %v4628
        %6674 = vmatpush1.xpose.msra.mxu0 %v4627
        %6675 = vmatprep.subr.mxu0 0.0
        %6676 = vmatpush1.xpose.msra.mxu0 0.0
        %6677 = vmatprep.subr.mxu0 0.0
        %6678 = vmatpush1.xpose.msra.mxu0 0.0
        %6679 = vmatprep.subr.mxu0 0.0
        %6680 = vmatpush1.xpose.msra.mxu0 0.0
        %6681 = vmatprep.subr.mxu0 0.0
        %6682 = vmatpush1.xpose.msra.mxu0 0.0
        %6683 = vmatprep.subr.mxu0 0.0
        %6684 = vmatpush1.xpose.msra.mxu0 0.0
        %6685 = vmatprep.subr.mxu0 0.0
        %6686 = vmatpush1.xpose.msra.mxu0 0.0
        %6687 = vmatprep.subr.mxu0 0.0
        %6688 = vmatpush1.xpose.msra.mxu0 0.0
        %6689 = vmatprep.subr.mxu0 0.0
        %6690 = vmatpush1.xpose.msra.mxu0 0.0
        %6691 = vmatprep.subr.mxu0 0.0
        %6692 = vmatpush1.xpose.msra.mxu0 0.0
        %6693 = vmatprep.subr.mxu0 0.0
        %6694 = vmatpush1.xpose.msra.mxu0 0.0
        %6695 = vmatprep.subr.mxu0 0.0
        %6696 = vmatpush1.xpose.msra.mxu0 0.0
        %6697 = vmatprep.subr.mxu0 0.0
        %6698 = vmatpush1.xpose.msra.mxu0 0.0
        %6699 = vmatprep.subr.mxu0 0.0
        %6700 = vmatpush1.xpose.msra.mxu0 0.0
        %6701 = vmatprep.subr.mxu0 0.0
        %6702 = vmatpush1.xpose.msra.mxu0 0.0
        %6703 = vmatprep.subr.mxu0 0.0
        %6704 = vmatpush1.xpose.msra.mxu0 0.0
        %6705 = vmatprep.subr.mxu0 0.0
        %6706 = vmatpush1.xpose.msra.mxu0 0.0
        %6707 = vmatprep.subr.mxu0 0.0
        %6708 = vmatpush1.xpose.msra.mxu0 0.0
        %6709 = vmatprep.subr.mxu0 0.0
        %6710 = vmatpush1.xpose.msra.mxu0 0.0
        %6711 = vmatprep.subr.mxu0 0.0
        %6712 = vmatpush1.xpose.msra.mxu0 0.0
        %6713 = vmatprep.subr.mxu0 0.0
        %6714 = vmatpush1.xpose.msra.mxu0 0.0
        %6715 = vmatprep.subr.mxu0 0.0
        %6716 = vmatpush1.xpose.msra.mxu0 0.0
        %6717 = vmatprep.subr.mxu0 0.0
        %6718 = vmatpush1.xpose.msra.mxu0 0.0
        %6719 = vmatprep.subr.mxu0 0.0
        %6720 = vmatpush1.xpose.msra.mxu0 0.0
        %6721 = vmatprep.subr.mxu0 0.0
        %6722 = vmatpush1.xpose.msra.mxu0 0.0
        %6723 = vmatprep.subr.mxu0 0.0
        %6724 = vmatpush1.xpose.msra.mxu0 0.0
        %6725 = vmatprep.subr.mxu0 0.0
        %6726 = vmatpush1.xpose.msra.mxu0 0.0
        %6727 = vmatprep.subr.mxu0 0.0
        %6728 = vmatpush1.xpose.msra.mxu0 0.0
        %6729 = vmatprep.subr.mxu0 0.0
        %6730 = vmatpush1.xpose.msra.mxu0 0.0
        %6731 = vmatprep.subr.mxu0 0.0
        %6732 = vmatpush1.xpose.msra.mxu0 0.0
        %6733 = vmatprep.subr.mxu0 0.0
        %6734 = vmatpush1.xpose.msra.mxu0 0.0
        %6735 = vmatprep.mubr.f32.mxu0 %v6646
        %6736 = vmatmul.mubr.f32.gmra.mrb[0].mxu0 %v6642
        %v6737 = vpop.f32.mrb[0].mxu0
        %v6738 = vadd.f32 0.0, %v6737
        %v6739 = vpop.f32.mrb[0].mxu0
        %6740 = vdwg.mxu0
        %6741 = vmatprep.subr.mxu0 %v4625
        %6742 = vmatpush1.xpose.msra.mxu0 %v4624
        %6743 = vmatprep.subr.mxu0 %v4630
        %6744 = vmatpush1.xpose.msra.mxu0 %v4629
        %6745 = vmatprep.subr.mxu0 0.0
        %6746 = vmatpush1.xpose.msra.mxu0 0.0
        %6747 = vmatprep.subr.mxu0 0.0
        %6748 = vmatpush1.xpose.msra.mxu0 0.0
        %6749 = vmatprep.subr.mxu0 0.0
        %6750 = vmatpush1.xpose.msra.mxu0 0.0
        %6751 = vmatprep.subr.mxu0 0.0
        %6752 = vmatpush1.xpose.msra.mxu0 0.0
        %6753 = vmatprep.subr.mxu0 0.0
        %6754 = vmatpush1.xpose.msra.mxu0 0.0
        %6755 = vmatprep.subr.mxu0 0.0
        %6756 = vmatpush1.xpose.msra.mxu0 0.0
        %6757 = vmatprep.subr.mxu0 0.0
        %6758 = vmatpush1.xpose.msra.mxu0 0.0
        %6759 = vmatprep.subr.mxu0 0.0
        %6760 = vmatpush1.xpose.msra.mxu0 0.0
        %6761 = vmatprep.subr.mxu0 0.0
        %6762 = vmatpush1.xpose.msra.mxu0 0.0
        %6763 = vmatprep.subr.mxu0 0.0
        %6764 = vmatpush1.xpose.msra.mxu0 0.0
        %6765 = vmatprep.subr.mxu0 0.0
        %6766 = vmatpush1.xpose.msra.mxu0 0.0
        %6767 = vmatprep.subr.mxu0 0.0
        %6768 = vmatpush1.xpose.msra.mxu0 0.0
        %6769 = vmatprep.subr.mxu0 0.0
        %6770 = vmatpush1.xpose.msra.mxu0 0.0
        %6771 = vmatprep.subr.mxu0 0.0
        %6772 = vmatpush1.xpose.msra.mxu0 0.0
        %6773 = vmatprep.subr.mxu0 0.0
        %6774 = vmatpush1.xpose.msra.mxu0 0.0
        %6775 = vmatprep.subr.mxu0 0.0
        %6776 = vmatpush1.xpose.msra.mxu0 0.0
        %6777 = vmatprep.subr.mxu0 0.0
        %6778 = vmatpush1.xpose.msra.mxu0 0.0
        %6779 = vmatprep.subr.mxu0 0.0
        %6780 = vmatpush1.xpose.msra.mxu0 0.0
        %6781 = vmatprep.subr.mxu0 0.0
        %6782 = vmatpush1.xpose.msra.mxu0 0.0
        %6783 = vmatprep.subr.mxu0 0.0
        %6784 = vmatpush1.xpose.msra.mxu0 0.0
        %6785 = vmatprep.subr.mxu0 0.0
        %6786 = vmatpush1.xpose.msra.mxu0 0.0
        %6787 = vmatprep.subr.mxu0 0.0
        %6788 = vmatpush1.xpose.msra.mxu0 0.0
        %6789 = vmatprep.subr.mxu0 0.0
        %6790 = vmatpush1.xpose.msra.mxu0 0.0
        %6791 = vmatprep.subr.mxu0 0.0
        %6792 = vmatpush1.xpose.msra.mxu0 0.0
        %6793 = vmatprep.subr.mxu0 0.0
        %6794 = vmatpush1.xpose.msra.mxu0 0.0
        %6795 = vmatprep.subr.mxu0 0.0
        %6796 = vmatpush1.xpose.msra.mxu0 0.0
        %6797 = vmatprep.subr.mxu0 0.0
        %6798 = vmatpush1.xpose.msra.mxu0 0.0
        %6799 = vmatprep.subr.mxu0 0.0
        %6800 = vmatpush1.xpose.msra.mxu0 0.0
        %6801 = vmatprep.subr.mxu0 0.0
        %6802 = vmatpush1.xpose.msra.mxu0 0.0
        %6803 = vmatprep.subr.mxu0 0.0
        %6804 = vmatpush1.xpose.msra.mxu0 0.0
        %6805 = vmatprep.mubr.f32.mxu0 %v6654
        %6806 = vmatmul.mubr.f32.gmra.mrb[0].mxu0 %v6650
        %v6807 = vpop.f32.mrb[0].mxu0
        %v6808 = vadd.f32 %v6738, %v6807
        %v6809 = vpop.f32.mrb[0].mxu0
        %6810 = vdwg.mxu0
        %6811 = vmatprep.subr.mxu0 0.0
        %6812 = vmatpush1.xpose.msra.mxu0 %v6666
        %6813 = vmatprep.subr.mxu0 0.0
        %6814 = vmatpush1.xpose.msra.mxu0 %v6669
        %6815 = vmatprep.subr.mxu0 0.0
        %6816 = vmatpush1.xpose.msra.mxu0 0.0
        %6817 = vmatprep.subr.mxu0 0.0
        %6818 = vmatpush1.xpose.msra.mxu0 0.0
        %6819 = vmatprep.subr.mxu0 0.0
        %6820 = vmatpush1.xpose.msra.mxu0 0.0
        %6821 = vmatprep.subr.mxu0 0.0
        %6822 = vmatpush1.xpose.msra.mxu0 0.0
        %6823 = vmatprep.subr.mxu0 0.0
        %6824 = vmatpush1.xpose.msra.mxu0 0.0
        %6825 = vmatprep.subr.mxu0 0.0
        %6826 = vmatpush1.xpose.msra.mxu0 0.0
        %6827 = vmatprep.subr.mxu0 0.0
        %6828 = vmatpush1.xpose.msra.mxu0 0.0
        %6829 = vmatprep.subr.mxu0 0.0
        %6830 = vmatpush1.xpose.msra.mxu0 0.0
        %6831 = vmatprep.subr.mxu0 0.0
        %6832 = vmatpush1.xpose.msra.mxu0 0.0
        %6833 = vmatprep.subr.mxu0 0.0
        %6834 = vmatpush1.xpose.msra.mxu0 0.0
        %6835 = vmatprep.subr.mxu0 0.0
        %6836 = vmatpush1.xpose.msra.mxu0 0.0
        %6837 = vmatprep.subr.mxu0 0.0
        %6838 = vmatpush1.xpose.msra.mxu0 0.0
        %6839 = vmatprep.subr.mxu0 0.0
        %6840 = vmatpush1.xpose.msra.mxu0 0.0
        %6841 = vmatprep.subr.mxu0 0.0
        %6842 = vmatpush1.xpose.msra.mxu0 0.0
        %6843 = vmatprep.subr.mxu0 0.0
        %6844 = vmatpush1.xpose.msra.mxu0 0.0
        %6845 = vmatprep.subr.mxu0 0.0
        %6846 = vmatpush1.xpose.msra.mxu0 0.0
        %6847 = vmatprep.subr.mxu0 0.0
        %6848 = vmatpush1.xpose.msra.mxu0 0.0
        %6849 = vmatprep.subr.mxu0 0.0
        %6850 = vmatpush1.xpose.msra.mxu0 0.0
        %6851 = vmatprep.subr.mxu0 0.0
        %6852 = vmatpush1.xpose.msra.mxu0 0.0
        %6853 = vmatprep.subr.mxu0 0.0
        %6854 = vmatpush1.xpose.msra.mxu0 0.0
        %6855 = vmatprep.subr.mxu0 0.0
        %6856 = vmatpush1.xpose.msra.mxu0 0.0
        %6857 = vmatprep.subr.mxu0 0.0
        %6858 = vmatpush1.xpose.msra.mxu0 0.0
        %6859 = vmatprep.subr.mxu0 0.0
        %6860 = vmatpush1.xpose.msra.mxu0 0.0
        %6861 = vmatprep.subr.mxu0 0.0
        %6862 = vmatpush1.xpose.msra.mxu0 0.0
        %6863 = vmatprep.subr.mxu0 0.0
        %6864 = vmatpush1.xpose.msra.mxu0 0.0
        %6865 = vmatprep.subr.mxu0 0.0
        %6866 = vmatpush1.xpose.msra.mxu0 0.0
        %6867 = vmatprep.subr.mxu0 0.0
        %6868 = vmatpush1.xpose.msra.mxu0 0.0
        %6869 = vmatprep.subr.mxu0 0.0
        %6870 = vmatpush1.xpose.msra.mxu0 0.0
        %6871 = vmatprep.subr.mxu0 0.0
        %6872 = vmatpush1.xpose.msra.mxu0 0.0
        %6873 = vmatprep.subr.mxu0 0.0
        %6874 = vmatpush1.xpose.msra.mxu0 0.0
        %6875 = vmatprep.mubr.f32.mxu0 0.0
        %6876 = vmatmul.mubr.f32.gmra.mrb[0].mxu0 %v6663
        %v6877 = vpop.f32.mrb[0].mxu0
        %v6878 = vadd.f32 %v6808, %v6877
        %v6879 = vpop.f32.mrb[0].mxu0
        %6880 = vdwg.mxu0
        %v6881 = vlaneseq
        %v6882 = vshrl.u32 %v6881, 7
        %v6883 = vsub.s32 0, %v6882
        %v6884 = vrot.slane %v4538, %v6883
        %v6885 = vlaneseq
        %v6886 = vshrl.u32 %v6885, 7
        %v6887 = vsub.s32 1, %v6886
        %v6888 = vrot.slane %v4538, %v6887
        %v6889 = vlaneseq
        %v6890 = vshrl.u32 %v6889, 7
        %v6891 = vsub.s32 2, %v6890
        %v6892 = vrot.slane %v4538, %v6891
        %v6893 = vlaneseq
        %v6894 = vshrl.u32 %v6893, 7
        %v6895 = vsub.s32 3, %v6894
        %v6896 = vrot.slane %v4538, %v6895
        %v6897 = vlaneseq
        %v6898 = vshrl.u32 %v6897, 7
        %v6899 = vsub.s32 4, %v6898
        %v6900 = vrot.slane %v4538, %v6899
        %v6905 = vsel %vm4726, %v6900, 0
        %v6908 = vsel %vm4726, %v4636, 0
        %v6911 = vsel %vm4726, %v4641, 0
        %6913 = vmatprep.subr.mxu0 %v4633
        %6914 = vmatpush1.xpose.msra.mxu0 %v4632
        %6915 = vmatprep.subr.mxu0 %v4638
        %6916 = vmatpush1.xpose.msra.mxu0 %v4637
        %6917 = vmatprep.subr.mxu0 0.0
        %6918 = vmatpush1.xpose.msra.mxu0 0.0
        %6919 = vmatprep.subr.mxu0 0.0
        %6920 = vmatpush1.xpose.msra.mxu0 0.0
        %6921 = vmatprep.subr.mxu0 0.0
        %6922 = vmatpush1.xpose.msra.mxu0 0.0
        %6923 = vmatprep.subr.mxu0 0.0
        %6924 = vmatpush1.xpose.msra.mxu0 0.0
        %6925 = vmatprep.subr.mxu0 0.0
        %6926 = vmatpush1.xpose.msra.mxu0 0.0
        %6927 = vmatprep.subr.mxu0 0.0
        %6928 = vmatpush1.xpose.msra.mxu0 0.0
        %6929 = vmatprep.subr.mxu0 0.0
        %6930 = vmatpush1.xpose.msra.mxu0 0.0
        %6931 = vmatprep.subr.mxu0 0.0
        %6932 = vmatpush1.xpose.msra.mxu0 0.0
        %6933 = vmatprep.subr.mxu0 0.0
        %6934 = vmatpush1.xpose.msra.mxu0 0.0
        %6935 = vmatprep.subr.mxu0 0.0
        %6936 = vmatpush1.xpose.msra.mxu0 0.0
        %6937 = vmatprep.subr.mxu0 0.0
        %6938 = vmatpush1.xpose.msra.mxu0 0.0
        %6939 = vmatprep.subr.mxu0 0.0
        %6940 = vmatpush1.xpose.msra.mxu0 0.0
        %6941 = vmatprep.subr.mxu0 0.0
        %6942 = vmatpush1.xpose.msra.mxu0 0.0
        %6943 = vmatprep.subr.mxu0 0.0
        %6944 = vmatpush1.xpose.msra.mxu0 0.0
        %6945 = vmatprep.subr.mxu0 0.0
        %6946 = vmatpush1.xpose.msra.mxu0 0.0
        %6947 = vmatprep.subr.mxu0 0.0
        %6948 = vmatpush1.xpose.msra.mxu0 0.0
        %6949 = vmatprep.subr.mxu0 0.0
        %6950 = vmatpush1.xpose.msra.mxu0 0.0
        %6951 = vmatprep.subr.mxu0 0.0
        %6952 = vmatpush1.xpose.msra.mxu0 0.0
        %6953 = vmatprep.subr.mxu0 0.0
        %6954 = vmatpush1.xpose.msra.mxu0 0.0
        %6955 = vmatprep.subr.mxu0 0.0
        %6956 = vmatpush1.xpose.msra.mxu0 0.0
        %6957 = vmatprep.subr.mxu0 0.0
        %6958 = vmatpush1.xpose.msra.mxu0 0.0
        %6959 = vmatprep.subr.mxu0 0.0
        %6960 = vmatpush1.xpose.msra.mxu0 0.0
        %6961 = vmatprep.subr.mxu0 0.0
        %6962 = vmatpush1.xpose.msra.mxu0 0.0
        %6963 = vmatprep.subr.mxu0 0.0
        %6964 = vmatpush1.xpose.msra.mxu0 0.0
        %6965 = vmatprep.subr.mxu0 0.0
        %6966 = vmatpush1.xpose.msra.mxu0 0.0
        %6967 = vmatprep.subr.mxu0 0.0
        %6968 = vmatpush1.xpose.msra.mxu0 0.0
        %6969 = vmatprep.subr.mxu0 0.0
        %6970 = vmatpush1.xpose.msra.mxu0 0.0
        %6971 = vmatprep.subr.mxu0 0.0
        %6972 = vmatpush1.xpose.msra.mxu0 0.0
        %6973 = vmatprep.subr.mxu0 0.0
        %6974 = vmatpush1.xpose.msra.mxu0 0.0
        %6975 = vmatprep.subr.mxu0 0.0
        %6976 = vmatpush1.xpose.msra.mxu0 0.0
        %6977 = vmatprep.mubr.f32.mxu0 %v6888
        %6978 = vmatmul.mubr.f32.gmra.mrb[0].mxu0 %v6884
        %v6979 = vpop.f32.mrb[0].mxu0
        %v6980 = vadd.f32 0.0, %v6979
        %v6981 = vpop.f32.mrb[0].mxu0
        %6982 = vdwg.mxu0
        %6983 = vmatprep.subr.mxu0 %v4635
        %6984 = vmatpush1.xpose.msra.mxu0 %v4634
        %6985 = vmatprep.subr.mxu0 %v4640
        %6986 = vmatpush1.xpose.msra.mxu0 %v4639
        %6987 = vmatprep.subr.mxu0 0.0
        %6988 = vmatpush1.xpose.msra.mxu0 0.0
        %6989 = vmatprep.subr.mxu0 0.0
        %6990 = vmatpush1.xpose.msra.mxu0 0.0
        %6991 = vmatprep.subr.mxu0 0.0
        %6992 = vmatpush1.xpose.msra.mxu0 0.0
        %6993 = vmatprep.subr.mxu0 0.0
        %6994 = vmatpush1.xpose.msra.mxu0 0.0
        %6995 = vmatprep.subr.mxu0 0.0
        %6996 = vmatpush1.xpose.msra.mxu0 0.0
        %6997 = vmatprep.subr.mxu0 0.0
        %6998 = vmatpush1.xpose.msra.mxu0 0.0
        %6999 = vmatprep.subr.mxu0 0.0
        %7000 = vmatpush1.xpose.msra.mxu0 0.0
        %7001 = vmatprep.subr.mxu0 0.0
        %7002 = vmatpush1.xpose.msra.mxu0 0.0
        %7003 = vmatprep.subr.mxu0 0.0
        %7004 = vmatpush1.xpose.msra.mxu0 0.0
        %7005 = vmatprep.subr.mxu0 0.0
        %7006 = vmatpush1.xpose.msra.mxu0 0.0
        %7007 = vmatprep.subr.mxu0 0.0
        %7008 = vmatpush1.xpose.msra.mxu0 0.0
        %7009 = vmatprep.subr.mxu0 0.0
        %7010 = vmatpush1.xpose.msra.mxu0 0.0
        %7011 = vmatprep.subr.mxu0 0.0
        %7012 = vmatpush1.xpose.msra.mxu0 0.0
        %7013 = vmatprep.subr.mxu0 0.0
        %7014 = vmatpush1.xpose.msra.mxu0 0.0
        %7015 = vmatprep.subr.mxu0 0.0
        %7016 = vmatpush1.xpose.msra.mxu0 0.0
        %7017 = vmatprep.subr.mxu0 0.0
        %7018 = vmatpush1.xpose.msra.mxu0 0.0
        %7019 = vmatprep.subr.mxu0 0.0
        %7020 = vmatpush1.xpose.msra.mxu0 0.0
        %7021 = vmatprep.subr.mxu0 0.0
        %7022 = vmatpush1.xpose.msra.mxu0 0.0
        %7023 = vmatprep.subr.mxu0 0.0
        %7024 = vmatpush1.xpose.msra.mxu0 0.0
        %7025 = vmatprep.subr.mxu0 0.0
        %7026 = vmatpush1.xpose.msra.mxu0 0.0
        %7027 = vmatprep.subr.mxu0 0.0
        %7028 = vmatpush1.xpose.msra.mxu0 0.0
        %7029 = vmatprep.subr.mxu0 0.0
        %7030 = vmatpush1.xpose.msra.mxu0 0.0
        %7031 = vmatprep.subr.mxu0 0.0
        %7032 = vmatpush1.xpose.msra.mxu0 0.0
        %7033 = vmatprep.subr.mxu0 0.0
        %7034 = vmatpush1.xpose.msra.mxu0 0.0
        %7035 = vmatprep.subr.mxu0 0.0
        %7036 = vmatpush1.xpose.msra.mxu0 0.0
        %7037 = vmatprep.subr.mxu0 0.0
        %7038 = vmatpush1.xpose.msra.mxu0 0.0
        %7039 = vmatprep.subr.mxu0 0.0
        %7040 = vmatpush1.xpose.msra.mxu0 0.0
        %7041 = vmatprep.subr.mxu0 0.0
        %7042 = vmatpush1.xpose.msra.mxu0 0.0
        %7043 = vmatprep.subr.mxu0 0.0
        %7044 = vmatpush1.xpose.msra.mxu0 0.0
        %7045 = vmatprep.subr.mxu0 0.0
        %7046 = vmatpush1.xpose.msra.mxu0 0.0
        %7047 = vmatprep.mubr.f32.mxu0 %v6896
        %7048 = vmatmul.mubr.f32.gmra.mrb[0].mxu0 %v6892
        %v7049 = vpop.f32.mrb[0].mxu0
        %v7050 = vadd.f32 %v6980, %v7049
        %v7051 = vpop.f32.mrb[0].mxu0
        %7052 = vdwg.mxu0
        %7053 = vmatprep.subr.mxu0 0.0
        %7054 = vmatpush1.xpose.msra.mxu0 %v6908
        %7055 = vmatprep.subr.mxu0 0.0
        %7056 = vmatpush1.xpose.msra.mxu0 %v6911
        %7057 = vmatprep.subr.mxu0 0.0
        %7058 = vmatpush1.xpose.msra.mxu0 0.0
        %7059 = vmatprep.subr.mxu0 0.0
        %7060 = vmatpush1.xpose.msra.mxu0 0.0
        %7061 = vmatprep.subr.mxu0 0.0
        %7062 = vmatpush1.xpose.msra.mxu0 0.0
        %7063 = vmatprep.subr.mxu0 0.0
        %7064 = vmatpush1.xpose.msra.mxu0 0.0
        %7065 = vmatprep.subr.mxu0 0.0
        %7066 = vmatpush1.xpose.msra.mxu0 0.0
        %7067 = vmatprep.subr.mxu0 0.0
        %7068 = vmatpush1.xpose.msra.mxu0 0.0
        %7069 = vmatprep.subr.mxu0 0.0
        %7070 = vmatpush1.xpose.msra.mxu0 0.0
        %7071 = vmatprep.subr.mxu0 0.0
        %7072 = vmatpush1.xpose.msra.mxu0 0.0
        %7073 = vmatprep.subr.mxu0 0.0
        %7074 = vmatpush1.xpose.msra.mxu0 0.0
        %7075 = vmatprep.subr.mxu0 0.0
        %7076 = vmatpush1.xpose.msra.mxu0 0.0
        %7077 = vmatprep.subr.mxu0 0.0
        %7078 = vmatpush1.xpose.msra.mxu0 0.0
        %7079 = vmatprep.subr.mxu0 0.0
        %7080 = vmatpush1.xpose.msra.mxu0 0.0
        %7081 = vmatprep.subr.mxu0 0.0
        %7082 = vmatpush1.xpose.msra.mxu0 0.0
        %7083 = vmatprep.subr.mxu0 0.0
        %7084 = vmatpush1.xpose.msra.mxu0 0.0
        %7085 = vmatprep.subr.mxu0 0.0
        %7086 = vmatpush1.xpose.msra.mxu0 0.0
        %7087 = vmatprep.subr.mxu0 0.0
        %7088 = vmatpush1.xpose.msra.mxu0 0.0
        %7089 = vmatprep.subr.mxu0 0.0
        %7090 = vmatpush1.xpose.msra.mxu0 0.0
        %7091 = vmatprep.subr.mxu0 0.0
        %7092 = vmatpush1.xpose.msra.mxu0 0.0
        %7093 = vmatprep.subr.mxu0 0.0
        %7094 = vmatpush1.xpose.msra.mxu0 0.0
        %7095 = vmatprep.subr.mxu0 0.0
        %7096 = vmatpush1.xpose.msra.mxu0 0.0
        %7097 = vmatprep.subr.mxu0 0.0
        %7098 = vmatpush1.xpose.msra.mxu0 0.0
        %7099 = vmatprep.subr.mxu0 0.0
        %7100 = vmatpush1.xpose.msra.mxu0 0.0
        %7101 = vmatprep.subr.mxu0 0.0
        %7102 = vmatpush1.xpose.msra.mxu0 0.0
        %7103 = vmatprep.subr.mxu0 0.0
        %7104 = vmatpush1.xpose.msra.mxu0 0.0
        %7105 = vmatprep.subr.mxu0 0.0
        %7106 = vmatpush1.xpose.msra.mxu0 0.0
        %7107 = vmatprep.subr.mxu0 0.0
        %7108 = vmatpush1.xpose.msra.mxu0 0.0
        %7109 = vmatprep.subr.mxu0 0.0
        %7110 = vmatpush1.xpose.msra.mxu0 0.0
        %7111 = vmatprep.subr.mxu0 0.0
        %7112 = vmatpush1.xpose.msra.mxu0 0.0
        %7113 = vmatprep.subr.mxu0 0.0
        %7114 = vmatpush1.xpose.msra.mxu0 0.0
        %7115 = vmatprep.subr.mxu0 0.0
        %7116 = vmatpush1.xpose.msra.mxu0 0.0
        %7117 = vmatprep.mubr.f32.mxu0 0.0
        %7118 = vmatmul.mubr.f32.gmra.mrb[0].mxu0 %v6905
        %v7119 = vpop.f32.mrb[0].mxu0
        %v7120 = vadd.f32 %v7050, %v7119
        %v7121 = vpop.f32.mrb[0].mxu0
        %7122 = vdwg.mxu0
        %v7123 = vlaneseq
        %v7124 = vshrl.u32 %v7123, 7
        %v7125 = vsub.s32 0, %v7124
        %v7126 = vrot.slane %v4535, %v7125
        %v7127 = vlaneseq
        %v7128 = vshrl.u32 %v7127, 7
        %v7129 = vsub.s32 1, %v7128
        %v7130 = vrot.slane %v4535, %v7129
        %v7131 = vlaneseq
        %v7132 = vshrl.u32 %v7131, 7
        %v7133 = vsub.s32 2, %v7132
        %v7134 = vrot.slane %v4535, %v7133
        %v7135 = vlaneseq
        %v7136 = vshrl.u32 %v7135, 7
        %v7137 = vsub.s32 3, %v7136
        %v7138 = vrot.slane %v4535, %v7137
        %v7139 = vlaneseq
        %v7140 = vshrl.u32 %v7139, 7
        %v7141 = vsub.s32 4, %v7140
        %v7142 = vrot.slane %v4535, %v7141
        %v7147 = vsel %vm4726, %v7142, 0
        %v7150 = vsel %vm4726, %v4646, 0
        %v7153 = vsel %vm4726, %v4651, 0
        %7155 = vmatprep.subr.mxu0 %v4643
        %7156 = vmatpush1.xpose.msra.mxu0 %v4642
        %7157 = vmatprep.subr.mxu0 %v4648
        %7158 = vmatpush1.xpose.msra.mxu0 %v4647
        %7159 = vmatprep.subr.mxu0 0.0
        %7160 = vmatpush1.xpose.msra.mxu0 0.0
        %7161 = vmatprep.subr.mxu0 0.0
        %7162 = vmatpush1.xpose.msra.mxu0 0.0
        %7163 = vmatprep.subr.mxu0 0.0
        %7164 = vmatpush1.xpose.msra.mxu0 0.0
        %7165 = vmatprep.subr.mxu0 0.0
        %7166 = vmatpush1.xpose.msra.mxu0 0.0
        %7167 = vmatprep.subr.mxu0 0.0
        %7168 = vmatpush1.xpose.msra.mxu0 0.0
        %7169 = vmatprep.subr.mxu0 0.0
        %7170 = vmatpush1.xpose.msra.mxu0 0.0
        %7171 = vmatprep.subr.mxu0 0.0
        %7172 = vmatpush1.xpose.msra.mxu0 0.0
        %7173 = vmatprep.subr.mxu0 0.0
        %7174 = vmatpush1.xpose.msra.mxu0 0.0
        %7175 = vmatprep.subr.mxu0 0.0
        %7176 = vmatpush1.xpose.msra.mxu0 0.0
        %7177 = vmatprep.subr.mxu0 0.0
        %7178 = vmatpush1.xpose.msra.mxu0 0.0
        %7179 = vmatprep.subr.mxu0 0.0
        %7180 = vmatpush1.xpose.msra.mxu0 0.0
        %7181 = vmatprep.subr.mxu0 0.0
        %7182 = vmatpush1.xpose.msra.mxu0 0.0
        %7183 = vmatprep.subr.mxu0 0.0
        %7184 = vmatpush1.xpose.msra.mxu0 0.0
        %7185 = vmatprep.subr.mxu0 0.0
        %7186 = vmatpush1.xpose.msra.mxu0 0.0
        %7187 = vmatprep.subr.mxu0 0.0
        %7188 = vmatpush1.xpose.msra.mxu0 0.0
        %7189 = vmatprep.subr.mxu0 0.0
        %7190 = vmatpush1.xpose.msra.mxu0 0.0
        %7191 = vmatprep.subr.mxu0 0.0
        %7192 = vmatpush1.xpose.msra.mxu0 0.0
        %7193 = vmatprep.subr.mxu0 0.0
        %7194 = vmatpush1.xpose.msra.mxu0 0.0
        %7195 = vmatprep.subr.mxu0 0.0
        %7196 = vmatpush1.xpose.msra.mxu0 0.0
        %7197 = vmatprep.subr.mxu0 0.0
        %7198 = vmatpush1.xpose.msra.mxu0 0.0
        %7199 = vmatprep.subr.mxu0 0.0
        %7200 = vmatpush1.xpose.msra.mxu0 0.0
        %7201 = vmatprep.subr.mxu0 0.0
        %7202 = vmatpush1.xpose.msra.mxu0 0.0
        %7203 = vmatprep.subr.mxu0 0.0
        %7204 = vmatpush1.xpose.msra.mxu0 0.0
        %7205 = vmatprep.subr.mxu0 0.0
        %7206 = vmatpush1.xpose.msra.mxu0 0.0
        %7207 = vmatprep.subr.mxu0 0.0
        %7208 = vmatpush1.xpose.msra.mxu0 0.0
        %7209 = vmatprep.subr.mxu0 0.0
        %7210 = vmatpush1.xpose.msra.mxu0 0.0
        %7211 = vmatprep.subr.mxu0 0.0
        %7212 = vmatpush1.xpose.msra.mxu0 0.0
        %7213 = vmatprep.subr.mxu0 0.0
        %7214 = vmatpush1.xpose.msra.mxu0 0.0
        %7215 = vmatprep.subr.mxu0 0.0
        %7216 = vmatpush1.xpose.msra.mxu0 0.0
        %7217 = vmatprep.subr.mxu0 0.0
        %7218 = vmatpush1.xpose.msra.mxu0 0.0
        %7219 = vmatprep.mubr.f32.mxu0 %v7130
        %7220 = vmatmul.mubr.f32.gmra.mrb[0].mxu0 %v7126
        %v7221 = vpop.f32.mrb[0].mxu0
        %v7222 = vadd.f32 0.0, %v7221
        %v7223 = vpop.f32.mrb[0].mxu0
        %7224 = vdwg.mxu0
        %7225 = vmatprep.subr.mxu0 %v4645
        %7226 = vmatpush1.xpose.msra.mxu0 %v4644
        %7227 = vmatprep.subr.mxu0 %v4650
        %7228 = vmatpush1.xpose.msra.mxu0 %v4649
        %7229 = vmatprep.subr.mxu0 0.0
        %7230 = vmatpush1.xpose.msra.mxu0 0.0
        %7231 = vmatprep.subr.mxu0 0.0
        %7232 = vmatpush1.xpose.msra.mxu0 0.0
        %7233 = vmatprep.subr.mxu0 0.0
        %7234 = vmatpush1.xpose.msra.mxu0 0.0
        %7235 = vmatprep.subr.mxu0 0.0
        %7236 = vmatpush1.xpose.msra.mxu0 0.0
        %7237 = vmatprep.subr.mxu0 0.0
        %7238 = vmatpush1.xpose.msra.mxu0 0.0
        %7239 = vmatprep.subr.mxu0 0.0
        %7240 = vmatpush1.xpose.msra.mxu0 0.0
        %7241 = vmatprep.subr.mxu0 0.0
        %7242 = vmatpush1.xpose.msra.mxu0 0.0
        %7243 = vmatprep.subr.mxu0 0.0
        %7244 = vmatpush1.xpose.msra.mxu0 0.0
        %7245 = vmatprep.subr.mxu0 0.0
        %7246 = vmatpush1.xpose.msra.mxu0 0.0
        %7247 = vmatprep.subr.mxu0 0.0
        %7248 = vmatpush1.xpose.msra.mxu0 0.0
        %7249 = vmatprep.subr.mxu0 0.0
        %7250 = vmatpush1.xpose.msra.mxu0 0.0
        %7251 = vmatprep.subr.mxu0 0.0
        %7252 = vmatpush1.xpose.msra.mxu0 0.0
        %7253 = vmatprep.subr.mxu0 0.0
        %7254 = vmatpush1.xpose.msra.mxu0 0.0
        %7255 = vmatprep.subr.mxu0 0.0
        %7256 = vmatpush1.xpose.msra.mxu0 0.0
        %7257 = vmatprep.subr.mxu0 0.0
        %7258 = vmatpush1.xpose.msra.mxu0 0.0
        %7259 = vmatprep.subr.mxu0 0.0
        %7260 = vmatpush1.xpose.msra.mxu0 0.0
        %7261 = vmatprep.subr.mxu0 0.0
        %7262 = vmatpush1.xpose.msra.mxu0 0.0
        %7263 = vmatprep.subr.mxu0 0.0
        %7264 = vmatpush1.xpose.msra.mxu0 0.0
        %7265 = vmatprep.subr.mxu0 0.0
        %7266 = vmatpush1.xpose.msra.mxu0 0.0
        %7267 = vmatprep.subr.mxu0 0.0
        %7268 = vmatpush1.xpose.msra.mxu0 0.0
        %7269 = vmatprep.subr.mxu0 0.0
        %7270 = vmatpush1.xpose.msra.mxu0 0.0
        %7271 = vmatprep.subr.mxu0 0.0
        %7272 = vmatpush1.xpose.msra.mxu0 0.0
        %7273 = vmatprep.subr.mxu0 0.0
        %7274 = vmatpush1.xpose.msra.mxu0 0.0
        %7275 = vmatprep.subr.mxu0 0.0
        %7276 = vmatpush1.xpose.msra.mxu0 0.0
        %7277 = vmatprep.subr.mxu0 0.0
        %7278 = vmatpush1.xpose.msra.mxu0 0.0
        %7279 = vmatprep.subr.mxu0 0.0
        %7280 = vmatpush1.xpose.msra.mxu0 0.0
        %7281 = vmatprep.subr.mxu0 0.0
        %7282 = vmatpush1.xpose.msra.mxu0 0.0
        %7283 = vmatprep.subr.mxu0 0.0
        %7284 = vmatpush1.xpose.msra.mxu0 0.0
        %7285 = vmatprep.subr.mxu0 0.0
        %7286 = vmatpush1.xpose.msra.mxu0 0.0
        %7287 = vmatprep.subr.mxu0 0.0
        %7288 = vmatpush1.xpose.msra.mxu0 0.0
        %7289 = vmatprep.mubr.f32.mxu0 %v7138
        %7290 = vmatmul.mubr.f32.gmra.mrb[0].mxu0 %v7134
        %v7291 = vpop.f32.mrb[0].mxu0
        %v7292 = vadd.f32 %v7222, %v7291
        %v7293 = vpop.f32.mrb[0].mxu0
        %7294 = vdwg.mxu0
        %7295 = vmatprep.subr.mxu0 0.0
        %7296 = vmatpush1.xpose.msra.mxu0 %v7150
        %7297 = vmatprep.subr.mxu0 0.0
        %7298 = vmatpush1.xpose.msra.mxu0 %v7153
        %7299 = vmatprep.subr.mxu0 0.0
        %7300 = vmatpush1.xpose.msra.mxu0 0.0
        %7301 = vmatprep.subr.mxu0 0.0
        %7302 = vmatpush1.xpose.msra.mxu0 0.0
        %7303 = vmatprep.subr.mxu0 0.0
        %7304 = vmatpush1.xpose.msra.mxu0 0.0
        %7305 = vmatprep.subr.mxu0 0.0
        %7306 = vmatpush1.xpose.msra.mxu0 0.0
        %7307 = vmatprep.subr.mxu0 0.0
        %7308 = vmatpush1.xpose.msra.mxu0 0.0
        %7309 = vmatprep.subr.mxu0 0.0
        %7310 = vmatpush1.xpose.msra.mxu0 0.0
        %7311 = vmatprep.subr.mxu0 0.0
        %7312 = vmatpush1.xpose.msra.mxu0 0.0
        %7313 = vmatprep.subr.mxu0 0.0
        %7314 = vmatpush1.xpose.msra.mxu0 0.0
        %7315 = vmatprep.subr.mxu0 0.0
        %7316 = vmatpush1.xpose.msra.mxu0 0.0
        %7317 = vmatprep.subr.mxu0 0.0
        %7318 = vmatpush1.xpose.msra.mxu0 0.0
        %7319 = vmatprep.subr.mxu0 0.0
        %7320 = vmatpush1.xpose.msra.mxu0 0.0
        %7321 = vmatprep.subr.mxu0 0.0
        %7322 = vmatpush1.xpose.msra.mxu0 0.0
        %7323 = vmatprep.subr.mxu0 0.0
        %7324 = vmatpush1.xpose.msra.mxu0 0.0
        %7325 = vmatprep.subr.mxu0 0.0
        %7326 = vmatpush1.xpose.msra.mxu0 0.0
        %7327 = vmatprep.subr.mxu0 0.0
        %7328 = vmatpush1.xpose.msra.mxu0 0.0
        %7329 = vmatprep.subr.mxu0 0.0
        %7330 = vmatpush1.xpose.msra.mxu0 0.0
        %7331 = vmatprep.subr.mxu0 0.0
        %7332 = vmatpush1.xpose.msra.mxu0 0.0
        %7333 = vmatprep.subr.mxu0 0.0
        %7334 = vmatpush1.xpose.msra.mxu0 0.0
        %7335 = vmatprep.subr.mxu0 0.0
        %7336 = vmatpush1.xpose.msra.mxu0 0.0
        %7337 = vmatprep.subr.mxu0 0.0
        %7338 = vmatpush1.xpose.msra.mxu0 0.0
        %7339 = vmatprep.subr.mxu0 0.0
        %7340 = vmatpush1.xpose.msra.mxu0 0.0
        %7341 = vmatprep.subr.mxu0 0.0
        %7342 = vmatpush1.xpose.msra.mxu0 0.0
        %7343 = vmatprep.subr.mxu0 0.0
        %7344 = vmatpush1.xpose.msra.mxu0 0.0
        %7345 = vmatprep.subr.mxu0 0.0
        %7346 = vmatpush1.xpose.msra.mxu0 0.0
        %7347 = vmatprep.subr.mxu0 0.0
        %7348 = vmatpush1.xpose.msra.mxu0 0.0
        %7349 = vmatprep.subr.mxu0 0.0
        %7350 = vmatpush1.xpose.msra.mxu0 0.0
        %7351 = vmatprep.subr.mxu0 0.0
        %7352 = vmatpush1.xpose.msra.mxu0 0.0
        %7353 = vmatprep.subr.mxu0 0.0
        %7354 = vmatpush1.xpose.msra.mxu0 0.0
        %7355 = vmatprep.subr.mxu0 0.0
        %7356 = vmatpush1.xpose.msra.mxu0 0.0
        %7357 = vmatprep.subr.mxu0 0.0
        %7358 = vmatpush1.xpose.msra.mxu0 0.0
        %7359 = vmatprep.mubr.f32.mxu0 0.0
        %7360 = vmatmul.mubr.f32.gmra.mrb[0].mxu0 %v7147
        %v7361 = vpop.f32.mrb[0].mxu0
        %v7362 = vadd.f32 %v7292, %v7361
        %v7363 = vpop.f32.mrb[0].mxu0
        %7364 = vdwg.mxu0
        %v7365 = vlaneseq
        %v7366 = vshrl.u32 %v7365, 7
        %v7367 = vsub.s32 0, %v7366
        %v7368 = vrot.slane %v4539, %v7367
        %v7369 = vlaneseq
        %v7370 = vshrl.u32 %v7369, 7
        %v7371 = vsub.s32 1, %v7370
        %v7372 = vrot.slane %v4539, %v7371
        %v7373 = vlaneseq
        %v7374 = vshrl.u32 %v7373, 7
        %v7375 = vsub.s32 2, %v7374
        %v7376 = vrot.slane %v4539, %v7375
        %v7377 = vlaneseq
        %v7378 = vshrl.u32 %v7377, 7
        %v7379 = vsub.s32 3, %v7378
        %v7380 = vrot.slane %v4539, %v7379
        %v7381 = vlaneseq
        %v7382 = vshrl.u32 %v7381, 7
        %v7383 = vsub.s32 4, %v7382
        %v7384 = vrot.slane %v4539, %v7383
        %v7389 = vsel %vm4726, %v7384, 0
        %v7392 = vsel %vm4726, %v4656, 0
        %v7395 = vsel %vm4726, %v4661, 0
        %7397 = vmatprep.subr.mxu0 %v4653
        %7398 = vmatpush1.xpose.msra.mxu0 %v4652
        %7399 = vmatprep.subr.mxu0 %v4658
        %7400 = vmatpush1.xpose.msra.mxu0 %v4657
        %7401 = vmatprep.subr.mxu0 0.0
        %7402 = vmatpush1.xpose.msra.mxu0 0.0
        %7403 = vmatprep.subr.mxu0 0.0
        %7404 = vmatpush1.xpose.msra.mxu0 0.0
        %7405 = vmatprep.subr.mxu0 0.0
        %7406 = vmatpush1.xpose.msra.mxu0 0.0
        %7407 = vmatprep.subr.mxu0 0.0
        %7408 = vmatpush1.xpose.msra.mxu0 0.0
        %7409 = vmatprep.subr.mxu0 0.0
        %7410 = vmatpush1.xpose.msra.mxu0 0.0
        %7411 = vmatprep.subr.mxu0 0.0
        %7412 = vmatpush1.xpose.msra.mxu0 0.0
        %7413 = vmatprep.subr.mxu0 0.0
        %7414 = vmatpush1.xpose.msra.mxu0 0.0
        %7415 = vmatprep.subr.mxu0 0.0
        %7416 = vmatpush1.xpose.msra.mxu0 0.0
        %7417 = vmatprep.subr.mxu0 0.0
        %7418 = vmatpush1.xpose.msra.mxu0 0.0
        %7419 = vmatprep.subr.mxu0 0.0
        %7420 = vmatpush1.xpose.msra.mxu0 0.0
        %7421 = vmatprep.subr.mxu0 0.0
        %7422 = vmatpush1.xpose.msra.mxu0 0.0
        %7423 = vmatprep.subr.mxu0 0.0
        %7424 = vmatpush1.xpose.msra.mxu0 0.0
        %7425 = vmatprep.subr.mxu0 0.0
        %7426 = vmatpush1.xpose.msra.mxu0 0.0
        %7427 = vmatprep.subr.mxu0 0.0
        %7428 = vmatpush1.xpose.msra.mxu0 0.0
        %7429 = vmatprep.subr.mxu0 0.0
        %7430 = vmatpush1.xpose.msra.mxu0 0.0
        %7431 = vmatprep.subr.mxu0 0.0
        %7432 = vmatpush1.xpose.msra.mxu0 0.0
        %7433 = vmatprep.subr.mxu0 0.0
        %7434 = vmatpush1.xpose.msra.mxu0 0.0
        %7435 = vmatprep.subr.mxu0 0.0
        %7436 = vmatpush1.xpose.msra.mxu0 0.0
        %7437 = vmatprep.subr.mxu0 0.0
        %7438 = vmatpush1.xpose.msra.mxu0 0.0
        %7439 = vmatprep.subr.mxu0 0.0
        %7440 = vmatpush1.xpose.msra.mxu0 0.0
        %7441 = vmatprep.subr.mxu0 0.0
        %7442 = vmatpush1.xpose.msra.mxu0 0.0
        %7443 = vmatprep.subr.mxu0 0.0
        %7444 = vmatpush1.xpose.msra.mxu0 0.0
        %7445 = vmatprep.subr.mxu0 0.0
        %7446 = vmatpush1.xpose.msra.mxu0 0.0
        %7447 = vmatprep.subr.mxu0 0.0
        %7448 = vmatpush1.xpose.msra.mxu0 0.0
        %7449 = vmatprep.subr.mxu0 0.0
        %7450 = vmatpush1.xpose.msra.mxu0 0.0
        %7451 = vmatprep.subr.mxu0 0.0
        %7452 = vmatpush1.xpose.msra.mxu0 0.0
        %7453 = vmatprep.subr.mxu0 0.0
        %7454 = vmatpush1.xpose.msra.mxu0 0.0
        %7455 = vmatprep.subr.mxu0 0.0
        %7456 = vmatpush1.xpose.msra.mxu0 0.0
        %7457 = vmatprep.subr.mxu0 0.0
        %7458 = vmatpush1.xpose.msra.mxu0 0.0
        %7459 = vmatprep.subr.mxu0 0.0
        %7460 = vmatpush1.xpose.msra.mxu0 0.0
        %7461 = vmatprep.mubr.f32.mxu0 %v7372
        %7462 = vmatmul.mubr.f32.gmra.mrb[0].mxu0 %v7368
        %v7463 = vpop.f32.mrb[0].mxu0
        %v7464 = vadd.f32 0.0, %v7463
        %v7465 = vpop.f32.mrb[0].mxu0
        %7466 = vdwg.mxu0
        %7467 = vmatprep.subr.mxu0 %v4655
        %7468 = vmatpush1.xpose.msra.mxu0 %v4654
        %7469 = vmatprep.subr.mxu0 %v4660
        %7470 = vmatpush1.xpose.msra.mxu0 %v4659
        %7471 = vmatprep.subr.mxu0 0.0
        %7472 = vmatpush1.xpose.msra.mxu0 0.0
        %7473 = vmatprep.subr.mxu0 0.0
        %7474 = vmatpush1.xpose.msra.mxu0 0.0
        %7475 = vmatprep.subr.mxu0 0.0
        %7476 = vmatpush1.xpose.msra.mxu0 0.0
        %7477 = vmatprep.subr.mxu0 0.0
        %7478 = vmatpush1.xpose.msra.mxu0 0.0
        %7479 = vmatprep.subr.mxu0 0.0
        %7480 = vmatpush1.xpose.msra.mxu0 0.0
        %7481 = vmatprep.subr.mxu0 0.0
        %7482 = vmatpush1.xpose.msra.mxu0 0.0
        %7483 = vmatprep.subr.mxu0 0.0
        %7484 = vmatpush1.xpose.msra.mxu0 0.0
        %7485 = vmatprep.subr.mxu0 0.0
        %7486 = vmatpush1.xpose.msra.mxu0 0.0
        %7487 = vmatprep.subr.mxu0 0.0
        %7488 = vmatpush1.xpose.msra.mxu0 0.0
        %7489 = vmatprep.subr.mxu0 0.0
        %7490 = vmatpush1.xpose.msra.mxu0 0.0
        %7491 = vmatprep.subr.mxu0 0.0
        %7492 = vmatpush1.xpose.msra.mxu0 0.0
        %7493 = vmatprep.subr.mxu0 0.0
        %7494 = vmatpush1.xpose.msra.mxu0 0.0
        %7495 = vmatprep.subr.mxu0 0.0
        %7496 = vmatpush1.xpose.msra.mxu0 0.0
        %7497 = vmatprep.subr.mxu0 0.0
        %7498 = vmatpush1.xpose.msra.mxu0 0.0
        %7499 = vmatprep.subr.mxu0 0.0
        %7500 = vmatpush1.xpose.msra.mxu0 0.0
        %7501 = vmatprep.subr.mxu0 0.0
        %7502 = vmatpush1.xpose.msra.mxu0 0.0
        %7503 = vmatprep.subr.mxu0 0.0
        %7504 = vmatpush1.xpose.msra.mxu0 0.0
        %7505 = vmatprep.subr.mxu0 0.0
        %7506 = vmatpush1.xpose.msra.mxu0 0.0
        %7507 = vmatprep.subr.mxu0 0.0
        %7508 = vmatpush1.xpose.msra.mxu0 0.0
        %7509 = vmatprep.subr.mxu0 0.0
        %7510 = vmatpush1.xpose.msra.mxu0 0.0
        %7511 = vmatprep.subr.mxu0 0.0
        %7512 = vmatpush1.xpose.msra.mxu0 0.0
        %7513 = vmatprep.subr.mxu0 0.0
        %7514 = vmatpush1.xpose.msra.mxu0 0.0
        %7515 = vmatprep.subr.mxu0 0.0
        %7516 = vmatpush1.xpose.msra.mxu0 0.0
        %7517 = vmatprep.subr.mxu0 0.0
        %7518 = vmatpush1.xpose.msra.mxu0 0.0
        %7519 = vmatprep.subr.mxu0 0.0
        %7520 = vmatpush1.xpose.msra.mxu0 0.0
        %7521 = vmatprep.subr.mxu0 0.0
        %7522 = vmatpush1.xpose.msra.mxu0 0.0
        %7523 = vmatprep.subr.mxu0 0.0
        %7524 = vmatpush1.xpose.msra.mxu0 0.0
        %7525 = vmatprep.subr.mxu0 0.0
        %7526 = vmatpush1.xpose.msra.mxu0 0.0
        %7527 = vmatprep.subr.mxu0 0.0
        %7528 = vmatpush1.xpose.msra.mxu0 0.0
        %7529 = vmatprep.subr.mxu0 0.0
        %7530 = vmatpush1.xpose.msra.mxu0 0.0
        %7531 = vmatprep.mubr.f32.mxu0 %v7380
        %7532 = vmatmul.mubr.f32.gmra.mrb[0].mxu0 %v7376
        %v7533 = vpop.f32.mrb[0].mxu0
        %v7534 = vadd.f32 %v7464, %v7533
        %v7535 = vpop.f32.mrb[0].mxu0
        %7536 = vdwg.mxu0
        %7537 = vmatprep.subr.mxu0 0.0
        %7538 = vmatpush1.xpose.msra.mxu0 %v7392
        %7539 = vmatprep.subr.mxu0 0.0
        %7540 = vmatpush1.xpose.msra.mxu0 %v7395
        %7541 = vmatprep.subr.mxu0 0.0
        %7542 = vmatpush1.xpose.msra.mxu0 0.0
        %7543 = vmatprep.subr.mxu0 0.0
        %7544 = vmatpush1.xpose.msra.mxu0 0.0
        %7545 = vmatprep.subr.mxu0 0.0
        %7546 = vmatpush1.xpose.msra.mxu0 0.0
        %7547 = vmatprep.subr.mxu0 0.0
        %7548 = vmatpush1.xpose.msra.mxu0 0.0
        %7549 = vmatprep.subr.mxu0 0.0
        %7550 = vmatpush1.xpose.msra.mxu0 0.0
        %7551 = vmatprep.subr.mxu0 0.0
        %7552 = vmatpush1.xpose.msra.mxu0 0.0
        %7553 = vmatprep.subr.mxu0 0.0
        %7554 = vmatpush1.xpose.msra.mxu0 0.0
        %7555 = vmatprep.subr.mxu0 0.0
        %7556 = vmatpush1.xpose.msra.mxu0 0.0
        %7557 = vmatprep.subr.mxu0 0.0
        %7558 = vmatpush1.xpose.msra.mxu0 0.0
        %7559 = vmatprep.subr.mxu0 0.0
        %7560 = vmatpush1.xpose.msra.mxu0 0.0
        %7561 = vmatprep.subr.mxu0 0.0
        %7562 = vmatpush1.xpose.msra.mxu0 0.0
        %7563 = vmatprep.subr.mxu0 0.0
        %7564 = vmatpush1.xpose.msra.mxu0 0.0
        %7565 = vmatprep.subr.mxu0 0.0
        %7566 = vmatpush1.xpose.msra.mxu0 0.0
        %7567 = vmatprep.subr.mxu0 0.0
        %7568 = vmatpush1.xpose.msra.mxu0 0.0
        %7569 = vmatprep.subr.mxu0 0.0
        %7570 = vmatpush1.xpose.msra.mxu0 0.0
        %7571 = vmatprep.subr.mxu0 0.0
        %7572 = vmatpush1.xpose.msra.mxu0 0.0
        %7573 = vmatprep.subr.mxu0 0.0
        %7574 = vmatpush1.xpose.msra.mxu0 0.0
        %7575 = vmatprep.subr.mxu0 0.0
        %7576 = vmatpush1.xpose.msra.mxu0 0.0
        %7577 = vmatprep.subr.mxu0 0.0
        %7578 = vmatpush1.xpose.msra.mxu0 0.0
        %7579 = vmatprep.subr.mxu0 0.0
        %7580 = vmatpush1.xpose.msra.mxu0 0.0
        %7581 = vmatprep.subr.mxu0 0.0
        %7582 = vmatpush1.xpose.msra.mxu0 0.0
        %7583 = vmatprep.subr.mxu0 0.0
        %7584 = vmatpush1.xpose.msra.mxu0 0.0
        %7585 = vmatprep.subr.mxu0 0.0
        %7586 = vmatpush1.xpose.msra.mxu0 0.0
        %7587 = vmatprep.subr.mxu0 0.0
        %7588 = vmatpush1.xpose.msra.mxu0 0.0
        %7589 = vmatprep.subr.mxu0 0.0
        %7590 = vmatpush1.xpose.msra.mxu0 0.0
        %7591 = vmatprep.subr.mxu0 0.0
        %7592 = vmatpush1.xpose.msra.mxu0 0.0
        %7593 = vmatprep.subr.mxu0 0.0
        %7594 = vmatpush1.xpose.msra.mxu0 0.0
        %7595 = vmatprep.subr.mxu0 0.0
        %7596 = vmatpush1.xpose.msra.mxu0 0.0
        %7597 = vmatprep.subr.mxu0 0.0
        %7598 = vmatpush1.xpose.msra.mxu0 0.0
        %7599 = vmatprep.subr.mxu0 0.0
        %7600 = vmatpush1.xpose.msra.mxu0 0.0
        %7601 = vmatprep.mubr.f32.mxu0 0.0
        %7602 = vmatmul.mubr.f32.gmra.mrb[0].mxu0 %v7389
        %v7603 = vpop.f32.mrb[0].mxu0
        %v7604 = vadd.f32 %v7534, %v7603
        %v7605 = vpop.f32.mrb[0].mxu0
        %7606 = vdwg.mxu0
        %v7607 = vlaneseq
        %v7608 = vshrl.u32 %v7607, 7
        %v7609 = vsub.s32 0, %v7608
        %v7610 = vrot.slane %v4536, %v7609
        %v7611 = vlaneseq
        %v7612 = vshrl.u32 %v7611, 7
        %v7613 = vsub.s32 1, %v7612
        %v7614 = vrot.slane %v4536, %v7613
        %v7615 = vlaneseq
        %v7616 = vshrl.u32 %v7615, 7
        %v7617 = vsub.s32 2, %v7616
        %v7618 = vrot.slane %v4536, %v7617
        %v7619 = vlaneseq
        %v7620 = vshrl.u32 %v7619, 7
        %v7621 = vsub.s32 3, %v7620
        %v7622 = vrot.slane %v4536, %v7621
        %v7623 = vlaneseq
        %v7624 = vshrl.u32 %v7623, 7
        %v7625 = vsub.s32 4, %v7624
        %v7626 = vrot.slane %v4536, %v7625
        %v7631 = vsel %vm4726, %v7626, 0
        %v7634 = vsel %vm4726, %v4666, 0
        %v7637 = vsel %vm4726, %v4671, 0
        %7639 = vmatprep.subr.mxu0 %v4663
        %7640 = vmatpush1.xpose.msra.mxu0 %v4662
        %7641 = vmatprep.subr.mxu0 %v4668
        %7642 = vmatpush1.xpose.msra.mxu0 %v4667
        %7643 = vmatprep.subr.mxu0 0.0
        %7644 = vmatpush1.xpose.msra.mxu0 0.0
        %7645 = vmatprep.subr.mxu0 0.0
        %7646 = vmatpush1.xpose.msra.mxu0 0.0
        %7647 = vmatprep.subr.mxu0 0.0
        %7648 = vmatpush1.xpose.msra.mxu0 0.0
        %7649 = vmatprep.subr.mxu0 0.0
        %7650 = vmatpush1.xpose.msra.mxu0 0.0
        %7651 = vmatprep.subr.mxu0 0.0
        %7652 = vmatpush1.xpose.msra.mxu0 0.0
        %7653 = vmatprep.subr.mxu0 0.0
        %7654 = vmatpush1.xpose.msra.mxu0 0.0
        %7655 = vmatprep.subr.mxu0 0.0
        %7656 = vmatpush1.xpose.msra.mxu0 0.0
        %7657 = vmatprep.subr.mxu0 0.0
        %7658 = vmatpush1.xpose.msra.mxu0 0.0
        %7659 = vmatprep.subr.mxu0 0.0
        %7660 = vmatpush1.xpose.msra.mxu0 0.0
        %7661 = vmatprep.subr.mxu0 0.0
        %7662 = vmatpush1.xpose.msra.mxu0 0.0
        %7663 = vmatprep.subr.mxu0 0.0
        %7664 = vmatpush1.xpose.msra.mxu0 0.0
        %7665 = vmatprep.subr.mxu0 0.0
        %7666 = vmatpush1.xpose.msra.mxu0 0.0
        %7667 = vmatprep.subr.mxu0 0.0
        %7668 = vmatpush1.xpose.msra.mxu0 0.0
        %7669 = vmatprep.subr.mxu0 0.0
        %7670 = vmatpush1.xpose.msra.mxu0 0.0
        %7671 = vmatprep.subr.mxu0 0.0
        %7672 = vmatpush1.xpose.msra.mxu0 0.0
        %7673 = vmatprep.subr.mxu0 0.0
        %7674 = vmatpush1.xpose.msra.mxu0 0.0
        %7675 = vmatprep.subr.mxu0 0.0
        %7676 = vmatpush1.xpose.msra.mxu0 0.0
        %7677 = vmatprep.subr.mxu0 0.0
        %7678 = vmatpush1.xpose.msra.mxu0 0.0
        %7679 = vmatprep.subr.mxu0 0.0
        %7680 = vmatpush1.xpose.msra.mxu0 0.0
        %7681 = vmatprep.subr.mxu0 0.0
        %7682 = vmatpush1.xpose.msra.mxu0 0.0
        %7683 = vmatprep.subr.mxu0 0.0
        %7684 = vmatpush1.xpose.msra.mxu0 0.0
        %7685 = vmatprep.subr.mxu0 0.0
        %7686 = vmatpush1.xpose.msra.mxu0 0.0
        %7687 = vmatprep.subr.mxu0 0.0
        %7688 = vmatpush1.xpose.msra.mxu0 0.0
        %7689 = vmatprep.subr.mxu0 0.0
        %7690 = vmatpush1.xpose.msra.mxu0 0.0
        %7691 = vmatprep.subr.mxu0 0.0
        %7692 = vmatpush1.xpose.msra.mxu0 0.0
        %7693 = vmatprep.subr.mxu0 0.0
        %7694 = vmatpush1.xpose.msra.mxu0 0.0
        %7695 = vmatprep.subr.mxu0 0.0
        %7696 = vmatpush1.xpose.msra.mxu0 0.0
        %7697 = vmatprep.subr.mxu0 0.0
        %7698 = vmatpush1.xpose.msra.mxu0 0.0
        %7699 = vmatprep.subr.mxu0 0.0
        %7700 = vmatpush1.xpose.msra.mxu0 0.0
        %7701 = vmatprep.subr.mxu0 0.0
        %7702 = vmatpush1.xpose.msra.mxu0 0.0
        %7703 = vmatprep.mubr.f32.mxu0 %v7614
        %7704 = vmatmul.mubr.f32.gmra.mrb[0].mxu0 %v7610
        %v7705 = vpop.f32.mrb[0].mxu0
        %v7706 = vadd.f32 0.0, %v7705
        %v7707 = vpop.f32.mrb[0].mxu0
        %7708 = vdwg.mxu0
        %7709 = vmatprep.subr.mxu0 %v4665
        %7710 = vmatpush1.xpose.msra.mxu0 %v4664
        %7711 = vmatprep.subr.mxu0 %v4670
        %7712 = vmatpush1.xpose.msra.mxu0 %v4669
        %7713 = vmatprep.subr.mxu0 0.0
        %7714 = vmatpush1.xpose.msra.mxu0 0.0
        %7715 = vmatprep.subr.mxu0 0.0
        %7716 = vmatpush1.xpose.msra.mxu0 0.0
        %7717 = vmatprep.subr.mxu0 0.0
        %7718 = vmatpush1.xpose.msra.mxu0 0.0
        %7719 = vmatprep.subr.mxu0 0.0
        %7720 = vmatpush1.xpose.msra.mxu0 0.0
        %7721 = vmatprep.subr.mxu0 0.0
        %7722 = vmatpush1.xpose.msra.mxu0 0.0
        %7723 = vmatprep.subr.mxu0 0.0
        %7724 = vmatpush1.xpose.msra.mxu0 0.0
        %7725 = vmatprep.subr.mxu0 0.0
        %7726 = vmatpush1.xpose.msra.mxu0 0.0
        %7727 = vmatprep.subr.mxu0 0.0
        %7728 = vmatpush1.xpose.msra.mxu0 0.0
        %7729 = vmatprep.subr.mxu0 0.0
        %7730 = vmatpush1.xpose.msra.mxu0 0.0
        %7731 = vmatprep.subr.mxu0 0.0
        %7732 = vmatpush1.xpose.msra.mxu0 0.0
        %7733 = vmatprep.subr.mxu0 0.0
        %7734 = vmatpush1.xpose.msra.mxu0 0.0
        %7735 = vmatprep.subr.mxu0 0.0
        %7736 = vmatpush1.xpose.msra.mxu0 0.0
        %7737 = vmatprep.subr.mxu0 0.0
        %7738 = vmatpush1.xpose.msra.mxu0 0.0
        %7739 = vmatprep.subr.mxu0 0.0
        %7740 = vmatpush1.xpose.msra.mxu0 0.0
        %7741 = vmatprep.subr.mxu0 0.0
        %7742 = vmatpush1.xpose.msra.mxu0 0.0
        %7743 = vmatprep.subr.mxu0 0.0
        %7744 = vmatpush1.xpose.msra.mxu0 0.0
        %7745 = vmatprep.subr.mxu0 0.0
        %7746 = vmatpush1.xpose.msra.mxu0 0.0
        %7747 = vmatprep.subr.mxu0 0.0
        %7748 = vmatpush1.xpose.msra.mxu0 0.0
        %7749 = vmatprep.subr.mxu0 0.0
        %7750 = vmatpush1.xpose.msra.mxu0 0.0
        %7751 = vmatprep.subr.mxu0 0.0
        %7752 = vmatpush1.xpose.msra.mxu0 0.0
        %7753 = vmatprep.subr.mxu0 0.0
        %7754 = vmatpush1.xpose.msra.mxu0 0.0
        %7755 = vmatprep.subr.mxu0 0.0
        %7756 = vmatpush1.xpose.msra.mxu0 0.0
        %7757 = vmatprep.subr.mxu0 0.0
        %7758 = vmatpush1.xpose.msra.mxu0 0.0
        %7759 = vmatprep.subr.mxu0 0.0
        %7760 = vmatpush1.xpose.msra.mxu0 0.0
        %7761 = vmatprep.subr.mxu0 0.0
        %7762 = vmatpush1.xpose.msra.mxu0 0.0
        %7763 = vmatprep.subr.mxu0 0.0
        %7764 = vmatpush1.xpose.msra.mxu0 0.0
        %7765 = vmatprep.subr.mxu0 0.0
        %7766 = vmatpush1.xpose.msra.mxu0 0.0
        %7767 = vmatprep.subr.mxu0 0.0
        %7768 = vmatpush1.xpose.msra.mxu0 0.0
        %7769 = vmatprep.subr.mxu0 0.0
        %7770 = vmatpush1.xpose.msra.mxu0 0.0
        %7771 = vmatprep.subr.mxu0 0.0
        %7772 = vmatpush1.xpose.msra.mxu0 0.0
        %7773 = vmatprep.mubr.f32.mxu0 %v7622
        %7774 = vmatmul.mubr.f32.gmra.mrb[0].mxu0 %v7618
        %v7775 = vpop.f32.mrb[0].mxu0
        %v7776 = vadd.f32 %v7706, %v7775
        %v7777 = vpop.f32.mrb[0].mxu0
        %7778 = vdwg.mxu0
        %7779 = vmatprep.subr.mxu0 0.0
        %7780 = vmatpush1.xpose.msra.mxu0 %v7634
        %7781 = vmatprep.subr.mxu0 0.0
        %7782 = vmatpush1.xpose.msra.mxu0 %v7637
        %7783 = vmatprep.subr.mxu0 0.0
        %7784 = vmatpush1.xpose.msra.mxu0 0.0
        %7785 = vmatprep.subr.mxu0 0.0
        %7786 = vmatpush1.xpose.msra.mxu0 0.0
        %7787 = vmatprep.subr.mxu0 0.0
        %7788 = vmatpush1.xpose.msra.mxu0 0.0
        %7789 = vmatprep.subr.mxu0 0.0
        %7790 = vmatpush1.xpose.msra.mxu0 0.0
        %7791 = vmatprep.subr.mxu0 0.0
        %7792 = vmatpush1.xpose.msra.mxu0 0.0
        %7793 = vmatprep.subr.mxu0 0.0
        %7794 = vmatpush1.xpose.msra.mxu0 0.0
        %7795 = vmatprep.subr.mxu0 0.0
        %7796 = vmatpush1.xpose.msra.mxu0 0.0
        %7797 = vmatprep.subr.mxu0 0.0
        %7798 = vmatpush1.xpose.msra.mxu0 0.0
        %7799 = vmatprep.subr.mxu0 0.0
        %7800 = vmatpush1.xpose.msra.mxu0 0.0
        %7801 = vmatprep.subr.mxu0 0.0
        %7802 = vmatpush1.xpose.msra.mxu0 0.0
        %7803 = vmatprep.subr.mxu0 0.0
        %7804 = vmatpush1.xpose.msra.mxu0 0.0
        %7805 = vmatprep.subr.mxu0 0.0
        %7806 = vmatpush1.xpose.msra.mxu0 0.0
        %7807 = vmatprep.subr.mxu0 0.0
        %7808 = vmatpush1.xpose.msra.mxu0 0.0
        %7809 = vmatprep.subr.mxu0 0.0
        %7810 = vmatpush1.xpose.msra.mxu0 0.0
        %7811 = vmatprep.subr.mxu0 0.0
        %7812 = vmatpush1.xpose.msra.mxu0 0.0
        %7813 = vmatprep.subr.mxu0 0.0
        %7814 = vmatpush1.xpose.msra.mxu0 0.0
        %7815 = vmatprep.subr.mxu0 0.0
        %7816 = vmatpush1.xpose.msra.mxu0 0.0
        %7817 = vmatprep.subr.mxu0 0.0
        %7818 = vmatpush1.xpose.msra.mxu0 0.0
        %7819 = vmatprep.subr.mxu0 0.0
        %7820 = vmatpush1.xpose.msra.mxu0 0.0
        %7821 = vmatprep.subr.mxu0 0.0
        %7822 = vmatpush1.xpose.msra.mxu0 0.0
        %7823 = vmatprep.subr.mxu0 0.0
        %7824 = vmatpush1.xpose.msra.mxu0 0.0
        %7825 = vmatprep.subr.mxu0 0.0
        %7826 = vmatpush1.xpose.msra.mxu0 0.0
        %7827 = vmatprep.subr.mxu0 0.0
        %7828 = vmatpush1.xpose.msra.mxu0 0.0
        %7829 = vmatprep.subr.mxu0 0.0
        %7830 = vmatpush1.xpose.msra.mxu0 0.0
        %7831 = vmatprep.subr.mxu0 0.0
        %7832 = vmatpush1.xpose.msra.mxu0 0.0
        %7833 = vmatprep.subr.mxu0 0.0
        %7834 = vmatpush1.xpose.msra.mxu0 0.0
        %7835 = vmatprep.subr.mxu0 0.0
        %7836 = vmatpush1.xpose.msra.mxu0 0.0
        %7837 = vmatprep.subr.mxu0 0.0
        %7838 = vmatpush1.xpose.msra.mxu0 0.0
        %7839 = vmatprep.subr.mxu0 0.0
        %7840 = vmatpush1.xpose.msra.mxu0 0.0
        %7841 = vmatprep.subr.mxu0 0.0
        %7842 = vmatpush1.xpose.msra.mxu0 0.0
        %7843 = vmatprep.mubr.f32.mxu0 0.0
        %7844 = vmatmul.mubr.f32.gmra.mrb[0].mxu0 %v7631
        %v7845 = vpop.f32.mrb[0].mxu0
        %v7846 = vadd.f32 %v7776, %v7845
        %v7847 = vpop.f32.mrb[0].mxu0
        %7848 = vdwg.mxu0
        %v7849 = vlaneseq
        %v7850 = vshrl.u32 %v7849, 7
        %v7851 = vsub.s32 0, %v7850
        %v7852 = vrot.slane %v4540, %v7851
        %v7853 = vlaneseq
        %v7854 = vshrl.u32 %v7853, 7
        %v7855 = vsub.s32 1, %v7854
        %v7856 = vrot.slane %v4540, %v7855
        %v7857 = vlaneseq
        %v7858 = vshrl.u32 %v7857, 7
        %v7859 = vsub.s32 2, %v7858
        %v7860 = vrot.slane %v4540, %v7859
        %v7861 = vlaneseq
        %v7862 = vshrl.u32 %v7861, 7
        %v7863 = vsub.s32 3, %v7862
        %v7864 = vrot.slane %v4540, %v7863
        %v7865 = vlaneseq
        %v7866 = vshrl.u32 %v7865, 7
        %v7867 = vsub.s32 4, %v7866
        %v7868 = vrot.slane %v4540, %v7867
        %v7873 = vsel %vm4726, %v7868, 0
        %v7876 = vsel %vm4726, %v4676, 0
        %v7879 = vsel %vm4726, %v4681, 0
        %7881 = vmatprep.subr.mxu0 %v4673
        %7882 = vmatpush1.xpose.msra.mxu0 %v4672
        %7883 = vmatprep.subr.mxu0 %v4678
        %7884 = vmatpush1.xpose.msra.mxu0 %v4677
        %7885 = vmatprep.subr.mxu0 0.0
        %7886 = vmatpush1.xpose.msra.mxu0 0.0
        %7887 = vmatprep.subr.mxu0 0.0
        %7888 = vmatpush1.xpose.msra.mxu0 0.0
        %7889 = vmatprep.subr.mxu0 0.0
        %7890 = vmatpush1.xpose.msra.mxu0 0.0
        %7891 = vmatprep.subr.mxu0 0.0
        %7892 = vmatpush1.xpose.msra.mxu0 0.0
        %7893 = vmatprep.subr.mxu0 0.0
        %7894 = vmatpush1.xpose.msra.mxu0 0.0
        %7895 = vmatprep.subr.mxu0 0.0
        %7896 = vmatpush1.xpose.msra.mxu0 0.0
        %7897 = vmatprep.subr.mxu0 0.0
        %7898 = vmatpush1.xpose.msra.mxu0 0.0
        %7899 = vmatprep.subr.mxu0 0.0
        %7900 = vmatpush1.xpose.msra.mxu0 0.0
        %7901 = vmatprep.subr.mxu0 0.0
        %7902 = vmatpush1.xpose.msra.mxu0 0.0
        %7903 = vmatprep.subr.mxu0 0.0
        %7904 = vmatpush1.xpose.msra.mxu0 0.0
        %7905 = vmatprep.subr.mxu0 0.0
        %7906 = vmatpush1.xpose.msra.mxu0 0.0
        %7907 = vmatprep.subr.mxu0 0.0
        %7908 = vmatpush1.xpose.msra.mxu0 0.0
        %7909 = vmatprep.subr.mxu0 0.0
        %7910 = vmatpush1.xpose.msra.mxu0 0.0
        %7911 = vmatprep.subr.mxu0 0.0
        %7912 = vmatpush1.xpose.msra.mxu0 0.0
        %7913 = vmatprep.subr.mxu0 0.0
        %7914 = vmatpush1.xpose.msra.mxu0 0.0
        %7915 = vmatprep.subr.mxu0 0.0
        %7916 = vmatpush1.xpose.msra.mxu0 0.0
        %7917 = vmatprep.subr.mxu0 0.0
        %7918 = vmatpush1.xpose.msra.mxu0 0.0
        %7919 = vmatprep.subr.mxu0 0.0
        %7920 = vmatpush1.xpose.msra.mxu0 0.0
        %7921 = vmatprep.subr.mxu0 0.0
        %7922 = vmatpush1.xpose.msra.mxu0 0.0
        %7923 = vmatprep.subr.mxu0 0.0
        %7924 = vmatpush1.xpose.msra.mxu0 0.0
        %7925 = vmatprep.subr.mxu0 0.0
        %7926 = vmatpush1.xpose.msra.mxu0 0.0
        %7927 = vmatprep.subr.mxu0 0.0
        %7928 = vmatpush1.xpose.msra.mxu0 0.0
        %7929 = vmatprep.subr.mxu0 0.0
        %7930 = vmatpush1.xpose.msra.mxu0 0.0
        %7931 = vmatprep.subr.mxu0 0.0
        %7932 = vmatpush1.xpose.msra.mxu0 0.0
        %7933 = vmatprep.subr.mxu0 0.0
        %7934 = vmatpush1.xpose.msra.mxu0 0.0
        %7935 = vmatprep.subr.mxu0 0.0
        %7936 = vmatpush1.xpose.msra.mxu0 0.0
        %7937 = vmatprep.subr.mxu0 0.0
        %7938 = vmatpush1.xpose.msra.mxu0 0.0
        %7939 = vmatprep.subr.mxu0 0.0
        %7940 = vmatpush1.xpose.msra.mxu0 0.0
        %7941 = vmatprep.subr.mxu0 0.0
        %7942 = vmatpush1.xpose.msra.mxu0 0.0
        %7943 = vmatprep.subr.mxu0 0.0
        %7944 = vmatpush1.xpose.msra.mxu0 0.0
        %7945 = vmatprep.mubr.f32.mxu0 %v7856
        %7946 = vmatmul.mubr.f32.gmra.mrb[0].mxu0 %v7852
        %v7947 = vpop.f32.mrb[0].mxu0
        %v7948 = vadd.f32 0.0, %v7947
        %v7949 = vpop.f32.mrb[0].mxu0
        %7950 = vdwg.mxu0
        %7951 = vmatprep.subr.mxu0 %v4675
        %7952 = vmatpush1.xpose.msra.mxu0 %v4674
        %7953 = vmatprep.subr.mxu0 %v4680
        %7954 = vmatpush1.xpose.msra.mxu0 %v4679
        %7955 = vmatprep.subr.mxu0 0.0
        %7956 = vmatpush1.xpose.msra.mxu0 0.0
        %7957 = vmatprep.subr.mxu0 0.0
        %7958 = vmatpush1.xpose.msra.mxu0 0.0
        %7959 = vmatprep.subr.mxu0 0.0
        %7960 = vmatpush1.xpose.msra.mxu0 0.0
        %7961 = vmatprep.subr.mxu0 0.0
        %7962 = vmatpush1.xpose.msra.mxu0 0.0
        %7963 = vmatprep.subr.mxu0 0.0
        %7964 = vmatpush1.xpose.msra.mxu0 0.0
        %7965 = vmatprep.subr.mxu0 0.0
        %7966 = vmatpush1.xpose.msra.mxu0 0.0
        %7967 = vmatprep.subr.mxu0 0.0
        %7968 = vmatpush1.xpose.msra.mxu0 0.0
        %7969 = vmatprep.subr.mxu0 0.0
        %7970 = vmatpush1.xpose.msra.mxu0 0.0
        %7971 = vmatprep.subr.mxu0 0.0
        %7972 = vmatpush1.xpose.msra.mxu0 0.0
        %7973 = vmatprep.subr.mxu0 0.0
        %7974 = vmatpush1.xpose.msra.mxu0 0.0
        %7975 = vmatprep.subr.mxu0 0.0
        %7976 = vmatpush1.xpose.msra.mxu0 0.0
        %7977 = vmatprep.subr.mxu0 0.0
        %7978 = vmatpush1.xpose.msra.mxu0 0.0
        %7979 = vmatprep.subr.mxu0 0.0
        %7980 = vmatpush1.xpose.msra.mxu0 0.0
        %7981 = vmatprep.subr.mxu0 0.0
        %7982 = vmatpush1.xpose.msra.mxu0 0.0
        %7983 = vmatprep.subr.mxu0 0.0
        %7984 = vmatpush1.xpose.msra.mxu0 0.0
        %7985 = vmatprep.subr.mxu0 0.0
        %7986 = vmatpush1.xpose.msra.mxu0 0.0
        %7987 = vmatprep.subr.mxu0 0.0
        %7988 = vmatpush1.xpose.msra.mxu0 0.0
        %7989 = vmatprep.subr.mxu0 0.0
        %7990 = vmatpush1.xpose.msra.mxu0 0.0
        %7991 = vmatprep.subr.mxu0 0.0
        %7992 = vmatpush1.xpose.msra.mxu0 0.0
        %7993 = vmatprep.subr.mxu0 0.0
        %7994 = vmatpush1.xpose.msra.mxu0 0.0
        %7995 = vmatprep.subr.mxu0 0.0
        %7996 = vmatpush1.xpose.msra.mxu0 0.0
        %7997 = vmatprep.subr.mxu0 0.0
        %7998 = vmatpush1.xpose.msra.mxu0 0.0
        %7999 = vmatprep.subr.mxu0 0.0
        %8000 = vmatpush1.xpose.msra.mxu0 0.0
        %8001 = vmatprep.subr.mxu0 0.0
        %8002 = vmatpush1.xpose.msra.mxu0 0.0
        %8003 = vmatprep.subr.mxu0 0.0
        %8004 = vmatpush1.xpose.msra.mxu0 0.0
        %8005 = vmatprep.subr.mxu0 0.0
        %8006 = vmatpush1.xpose.msra.mxu0 0.0
        %8007 = vmatprep.subr.mxu0 0.0
        %8008 = vmatpush1.xpose.msra.mxu0 0.0
        %8009 = vmatprep.subr.mxu0 0.0
        %8010 = vmatpush1.xpose.msra.mxu0 0.0
        %8011 = vmatprep.subr.mxu0 0.0
        %8012 = vmatpush1.xpose.msra.mxu0 0.0
        %8013 = vmatprep.subr.mxu0 0.0
        %8014 = vmatpush1.xpose.msra.mxu0 0.0
        %8015 = vmatprep.mubr.f32.mxu0 %v7864
        %8016 = vmatmul.mubr.f32.gmra.mrb[0].mxu0 %v7860
        %v8017 = vpop.f32.mrb[0].mxu0
        %v8018 = vadd.f32 %v7948, %v8017
        %v8019 = vpop.f32.mrb[0].mxu0
        %8020 = vdwg.mxu0
        %8021 = vmatprep.subr.mxu0 0.0
        %8022 = vmatpush1.xpose.msra.mxu0 %v7876
        %8023 = vmatprep.subr.mxu0 0.0
        %8024 = vmatpush1.xpose.msra.mxu0 %v7879
        %8025 = vmatprep.subr.mxu0 0.0
        %8026 = vmatpush1.xpose.msra.mxu0 0.0
        %8027 = vmatprep.subr.mxu0 0.0
        %8028 = vmatpush1.xpose.msra.mxu0 0.0
        %8029 = vmatprep.subr.mxu0 0.0
        %8030 = vmatpush1.xpose.msra.mxu0 0.0
        %8031 = vmatprep.subr.mxu0 0.0
        %8032 = vmatpush1.xpose.msra.mxu0 0.0
        %8033 = vmatprep.subr.mxu0 0.0
        %8034 = vmatpush1.xpose.msra.mxu0 0.0
        %8035 = vmatprep.subr.mxu0 0.0
        %8036 = vmatpush1.xpose.msra.mxu0 0.0
        %8037 = vmatprep.subr.mxu0 0.0
        %8038 = vmatpush1.xpose.msra.mxu0 0.0
        %8039 = vmatprep.subr.mxu0 0.0
        %8040 = vmatpush1.xpose.msra.mxu0 0.0
        %8041 = vmatprep.subr.mxu0 0.0
        %8042 = vmatpush1.xpose.msra.mxu0 0.0
        %8043 = vmatprep.subr.mxu0 0.0
        %8044 = vmatpush1.xpose.msra.mxu0 0.0
        %8045 = vmatprep.subr.mxu0 0.0
        %8046 = vmatpush1.xpose.msra.mxu0 0.0
        %8047 = vmatprep.subr.mxu0 0.0
        %8048 = vmatpush1.xpose.msra.mxu0 0.0
        %8049 = vmatprep.subr.mxu0 0.0
        %8050 = vmatpush1.xpose.msra.mxu0 0.0
        %8051 = vmatprep.subr.mxu0 0.0
        %8052 = vmatpush1.xpose.msra.mxu0 0.0
        %8053 = vmatprep.subr.mxu0 0.0
        %8054 = vmatpush1.xpose.msra.mxu0 0.0
        %8055 = vmatprep.subr.mxu0 0.0
        %8056 = vmatpush1.xpose.msra.mxu0 0.0
        %8057 = vmatprep.subr.mxu0 0.0
        %8058 = vmatpush1.xpose.msra.mxu0 0.0
        %8059 = vmatprep.subr.mxu0 0.0
        %8060 = vmatpush1.xpose.msra.mxu0 0.0
        %8061 = vmatprep.subr.mxu0 0.0
        %8062 = vmatpush1.xpose.msra.mxu0 0.0
        %8063 = vmatprep.subr.mxu0 0.0
        %8064 = vmatpush1.xpose.msra.mxu0 0.0
        %8065 = vmatprep.subr.mxu0 0.0
        %8066 = vmatpush1.xpose.msra.mxu0 0.0
        %8067 = vmatprep.subr.mxu0 0.0
        %8068 = vmatpush1.xpose.msra.mxu0 0.0
        %8069 = vmatprep.subr.mxu0 0.0
        %8070 = vmatpush1.xpose.msra.mxu0 0.0
        %8071 = vmatprep.subr.mxu0 0.0
        %8072 = vmatpush1.xpose.msra.mxu0 0.0
        %8073 = vmatprep.subr.mxu0 0.0
        %8074 = vmatpush1.xpose.msra.mxu0 0.0
        %8075 = vmatprep.subr.mxu0 0.0
        %8076 = vmatpush1.xpose.msra.mxu0 0.0
        %8077 = vmatprep.subr.mxu0 0.0
        %8078 = vmatpush1.xpose.msra.mxu0 0.0
        %8079 = vmatprep.subr.mxu0 0.0
        %8080 = vmatpush1.xpose.msra.mxu0 0.0
        %8081 = vmatprep.subr.mxu0 0.0
        %8082 = vmatpush1.xpose.msra.mxu0 0.0
        %8083 = vmatprep.subr.mxu0 0.0
        %8084 = vmatpush1.xpose.msra.mxu0 0.0
        %8085 = vmatprep.mubr.f32.mxu0 0.0
        %8086 = vmatmul.mubr.f32.gmra.mrb[0].mxu0 %v7873
        %v8087 = vpop.f32.mrb[0].mxu0
        %v8088 = vadd.f32 %v8018, %v8087
        %v8089 = vpop.f32.mrb[0].mxu0
        %8090 = vdwg.mxu0
        %v8091 = vlaneseq
        %v8092 = vshrl.u32 %v8091, 7
        %v8093 = vsub.s32 0, %v8092
        %v8094 = vrot.slane %v4537, %v8093
        %v8095 = vlaneseq
        %v8096 = vshrl.u32 %v8095, 7
        %v8097 = vsub.s32 1, %v8096
        %v8098 = vrot.slane %v4537, %v8097
        %v8099 = vlaneseq
        %v8100 = vshrl.u32 %v8099, 7
        %v8101 = vsub.s32 2, %v8100
        %v8102 = vrot.slane %v4537, %v8101
        %v8103 = vlaneseq
        %v8104 = vshrl.u32 %v8103, 7
        %v8105 = vsub.s32 3, %v8104
        %v8106 = vrot.slane %v4537, %v8105
        %v8107 = vlaneseq
        %v8108 = vshrl.u32 %v8107, 7
        %v8109 = vsub.s32 4, %v8108
        %v8110 = vrot.slane %v4537, %v8109
        %v8115 = vsel %vm4726, %v8110, 0
        %v8118 = vsel %vm4726, %v4686, 0
        %v8121 = vsel %vm4726, %v4691, 0
        %8123 = vmatprep.subr.mxu0 %v4683
        %8124 = vmatpush1.xpose.msra.mxu0 %v4682
        %8125 = vmatprep.subr.mxu0 %v4688
        %8126 = vmatpush1.xpose.msra.mxu0 %v4687
        %8127 = vmatprep.subr.mxu0 0.0
        %8128 = vmatpush1.xpose.msra.mxu0 0.0
        %8129 = vmatprep.subr.mxu0 0.0
        %8130 = vmatpush1.xpose.msra.mxu0 0.0
        %8131 = vmatprep.subr.mxu0 0.0
        %8132 = vmatpush1.xpose.msra.mxu0 0.0
        %8133 = vmatprep.subr.mxu0 0.0
        %8134 = vmatpush1.xpose.msra.mxu0 0.0
        %8135 = vmatprep.subr.mxu0 0.0
        %8136 = vmatpush1.xpose.msra.mxu0 0.0
        %8137 = vmatprep.subr.mxu0 0.0
        %8138 = vmatpush1.xpose.msra.mxu0 0.0
        %8139 = vmatprep.subr.mxu0 0.0
        %8140 = vmatpush1.xpose.msra.mxu0 0.0
        %8141 = vmatprep.subr.mxu0 0.0
        %8142 = vmatpush1.xpose.msra.mxu0 0.0
        %8143 = vmatprep.subr.mxu0 0.0
        %8144 = vmatpush1.xpose.msra.mxu0 0.0
        %8145 = vmatprep.subr.mxu0 0.0
        %8146 = vmatpush1.xpose.msra.mxu0 0.0
        %8147 = vmatprep.subr.mxu0 0.0
        %8148 = vmatpush1.xpose.msra.mxu0 0.0
        %8149 = vmatprep.subr.mxu0 0.0
        %8150 = vmatpush1.xpose.msra.mxu0 0.0
        %8151 = vmatprep.subr.mxu0 0.0
        %8152 = vmatpush1.xpose.msra.mxu0 0.0
        %8153 = vmatprep.subr.mxu0 0.0
        %8154 = vmatpush1.xpose.msra.mxu0 0.0
        %8155 = vmatprep.subr.mxu0 0.0
        %8156 = vmatpush1.xpose.msra.mxu0 0.0
        %8157 = vmatprep.subr.mxu0 0.0
        %8158 = vmatpush1.xpose.msra.mxu0 0.0
        %8159 = vmatprep.subr.mxu0 0.0
        %8160 = vmatpush1.xpose.msra.mxu0 0.0
        %8161 = vmatprep.subr.mxu0 0.0
        %8162 = vmatpush1.xpose.msra.mxu0 0.0
        %8163 = vmatprep.subr.mxu0 0.0
        %8164 = vmatpush1.xpose.msra.mxu0 0.0
        %8165 = vmatprep.subr.mxu0 0.0
        %8166 = vmatpush1.xpose.msra.mxu0 0.0
        %8167 = vmatprep.subr.mxu0 0.0
        %8168 = vmatpush1.xpose.msra.mxu0 0.0
        %8169 = vmatprep.subr.mxu0 0.0
        %8170 = vmatpush1.xpose.msra.mxu0 0.0
        %8171 = vmatprep.subr.mxu0 0.0
        %8172 = vmatpush1.xpose.msra.mxu0 0.0
        %8173 = vmatprep.subr.mxu0 0.0
        %8174 = vmatpush1.xpose.msra.mxu0 0.0
        %8175 = vmatprep.subr.mxu0 0.0
        %8176 = vmatpush1.xpose.msra.mxu0 0.0
        %8177 = vmatprep.subr.mxu0 0.0
        %8178 = vmatpush1.xpose.msra.mxu0 0.0
        %8179 = vmatprep.subr.mxu0 0.0
        %8180 = vmatpush1.xpose.msra.mxu0 0.0
        %8181 = vmatprep.subr.mxu0 0.0
        %8182 = vmatpush1.xpose.msra.mxu0 0.0
        %8183 = vmatprep.subr.mxu0 0.0
        %8184 = vmatpush1.xpose.msra.mxu0 0.0
        %8185 = vmatprep.subr.mxu0 0.0
        %8186 = vmatpush1.xpose.msra.mxu0 0.0
        %8187 = vmatprep.mubr.f32.mxu0 %v8098
        %8188 = vmatmul.mubr.f32.gmra.mrb[0].mxu0 %v8094
        %v8189 = vpop.f32.mrb[0].mxu0
        %v8190 = vadd.f32 0.0, %v8189
        %v8191 = vpop.f32.mrb[0].mxu0
        %8192 = vdwg.mxu0
        %8193 = vmatprep.subr.mxu0 %v4685
        %8194 = vmatpush1.xpose.msra.mxu0 %v4684
        %8195 = vmatprep.subr.mxu0 %v4690
        %8196 = vmatpush1.xpose.msra.mxu0 %v4689
        %8197 = vmatprep.subr.mxu0 0.0
        %8198 = vmatpush1.xpose.msra.mxu0 0.0
        %8199 = vmatprep.subr.mxu0 0.0
        %8200 = vmatpush1.xpose.msra.mxu0 0.0
        %8201 = vmatprep.subr.mxu0 0.0
        %8202 = vmatpush1.xpose.msra.mxu0 0.0
        %8203 = vmatprep.subr.mxu0 0.0
        %8204 = vmatpush1.xpose.msra.mxu0 0.0
        %8205 = vmatprep.subr.mxu0 0.0
        %8206 = vmatpush1.xpose.msra.mxu0 0.0
        %8207 = vmatprep.subr.mxu0 0.0
        %8208 = vmatpush1.xpose.msra.mxu0 0.0
        %8209 = vmatprep.subr.mxu0 0.0
        %8210 = vmatpush1.xpose.msra.mxu0 0.0
        %8211 = vmatprep.subr.mxu0 0.0
        %8212 = vmatpush1.xpose.msra.mxu0 0.0
        %8213 = vmatprep.subr.mxu0 0.0
        %8214 = vmatpush1.xpose.msra.mxu0 0.0
        %8215 = vmatprep.subr.mxu0 0.0
        %8216 = vmatpush1.xpose.msra.mxu0 0.0
        %8217 = vmatprep.subr.mxu0 0.0
        %8218 = vmatpush1.xpose.msra.mxu0 0.0
        %8219 = vmatprep.subr.mxu0 0.0
        %8220 = vmatpush1.xpose.msra.mxu0 0.0
        %8221 = vmatprep.subr.mxu0 0.0
        %8222 = vmatpush1.xpose.msra.mxu0 0.0
        %8223 = vmatprep.subr.mxu0 0.0
        %8224 = vmatpush1.xpose.msra.mxu0 0.0
        %8225 = vmatprep.subr.mxu0 0.0
        %8226 = vmatpush1.xpose.msra.mxu0 0.0
        %8227 = vmatprep.subr.mxu0 0.0
        %8228 = vmatpush1.xpose.msra.mxu0 0.0
        %8229 = vmatprep.subr.mxu0 0.0
        %8230 = vmatpush1.xpose.msra.mxu0 0.0
        %8231 = vmatprep.subr.mxu0 0.0
        %8232 = vmatpush1.xpose.msra.mxu0 0.0
        %8233 = vmatprep.subr.mxu0 0.0
        %8234 = vmatpush1.xpose.msra.mxu0 0.0
        %8235 = vmatprep.subr.mxu0 0.0
        %8236 = vmatpush1.xpose.msra.mxu0 0.0
        %8237 = vmatprep.subr.mxu0 0.0
        %8238 = vmatpush1.xpose.msra.mxu0 0.0
        %8239 = vmatprep.subr.mxu0 0.0
        %8240 = vmatpush1.xpose.msra.mxu0 0.0
        %8241 = vmatprep.subr.mxu0 0.0
        %8242 = vmatpush1.xpose.msra.mxu0 0.0
        %8243 = vmatprep.subr.mxu0 0.0
        %8244 = vmatpush1.xpose.msra.mxu0 0.0
        %8245 = vmatprep.subr.mxu0 0.0
        %8246 = vmatpush1.xpose.msra.mxu0 0.0
        %8247 = vmatprep.subr.mxu0 0.0
        %8248 = vmatpush1.xpose.msra.mxu0 0.0
        %8249 = vmatprep.subr.mxu0 0.0
        %8250 = vmatpush1.xpose.msra.mxu0 0.0
        %8251 = vmatprep.subr.mxu0 0.0
        %8252 = vmatpush1.xpose.msra.mxu0 0.0
        %8253 = vmatprep.subr.mxu0 0.0
        %8254 = vmatpush1.xpose.msra.mxu0 0.0
        %8255 = vmatprep.subr.mxu0 0.0
        %8256 = vmatpush1.xpose.msra.mxu0 0.0
        %8257 = vmatprep.mubr.f32.mxu0 %v8106
        %8258 = vmatmul.mubr.f32.gmra.mrb[0].mxu0 %v8102
        %v8259 = vpop.f32.mrb[0].mxu0
        %v8260 = vadd.f32 %v8190, %v8259
        %v8261 = vpop.f32.mrb[0].mxu0
        %8262 = vdwg.mxu0
        %8263 = vmatprep.subr.mxu0 0.0
        %8264 = vmatpush1.xpose.msra.mxu0 %v8118
        %8265 = vmatprep.subr.mxu0 0.0
        %8266 = vmatpush1.xpose.msra.mxu0 %v8121
        %8267 = vmatprep.subr.mxu0 0.0
        %8268 = vmatpush1.xpose.msra.mxu0 0.0
        %8269 = vmatprep.subr.mxu0 0.0
        %8270 = vmatpush1.xpose.msra.mxu0 0.0
        %8271 = vmatprep.subr.mxu0 0.0
        %8272 = vmatpush1.xpose.msra.mxu0 0.0
        %8273 = vmatprep.subr.mxu0 0.0
        %8274 = vmatpush1.xpose.msra.mxu0 0.0
        %8275 = vmatprep.subr.mxu0 0.0
        %8276 = vmatpush1.xpose.msra.mxu0 0.0
        %8277 = vmatprep.subr.mxu0 0.0
        %8278 = vmatpush1.xpose.msra.mxu0 0.0
        %8279 = vmatprep.subr.mxu0 0.0
        %8280 = vmatpush1.xpose.msra.mxu0 0.0
        %8281 = vmatprep.subr.mxu0 0.0
        %8282 = vmatpush1.xpose.msra.mxu0 0.0
        %8283 = vmatprep.subr.mxu0 0.0
        %8284 = vmatpush1.xpose.msra.mxu0 0.0
        %8285 = vmatprep.subr.mxu0 0.0
        %8286 = vmatpush1.xpose.msra.mxu0 0.0
        %8287 = vmatprep.subr.mxu0 0.0
        %8288 = vmatpush1.xpose.msra.mxu0 0.0
        %8289 = vmatprep.subr.mxu0 0.0
        %8290 = vmatpush1.xpose.msra.mxu0 0.0
        %8291 = vmatprep.subr.mxu0 0.0
        %8292 = vmatpush1.xpose.msra.mxu0 0.0
        %8293 = vmatprep.subr.mxu0 0.0
        %8294 = vmatpush1.xpose.msra.mxu0 0.0
        %8295 = vmatprep.subr.mxu0 0.0
        %8296 = vmatpush1.xpose.msra.mxu0 0.0
        %8297 = vmatprep.subr.mxu0 0.0
        %8298 = vmatpush1.xpose.msra.mxu0 0.0
        %8299 = vmatprep.subr.mxu0 0.0
        %8300 = vmatpush1.xpose.msra.mxu0 0.0
        %8301 = vmatprep.subr.mxu0 0.0
        %8302 = vmatpush1.xpose.msra.mxu0 0.0
        %8303 = vmatprep.subr.mxu0 0.0
        %8304 = vmatpush1.xpose.msra.mxu0 0.0
        %8305 = vmatprep.subr.mxu0 0.0
        %8306 = vmatpush1.xpose.msra.mxu0 0.0
        %8307 = vmatprep.subr.mxu0 0.0
        %8308 = vmatpush1.xpose.msra.mxu0 0.0
        %8309 = vmatprep.subr.mxu0 0.0
        %8310 = vmatpush1.xpose.msra.mxu0 0.0
        %8311 = vmatprep.subr.mxu0 0.0
        %8312 = vmatpush1.xpose.msra.mxu0 0.0
        %8313 = vmatprep.subr.mxu0 0.0
        %8314 = vmatpush1.xpose.msra.mxu0 0.0
        %8315 = vmatprep.subr.mxu0 0.0
        %8316 = vmatpush1.xpose.msra.mxu0 0.0
        %8317 = vmatprep.subr.mxu0 0.0
        %8318 = vmatpush1.xpose.msra.mxu0 0.0
        %8319 = vmatprep.subr.mxu0 0.0
        %8320 = vmatpush1.xpose.msra.mxu0 0.0
        %8321 = vmatprep.subr.mxu0 0.0
        %8322 = vmatpush1.xpose.msra.mxu0 0.0
        %8323 = vmatprep.subr.mxu0 0.0
        %8324 = vmatpush1.xpose.msra.mxu0 0.0
        %8325 = vmatprep.subr.mxu0 0.0
        %8326 = vmatpush1.xpose.msra.mxu0 0.0
        %8327 = vmatprep.mubr.f32.mxu0 0.0
        %8328 = vmatmul.mubr.f32.gmra.mrb[0].mxu0 %v8115
        %v8329 = vpop.f32.mrb[0].mxu0
        %v8330 = vadd.f32 %v8260, %v8329
        %v8331 = vpop.f32.mrb[0].mxu0
        %8332 = vdwg.mxu0
        %v8333 = vlaneseq
        %v8334 = vshrl.u32 %v8333, 7
        %v8335 = vsub.s32 0, %v8334
        %v8336 = vrot.slane %v4541, %v8335
        %v8337 = vlaneseq
        %v8338 = vshrl.u32 %v8337, 7
        %v8339 = vsub.s32 1, %v8338
        %v8340 = vrot.slane %v4541, %v8339
        %v8341 = vlaneseq
        %v8342 = vshrl.u32 %v8341, 7
        %v8343 = vsub.s32 2, %v8342
        %v8344 = vrot.slane %v4541, %v8343
        %v8345 = vlaneseq
        %v8346 = vshrl.u32 %v8345, 7
        %v8347 = vsub.s32 3, %v8346
        %v8348 = vrot.slane %v4541, %v8347
        %v8349 = vlaneseq
        %v8350 = vshrl.u32 %v8349, 7
        %v8351 = vsub.s32 4, %v8350
        %v8352 = vrot.slane %v4541, %v8351
        %v8357 = vsel %vm4726, %v8352, 0
        %v8360 = vsel %vm4726, %v4696, 0
        %v8363 = vsel %vm4726, %v4701, 0
        %8365 = vmatprep.subr.mxu0 %v4693
        %8366 = vmatpush1.xpose.msra.mxu0 %v4692
        %8367 = vmatprep.subr.mxu0 %v4698
        %8368 = vmatpush1.xpose.msra.mxu0 %v4697
        %8369 = vmatprep.subr.mxu0 0.0
        %8370 = vmatpush1.xpose.msra.mxu0 0.0
        %8371 = vmatprep.subr.mxu0 0.0
        %8372 = vmatpush1.xpose.msra.mxu0 0.0
        %8373 = vmatprep.subr.mxu0 0.0
        %8374 = vmatpush1.xpose.msra.mxu0 0.0
        %8375 = vmatprep.subr.mxu0 0.0
        %8376 = vmatpush1.xpose.msra.mxu0 0.0
        %8377 = vmatprep.subr.mxu0 0.0
        %8378 = vmatpush1.xpose.msra.mxu0 0.0
        %8379 = vmatprep.subr.mxu0 0.0
        %8380 = vmatpush1.xpose.msra.mxu0 0.0
        %8381 = vmatprep.subr.mxu0 0.0
        %8382 = vmatpush1.xpose.msra.mxu0 0.0
        %8383 = vmatprep.subr.mxu0 0.0
        %8384 = vmatpush1.xpose.msra.mxu0 0.0
        %8385 = vmatprep.subr.mxu0 0.0
        %8386 = vmatpush1.xpose.msra.mxu0 0.0
        %8387 = vmatprep.subr.mxu0 0.0
        %8388 = vmatpush1.xpose.msra.mxu0 0.0
        %8389 = vmatprep.subr.mxu0 0.0
        %8390 = vmatpush1.xpose.msra.mxu0 0.0
        %8391 = vmatprep.subr.mxu0 0.0
        %8392 = vmatpush1.xpose.msra.mxu0 0.0
        %8393 = vmatprep.subr.mxu0 0.0
        %8394 = vmatpush1.xpose.msra.mxu0 0.0
        %8395 = vmatprep.subr.mxu0 0.0
        %8396 = vmatpush1.xpose.msra.mxu0 0.0
        %8397 = vmatprep.subr.mxu0 0.0
        %8398 = vmatpush1.xpose.msra.mxu0 0.0
        %8399 = vmatprep.subr.mxu0 0.0
        %8400 = vmatpush1.xpose.msra.mxu0 0.0
        %8401 = vmatprep.subr.mxu0 0.0
        %8402 = vmatpush1.xpose.msra.mxu0 0.0
        %8403 = vmatprep.subr.mxu0 0.0
        %8404 = vmatpush1.xpose.msra.mxu0 0.0
        %8405 = vmatprep.subr.mxu0 0.0
        %8406 = vmatpush1.xpose.msra.mxu0 0.0
        %8407 = vmatprep.subr.mxu0 0.0
        %8408 = vmatpush1.xpose.msra.mxu0 0.0
        %8409 = vmatprep.subr.mxu0 0.0
        %8410 = vmatpush1.xpose.msra.mxu0 0.0
        %8411 = vmatprep.subr.mxu0 0.0
        %8412 = vmatpush1.xpose.msra.mxu0 0.0
        %8413 = vmatprep.subr.mxu0 0.0
        %8414 = vmatpush1.xpose.msra.mxu0 0.0
        %8415 = vmatprep.subr.mxu0 0.0
        %8416 = vmatpush1.xpose.msra.mxu0 0.0
        %8417 = vmatprep.subr.mxu0 0.0
        %8418 = vmatpush1.xpose.msra.mxu0 0.0
        %8419 = vmatprep.subr.mxu0 0.0
        %8420 = vmatpush1.xpose.msra.mxu0 0.0
        %8421 = vmatprep.subr.mxu0 0.0
        %8422 = vmatpush1.xpose.msra.mxu0 0.0
        %8423 = vmatprep.subr.mxu0 0.0
        %8424 = vmatpush1.xpose.msra.mxu0 0.0
        %8425 = vmatprep.subr.mxu0 0.0
        %8426 = vmatpush1.xpose.msra.mxu0 0.0
        %8427 = vmatprep.subr.mxu0 0.0
        %8428 = vmatpush1.xpose.msra.mxu0 0.0
        %8429 = vmatprep.mubr.f32.mxu0 %v8340
        %8430 = vmatmul.mubr.f32.gmra.mrb[0].mxu0 %v8336
        %v8431 = vpop.f32.mrb[0].mxu0
        %v8432 = vadd.f32 0.0, %v8431
        %v8433 = vpop.f32.mrb[0].mxu0
        %8434 = vdwg.mxu0
        %8435 = vmatprep.subr.mxu0 %v4695
        %8436 = vmatpush1.xpose.msra.mxu0 %v4694
        %8437 = vmatprep.subr.mxu0 %v4700
        %8438 = vmatpush1.xpose.msra.mxu0 %v4699
        %8439 = vmatprep.subr.mxu0 0.0
        %8440 = vmatpush1.xpose.msra.mxu0 0.0
        %8441 = vmatprep.subr.mxu0 0.0
        %8442 = vmatpush1.xpose.msra.mxu0 0.0
        %8443 = vmatprep.subr.mxu0 0.0
        %8444 = vmatpush1.xpose.msra.mxu0 0.0
        %8445 = vmatprep.subr.mxu0 0.0
        %8446 = vmatpush1.xpose.msra.mxu0 0.0
        %8447 = vmatprep.subr.mxu0 0.0
        %8448 = vmatpush1.xpose.msra.mxu0 0.0
        %8449 = vmatprep.subr.mxu0 0.0
        %8450 = vmatpush1.xpose.msra.mxu0 0.0
        %8451 = vmatprep.subr.mxu0 0.0
        %8452 = vmatpush1.xpose.msra.mxu0 0.0
        %8453 = vmatprep.subr.mxu0 0.0
        %8454 = vmatpush1.xpose.msra.mxu0 0.0
        %8455 = vmatprep.subr.mxu0 0.0
        %8456 = vmatpush1.xpose.msra.mxu0 0.0
        %8457 = vmatprep.subr.mxu0 0.0
        %8458 = vmatpush1.xpose.msra.mxu0 0.0
        %8459 = vmatprep.subr.mxu0 0.0
        %8460 = vmatpush1.xpose.msra.mxu0 0.0
        %8461 = vmatprep.subr.mxu0 0.0
        %8462 = vmatpush1.xpose.msra.mxu0 0.0
        %8463 = vmatprep.subr.mxu0 0.0
        %8464 = vmatpush1.xpose.msra.mxu0 0.0
        %8465 = vmatprep.subr.mxu0 0.0
        %8466 = vmatpush1.xpose.msra.mxu0 0.0
        %8467 = vmatprep.subr.mxu0 0.0
        %8468 = vmatpush1.xpose.msra.mxu0 0.0
        %8469 = vmatprep.subr.mxu0 0.0
        %8470 = vmatpush1.xpose.msra.mxu0 0.0
        %8471 = vmatprep.subr.mxu0 0.0
        %8472 = vmatpush1.xpose.msra.mxu0 0.0
        %8473 = vmatprep.subr.mxu0 0.0
        %8474 = vmatpush1.xpose.msra.mxu0 0.0
        %8475 = vmatprep.subr.mxu0 0.0
        %8476 = vmatpush1.xpose.msra.mxu0 0.0
        %8477 = vmatprep.subr.mxu0 0.0
        %8478 = vmatpush1.xpose.msra.mxu0 0.0
        %8479 = vmatprep.subr.mxu0 0.0
        %8480 = vmatpush1.xpose.msra.mxu0 0.0
        %8481 = vmatprep.subr.mxu0 0.0
        %8482 = vmatpush1.xpose.msra.mxu0 0.0
        %8483 = vmatprep.subr.mxu0 0.0
        %8484 = vmatpush1.xpose.msra.mxu0 0.0
        %8485 = vmatprep.subr.mxu0 0.0
        %8486 = vmatpush1.xpose.msra.mxu0 0.0
        %8487 = vmatprep.subr.mxu0 0.0
        %8488 = vmatpush1.xpose.msra.mxu0 0.0
        %8489 = vmatprep.subr.mxu0 0.0
        %8490 = vmatpush1.xpose.msra.mxu0 0.0
        %8491 = vmatprep.subr.mxu0 0.0
        %8492 = vmatpush1.xpose.msra.mxu0 0.0
        %8493 = vmatprep.subr.mxu0 0.0
        %8494 = vmatpush1.xpose.msra.mxu0 0.0
        %8495 = vmatprep.subr.mxu0 0.0
        %8496 = vmatpush1.xpose.msra.mxu0 0.0
        %8497 = vmatprep.subr.mxu0 0.0
        %8498 = vmatpush1.xpose.msra.mxu0 0.0
        %8499 = vmatprep.mubr.f32.mxu0 %v8348
        %8500 = vmatmul.mubr.f32.gmra.mrb[0].mxu0 %v8344
        %v8501 = vpop.f32.mrb[0].mxu0
        %v8502 = vadd.f32 %v8432, %v8501
        %v8503 = vpop.f32.mrb[0].mxu0
        %8504 = vdwg.mxu0
        %8505 = vmatprep.subr.mxu0 0.0
        %8506 = vmatpush1.xpose.msra.mxu0 %v8360
        %8507 = vmatprep.subr.mxu0 0.0
        %8508 = vmatpush1.xpose.msra.mxu0 %v8363
        %8509 = vmatprep.subr.mxu0 0.0
        %8510 = vmatpush1.xpose.msra.mxu0 0.0
        %8511 = vmatprep.subr.mxu0 0.0
        %8512 = vmatpush1.xpose.msra.mxu0 0.0
        %8513 = vmatprep.subr.mxu0 0.0
        %8514 = vmatpush1.xpose.msra.mxu0 0.0
        %8515 = vmatprep.subr.mxu0 0.0
        %8516 = vmatpush1.xpose.msra.mxu0 0.0
        %8517 = vmatprep.subr.mxu0 0.0
        %8518 = vmatpush1.xpose.msra.mxu0 0.0
        %8519 = vmatprep.subr.mxu0 0.0
        %8520 = vmatpush1.xpose.msra.mxu0 0.0
        %8521 = vmatprep.subr.mxu0 0.0
        %8522 = vmatpush1.xpose.msra.mxu0 0.0
        %8523 = vmatprep.subr.mxu0 0.0
        %8524 = vmatpush1.xpose.msra.mxu0 0.0
        %8525 = vmatprep.subr.mxu0 0.0
        %8526 = vmatpush1.xpose.msra.mxu0 0.0
        %8527 = vmatprep.subr.mxu0 0.0
        %8528 = vmatpush1.xpose.msra.mxu0 0.0
        %8529 = vmatprep.subr.mxu0 0.0
        %8530 = vmatpush1.xpose.msra.mxu0 0.0
        %8531 = vmatprep.subr.mxu0 0.0
        %8532 = vmatpush1.xpose.msra.mxu0 0.0
        %8533 = vmatprep.subr.mxu0 0.0
        %8534 = vmatpush1.xpose.msra.mxu0 0.0
        %8535 = vmatprep.subr.mxu0 0.0
        %8536 = vmatpush1.xpose.msra.mxu0 0.0
        %8537 = vmatprep.subr.mxu0 0.0
        %8538 = vmatpush1.xpose.msra.mxu0 0.0
        %8539 = vmatprep.subr.mxu0 0.0
        %8540 = vmatpush1.xpose.msra.mxu0 0.0
        %8541 = vmatprep.subr.mxu0 0.0
        %8542 = vmatpush1.xpose.msra.mxu0 0.0
        %8543 = vmatprep.subr.mxu0 0.0
        %8544 = vmatpush1.xpose.msra.mxu0 0.0
        %8545 = vmatprep.subr.mxu0 0.0
        %8546 = vmatpush1.xpose.msra.mxu0 0.0
        %8547 = vmatprep.subr.mxu0 0.0
        %8548 = vmatpush1.xpose.msra.mxu0 0.0
        %8549 = vmatprep.subr.mxu0 0.0
        %8550 = vmatpush1.xpose.msra.mxu0 0.0
        %8551 = vmatprep.subr.mxu0 0.0
        %8552 = vmatpush1.xpose.msra.mxu0 0.0
        %8553 = vmatprep.subr.mxu0 0.0
        %8554 = vmatpush1.xpose.msra.mxu0 0.0
        %8555 = vmatprep.subr.mxu0 0.0
        %8556 = vmatpush1.xpose.msra.mxu0 0.0
        %8557 = vmatprep.subr.mxu0 0.0
        %8558 = vmatpush1.xpose.msra.mxu0 0.0
        %8559 = vmatprep.subr.mxu0 0.0
        %8560 = vmatpush1.xpose.msra.mxu0 0.0
        %8561 = vmatprep.subr.mxu0 0.0
        %8562 = vmatpush1.xpose.msra.mxu0 0.0
        %8563 = vmatprep.subr.mxu0 0.0
        %8564 = vmatpush1.xpose.msra.mxu0 0.0
        %8565 = vmatprep.subr.mxu0 0.0
        %8566 = vmatpush1.xpose.msra.mxu0 0.0
        %8567 = vmatprep.subr.mxu0 0.0
        %8568 = vmatpush1.xpose.msra.mxu0 0.0
        %8569 = vmatprep.mubr.f32.mxu0 0.0
        %8570 = vmatmul.mubr.f32.gmra.mrb[0].mxu0 %v8357
        %v8571 = vpop.f32.mrb[0].mxu0
        %v8572 = vadd.f32 %v8502, %v8571
        %v8573 = vpop.f32.mrb[0].mxu0
        %8574 = vdwg.mxu0
        %vm8575 = vcmask 73728
        %v8576 = vsel %vm8575, %v4942, 0.0
        %v8577 = vsel %vm8575, %v5184, 0.0
        %v8578 = vadd.f32 %v8576, %v8577
        %v8579 = vsel %vm8575, %v5426, 0.0
        %v8580 = vadd.f32 %v8578, %v8579
        %v8581 = vsel %vm8575, %v5668, 0.0
        %v8582 = vadd.f32 %v8580, %v8581
        %v8583 = vsel %vm8575, %v5910, 0.0
        %v8584 = vadd.f32 %v8582, %v8583
        %v8585 = vsel %vm8575, %v6152, 0.0
        %v8586 = vadd.f32 %v8584, %v8585
        %v8587 = vsel %vm8575, %v6394, 0.0
        %v8588 = vadd.f32 %v8586, %v8587
        %v8589 = vsel %vm8575, %v6636, 0.0
        %v8590 = vadd.f32 %v8588, %v8589
        %v8591 = vsel %vm8575, %v6878, 0.0
        %v8592 = vadd.f32 %v8590, %v8591
        %v8593 = vsel %vm8575, %v7120, 0.0
        %v8594 = vadd.f32 %v8592, %v8593
        %v8595 = vsel %vm8575, %v7362, 0.0
        %v8596 = vadd.f32 %v8594, %v8595
        %v8597 = vsel %vm8575, %v7604, 0.0
        %v8598 = vadd.f32 %v8596, %v8597
        %v8599 = vsel %vm8575, %v7846, 0.0
        %v8600 = vadd.f32 %v8598, %v8599
        %v8601 = vsel %vm8575, %v8088, 0.0
        %v8602 = vadd.f32 %v8600, %v8601
        %v8603 = vsel %vm8575, %v8330, 0.0
        %v8604 = vadd.f32 %v8602, %v8603
        %v8605 = vsel %vm8575, %v8572, 0.0
        %v8606 = vadd.f32 %v8604, %v8605
        %v8607 = vld [vmem:[%s8] sm:$0x1]
        %v8608 = vadd.f32 %v8606, %v8607
        %v8609 = vsel %vm8575, %v8608, -inf
        %8610 = vmax.xlane.f32.xlu0 %v8609
        %v8611 = vpop.xlane.xlu0 %8610
        %v8612 = vsub.f32 %v8608, %v8611
        %v8613 = vmul.f32 %v8612, 1.442695
        %v8614 = vpow.pop %v8613
        %v8615 = vsel %vm8575, %v8614, 0.0
        %8616 = vadd.xlane.f32.xlu0 %v8615
        %v8617 = vpop.xlane.xlu0 %8616
        %v8618 = vrcp.pop %v8617
        %v8619 = vmul.f32 %v8614, %v8618
        %8620 = vst.msk [vmem:[%s322] sm:$0x1] %vm8575, %v8619
        %s8621 = sand.u32 %s225, 1
        %s8622 = scalar_lea.sflag [#allocation3], %s8621
        %s8623 = sand.u32 %s225, 1
        %s8624 = scalar_lea.vmem [#allocation2], %s8623
        // Predicated region
        $region57: #{tpu_custom_call.1} parent=55 // pred_check
          %p8625 = pneg %p235
        $region58: #{tpu_custom_call.1} parent=55 // pred_check_branch
          %8627 = sbr.rel (%p8625) target = $region60
        $region59: #{tpu_custom_call.1} parent=55 // pred_region
          %s8629 = ssub.s32 16, 16
          %8630 = vsyncadd %s8622, %s8629
          %s8631 = smul.addr %s23, 16
          %s8632 = scalar_lea.hbm %s9, %s8631
          %s8634 = sshll.u32 %s8624, 4
          %s8635 = int_to_ptr.vmem [resolvable:$true] %s8634
          %8637 = dma.vmem_to_hbm [thread:$0]  %s8635, 16, %s8632, %s8622
        $region60: #{tpu_custom_call.1} parent=55 // pred_fallthru
          _
      $region56: #{tpu_custom_call.1} parent=5 // pred_fallthru
        _
      %p8638 = scmp.le.s32.totalorder 2, %s18
      // Predicated region
      $region61: #{tpu_custom_call.1} parent=5 // pred_check
        %p8639 = pneg %p8638
      $region62: #{tpu_custom_call.1} parent=5 // pred_check_branch
        %8641 = sbr.rel (%p8639) target = $region64
      $region63: #{tpu_custom_call.1} parent=5 // pred_region
        %s8642 = ssub.s32 %s18, 2
        // Predicated region
        $region65: #{tpu_custom_call.1} parent=63 // pred_check
          %p8643 = pneg %p241
        $region66: #{tpu_custom_call.1} parent=63 // pred_check_branch
          %8645 = sbr.rel (%p8643) target = $region68
        $region67: #{tpu_custom_call.1} parent=63 // pred_region
          %s8646 = sand.u32 %s226, 1
          %s8647 = scalar_lea.sflag [#allocation3], %s8646
          %s8648 = sand.u32 %s226, 1
          %s8649 = scalar_lea.vmem [#allocation2], %s8648
          %8650 = dma.done %s8647, 16
        $region68: #{tpu_custom_call.1} parent=63 // pred_fallthru
          _
      $region64: #{tpu_custom_call.1} parent=5 // pred_fallthru
        _
    $region6: #{tpu_custom_call.1} parent=1 // loop_footer
      %s22 = sadd.s32 1, %s18
    $region7: #{tpu_custom_call.1} parent=1 // loop_footer_branch
      %17 = sbr.rel target = $region3
    $region8: #{tpu_custom_call.1} parent=1 // loop_exit
      _
    %8651 = vsyncpa [#allocation3], 1
    %s8652 = scalar_lea.sflag [#allocation3], 1
    %8653 = vsyncpa %s8652, 1

</llo_original>
